<compile_context>
chip_gen: v5e
topology: v5e:2x2
jax: 0.10.0
libtpu: 0.0.40
codegen_flags: <defaults>
</compile_context>

<pallas_src>
import functools
import math

import jax
import jax.numpy as jnp
from jax import lax
from jax.experimental import pallas as pl
from jax.experimental.pallas import tpu as pltpu


# ----------------------------- in-kernel helpers ----------------------------

def _erf(x):
    # Abramowitz & Stegun 7.1.26 rational approximation (|err| < 1.5e-7, i.e.
    # f32-accurate), built only from exp / mul / add so it lowers on Mosaic.
    p = 0.3275911
    a1, a2, a3, a4, a5 = (0.254829592, -0.284496736, 1.421413741,
                          -1.453152027, 1.061405429)
    sgn = jnp.where(x < 0.0, -1.0, 1.0)
    ax = jnp.abs(x)
    t = 1.0 / (1.0 + p * ax)
    poly = ((((a5 * t + a4) * t + a3) * t + a2) * t + a1) * t
    return sgn * (1.0 - poly * jnp.exp(-ax * ax))


def _gelu_exact(x):
    # Matches PyTorch F.gelu(approximate='none') = x * Phi(x).
    # TODO(synk): erf here is the A&S rational approximation (f32-accurate),
    # not bit-identical to torch's exact erf.
    return 0.5 * x * (1.0 + _erf(x * (1.0 / math.sqrt(2.0))))


def _layernorm(x, g, b, eps):
    mean = jnp.mean(x, axis=-1, keepdims=True)
    var = jnp.mean(jnp.square(x - mean), axis=-1, keepdims=True)
    return (x - mean) * lax.rsqrt(var + eps) * g + b


def _multihead_attn(q, k, v, mask, wo, bo, nhead, scale, attn_sc):
    """q:[Tq,E]  k,v:[Tk,E]  mask:[Tq,Tk] or None.  Returns [Tq,E]."""
    Tq, E = q.shape
    dh = E // nhead
    q = q * scale                       # scale once, not per-head score tile
    for h in range(nhead):              # static unroll; all slices are static
        lo = h * dh
        qh = q[:, lo:lo + dh]
        kh = k[:, lo:lo + dh]
        vh = v[:, lo:lo + dh]
        # contract last dims -> no explicit K transpose materialized
        s = lax.dot_general(qh, kh, (((1,), (1,)), ((), ())),
                            preferred_element_type=jnp.float32)
        if mask is not None:
            s = s + mask
        s = s - jnp.max(s, axis=-1, keepdims=True)
        p = jnp.exp(s)
        p = p / jnp.sum(p, axis=-1, keepdims=True)
        attn_sc[0:Tq, lo:lo + dh] = jnp.dot(p, vh,
                                            preferred_element_type=jnp.float32)
    return jnp.dot(attn_sc[0:Tq, :], wo,
                   preferred_element_type=jnp.float32) + bo


# --------------------------- single fused kernel -----------------------------

def _fused_transformer_kernel(
        # per-batch inputs
        src_ref, tgt_ref,
        # shared constants / weights
        mask_src_ref, mask_tgt_ref,
        esw_ref, esb_ref, etw_ref, etb_ref, pes_ref, pet_ref,
        e_wqkv, e_bqkv, e_wo, e_bo, e_n1g, e_n1b,
        e_ff1w, e_ff1b, e_ff2w, e_ff2b, e_n2g, e_n2b,
        encng_ref, encnb_ref,
        d_sa_wqkv, d_sa_bqkv, d_sa_wo, d_sa_bo, d_n1g, d_n1b,
        d_ca_wq, d_ca_bq, d_ca_wkv, d_ca_bkv, d_ca_wo, d_ca_bo, d_n2g, d_n2b,
        d_ff1w, d_ff1b, d_ff2w, d_ff2b, d_n3g, d_n3b,
        decng_ref, decnb_ref, outw_ref, outb_ref,
        # output + scratch
        o_ref, attn_sc,
        *, num_enc, num_dec, nhead, scale, eps):
    E = esw_ref.shape[1]

    # --- source embedding + positional encoding (dropout = identity, eval) ---
    x = (jnp.dot(src_ref[0], esw_ref[...], preferred_element_type=jnp.float32)
         + esb_ref[...] + pes_ref[...])
    mask_src = mask_src_ref[...]

    # --- encoder stack (post-LN, gelu) ---
    for l in range(num_enc):
        qkv = jnp.dot(x, e_wqkv[l], preferred_element_type=jnp.float32) + e_bqkv[l]
        attn = _multihead_attn(qkv[:, :E], qkv[:, E:2 * E], qkv[:, 2 * E:],
                               mask_src, e_wo[l], e_bo[l], nhead, scale, attn_sc)
        x = _layernorm(x + attn, e_n1g[l], e_n1b[l], eps)
        h = _gelu_exact(jnp.dot(x, e_ff1w[l],
                                preferred_element_type=jnp.float32) + e_ff1b[l])
        ff = jnp.dot(h, e_ff2w[l], preferred_element_type=jnp.float32) + e_ff2b[l]
        x = _layernorm(x + ff, e_n2g[l], e_n2b[l], eps)
    mem = _layernorm(x, encng_ref[...], encnb_ref[...], eps)

    # --- target embedding + positional encoding ---
    y = (jnp.dot(tgt_ref[0], etw_ref[...], preferred_element_type=jnp.float32)
         + etb_ref[...] + pet_ref[...])
    mask_tgt = mask_tgt_ref[...]

    # --- decoder stack ---
    for l in range(num_dec):
        # self-attention (causal additive mask)
        qkv = jnp.dot(y, d_sa_wqkv[l],
                      preferred_element_type=jnp.float32) + d_sa_bqkv[l]
        sa = _multihead_attn(qkv[:, :E], qkv[:, E:2 * E], qkv[:, 2 * E:],
                             mask_tgt, d_sa_wo[l], d_sa_bo[l],
                             nhead, scale, attn_sc)
        y = _layernorm(y + sa, d_n1g[l], d_n1b[l], eps)
        # cross-attention (memory_mask=None in the PyTorch forward -> no mask)
        q = jnp.dot(y, d_ca_wq[l], preferred_element_type=jnp.float32) + d_ca_bq[l]
        kv = jnp.dot(mem, d_ca_wkv[l],
                     preferred_element_type=jnp.float32) + d_ca_bkv[l]
        ca = _multihead_attn(q, kv[:, :E], kv[:, E:],
                             None, d_ca_wo[l], d_ca_bo[l], nhead, scale, attn_sc)
        y = _layernorm(y + ca, d_n2g[l], d_n2b[l], eps)
        # feed-forward
        h = _gelu_exact(jnp.dot(y, d_ff1w[l],
                                preferred_element_type=jnp.float32) + d_ff1b[l])
        ff = jnp.dot(h, d_ff2w[l], preferred_element_type=jnp.float32) + d_ff2b[l]
        y = _layernorm(y + ff, d_n3g[l], d_n3b[l], eps)

    # --- final decoder norm fused with output projection ---
    y = _layernorm(y, decng_ref[...], decnb_ref[...], eps)
    o_ref[0] = (jnp.dot(y, outw_ref[...], preferred_element_type=jnp.float32)
                + outb_ref[...]).astype(o_ref.dtype)


# ----------------------------- pallas_call wrapper ---------------------------

def _const_spec(a):
    # full-array block, same block index on every grid step -> fetched once
    idx = (0,) * a.ndim
    return pl.BlockSpec(a.shape, lambda b: idx)


def transformer_forward(params, src, tgt, mask_src, mask_tgt, nhead, eps=1e-5):
    B, S, _ = src.shape
    _, T, _ = tgt.shape
    E = params["emb_src_w"].shape[1]
    Dout = params["out_w"].shape[1]
    enc, dec = params["enc"], params["dec"]
    num_enc = enc["wqkv"].shape[0]
    num_dec = dec["sa_wqkv"].shape[0]
    scale = 1.0 / math.sqrt(E // nhead)

    pe_src = params["pe"][:S]
    pe_tgt = params["pe"][:T]

    const_inputs = [
        mask_src, mask_tgt,
        params["emb_src_w"], params["emb_src_b"],
        params["emb_tgt_w"], params["emb_tgt_b"],
        pe_src, pe_tgt,
        enc["wqkv"], enc["bqkv"], enc["wo"], enc["bo"],
        enc["n1g"], enc["n1b"], enc["ff1w"], enc["ff1b"],
        enc["ff2w"], enc["ff2b"], enc["n2g"], enc["n2b"],
        params["enc_norm_g"], params["enc_norm_b"],
        dec["sa_wqkv"], dec["sa_bqkv"], dec["sa_wo"], dec["sa_bo"],
        dec["n1g"], dec["n1b"],
        dec["ca_wq"], dec["ca_bq"], dec["ca_wkv"], dec["ca_bkv"],
        dec["ca_wo"], dec["ca_bo"], dec["n2g"], dec["n2b"],
        dec["ff1w"], dec["ff1b"], dec["ff2w"], dec["ff2b"],
        dec["n3g"], dec["n3b"],
        params["dec_norm_g"], params["dec_norm_b"],
        params["out_w"], params["out_b"],
    ]

    in_specs = [
        pl.BlockSpec((1, S, src.shape[-1]), lambda b: (b, 0, 0)),
        pl.BlockSpec((1, T, tgt.shape[-1]), lambda b: (b, 0, 0)),
    ] + [_const_spec(a) for a in const_inputs]

    kernel = functools.partial(_fused_transformer_kernel,
                               num_enc=num_enc, num_dec=num_dec,
                               nhead=nhead, scale=scale, eps=eps)

    return pl.pallas_call(
        kernel,
        out_shape=jax.ShapeDtypeStruct((B, T, Dout), jnp.float32),
        grid=(B,),
        in_specs=in_specs,
        out_specs=pl.BlockSpec((1, T, Dout), lambda b: (b, 0, 0)),
        scratch_shapes=[pltpu.VMEM((max(S, T), E), jnp.float32)],
        compiler_params=pltpu.CompilerParams(
            dimension_semantics=("parallel",)),
    )(src, tgt, *const_inputs)


# ----------------------------- deterministic params --------------------------

def init_params(key, num_enc, num_dec, d_model, d_input, d_output, dff, nhead,
                max_len=5000):
    keys = iter(jax.random.split(key, 128))
    scl = 0.02

    def w(shape):
        return scl * jax.random.normal(next(keys), shape, jnp.float32)

    def zeros(shape):
        return jnp.zeros(shape, jnp.float32)

    def ones(shape):
        return jnp.ones(shape, jnp.float32)

    enc = {
        "wqkv": w((num_enc, d_model, 3 * d_model)),
        "bqkv": zeros((num_enc, 1, 3 * d_model)),
        "wo": w((num_enc, d_model, d_model)), "bo": zeros((num_enc, 1, d_model)),
        "n1g": ones((num_enc, 1, d_model)), "n1b": zeros((num_enc, 1, d_model)),
        "ff1w": w((num_enc, d_model, dff)), "ff1b": zeros((num_enc, 1, dff)),
        "ff2w": w((num_enc, dff, d_model)), "ff2b": zeros((num_enc, 1, d_model)),
        "n2g": ones((num_enc, 1, d_model)), "n2b": zeros((num_enc, 1, d_model)),
    }
    dec = {
        "sa_wqkv": w((num_dec, d_model, 3 * d_model)),
        "sa_bqkv": zeros((num_dec, 1, 3 * d_model)),
        "sa_wo": w((num_dec, d_model, d_model)),
        "sa_bo": zeros((num_dec, 1, d_model)),
        "n1g": ones((num_dec, 1, d_model)), "n1b": zeros((num_dec, 1, d_model)),
        "ca_wq": w((num_dec, d_model, d_model)),
        "ca_bq": zeros((num_dec, 1, d_model)),
        "ca_wkv": w((num_dec, d_model, 2 * d_model)),
        "ca_bkv": zeros((num_dec, 1, 2 * d_model)),
        "ca_wo": w((num_dec, d_model, d_model)),
        "ca_bo": zeros((num_dec, 1, d_model)),
        "n2g": ones((num_dec, 1, d_model)), "n2b": zeros((num_dec, 1, d_model)),
        "ff1w": w((num_dec, d_model, dff)), "ff1b": zeros((num_dec, 1, dff)),
        "ff2w": w((num_dec, dff, d_model)), "ff2b": zeros((num_dec, 1, d_model)),
        "n3g": ones((num_dec, 1, d_model)), "n3b": zeros((num_dec, 1, d_model)),
    }

    # positional-encoding buffer (same construction as PositionalEncoding.__init__)
    position = jnp.arange(max_len, dtype=jnp.float32)[:, None]
    div_term = jnp.exp(jnp.arange(0, d_model, 2, dtype=jnp.float32)
                       * (-math.log(10000.0) / d_model))
    pe = jnp.zeros((max_len, d_model), jnp.float32)
    pe = pe.at[:, 0::2].set(jnp.sin(position * div_term))
    pe = pe.at[:, 1::2].set(jnp.cos(position * div_term))

    return {
        "pe": pe,
        "emb_src_w": w((d_input, d_model)), "emb_src_b": zeros((1, d_model)),
        "emb_tgt_w": w((d_output, d_model)), "emb_tgt_b": zeros((1, d_model)),
        "enc": enc, "dec": dec,
        "enc_norm_g": ones((1, d_model)), "enc_norm_b": zeros((1, d_model)),
        "dec_norm_g": ones((1, d_model)), "dec_norm_b": zeros((1, d_model)),
        "out_w": w((d_model, d_output)), "out_b": zeros((1, d_output)),
    }


# ----------------------------------- main -----------------------------------

if __name__ == "__main__":
    B, S_src, S_tgt = 2, 8, 8
    d_model, d_input, d_output = 32, 4, 4
    dim_feedforward, nhead = 64, 8
    num_encoder_layers, num_decoder_layers = 2, 2

    root = jax.random.PRNGKey(0)
    kp, ks, kt = jax.random.split(root, 3)
    params = init_params(kp, num_encoder_layers, num_decoder_layers,
                         d_model, d_input, d_output, dim_feedforward, nhead)

    src = jax.random.normal(ks, (B, S_src, d_input), jnp.float32)
    tgt = jax.random.normal(kt, (B, S_tgt, d_output), jnp.float32)
    # float additive attention masks (PyTorch attn_mask semantics):
    mask_src = jnp.zeros((S_src, S_src), jnp.float32)
    mask_tgt = jnp.where(jnp.triu(jnp.ones((S_tgt, S_tgt), dtype=bool), k=1),
                         -1e9, 0.0).astype(jnp.float32)

    fwd = jax.jit(functools.partial(transformer_forward, nhead=nhead))
    out = fwd(params, src, tgt, mask_src, mask_tgt)
    jax.block_until_ready(out)

    assert out.shape == (B, S_tgt, d_output)
    assert bool(jnp.all(jnp.isfinite(out)))
    print("KERNEL_OK")
</pallas_src>

<mosaic_0001>
module attributes {stable_mosaic.version = 11 : i64} {
  func.func @_fused_transformer_kernel(%arg0: i32, %arg1: memref<1x8x4xf32, #tpu.memory_space<vmem>>, %arg2: memref<1x8x4xf32, #tpu.memory_space<vmem>>, %arg3: memref<8x8xf32, #tpu.memory_space<vmem>>, %arg4: memref<8x8xf32, #tpu.memory_space<vmem>>, %arg5: memref<4x32xf32, #tpu.memory_space<vmem>>, %arg6: memref<1x32xf32, #tpu.memory_space<vmem>>, %arg7: memref<4x32xf32, #tpu.memory_space<vmem>>, %arg8: memref<1x32xf32, #tpu.memory_space<vmem>>, %arg9: memref<8x32xf32, #tpu.memory_space<vmem>>, %arg10: memref<8x32xf32, #tpu.memory_space<vmem>>, %arg11: memref<2x32x96xf32, #tpu.memory_space<vmem>>, %arg12: memref<2x1x96xf32, #tpu.memory_space<vmem>>, %arg13: memref<2x32x32xf32, #tpu.memory_space<vmem>>, %arg14: memref<2x1x32xf32, #tpu.memory_space<vmem>>, %arg15: memref<2x1x32xf32, #tpu.memory_space<vmem>>, %arg16: memref<2x1x32xf32, #tpu.memory_space<vmem>>, %arg17: memref<2x32x64xf32, #tpu.memory_space<vmem>>, %arg18: memref<2x1x64xf32, #tpu.memory_space<vmem>>, %arg19: memref<2x64x32xf32, #tpu.memory_space<vmem>>, %arg20: memref<2x1x32xf32, #tpu.memory_space<vmem>>, %arg21: memref<2x1x32xf32, #tpu.memory_space<vmem>>, %arg22: memref<2x1x32xf32, #tpu.memory_space<vmem>>, %arg23: memref<1x32xf32, #tpu.memory_space<vmem>>, %arg24: memref<1x32xf32, #tpu.memory_space<vmem>>, %arg25: memref<2x32x96xf32, #tpu.memory_space<vmem>>, %arg26: memref<2x1x96xf32, #tpu.memory_space<vmem>>, %arg27: memref<2x32x32xf32, #tpu.memory_space<vmem>>, %arg28: memref<2x1x32xf32, #tpu.memory_space<vmem>>, %arg29: memref<2x1x32xf32, #tpu.memory_space<vmem>>, %arg30: memref<2x1x32xf32, #tpu.memory_space<vmem>>, %arg31: memref<2x32x32xf32, #tpu.memory_space<vmem>>, %arg32: memref<2x1x32xf32, #tpu.memory_space<vmem>>, %arg33: memref<2x32x64xf32, #tpu.memory_space<vmem>>, %arg34: memref<2x1x64xf32, #tpu.memory_space<vmem>>, %arg35: memref<2x32x32xf32, #tpu.memory_space<vmem>>, %arg36: memref<2x1x32xf32, #tpu.memory_space<vmem>>, %arg37: memref<2x1x32xf32, #tpu.memory_space<vmem>>, %arg38: memref<2x1x32xf32, #tpu.memory_space<vmem>>, %arg39: memref<2x32x64xf32, #tpu.memory_space<vmem>>, %arg40: memref<2x1x64xf32, #tpu.memory_space<vmem>>, %arg41: memref<2x64x32xf32, #tpu.memory_space<vmem>>, %arg42: memref<2x1x32xf32, #tpu.memory_space<vmem>>, %arg43: memref<2x1x32xf32, #tpu.memory_space<vmem>>, %arg44: memref<2x1x32xf32, #tpu.memory_space<vmem>>, %arg45: memref<1x32xf32, #tpu.memory_space<vmem>>, %arg46: memref<1x32xf32, #tpu.memory_space<vmem>>, %arg47: memref<32x4xf32, #tpu.memory_space<vmem>>, %arg48: memref<1x4xf32, #tpu.memory_space<vmem>>, %arg49: memref<1x8x4xf32, #tpu.memory_space<vmem>>, %arg50: memref<8x32xf32, #tpu.memory_space<vmem>>) attributes {dimension_semantics = [#tpu.dimension_semantics<parallel>], iteration_bounds = array<i64: 2>, scalar_prefetch = 0 : i64, scratch_operands = 1 : i64, tpu.core_type = #tpu.core_type<tc>, window_params = [{transform_indices = @transform_0, window_bounds = array<i64: 1, 8, 4>}, {transform_indices = @transform_1, window_bounds = array<i64: 1, 8, 4>}, {pipeline_mode = #tpu.pipeline_mode<synchronous>, transform_indices = @transform_2, window_bounds = array<i64: 8, 8>}, {pipeline_mode = #tpu.pipeline_mode<synchronous>, transform_indices = @transform_3, window_bounds = array<i64: 8, 8>}, {pipeline_mode = #tpu.pipeline_mode<synchronous>, transform_indices = @transform_4, window_bounds = array<i64: 4, 32>}, {pipeline_mode = #tpu.pipeline_mode<synchronous>, transform_indices = @transform_5, window_bounds = array<i64: 1, 32>}, {pipeline_mode = #tpu.pipeline_mode<synchronous>, transform_indices = @transform_6, window_bounds = array<i64: 4, 32>}, {pipeline_mode = #tpu.pipeline_mode<synchronous>, transform_indices = @transform_7, window_bounds = array<i64: 1, 32>}, {pipeline_mode = #tpu.pipeline_mode<synchronous>, transform_indices = @transform_8, window_bounds = array<i64: 8, 32>}, {pipeline_mode = #tpu.pipeline_mode<synchronous>, transform_indices = @transform_9, window_bounds = array<i64: 8, 32>}, {pipeline_mode = #tpu.pipeline_mode<synchronous>, transform_indices = @transform_10, window_bounds = array<i64: 2, 32, 96>}, {pipeline_mode = #tpu.pipeline_mode<synchronous>, transform_indices = @transform_11, window_bounds = array<i64: 2, 1, 96>}, {pipeline_mode = #tpu.pipeline_mode<synchronous>, transform_indices = @transform_12, window_bounds = array<i64: 2, 32, 32>}, {pipeline_mode = #tpu.pipeline_mode<synchronous>, transform_indices = @transform_13, window_bounds = array<i64: 2, 1, 32>}, {pipeline_mode = #tpu.pipeline_mode<synchronous>, transform_indices = @transform_14, window_bounds = array<i64: 2, 1, 32>}, {pipeline_mode = #tpu.pipeline_mode<synchronous>, transform_indices = @transform_15, window_bounds = array<i64: 2, 1, 32>}, {pipeline_mode = #tpu.pipeline_mode<synchronous>, transform_indices = @transform_16, window_bounds = array<i64: 2, 32, 64>}, {pipeline_mode = #tpu.pipeline_mode<synchronous>, transform_indices = @transform_17, window_bounds = array<i64: 2, 1, 64>}, {pipeline_mode = #tpu.pipeline_mode<synchronous>, transform_indices = @transform_18, window_bounds = array<i64: 2, 64, 32>}, {pipeline_mode = #tpu.pipeline_mode<synchronous>, transform_indices = @transform_19, window_bounds = array<i64: 2, 1, 32>}, {pipeline_mode = #tpu.pipeline_mode<synchronous>, transform_indices = @transform_20, window_bounds = array<i64: 2, 1, 32>}, {pipeline_mode = #tpu.pipeline_mode<synchronous>, transform_indices = @transform_21, window_bounds = array<i64: 2, 1, 32>}, {pipeline_mode = #tpu.pipeline_mode<synchronous>, transform_indices = @transform_22, window_bounds = array<i64: 1, 32>}, {pipeline_mode = #tpu.pipeline_mode<synchronous>, transform_indices = @transform_23, window_bounds = array<i64: 1, 32>}, {pipeline_mode = #tpu.pipeline_mode<synchronous>, transform_indices = @transform_24, window_bounds = array<i64: 2, 32, 96>}, {pipeline_mode = #tpu.pipeline_mode<synchronous>, transform_indices = @transform_25, window_bounds = array<i64: 2, 1, 96>}, {pipeline_mode = #tpu.pipeline_mode<synchronous>, transform_indices = @transform_26, window_bounds = array<i64: 2, 32, 32>}, {pipeline_mode = #tpu.pipeline_mode<synchronous>, transform_indices = @transform_27, window_bounds = array<i64: 2, 1, 32>}, {pipeline_mode = #tpu.pipeline_mode<synchronous>, transform_indices = @transform_28, window_bounds = array<i64: 2, 1, 32>}, {pipeline_mode = #tpu.pipeline_mode<synchronous>, transform_indices = @transform_29, window_bounds = array<i64: 2, 1, 32>}, {pipeline_mode = #tpu.pipeline_mode<synchronous>, transform_indices = @transform_30, window_bounds = array<i64: 2, 32, 32>}, {pipeline_mode = #tpu.pipeline_mode<synchronous>, transform_indices = @transform_31, window_bounds = array<i64: 2, 1, 32>}, {pipeline_mode = #tpu.pipeline_mode<synchronous>, transform_indices = @transform_32, window_bounds = array<i64: 2, 32, 64>}, {pipeline_mode = #tpu.pipeline_mode<synchronous>, transform_indices = @transform_33, window_bounds = array<i64: 2, 1, 64>}, {pipeline_mode = #tpu.pipeline_mode<synchronous>, transform_indices = @transform_34, window_bounds = array<i64: 2, 32, 32>}, {pipeline_mode = #tpu.pipeline_mode<synchronous>, transform_indices = @transform_35, window_bounds = array<i64: 2, 1, 32>}, {pipeline_mode = #tpu.pipeline_mode<synchronous>, transform_indices = @transform_36, window_bounds = array<i64: 2, 1, 32>}, {pipeline_mode = #tpu.pipeline_mode<synchronous>, transform_indices = @transform_37, window_bounds = array<i64: 2, 1, 32>}, {pipeline_mode = #tpu.pipeline_mode<synchronous>, transform_indices = @transform_38, window_bounds = array<i64: 2, 32, 64>}, {pipeline_mode = #tpu.pipeline_mode<synchronous>, transform_indices = @transform_39, window_bounds = array<i64: 2, 1, 64>}, {pipeline_mode = #tpu.pipeline_mode<synchronous>, transform_indices = @transform_40, window_bounds = array<i64: 2, 64, 32>}, {pipeline_mode = #tpu.pipeline_mode<synchronous>, transform_indices = @transform_41, window_bounds = array<i64: 2, 1, 32>}, {pipeline_mode = #tpu.pipeline_mode<synchronous>, transform_indices = @transform_42, window_bounds = array<i64: 2, 1, 32>}, {pipeline_mode = #tpu.pipeline_mode<synchronous>, transform_indices = @transform_43, window_bounds = array<i64: 2, 1, 32>}, {pipeline_mode = #tpu.pipeline_mode<synchronous>, transform_indices = @transform_44, window_bounds = array<i64: 1, 32>}, {pipeline_mode = #tpu.pipeline_mode<synchronous>, transform_indices = @transform_45, window_bounds = array<i64: 1, 32>}, {pipeline_mode = #tpu.pipeline_mode<synchronous>, transform_indices = @transform_46, window_bounds = array<i64: 32, 4>}, {pipeline_mode = #tpu.pipeline_mode<synchronous>, transform_indices = @transform_47, window_bounds = array<i64: 1, 4>}, {transform_indices = @transform_48, window_bounds = array<i64: 1, 8, 4>}]} {
    %c0 = arith.constant 0 : index
    %c0_0 = arith.constant 0 : index
    %c0_1 = arith.constant 0 : index
    %0 = vector.load %arg1[%c0, %c0_0, %c0_1] : memref<1x8x4xf32, #tpu.memory_space<vmem>>, vector<1x8x4xf32>
    %1 = vector.shape_cast %0 : vector<1x8x4xf32> to vector<8x4xf32>
    %c0_2 = arith.constant 0 : index
    %c0_3 = arith.constant 0 : index
    %2 = vector.load %arg5[%c0_2, %c0_3] : memref<4x32xf32, #tpu.memory_space<vmem>>, vector<4x32xf32>
    %cst = arith.constant dense<0.000000e+00> : vector<8x32xf32>
    %3 = tpu.matmul %1, %2, %cst {dimension_numbers = #tpu.dot_dimension_numbers<[1], [0], [0], [1], [0, 0, 1, 1], [], []>} : vector<8x4xf32>, vector<4x32xf32>, vector<8x32xf32> -> vector<8x32xf32>
    %c0_4 = arith.constant 0 : index
    %c0_5 = arith.constant 0 : index
    %4 = vector.load %arg6[%c0_4, %c0_5] : memref<1x32xf32, #tpu.memory_space<vmem>>, vector<1x32xf32>
    %5 = vector.broadcast %4 : vector<1x32xf32> to vector<8x32xf32>
    %6 = arith.addf %3, %5 : vector<8x32xf32>
    %c0_6 = arith.constant 0 : index
    %c0_7 = arith.constant 0 : index
    %7 = vector.load %arg9[%c0_6, %c0_7] : memref<8x32xf32, #tpu.memory_space<vmem>>, vector<8x32xf32>
    %8 = arith.addf %6, %7 : vector<8x32xf32>
    %c0_8 = arith.constant 0 : index
    %c0_9 = arith.constant 0 : index
    %9 = vector.load %arg3[%c0_8, %c0_9] : memref<8x8xf32, #tpu.memory_space<vmem>>, vector<8x8xf32>
    %c0_10 = arith.constant 0 : index
    %c0_11 = arith.constant 0 : index
    %c0_12 = arith.constant 0 : index
    %10 = vector.load %arg11[%c0_10, %c0_11, %c0_12] : memref<2x32x96xf32, #tpu.memory_space<vmem>>, vector<1x32x96xf32>
    %11 = vector.shape_cast %10 : vector<1x32x96xf32> to vector<32x96xf32>
    %cst_13 = arith.constant dense<0.000000e+00> : vector<8x96xf32>
    %12 = tpu.matmul %8, %11, %cst_13 {dimension_numbers = #tpu.dot_dimension_numbers<[1], [0], [0], [1], [0, 0, 1, 1], [], []>} : vector<8x32xf32>, vector<32x96xf32>, vector<8x96xf32> -> vector<8x96xf32>
    %c0_14 = arith.constant 0 : index
    %c0_15 = arith.constant 0 : index
    %c0_16 = arith.constant 0 : index
    %13 = vector.load %arg12[%c0_14, %c0_15, %c0_16] : memref<2x1x96xf32, #tpu.memory_space<vmem>>, vector<1x1x96xf32>
    %14 = vector.shape_cast %13 : vector<1x1x96xf32> to vector<1x96xf32>
    %15 = vector.broadcast %14 : vector<1x96xf32> to vector<8x96xf32>
    %16 = arith.addf %12, %15 : vector<8x96xf32>
    %17 = vector.extract_strided_slice %16 {offsets = [0, 0], sizes = [8, 32], strides = [1, 1]} : vector<8x96xf32> to vector<8x32xf32>
    %18 = vector.extract_strided_slice %16 {offsets = [0, 32], sizes = [8, 32], strides = [1, 1]} : vector<8x96xf32> to vector<8x32xf32>
    %19 = vector.extract_strided_slice %16 {offsets = [0, 64], sizes = [8, 32], strides = [1, 1]} : vector<8x96xf32> to vector<8x32xf32>
    %c0_17 = arith.constant 0 : index
    %c0_18 = arith.constant 0 : index
    %c0_19 = arith.constant 0 : index
    %20 = vector.load %arg13[%c0_17, %c0_18, %c0_19] : memref<2x32x32xf32, #tpu.memory_space<vmem>>, vector<1x32x32xf32>
    %21 = vector.shape_cast %20 : vector<1x32x32xf32> to vector<32x32xf32>
    %c0_20 = arith.constant 0 : index
    %c0_21 = arith.constant 0 : index
    %c0_22 = arith.constant 0 : index
    %22 = vector.load %arg14[%c0_20, %c0_21, %c0_22] : memref<2x1x32xf32, #tpu.memory_space<vmem>>, vector<1x1x32xf32>
    %23 = vector.shape_cast %22 : vector<1x1x32xf32> to vector<1x32xf32>
    %cst_23 = arith.constant 5.000000e-01 : f32
    %24 = vector.broadcast %cst_23 : f32 to vector<8x32xf32>
    %25 = arith.mulf %17, %24 : vector<8x32xf32>
    %26 = vector.extract_strided_slice %25 {offsets = [0, 0], sizes = [8, 4], strides = [1, 1]} : vector<8x32xf32> to vector<8x4xf32>
    %27 = vector.extract_strided_slice %18 {offsets = [0, 0], sizes = [8, 4], strides = [1, 1]} : vector<8x32xf32> to vector<8x4xf32>
    %28 = vector.extract_strided_slice %19 {offsets = [0, 0], sizes = [8, 4], strides = [1, 1]} : vector<8x32xf32> to vector<8x4xf32>
    %cst_24 = arith.constant dense<0.000000e+00> : vector<8x8xf32>
    %29 = tpu.matmul %26, %27, %cst_24 {dimension_numbers = #tpu.dot_dimension_numbers<[1], [1], [0], [0], [0, 0, 1, 0], [], []>} : vector<8x4xf32>, vector<8x4xf32>, vector<8x8xf32> -> vector<8x8xf32>
    %30 = arith.addf %29, %9 : vector<8x8xf32>
    %cst_25 = arith.constant dense<0xFF800000> : vector<8xf32>
    %31 = vector.multi_reduction <maximumf>, %30, %cst_25 [1] : vector<8x8xf32> to vector<8xf32>
    %32 = vector.shape_cast %31 : vector<8xf32> to vector<8x1xf32>
    %33 = vector.broadcast %32 : vector<8x1xf32> to vector<8x8xf32>
    %34 = arith.subf %30, %33 : vector<8x8xf32>
    %35 = math.exp %34 : vector<8x8xf32>
    %cst_26 = arith.constant dense<0.000000e+00> : vector<8xf32>
    %36 = vector.multi_reduction <add>, %35, %cst_26 [1] : vector<8x8xf32> to vector<8xf32>
    %37 = vector.shape_cast %36 : vector<8xf32> to vector<8x1xf32>
    %38 = vector.broadcast %37 : vector<8x1xf32> to vector<8x8xf32>
    %39 = arith.divf %35, %38 : vector<8x8xf32>
    %cst_27 = arith.constant dense<0.000000e+00> : vector<8x4xf32>
    %40 = tpu.matmul %39, %28, %cst_27 {dimension_numbers = #tpu.dot_dimension_numbers<[1], [0], [0], [1], [0, 0, 1, 1], [], []>} : vector<8x8xf32>, vector<8x4xf32>, vector<8x4xf32> -> vector<8x4xf32>
    %c0_28 = arith.constant 0 : index
    %c0_29 = arith.constant 0 : index
    %41 = vector.load %arg50[%c0_28, %c0_29] : memref<8x32xf32, #tpu.memory_space<vmem>>, vector<8x4xf32>
    tpu.vector_store %arg50[%c0_28, %c0_29], %40 {strides = array<i32>} : memref<8x32xf32, #tpu.memory_space<vmem>>, vector<8x4xf32>,
    %42 = vector.extract_strided_slice %25 {offsets = [0, 4], sizes = [8, 4], strides = [1, 1]} : vector<8x32xf32> to vector<8x4xf32>
    %43 = vector.extract_strided_slice %18 {offsets = [0, 4], sizes = [8, 4], strides = [1, 1]} : vector<8x32xf32> to vector<8x4xf32>
    %44 = vector.extract_strided_slice %19 {offsets = [0, 4], sizes = [8, 4], strides = [1, 1]} : vector<8x32xf32> to vector<8x4xf32>
    %cst_30 = arith.constant dense<0.000000e+00> : vector<8x8xf32>
    %45 = tpu.matmul %42, %43, %cst_30 {dimension_numbers = #tpu.dot_dimension_numbers<[1], [1], [0], [0], [0, 0, 1, 0], [], []>} : vector<8x4xf32>, vector<8x4xf32>, vector<8x8xf32> -> vector<8x8xf32>
    %46 = arith.addf %45, %9 : vector<8x8xf32>
    %cst_31 = arith.constant dense<0xFF800000> : vector<8xf32>
    %47 = vector.multi_reduction <maximumf>, %46, %cst_31 [1] : vector<8x8xf32> to vector<8xf32>
    %48 = vector.shape_cast %47 : vector<8xf32> to vector<8x1xf32>
    %49 = vector.broadcast %48 : vector<8x1xf32> to vector<8x8xf32>
    %50 = arith.subf %46, %49 : vector<8x8xf32>
    %51 = math.exp %50 : vector<8x8xf32>
    %cst_32 = arith.constant dense<0.000000e+00> : vector<8xf32>
    %52 = vector.multi_reduction <add>, %51, %cst_32 [1] : vector<8x8xf32> to vector<8xf32>
    %53 = vector.shape_cast %52 : vector<8xf32> to vector<8x1xf32>
    %54 = vector.broadcast %53 : vector<8x1xf32> to vector<8x8xf32>
    %55 = arith.divf %51, %54 : vector<8x8xf32>
    %cst_33 = arith.constant dense<0.000000e+00> : vector<8x4xf32>
    %56 = tpu.matmul %55, %44, %cst_33 {dimension_numbers = #tpu.dot_dimension_numbers<[1], [0], [0], [1], [0, 0, 1, 1], [], []>} : vector<8x8xf32>, vector<8x4xf32>, vector<8x4xf32> -> vector<8x4xf32>
    %c0_34 = arith.constant 0 : index
    %c4 = arith.constant 4 : index
    %57 = vector.load %arg50[%c0_34, %c4] : memref<8x32xf32, #tpu.memory_space<vmem>>, vector<8x4xf32>
    tpu.vector_store %arg50[%c0_34, %c4], %56 {strides = array<i32>} : memref<8x32xf32, #tpu.memory_space<vmem>>, vector<8x4xf32>,
    %58 = vector.extract_strided_slice %25 {offsets = [0, 8], sizes = [8, 4], strides = [1, 1]} : vector<8x32xf32> to vector<8x4xf32>
    %59 = vector.extract_strided_slice %18 {offsets = [0, 8], sizes = [8, 4], strides = [1, 1]} : vector<8x32xf32> to vector<8x4xf32>
    %60 = vector.extract_strided_slice %19 {offsets = [0, 8], sizes = [8, 4], strides = [1, 1]} : vector<8x32xf32> to vector<8x4xf32>
    %cst_35 = arith.constant dense<0.000000e+00> : vector<8x8xf32>
    %61 = tpu.matmul %58, %59, %cst_35 {dimension_numbers = #tpu.dot_dimension_numbers<[1], [1], [0], [0], [0, 0, 1, 0], [], []>} : vector<8x4xf32>, vector<8x4xf32>, vector<8x8xf32> -> vector<8x8xf32>
    %62 = arith.addf %61, %9 : vector<8x8xf32>
    %cst_36 = arith.constant dense<0xFF800000> : vector<8xf32>
    %63 = vector.multi_reduction <maximumf>, %62, %cst_36 [1] : vector<8x8xf32> to vector<8xf32>
    %64 = vector.shape_cast %63 : vector<8xf32> to vector<8x1xf32>
    %65 = vector.broadcast %64 : vector<8x1xf32> to vector<8x8xf32>
    %66 = arith.subf %62, %65 : vector<8x8xf32>
    %67 = math.exp %66 : vector<8x8xf32>
    %cst_37 = arith.constant dense<0.000000e+00> : vector<8xf32>
    %68 = vector.multi_reduction <add>, %67, %cst_37 [1] : vector<8x8xf32> to vector<8xf32>
    %69 = vector.shape_cast %68 : vector<8xf32> to vector<8x1xf32>
    %70 = vector.broadcast %69 : vector<8x1xf32> to vector<8x8xf32>
    %71 = arith.divf %67, %70 : vector<8x8xf32>
    %cst_38 = arith.constant dense<0.000000e+00> : vector<8x4xf32>
    %72 = tpu.matmul %71, %60, %cst_38 {dimension_numbers = #tpu.dot_dimension_numbers<[1], [0], [0], [1], [0, 0, 1, 1], [], []>} : vector<8x8xf32>, vector<8x4xf32>, vector<8x4xf32> -> vector<8x4xf32>
    %c0_39 = arith.constant 0 : index
    %c8 = arith.constant 8 : index
    %73 = vector.load %arg50[%c0_39, %c8] : memref<8x32xf32, #tpu.memory_space<vmem>>, vector<8x4xf32>
    tpu.vector_store %arg50[%c0_39, %c8], %72 {strides = array<i32>} : memref<8x32xf32, #tpu.memory_space<vmem>>, vector<8x4xf32>,
    %74 = vector.extract_strided_slice %25 {offsets = [0, 12], sizes = [8, 4], strides = [1, 1]} : vector<8x32xf32> to vector<8x4xf32>
    %75 = vector.extract_strided_slice %18 {offsets = [0, 12], sizes = [8, 4], strides = [1, 1]} : vector<8x32xf32> to vector<8x4xf32>
    %76 = vector.extract_strided_slice %19 {offsets = [0, 12], sizes = [8, 4], strides = [1, 1]} : vector<8x32xf32> to vector<8x4xf32>
    %cst_40 = arith.constant dense<0.000000e+00> : vector<8x8xf32>
    %77 = tpu.matmul %74, %75, %cst_40 {dimension_numbers = #tpu.dot_dimension_numbers<[1], [1], [0], [0], [0, 0, 1, 0], [], []>} : vector<8x4xf32>, vector<8x4xf32>, vector<8x8xf32> -> vector<8x8xf32>
    %78 = arith.addf %77, %9 : vector<8x8xf32>
    %cst_41 = arith.constant dense<0xFF800000> : vector<8xf32>
    %79 = vector.multi_reduction <maximumf>, %78, %cst_41 [1] : vector<8x8xf32> to vector<8xf32>
    %80 = vector.shape_cast %79 : vector<8xf32> to vector<8x1xf32>
    %81 = vector.broadcast %80 : vector<8x1xf32> to vector<8x8xf32>
    %82 = arith.subf %78, %81 : vector<8x8xf32>
    %83 = math.exp %82 : vector<8x8xf32>
    %cst_42 = arith.constant dense<0.000000e+00> : vector<8xf32>
    %84 = vector.multi_reduction <add>, %83, %cst_42 [1] : vector<8x8xf32> to vector<8xf32>
    %85 = vector.shape_cast %84 : vector<8xf32> to vector<8x1xf32>
    %86 = vector.broadcast %85 : vector<8x1xf32> to vector<8x8xf32>
    %87 = arith.divf %83, %86 : vector<8x8xf32>
    %cst_43 = arith.constant dense<0.000000e+00> : vector<8x4xf32>
    %88 = tpu.matmul %87, %76, %cst_43 {dimension_numbers = #tpu.dot_dimension_numbers<[1], [0], [0], [1], [0, 0, 1, 1], [], []>} : vector<8x8xf32>, vector<8x4xf32>, vector<8x4xf32> -> vector<8x4xf32>
    %c0_44 = arith.constant 0 : index
    %c12 = arith.constant 12 : index
    %89 = vector.load %arg50[%c0_44, %c12] : memref<8x32xf32, #tpu.memory_space<vmem>>, vector<8x4xf32>
    tpu.vector_store %arg50[%c0_44, %c12], %88 {strides = array<i32>} : memref<8x32xf32, #tpu.memory_space<vmem>>, vector<8x4xf32>,
    %90 = vector.extract_strided_slice %25 {offsets = [0, 16], sizes = [8, 4], strides = [1, 1]} : vector<8x32xf32> to vector<8x4xf32>
    %91 = vector.extract_strided_slice %18 {offsets = [0, 16], sizes = [8, 4], strides = [1, 1]} : vector<8x32xf32> to vector<8x4xf32>
    %92 = vector.extract_strided_slice %19 {offsets = [0, 16], sizes = [8, 4], strides = [1, 1]} : vector<8x32xf32> to vector<8x4xf32>
    %cst_45 = arith.constant dense<0.000000e+00> : vector<8x8xf32>
    %93 = tpu.matmul %90, %91, %cst_45 {dimension_numbers = #tpu.dot_dimension_numbers<[1], [1], [0], [0], [0, 0, 1, 0], [], []>} : vector<8x4xf32>, vector<8x4xf32>, vector<8x8xf32> -> vector<8x8xf32>
    %94 = arith.addf %93, %9 : vector<8x8xf32>
    %cst_46 = arith.constant dense<0xFF800000> : vector<8xf32>
    %95 = vector.multi_reduction <maximumf>, %94, %cst_46 [1] : vector<8x8xf32> to vector<8xf32>
    %96 = vector.shape_cast %95 : vector<8xf32> to vector<8x1xf32>
    %97 = vector.broadcast %96 : vector<8x1xf32> to vector<8x8xf32>
    %98 = arith.subf %94, %97 : vector<8x8xf32>
    %99 = math.exp %98 : vector<8x8xf32>
    %cst_47 = arith.constant dense<0.000000e+00> : vector<8xf32>
    %100 = vector.multi_reduction <add>, %99, %cst_47 [1] : vector<8x8xf32> to vector<8xf32>
    %101 = vector.shape_cast %100 : vector<8xf32> to vector<8x1xf32>
    %102 = vector.broadcast %101 : vector<8x1xf32> to vector<8x8xf32>
    %103 = arith.divf %99, %102 : vector<8x8xf32>
    %cst_48 = arith.constant dense<0.000000e+00> : vector<8x4xf32>
    %104 = tpu.matmul %103, %92, %cst_48 {dimension_numbers = #tpu.dot_dimension_numbers<[1], [0], [0], [1], [0, 0, 1, 1], [], []>} : vector<8x8xf32>, vector<8x4xf32>, vector<8x4xf32> -> vector<8x4xf32>
    %c0_49 = arith.constant 0 : index
    %c16 = arith.constant 16 : index
    %105 = vector.load %arg50[%c0_49, %c16] : memref<8x32xf32, #tpu.memory_space<vmem>>, vector<8x4xf32>
    tpu.vector_store %arg50[%c0_49, %c16], %104 {strides = array<i32>} : memref<8x32xf32, #tpu.memory_space<vmem>>, vector<8x4xf32>,
    %106 = vector.extract_strided_slice %25 {offsets = [0, 20], sizes = [8, 4], strides = [1, 1]} : vector<8x32xf32> to vector<8x4xf32>
    %107 = vector.extract_strided_slice %18 {offsets = [0, 20], sizes = [8, 4], strides = [1, 1]} : vector<8x32xf32> to vector<8x4xf32>
    %108 = vector.extract_strided_slice %19 {offsets = [0, 20], sizes = [8, 4], strides = [1, 1]} : vector<8x32xf32> to vector<8x4xf32>
    %cst_50 = arith.constant dense<0.000000e+00> : vector<8x8xf32>
    %109 = tpu.matmul %106, %107, %cst_50 {dimension_numbers = #tpu.dot_dimension_numbers<[1], [1], [0], [0], [0, 0, 1, 0], [], []>} : vector<8x4xf32>, vector<8x4xf32>, vector<8x8xf32> -> vector<8x8xf32>
    %110 = arith.addf %109, %9 : vector<8x8xf32>
    %cst_51 = arith.constant dense<0xFF800000> : vector<8xf32>
    %111 = vector.multi_reduction <maximumf>, %110, %cst_51 [1] : vector<8x8xf32> to vector<8xf32>
    %112 = vector.shape_cast %111 : vector<8xf32> to vector<8x1xf32>
    %113 = vector.broadcast %112 : vector<8x1xf32> to vector<8x8xf32>
    %114 = arith.subf %110, %113 : vector<8x8xf32>
    %115 = math.exp %114 : vector<8x8xf32>
    %cst_52 = arith.constant dense<0.000000e+00> : vector<8xf32>
    %116 = vector.multi_reduction <add>, %115, %cst_52 [1] : vector<8x8xf32> to vector<8xf32>
    %117 = vector.shape_cast %116 : vector<8xf32> to vector<8x1xf32>
    %118 = vector.broadcast %117 : vector<8x1xf32> to vector<8x8xf32>
    %119 = arith.divf %115, %118 : vector<8x8xf32>
    %cst_53 = arith.constant dense<0.000000e+00> : vector<8x4xf32>
    %120 = tpu.matmul %119, %108, %cst_53 {dimension_numbers = #tpu.dot_dimension_numbers<[1], [0], [0], [1], [0, 0, 1, 1], [], []>} : vector<8x8xf32>, vector<8x4xf32>, vector<8x4xf32> -> vector<8x4xf32>
    %c0_54 = arith.constant 0 : index
    %c20 = arith.constant 20 : index
    %121 = vector.load %arg50[%c0_54, %c20] : memref<8x32xf32, #tpu.memory_space<vmem>>, vector<8x4xf32>
    tpu.vector_store %arg50[%c0_54, %c20], %120 {strides = array<i32>} : memref<8x32xf32, #tpu.memory_space<vmem>>, vector<8x4xf32>,
    %122 = vector.extract_strided_slice %25 {offsets = [0, 24], sizes = [8, 4], strides = [1, 1]} : vector<8x32xf32> to vector<8x4xf32>
    %123 = vector.extract_strided_slice %18 {offsets = [0, 24], sizes = [8, 4], strides = [1, 1]} : vector<8x32xf32> to vector<8x4xf32>
    %124 = vector.extract_strided_slice %19 {offsets = [0, 24], sizes = [8, 4], strides = [1, 1]} : vector<8x32xf32> to vector<8x4xf32>
    %cst_55 = arith.constant dense<0.000000e+00> : vector<8x8xf32>
    %125 = tpu.matmul %122, %123, %cst_55 {dimension_numbers = #tpu.dot_dimension_numbers<[1], [1], [0], [0], [0, 0, 1, 0], [], []>} : vector<8x4xf32>, vector<8x4xf32>, vector<8x8xf32> -> vector<8x8xf32>
    %126 = arith.addf %125, %9 : vector<8x8xf32>
    %cst_56 = arith.constant dense<0xFF800000> : vector<8xf32>
    %127 = vector.multi_reduction <maximumf>, %126, %cst_56 [1] : vector<8x8xf32> to vector<8xf32>
    %128 = vector.shape_cast %127 : vector<8xf32> to vector<8x1xf32>
    %129 = vector.broadcast %128 : vector<8x1xf32> to vector<8x8xf32>
    %130 = arith.subf %126, %129 : vector<8x8xf32>
    %131 = math.exp %130 : vector<8x8xf32>
    %cst_57 = arith.constant dense<0.000000e+00> : vector<8xf32>
    %132 = vector.multi_reduction <add>, %131, %cst_57 [1] : vector<8x8xf32> to vector<8xf32>
    %133 = vector.shape_cast %132 : vector<8xf32> to vector<8x1xf32>
    %134 = vector.broadcast %133 : vector<8x1xf32> to vector<8x8xf32>
    %135 = arith.divf %131, %134 : vector<8x8xf32>
    %cst_58 = arith.constant dense<0.000000e+00> : vector<8x4xf32>
    %136 = tpu.matmul %135, %124, %cst_58 {dimension_numbers = #tpu.dot_dimension_numbers<[1], [0], [0], [1], [0, 0, 1, 1], [], []>} : vector<8x8xf32>, vector<8x4xf32>, vector<8x4xf32> -> vector<8x4xf32>
    %c0_59 = arith.constant 0 : index
    %c24 = arith.constant 24 : index
    %137 = vector.load %arg50[%c0_59, %c24] : memref<8x32xf32, #tpu.memory_space<vmem>>, vector<8x4xf32>
    tpu.vector_store %arg50[%c0_59, %c24], %136 {strides = array<i32>} : memref<8x32xf32, #tpu.memory_space<vmem>>, vector<8x4xf32>,
    %138 = vector.extract_strided_slice %25 {offsets = [0, 28], sizes = [8, 4], strides = [1, 1]} : vector<8x32xf32> to vector<8x4xf32>
    %139 = vector.extract_strided_slice %18 {offsets = [0, 28], sizes = [8, 4], strides = [1, 1]} : vector<8x32xf32> to vector<8x4xf32>
    %140 = vector.extract_strided_slice %19 {offsets = [0, 28], sizes = [8, 4], strides = [1, 1]} : vector<8x32xf32> to vector<8x4xf32>
    %cst_60 = arith.constant dense<0.000000e+00> : vector<8x8xf32>
    %141 = tpu.matmul %138, %139, %cst_60 {dimension_numbers = #tpu.dot_dimension_numbers<[1], [1], [0], [0], [0, 0, 1, 0], [], []>} : vector<8x4xf32>, vector<8x4xf32>, vector<8x8xf32> -> vector<8x8xf32>
    %142 = arith.addf %141, %9 : vector<8x8xf32>
    %cst_61 = arith.constant dense<0xFF800000> : vector<8xf32>
    %143 = vector.multi_reduction <maximumf>, %142, %cst_61 [1] : vector<8x8xf32> to vector<8xf32>
    %144 = vector.shape_cast %143 : vector<8xf32> to vector<8x1xf32>
    %145 = vector.broadcast %144 : vector<8x1xf32> to vector<8x8xf32>
    %146 = arith.subf %142, %145 : vector<8x8xf32>
    %147 = math.exp %146 : vector<8x8xf32>
    %cst_62 = arith.constant dense<0.000000e+00> : vector<8xf32>
    %148 = vector.multi_reduction <add>, %147, %cst_62 [1] : vector<8x8xf32> to vector<8xf32>
    %149 = vector.shape_cast %148 : vector<8xf32> to vector<8x1xf32>
    %150 = vector.broadcast %149 : vector<8x1xf32> to vector<8x8xf32>
    %151 = arith.divf %147, %150 : vector<8x8xf32>
    %cst_63 = arith.constant dense<0.000000e+00> : vector<8x4xf32>
    %152 = tpu.matmul %151, %140, %cst_63 {dimension_numbers = #tpu.dot_dimension_numbers<[1], [0], [0], [1], [0, 0, 1, 1], [], []>} : vector<8x8xf32>, vector<8x4xf32>, vector<8x4xf32> -> vector<8x4xf32>
    %c0_64 = arith.constant 0 : index
    %c28 = arith.constant 28 : index
    %153 = vector.load %arg50[%c0_64, %c28] : memref<8x32xf32, #tpu.memory_space<vmem>>, vector<8x4xf32>
    tpu.vector_store %arg50[%c0_64, %c28], %152 {strides = array<i32>} : memref<8x32xf32, #tpu.memory_space<vmem>>, vector<8x4xf32>,
    %c0_65 = arith.constant 0 : index
    %c0_66 = arith.constant 0 : index
    %154 = vector.load %arg50[%c0_65, %c0_66] : memref<8x32xf32, #tpu.memory_space<vmem>>, vector<8x32xf32>
    %cst_67 = arith.constant dense<0.000000e+00> : vector<8x32xf32>
    %155 = tpu.matmul %154, %21, %cst_67 {dimension_numbers = #tpu.dot_dimension_numbers<[1], [0], [0], [1], [0, 0, 1, 1], [], []>} : vector<8x32xf32>, vector<32x32xf32>, vector<8x32xf32> -> vector<8x32xf32>
    %156 = vector.broadcast %23 : vector<1x32xf32> to vector<8x32xf32>
    %157 = arith.addf %155, %156 : vector<8x32xf32>
    %158 = arith.addf %8, %157 : vector<8x32xf32>
    %c0_68 = arith.constant 0 : index
    %c0_69 = arith.constant 0 : index
    %c0_70 = arith.constant 0 : index
    %159 = vector.load %arg15[%c0_68, %c0_69, %c0_70] : memref<2x1x32xf32, #tpu.memory_space<vmem>>, vector<1x1x32xf32>
    %160 = vector.shape_cast %159 : vector<1x1x32xf32> to vector<1x32xf32>
    %c0_71 = arith.constant 0 : index
    %c0_72 = arith.constant 0 : index
    %c0_73 = arith.constant 0 : index
    %161 = vector.load %arg16[%c0_71, %c0_72, %c0_73] : memref<2x1x32xf32, #tpu.memory_space<vmem>>, vector<1x1x32xf32>
    %162 = vector.shape_cast %161 : vector<1x1x32xf32> to vector<1x32xf32>
    %cst_74 = arith.constant dense<0.000000e+00> : vector<8xf32>
    %163 = vector.multi_reduction <add>, %158, %cst_74 [1] : vector<8x32xf32> to vector<8xf32>
    %164 = vector.shape_cast %163 : vector<8xf32> to vector<8x1xf32>
    %cst_75 = arith.constant 3.200000e+01 : f32
    %165 = vector.broadcast %cst_75 : f32 to vector<8x1xf32>
    %166 = arith.divf %164, %165 : vector<8x1xf32>
    %167 = vector.broadcast %166 : vector<8x1xf32> to vector<8x32xf32>
    %168 = arith.subf %158, %167 : vector<8x32xf32>
    %169 = arith.mulf %168, %168 : vector<8x32xf32>
    %cst_76 = arith.constant dense<0.000000e+00> : vector<8xf32>
    %170 = vector.multi_reduction <add>, %169, %cst_76 [1] : vector<8x32xf32> to vector<8xf32>
    %171 = vector.shape_cast %170 : vector<8xf32> to vector<8x1xf32>
    %cst_77 = arith.constant 3.200000e+01 : f32
    %172 = vector.broadcast %cst_77 : f32 to vector<8x1xf32>
    %173 = arith.divf %171, %172 : vector<8x1xf32>
    %174 = vector.broadcast %166 : vector<8x1xf32> to vector<8x32xf32>
    %175 = arith.subf %158, %174 : vector<8x32xf32>
    %cst_78 = arith.constant 9.99999974E-6 : f32
    %176 = vector.broadcast %cst_78 : f32 to vector<8x1xf32>
    %177 = arith.addf %173, %176 : vector<8x1xf32>
    %178 = math.rsqrt %177 : vector<8x1xf32>
    %179 = vector.broadcast %178 : vector<8x1xf32> to vector<8x32xf32>
    %180 = arith.mulf %175, %179 : vector<8x32xf32>
    %181 = vector.broadcast %160 : vector<1x32xf32> to vector<8x32xf32>
    %182 = arith.mulf %180, %181 : vector<8x32xf32>
    %183 = vector.broadcast %162 : vector<1x32xf32> to vector<8x32xf32>
    %184 = arith.addf %182, %183 : vector<8x32xf32>
    %c0_79 = arith.constant 0 : index
    %c0_80 = arith.constant 0 : index
    %c0_81 = arith.constant 0 : index
    %185 = vector.load %arg17[%c0_79, %c0_80, %c0_81] : memref<2x32x64xf32, #tpu.memory_space<vmem>>, vector<1x32x64xf32>
    %186 = vector.shape_cast %185 : vector<1x32x64xf32> to vector<32x64xf32>
    %cst_82 = arith.constant dense<0.000000e+00> : vector<8x64xf32>
    %187 = tpu.matmul %184, %186, %cst_82 {dimension_numbers = #tpu.dot_dimension_numbers<[1], [0], [0], [1], [0, 0, 1, 1], [], []>} : vector<8x32xf32>, vector<32x64xf32>, vector<8x64xf32> -> vector<8x64xf32>
    %c0_83 = arith.constant 0 : index
    %c0_84 = arith.constant 0 : index
    %c0_85 = arith.constant 0 : index
    %188 = vector.load %arg18[%c0_83, %c0_84, %c0_85] : memref<2x1x64xf32, #tpu.memory_space<vmem>>, vector<1x1x64xf32>
    %189 = vector.shape_cast %188 : vector<1x1x64xf32> to vector<1x64xf32>
    %190 = vector.broadcast %189 : vector<1x64xf32> to vector<8x64xf32>
    %191 = arith.addf %187, %190 : vector<8x64xf32>
    %cst_86 = arith.constant 5.000000e-01 : f32
    %192 = vector.broadcast %cst_86 : f32 to vector<8x64xf32>
    %193 = arith.mulf %192, %191 : vector<8x64xf32>
    %cst_87 = arith.constant 0.707106769 : f32
    %194 = vector.broadcast %cst_87 : f32 to vector<8x64xf32>
    %195 = arith.mulf %191, %194 : vector<8x64xf32>
    %cst_88 = arith.constant 0.000000e+00 : f32
    %196 = vector.broadcast %cst_88 : f32 to vector<8x64xf32>
    %197 = arith.cmpf olt, %195, %196 : vector<8x64xf32>
    %cst_89 = arith.constant -1.000000e+00 : f32
    %cst_90 = arith.constant 1.000000e+00 : f32
    %198 = vector.broadcast %cst_89 : f32 to vector<8x64xf32>
    %199 = vector.broadcast %cst_90 : f32 to vector<8x64xf32>
    %200 = arith.select %197, %198, %199 : vector<8x64xi1>, vector<8x64xf32>
    %201 = math.absf %195 : vector<8x64xf32>
    %cst_91 = arith.constant 0.327591091 : f32
    %202 = vector.broadcast %cst_91 : f32 to vector<8x64xf32>
    %203 = arith.mulf %202, %201 : vector<8x64xf32>
    %cst_92 = arith.constant 1.000000e+00 : f32
    %204 = vector.broadcast %cst_92 : f32 to vector<8x64xf32>
    %205 = arith.addf %204, %203 : vector<8x64xf32>
    %cst_93 = arith.constant 1.000000e+00 : f32
    %206 = vector.broadcast %cst_93 : f32 to vector<8x64xf32>
    %207 = arith.divf %206, %205 : vector<8x64xf32>
    %cst_94 = arith.constant 1.06140542 : f32
    %208 = vector.broadcast %cst_94 : f32 to vector<8x64xf32>
    %209 = arith.mulf %208, %207 : vector<8x64xf32>
    %cst_95 = arith.constant -1.45315206 : f32
    %210 = vector.broadcast %cst_95 : f32 to vector<8x64xf32>
    %211 = arith.addf %209, %210 : vector<8x64xf32>
    %212 = arith.mulf %211, %207 : vector<8x64xf32>
    %cst_96 = arith.constant 1.42141378 : f32
    %213 = vector.broadcast %cst_96 : f32 to vector<8x64xf32>
    %214 = arith.addf %212, %213 : vector<8x64xf32>
    %215 = arith.mulf %214, %207 : vector<8x64xf32>
    %cst_97 = arith.constant -0.284496725 : f32
    %216 = vector.broadcast %cst_97 : f32 to vector<8x64xf32>
    %217 = arith.addf %215, %216 : vector<8x64xf32>
    %218 = arith.mulf %217, %207 : vector<8x64xf32>
    %cst_98 = arith.constant 0.254829586 : f32
    %219 = vector.broadcast %cst_98 : f32 to vector<8x64xf32>
    %220 = arith.addf %218, %219 : vector<8x64xf32>
    %221 = arith.mulf %220, %207 : vector<8x64xf32>
    %cst_99 = arith.constant 0.000000e+00 : f32
    %222 = vector.broadcast %cst_99 : f32 to vector<8x64xf32>
    %223 = arith.subf %222, %201 : vector<8x64xf32>
    %224 = arith.mulf %223, %201 : vector<8x64xf32>
    %225 = math.exp %224 : vector<8x64xf32>
    %226 = arith.mulf %221, %225 : vector<8x64xf32>
    %cst_100 = arith.constant 1.000000e+00 : f32
    %227 = vector.broadcast %cst_100 : f32 to vector<8x64xf32>
    %228 = arith.subf %227, %226 : vector<8x64xf32>
    %229 = arith.mulf %200, %228 : vector<8x64xf32>
    %cst_101 = arith.constant 1.000000e+00 : f32
    %230 = vector.broadcast %cst_101 : f32 to vector<8x64xf32>
    %231 = arith.addf %230, %229 : vector<8x64xf32>
    %232 = arith.mulf %193, %231 : vector<8x64xf32>
    %c0_102 = arith.constant 0 : index
    %c0_103 = arith.constant 0 : index
    %c0_104 = arith.constant 0 : index
    %233 = vector.load %arg19[%c0_102, %c0_103, %c0_104] : memref<2x64x32xf32, #tpu.memory_space<vmem>>, vector<1x64x32xf32>
    %234 = vector.shape_cast %233 : vector<1x64x32xf32> to vector<64x32xf32>
    %cst_105 = arith.constant dense<0.000000e+00> : vector<8x32xf32>
    %235 = tpu.matmul %232, %234, %cst_105 {dimension_numbers = #tpu.dot_dimension_numbers<[1], [0], [0], [1], [0, 0, 1, 1], [], []>} : vector<8x64xf32>, vector<64x32xf32>, vector<8x32xf32> -> vector<8x32xf32>
    %c0_106 = arith.constant 0 : index
    %c0_107 = arith.constant 0 : index
    %c0_108 = arith.constant 0 : index
    %236 = vector.load %arg20[%c0_106, %c0_107, %c0_108] : memref<2x1x32xf32, #tpu.memory_space<vmem>>, vector<1x1x32xf32>
    %237 = vector.shape_cast %236 : vector<1x1x32xf32> to vector<1x32xf32>
    %238 = vector.broadcast %237 : vector<1x32xf32> to vector<8x32xf32>
    %239 = arith.addf %235, %238 : vector<8x32xf32>
    %240 = arith.addf %184, %239 : vector<8x32xf32>
    %c0_109 = arith.constant 0 : index
    %c0_110 = arith.constant 0 : index
    %c0_111 = arith.constant 0 : index
    %241 = vector.load %arg21[%c0_109, %c0_110, %c0_111] : memref<2x1x32xf32, #tpu.memory_space<vmem>>, vector<1x1x32xf32>
    %242 = vector.shape_cast %241 : vector<1x1x32xf32> to vector<1x32xf32>
    %c0_112 = arith.constant 0 : index
    %c0_113 = arith.constant 0 : index
    %c0_114 = arith.constant 0 : index
    %243 = vector.load %arg22[%c0_112, %c0_113, %c0_114] : memref<2x1x32xf32, #tpu.memory_space<vmem>>, vector<1x1x32xf32>
    %244 = vector.shape_cast %243 : vector<1x1x32xf32> to vector<1x32xf32>
    %cst_115 = arith.constant dense<0.000000e+00> : vector<8xf32>
    %245 = vector.multi_reduction <add>, %240, %cst_115 [1] : vector<8x32xf32> to vector<8xf32>
    %246 = vector.shape_cast %245 : vector<8xf32> to vector<8x1xf32>
    %cst_116 = arith.constant 3.200000e+01 : f32
    %247 = vector.broadcast %cst_116 : f32 to vector<8x1xf32>
    %248 = arith.divf %246, %247 : vector<8x1xf32>
    %249 = vector.broadcast %248 : vector<8x1xf32> to vector<8x32xf32>
    %250 = arith.subf %240, %249 : vector<8x32xf32>
    %251 = arith.mulf %250, %250 : vector<8x32xf32>
    %cst_117 = arith.constant dense<0.000000e+00> : vector<8xf32>
    %252 = vector.multi_reduction <add>, %251, %cst_117 [1] : vector<8x32xf32> to vector<8xf32>
    %253 = vector.shape_cast %252 : vector<8xf32> to vector<8x1xf32>
    %cst_118 = arith.constant 3.200000e+01 : f32
    %254 = vector.broadcast %cst_118 : f32 to vector<8x1xf32>
    %255 = arith.divf %253, %254 : vector<8x1xf32>
    %256 = vector.broadcast %248 : vector<8x1xf32> to vector<8x32xf32>
    %257 = arith.subf %240, %256 : vector<8x32xf32>
    %cst_119 = arith.constant 9.99999974E-6 : f32
    %258 = vector.broadcast %cst_119 : f32 to vector<8x1xf32>
    %259 = arith.addf %255, %258 : vector<8x1xf32>
    %260 = math.rsqrt %259 : vector<8x1xf32>
    %261 = vector.broadcast %260 : vector<8x1xf32> to vector<8x32xf32>
    %262 = arith.mulf %257, %261 : vector<8x32xf32>
    %263 = vector.broadcast %242 : vector<1x32xf32> to vector<8x32xf32>
    %264 = arith.mulf %262, %263 : vector<8x32xf32>
    %265 = vector.broadcast %244 : vector<1x32xf32> to vector<8x32xf32>
    %266 = arith.addf %264, %265 : vector<8x32xf32>
    %c1 = arith.constant 1 : index
    %c0_120 = arith.constant 0 : index
    %c0_121 = arith.constant 0 : index
    %267 = vector.load %arg11[%c1, %c0_120, %c0_121] : memref<2x32x96xf32, #tpu.memory_space<vmem>>, vector<1x32x96xf32>
    %268 = vector.shape_cast %267 : vector<1x32x96xf32> to vector<32x96xf32>
    %cst_122 = arith.constant dense<0.000000e+00> : vector<8x96xf32>
    %269 = tpu.matmul %266, %268, %cst_122 {dimension_numbers = #tpu.dot_dimension_numbers<[1], [0], [0], [1], [0, 0, 1, 1], [], []>} : vector<8x32xf32>, vector<32x96xf32>, vector<8x96xf32> -> vector<8x96xf32>
    %c1_123 = arith.constant 1 : index
    %c0_124 = arith.constant 0 : index
    %c0_125 = arith.constant 0 : index
    %270 = vector.load %arg12[%c1_123, %c0_124, %c0_125] : memref<2x1x96xf32, #tpu.memory_space<vmem>>, vector<1x1x96xf32>
    %271 = vector.shape_cast %270 : vector<1x1x96xf32> to vector<1x96xf32>
    %272 = vector.broadcast %271 : vector<1x96xf32> to vector<8x96xf32>
    %273 = arith.addf %269, %272 : vector<8x96xf32>
    %274 = vector.extract_strided_slice %273 {offsets = [0, 0], sizes = [8, 32], strides = [1, 1]} : vector<8x96xf32> to vector<8x32xf32>
    %275 = vector.extract_strided_slice %273 {offsets = [0, 32], sizes = [8, 32], strides = [1, 1]} : vector<8x96xf32> to vector<8x32xf32>
    %276 = vector.extract_strided_slice %273 {offsets = [0, 64], sizes = [8, 32], strides = [1, 1]} : vector<8x96xf32> to vector<8x32xf32>
    %c1_126 = arith.constant 1 : index
    %c0_127 = arith.constant 0 : index
    %c0_128 = arith.constant 0 : index
    %277 = vector.load %arg13[%c1_126, %c0_127, %c0_128] : memref<2x32x32xf32, #tpu.memory_space<vmem>>, vector<1x32x32xf32>
    %278 = vector.shape_cast %277 : vector<1x32x32xf32> to vector<32x32xf32>
    %c1_129 = arith.constant 1 : index
    %c0_130 = arith.constant 0 : index
    %c0_131 = arith.constant 0 : index
    %279 = vector.load %arg14[%c1_129, %c0_130, %c0_131] : memref<2x1x32xf32, #tpu.memory_space<vmem>>, vector<1x1x32xf32>
    %280 = vector.shape_cast %279 : vector<1x1x32xf32> to vector<1x32xf32>
    %cst_132 = arith.constant 5.000000e-01 : f32
    %281 = vector.broadcast %cst_132 : f32 to vector<8x32xf32>
    %282 = arith.mulf %274, %281 : vector<8x32xf32>
    %283 = vector.extract_strided_slice %282 {offsets = [0, 0], sizes = [8, 4], strides = [1, 1]} : vector<8x32xf32> to vector<8x4xf32>
    %284 = vector.extract_strided_slice %275 {offsets = [0, 0], sizes = [8, 4], strides = [1, 1]} : vector<8x32xf32> to vector<8x4xf32>
    %285 = vector.extract_strided_slice %276 {offsets = [0, 0], sizes = [8, 4], strides = [1, 1]} : vector<8x32xf32> to vector<8x4xf32>
    %cst_133 = arith.constant dense<0.000000e+00> : vector<8x8xf32>
    %286 = tpu.matmul %283, %284, %cst_133 {dimension_numbers = #tpu.dot_dimension_numbers<[1], [1], [0], [0], [0, 0, 1, 0], [], []>} : vector<8x4xf32>, vector<8x4xf32>, vector<8x8xf32> -> vector<8x8xf32>
    %287 = arith.addf %286, %9 : vector<8x8xf32>
    %cst_134 = arith.constant dense<0xFF800000> : vector<8xf32>
    %288 = vector.multi_reduction <maximumf>, %287, %cst_134 [1] : vector<8x8xf32> to vector<8xf32>
    %289 = vector.shape_cast %288 : vector<8xf32> to vector<8x1xf32>
    %290 = vector.broadcast %289 : vector<8x1xf32> to vector<8x8xf32>
    %291 = arith.subf %287, %290 : vector<8x8xf32>
    %292 = math.exp %291 : vector<8x8xf32>
    %cst_135 = arith.constant dense<0.000000e+00> : vector<8xf32>
    %293 = vector.multi_reduction <add>, %292, %cst_135 [1] : vector<8x8xf32> to vector<8xf32>
    %294 = vector.shape_cast %293 : vector<8xf32> to vector<8x1xf32>
    %295 = vector.broadcast %294 : vector<8x1xf32> to vector<8x8xf32>
    %296 = arith.divf %292, %295 : vector<8x8xf32>
    %cst_136 = arith.constant dense<0.000000e+00> : vector<8x4xf32>
    %297 = tpu.matmul %296, %285, %cst_136 {dimension_numbers = #tpu.dot_dimension_numbers<[1], [0], [0], [1], [0, 0, 1, 1], [], []>} : vector<8x8xf32>, vector<8x4xf32>, vector<8x4xf32> -> vector<8x4xf32>
    %c0_137 = arith.constant 0 : index
    %c0_138 = arith.constant 0 : index
    %298 = vector.load %arg50[%c0_137, %c0_138] : memref<8x32xf32, #tpu.memory_space<vmem>>, vector<8x4xf32>
    tpu.vector_store %arg50[%c0_137, %c0_138], %297 {strides = array<i32>} : memref<8x32xf32, #tpu.memory_space<vmem>>, vector<8x4xf32>,
    %299 = vector.extract_strided_slice %282 {offsets = [0, 4], sizes = [8, 4], strides = [1, 1]} : vector<8x32xf32> to vector<8x4xf32>
    %300 = vector.extract_strided_slice %275 {offsets = [0, 4], sizes = [8, 4], strides = [1, 1]} : vector<8x32xf32> to vector<8x4xf32>
    %301 = vector.extract_strided_slice %276 {offsets = [0, 4], sizes = [8, 4], strides = [1, 1]} : vector<8x32xf32> to vector<8x4xf32>
    %cst_139 = arith.constant dense<0.000000e+00> : vector<8x8xf32>
    %302 = tpu.matmul %299, %300, %cst_139 {dimension_numbers = #tpu.dot_dimension_numbers<[1], [1], [0], [0], [0, 0, 1, 0], [], []>} : vector<8x4xf32>, vector<8x4xf32>, vector<8x8xf32> -> vector<8x8xf32>
    %303 = arith.addf %302, %9 : vector<8x8xf32>
    %cst_140 = arith.constant dense<0xFF800000> : vector<8xf32>
    %304 = vector.multi_reduction <maximumf>, %303, %cst_140 [1] : vector<8x8xf32> to vector<8xf32>
    %305 = vector.shape_cast %304 : vector<8xf32> to vector<8x1xf32>
    %306 = vector.broadcast %305 : vector<8x1xf32> to vector<8x8xf32>
    %307 = arith.subf %303, %306 : vector<8x8xf32>
    %308 = math.exp %307 : vector<8x8xf32>
    %cst_141 = arith.constant dense<0.000000e+00> : vector<8xf32>
    %309 = vector.multi_reduction <add>, %308, %cst_141 [1] : vector<8x8xf32> to vector<8xf32>
    %310 = vector.shape_cast %309 : vector<8xf32> to vector<8x1xf32>
    %311 = vector.broadcast %310 : vector<8x1xf32> to vector<8x8xf32>
    %312 = arith.divf %308, %311 : vector<8x8xf32>
    %cst_142 = arith.constant dense<0.000000e+00> : vector<8x4xf32>
    %313 = tpu.matmul %312, %301, %cst_142 {dimension_numbers = #tpu.dot_dimension_numbers<[1], [0], [0], [1], [0, 0, 1, 1], [], []>} : vector<8x8xf32>, vector<8x4xf32>, vector<8x4xf32> -> vector<8x4xf32>
    %c0_143 = arith.constant 0 : index
    %c4_144 = arith.constant 4 : index
    %314 = vector.load %arg50[%c0_143, %c4_144] : memref<8x32xf32, #tpu.memory_space<vmem>>, vector<8x4xf32>
    tpu.vector_store %arg50[%c0_143, %c4_144], %313 {strides = array<i32>} : memref<8x32xf32, #tpu.memory_space<vmem>>, vector<8x4xf32>,
    %315 = vector.extract_strided_slice %282 {offsets = [0, 8], sizes = [8, 4], strides = [1, 1]} : vector<8x32xf32> to vector<8x4xf32>
    %316 = vector.extract_strided_slice %275 {offsets = [0, 8], sizes = [8, 4], strides = [1, 1]} : vector<8x32xf32> to vector<8x4xf32>
    %317 = vector.extract_strided_slice %276 {offsets = [0, 8], sizes = [8, 4], strides = [1, 1]} : vector<8x32xf32> to vector<8x4xf32>
    %cst_145 = arith.constant dense<0.000000e+00> : vector<8x8xf32>
    %318 = tpu.matmul %315, %316, %cst_145 {dimension_numbers = #tpu.dot_dimension_numbers<[1], [1], [0], [0], [0, 0, 1, 0], [], []>} : vector<8x4xf32>, vector<8x4xf32>, vector<8x8xf32> -> vector<8x8xf32>
    %319 = arith.addf %318, %9 : vector<8x8xf32>
    %cst_146 = arith.constant dense<0xFF800000> : vector<8xf32>
    %320 = vector.multi_reduction <maximumf>, %319, %cst_146 [1] : vector<8x8xf32> to vector<8xf32>
    %321 = vector.shape_cast %320 : vector<8xf32> to vector<8x1xf32>
    %322 = vector.broadcast %321 : vector<8x1xf32> to vector<8x8xf32>
    %323 = arith.subf %319, %322 : vector<8x8xf32>
    %324 = math.exp %323 : vector<8x8xf32>
    %cst_147 = arith.constant dense<0.000000e+00> : vector<8xf32>
    %325 = vector.multi_reduction <add>, %324, %cst_147 [1] : vector<8x8xf32> to vector<8xf32>
    %326 = vector.shape_cast %325 : vector<8xf32> to vector<8x1xf32>
    %327 = vector.broadcast %326 : vector<8x1xf32> to vector<8x8xf32>
    %328 = arith.divf %324, %327 : vector<8x8xf32>
    %cst_148 = arith.constant dense<0.000000e+00> : vector<8x4xf32>
    %329 = tpu.matmul %328, %317, %cst_148 {dimension_numbers = #tpu.dot_dimension_numbers<[1], [0], [0], [1], [0, 0, 1, 1], [], []>} : vector<8x8xf32>, vector<8x4xf32>, vector<8x4xf32> -> vector<8x4xf32>
    %c0_149 = arith.constant 0 : index
    %c8_150 = arith.constant 8 : index
    %330 = vector.load %arg50[%c0_149, %c8_150] : memref<8x32xf32, #tpu.memory_space<vmem>>, vector<8x4xf32>
    tpu.vector_store %arg50[%c0_149, %c8_150], %329 {strides = array<i32>} : memref<8x32xf32, #tpu.memory_space<vmem>>, vector<8x4xf32>,
    %331 = vector.extract_strided_slice %282 {offsets = [0, 12], sizes = [8, 4], strides = [1, 1]} : vector<8x32xf32> to vector<8x4xf32>
    %332 = vector.extract_strided_slice %275 {offsets = [0, 12], sizes = [8, 4], strides = [1, 1]} : vector<8x32xf32> to vector<8x4xf32>
    %333 = vector.extract_strided_slice %276 {offsets = [0, 12], sizes = [8, 4], strides = [1, 1]} : vector<8x32xf32> to vector<8x4xf32>
    %cst_151 = arith.constant dense<0.000000e+00> : vector<8x8xf32>
    %334 = tpu.matmul %331, %332, %cst_151 {dimension_numbers = #tpu.dot_dimension_numbers<[1], [1], [0], [0], [0, 0, 1, 0], [], []>} : vector<8x4xf32>, vector<8x4xf32>, vector<8x8xf32> -> vector<8x8xf32>
    %335 = arith.addf %334, %9 : vector<8x8xf32>
    %cst_152 = arith.constant dense<0xFF800000> : vector<8xf32>
    %336 = vector.multi_reduction <maximumf>, %335, %cst_152 [1] : vector<8x8xf32> to vector<8xf32>
    %337 = vector.shape_cast %336 : vector<8xf32> to vector<8x1xf32>
    %338 = vector.broadcast %337 : vector<8x1xf32> to vector<8x8xf32>
    %339 = arith.subf %335, %338 : vector<8x8xf32>
    %340 = math.exp %339 : vector<8x8xf32>
    %cst_153 = arith.constant dense<0.000000e+00> : vector<8xf32>
    %341 = vector.multi_reduction <add>, %340, %cst_153 [1] : vector<8x8xf32> to vector<8xf32>
    %342 = vector.shape_cast %341 : vector<8xf32> to vector<8x1xf32>
    %343 = vector.broadcast %342 : vector<8x1xf32> to vector<8x8xf32>
    %344 = arith.divf %340, %343 : vector<8x8xf32>
    %cst_154 = arith.constant dense<0.000000e+00> : vector<8x4xf32>
    %345 = tpu.matmul %344, %333, %cst_154 {dimension_numbers = #tpu.dot_dimension_numbers<[1], [0], [0], [1], [0, 0, 1, 1], [], []>} : vector<8x8xf32>, vector<8x4xf32>, vector<8x4xf32> -> vector<8x4xf32>
    %c0_155 = arith.constant 0 : index
    %c12_156 = arith.constant 12 : index
    %346 = vector.load %arg50[%c0_155, %c12_156] : memref<8x32xf32, #tpu.memory_space<vmem>>, vector<8x4xf32>
    tpu.vector_store %arg50[%c0_155, %c12_156], %345 {strides = array<i32>} : memref<8x32xf32, #tpu.memory_space<vmem>>, vector<8x4xf32>,
    %347 = vector.extract_strided_slice %282 {offsets = [0, 16], sizes = [8, 4], strides = [1, 1]} : vector<8x32xf32> to vector<8x4xf32>
    %348 = vector.extract_strided_slice %275 {offsets = [0, 16], sizes = [8, 4], strides = [1, 1]} : vector<8x32xf32> to vector<8x4xf32>
    %349 = vector.extract_strided_slice %276 {offsets = [0, 16], sizes = [8, 4], strides = [1, 1]} : vector<8x32xf32> to vector<8x4xf32>
    %cst_157 = arith.constant dense<0.000000e+00> : vector<8x8xf32>
    %350 = tpu.matmul %347, %348, %cst_157 {dimension_numbers = #tpu.dot_dimension_numbers<[1], [1], [0], [0], [0, 0, 1, 0], [], []>} : vector<8x4xf32>, vector<8x4xf32>, vector<8x8xf32> -> vector<8x8xf32>
    %351 = arith.addf %350, %9 : vector<8x8xf32>
    %cst_158 = arith.constant dense<0xFF800000> : vector<8xf32>
    %352 = vector.multi_reduction <maximumf>, %351, %cst_158 [1] : vector<8x8xf32> to vector<8xf32>
    %353 = vector.shape_cast %352 : vector<8xf32> to vector<8x1xf32>
    %354 = vector.broadcast %353 : vector<8x1xf32> to vector<8x8xf32>
    %355 = arith.subf %351, %354 : vector<8x8xf32>
    %356 = math.exp %355 : vector<8x8xf32>
    %cst_159 = arith.constant dense<0.000000e+00> : vector<8xf32>
    %357 = vector.multi_reduction <add>, %356, %cst_159 [1] : vector<8x8xf32> to vector<8xf32>
    %358 = vector.shape_cast %357 : vector<8xf32> to vector<8x1xf32>
    %359 = vector.broadcast %358 : vector<8x1xf32> to vector<8x8xf32>
    %360 = arith.divf %356, %359 : vector<8x8xf32>
    %cst_160 = arith.constant dense<0.000000e+00> : vector<8x4xf32>
    %361 = tpu.matmul %360, %349, %cst_160 {dimension_numbers = #tpu.dot_dimension_numbers<[1], [0], [0], [1], [0, 0, 1, 1], [], []>} : vector<8x8xf32>, vector<8x4xf32>, vector<8x4xf32> -> vector<8x4xf32>
    %c0_161 = arith.constant 0 : index
    %c16_162 = arith.constant 16 : index
    %362 = vector.load %arg50[%c0_161, %c16_162] : memref<8x32xf32, #tpu.memory_space<vmem>>, vector<8x4xf32>
    tpu.vector_store %arg50[%c0_161, %c16_162], %361 {strides = array<i32>} : memref<8x32xf32, #tpu.memory_space<vmem>>, vector<8x4xf32>,
    %363 = vector.extract_strided_slice %282 {offsets = [0, 20], sizes = [8, 4], strides = [1, 1]} : vector<8x32xf32> to vector<8x4xf32>
    %364 = vector.extract_strided_slice %275 {offsets = [0, 20], sizes = [8, 4], strides = [1, 1]} : vector<8x32xf32> to vector<8x4xf32>
    %365 = vector.extract_strided_slice %276 {offsets = [0, 20], sizes = [8, 4], strides = [1, 1]} : vector<8x32xf32> to vector<8x4xf32>
    %cst_163 = arith.constant dense<0.000000e+00> : vector<8x8xf32>
    %366 = tpu.matmul %363, %364, %cst_163 {dimension_numbers = #tpu.dot_dimension_numbers<[1], [1], [0], [0], [0, 0, 1, 0], [], []>} : vector<8x4xf32>, vector<8x4xf32>, vector<8x8xf32> -> vector<8x8xf32>
    %367 = arith.addf %366, %9 : vector<8x8xf32>
    %cst_164 = arith.constant dense<0xFF800000> : vector<8xf32>
    %368 = vector.multi_reduction <maximumf>, %367, %cst_164 [1] : vector<8x8xf32> to vector<8xf32>
    %369 = vector.shape_cast %368 : vector<8xf32> to vector<8x1xf32>
    %370 = vector.broadcast %369 : vector<8x1xf32> to vector<8x8xf32>
    %371 = arith.subf %367, %370 : vector<8x8xf32>
    %372 = math.exp %371 : vector<8x8xf32>
    %cst_165 = arith.constant dense<0.000000e+00> : vector<8xf32>
    %373 = vector.multi_reduction <add>, %372, %cst_165 [1] : vector<8x8xf32> to vector<8xf32>
    %374 = vector.shape_cast %373 : vector<8xf32> to vector<8x1xf32>
    %375 = vector.broadcast %374 : vector<8x1xf32> to vector<8x8xf32>
    %376 = arith.divf %372, %375 : vector<8x8xf32>
    %cst_166 = arith.constant dense<0.000000e+00> : vector<8x4xf32>
    %377 = tpu.matmul %376, %365, %cst_166 {dimension_numbers = #tpu.dot_dimension_numbers<[1], [0], [0], [1], [0, 0, 1, 1], [], []>} : vector<8x8xf32>, vector<8x4xf32>, vector<8x4xf32> -> vector<8x4xf32>
    %c0_167 = arith.constant 0 : index
    %c20_168 = arith.constant 20 : index
    %378 = vector.load %arg50[%c0_167, %c20_168] : memref<8x32xf32, #tpu.memory_space<vmem>>, vector<8x4xf32>
    tpu.vector_store %arg50[%c0_167, %c20_168], %377 {strides = array<i32>} : memref<8x32xf32, #tpu.memory_space<vmem>>, vector<8x4xf32>,
    %379 = vector.extract_strided_slice %282 {offsets = [0, 24], sizes = [8, 4], strides = [1, 1]} : vector<8x32xf32> to vector<8x4xf32>
    %380 = vector.extract_strided_slice %275 {offsets = [0, 24], sizes = [8, 4], strides = [1, 1]} : vector<8x32xf32> to vector<8x4xf32>
    %381 = vector.extract_strided_slice %276 {offsets = [0, 24], sizes = [8, 4], strides = [1, 1]} : vector<8x32xf32> to vector<8x4xf32>
    %cst_169 = arith.constant dense<0.000000e+00> : vector<8x8xf32>
    %382 = tpu.matmul %379, %380, %cst_169 {dimension_numbers = #tpu.dot_dimension_numbers<[1], [1], [0], [0], [0, 0, 1, 0], [], []>} : vector<8x4xf32>, vector<8x4xf32>, vector<8x8xf32> -> vector<8x8xf32>
    %383 = arith.addf %382, %9 : vector<8x8xf32>
    %cst_170 = arith.constant dense<0xFF800000> : vector<8xf32>
    %384 = vector.multi_reduction <maximumf>, %383, %cst_170 [1] : vector<8x8xf32> to vector<8xf32>
    %385 = vector.shape_cast %384 : vector<8xf32> to vector<8x1xf32>
    %386 = vector.broadcast %385 : vector<8x1xf32> to vector<8x8xf32>
    %387 = arith.subf %383, %386 : vector<8x8xf32>
    %388 = math.exp %387 : vector<8x8xf32>
    %cst_171 = arith.constant dense<0.000000e+00> : vector<8xf32>
    %389 = vector.multi_reduction <add>, %388, %cst_171 [1] : vector<8x8xf32> to vector<8xf32>
    %390 = vector.shape_cast %389 : vector<8xf32> to vector<8x1xf32>
    %391 = vector.broadcast %390 : vector<8x1xf32> to vector<8x8xf32>
    %392 = arith.divf %388, %391 : vector<8x8xf32>
    %cst_172 = arith.constant dense<0.000000e+00> : vector<8x4xf32>
    %393 = tpu.matmul %392, %381, %cst_172 {dimension_numbers = #tpu.dot_dimension_numbers<[1], [0], [0], [1], [0, 0, 1, 1], [], []>} : vector<8x8xf32>, vector<8x4xf32>, vector<8x4xf32> -> vector<8x4xf32>
    %c0_173 = arith.constant 0 : index
    %c24_174 = arith.constant 24 : index
    %394 = vector.load %arg50[%c0_173, %c24_174] : memref<8x32xf32, #tpu.memory_space<vmem>>, vector<8x4xf32>
    tpu.vector_store %arg50[%c0_173, %c24_174], %393 {strides = array<i32>} : memref<8x32xf32, #tpu.memory_space<vmem>>, vector<8x4xf32>,
    %395 = vector.extract_strided_slice %282 {offsets = [0, 28], sizes = [8, 4], strides = [1, 1]} : vector<8x32xf32> to vector<8x4xf32>
    %396 = vector.extract_strided_slice %275 {offsets = [0, 28], sizes = [8, 4], strides = [1, 1]} : vector<8x32xf32> to vector<8x4xf32>
    %397 = vector.extract_strided_slice %276 {offsets = [0, 28], sizes = [8, 4], strides = [1, 1]} : vector<8x32xf32> to vector<8x4xf32>
    %cst_175 = arith.constant dense<0.000000e+00> : vector<8x8xf32>
    %398 = tpu.matmul %395, %396, %cst_175 {dimension_numbers = #tpu.dot_dimension_numbers<[1], [1], [0], [0], [0, 0, 1, 0], [], []>} : vector<8x4xf32>, vector<8x4xf32>, vector<8x8xf32> -> vector<8x8xf32>
    %399 = arith.addf %398, %9 : vector<8x8xf32>
    %cst_176 = arith.constant dense<0xFF800000> : vector<8xf32>
    %400 = vector.multi_reduction <maximumf>, %399, %cst_176 [1] : vector<8x8xf32> to vector<8xf32>
    %401 = vector.shape_cast %400 : vector<8xf32> to vector<8x1xf32>
    %402 = vector.broadcast %401 : vector<8x1xf32> to vector<8x8xf32>
    %403 = arith.subf %399, %402 : vector<8x8xf32>
    %404 = math.exp %403 : vector<8x8xf32>
    %cst_177 = arith.constant dense<0.000000e+00> : vector<8xf32>
    %405 = vector.multi_reduction <add>, %404, %cst_177 [1] : vector<8x8xf32> to vector<8xf32>
    %406 = vector.shape_cast %405 : vector<8xf32> to vector<8x1xf32>
    %407 = vector.broadcast %406 : vector<8x1xf32> to vector<8x8xf32>
    %408 = arith.divf %404, %407 : vector<8x8xf32>
    %cst_178 = arith.constant dense<0.000000e+00> : vector<8x4xf32>
    %409 = tpu.matmul %408, %397, %cst_178 {dimension_numbers = #tpu.dot_dimension_numbers<[1], [0], [0], [1], [0, 0, 1, 1], [], []>} : vector<8x8xf32>, vector<8x4xf32>, vector<8x4xf32> -> vector<8x4xf32>
    %c0_179 = arith.constant 0 : index
    %c28_180 = arith.constant 28 : index
    %410 = vector.load %arg50[%c0_179, %c28_180] : memref<8x32xf32, #tpu.memory_space<vmem>>, vector<8x4xf32>
    tpu.vector_store %arg50[%c0_179, %c28_180], %409 {strides = array<i32>} : memref<8x32xf32, #tpu.memory_space<vmem>>, vector<8x4xf32>,
    %c0_181 = arith.constant 0 : index
    %c0_182 = arith.constant 0 : index
    %411 = vector.load %arg50[%c0_181, %c0_182] : memref<8x32xf32, #tpu.memory_space<vmem>>, vector<8x32xf32>
    %cst_183 = arith.constant dense<0.000000e+00> : vector<8x32xf32>
    %412 = tpu.matmul %411, %278, %cst_183 {dimension_numbers = #tpu.dot_dimension_numbers<[1], [0], [0], [1], [0, 0, 1, 1], [], []>} : vector<8x32xf32>, vector<32x32xf32>, vector<8x32xf32> -> vector<8x32xf32>
    %413 = vector.broadcast %280 : vector<1x32xf32> to vector<8x32xf32>
    %414 = arith.addf %412, %413 : vector<8x32xf32>
    %415 = arith.addf %266, %414 : vector<8x32xf32>
    %c1_184 = arith.constant 1 : index
    %c0_185 = arith.constant 0 : index
    %c0_186 = arith.constant 0 : index
    %416 = vector.load %arg15[%c1_184, %c0_185, %c0_186] : memref<2x1x32xf32, #tpu.memory_space<vmem>>, vector<1x1x32xf32>
    %417 = vector.shape_cast %416 : vector<1x1x32xf32> to vector<1x32xf32>
    %c1_187 = arith.constant 1 : index
    %c0_188 = arith.constant 0 : index
    %c0_189 = arith.constant 0 : index
    %418 = vector.load %arg16[%c1_187, %c0_188, %c0_189] : memref<2x1x32xf32, #tpu.memory_space<vmem>>, vector<1x1x32xf32>
    %419 = vector.shape_cast %418 : vector<1x1x32xf32> to vector<1x32xf32>
    %cst_190 = arith.constant dense<0.000000e+00> : vector<8xf32>
    %420 = vector.multi_reduction <add>, %415, %cst_190 [1] : vector<8x32xf32> to vector<8xf32>
    %421 = vector.shape_cast %420 : vector<8xf32> to vector<8x1xf32>
    %cst_191 = arith.constant 3.200000e+01 : f32
    %422 = vector.broadcast %cst_191 : f32 to vector<8x1xf32>
    %423 = arith.divf %421, %422 : vector<8x1xf32>
    %424 = vector.broadcast %423 : vector<8x1xf32> to vector<8x32xf32>
    %425 = arith.subf %415, %424 : vector<8x32xf32>
    %426 = arith.mulf %425, %425 : vector<8x32xf32>
    %cst_192 = arith.constant dense<0.000000e+00> : vector<8xf32>
    %427 = vector.multi_reduction <add>, %426, %cst_192 [1] : vector<8x32xf32> to vector<8xf32>
    %428 = vector.shape_cast %427 : vector<8xf32> to vector<8x1xf32>
    %cst_193 = arith.constant 3.200000e+01 : f32
    %429 = vector.broadcast %cst_193 : f32 to vector<8x1xf32>
    %430 = arith.divf %428, %429 : vector<8x1xf32>
    %431 = vector.broadcast %423 : vector<8x1xf32> to vector<8x32xf32>
    %432 = arith.subf %415, %431 : vector<8x32xf32>
    %cst_194 = arith.constant 9.99999974E-6 : f32
    %433 = vector.broadcast %cst_194 : f32 to vector<8x1xf32>
    %434 = arith.addf %430, %433 : vector<8x1xf32>
    %435 = math.rsqrt %434 : vector<8x1xf32>
    %436 = vector.broadcast %435 : vector<8x1xf32> to vector<8x32xf32>
    %437 = arith.mulf %432, %436 : vector<8x32xf32>
    %438 = vector.broadcast %417 : vector<1x32xf32> to vector<8x32xf32>
    %439 = arith.mulf %437, %438 : vector<8x32xf32>
    %440 = vector.broadcast %419 : vector<1x32xf32> to vector<8x32xf32>
    %441 = arith.addf %439, %440 : vector<8x32xf32>
    %c1_195 = arith.constant 1 : index
    %c0_196 = arith.constant 0 : index
    %c0_197 = arith.constant 0 : index
    %442 = vector.load %arg17[%c1_195, %c0_196, %c0_197] : memref<2x32x64xf32, #tpu.memory_space<vmem>>, vector<1x32x64xf32>
    %443 = vector.shape_cast %442 : vector<1x32x64xf32> to vector<32x64xf32>
    %cst_198 = arith.constant dense<0.000000e+00> : vector<8x64xf32>
    %444 = tpu.matmul %441, %443, %cst_198 {dimension_numbers = #tpu.dot_dimension_numbers<[1], [0], [0], [1], [0, 0, 1, 1], [], []>} : vector<8x32xf32>, vector<32x64xf32>, vector<8x64xf32> -> vector<8x64xf32>
    %c1_199 = arith.constant 1 : index
    %c0_200 = arith.constant 0 : index
    %c0_201 = arith.constant 0 : index
    %445 = vector.load %arg18[%c1_199, %c0_200, %c0_201] : memref<2x1x64xf32, #tpu.memory_space<vmem>>, vector<1x1x64xf32>
    %446 = vector.shape_cast %445 : vector<1x1x64xf32> to vector<1x64xf32>
    %447 = vector.broadcast %446 : vector<1x64xf32> to vector<8x64xf32>
    %448 = arith.addf %444, %447 : vector<8x64xf32>
    %cst_202 = arith.constant 5.000000e-01 : f32
    %449 = vector.broadcast %cst_202 : f32 to vector<8x64xf32>
    %450 = arith.mulf %449, %448 : vector<8x64xf32>
    %cst_203 = arith.constant 0.707106769 : f32
    %451 = vector.broadcast %cst_203 : f32 to vector<8x64xf32>
    %452 = arith.mulf %448, %451 : vector<8x64xf32>
    %cst_204 = arith.constant 0.000000e+00 : f32
    %453 = vector.broadcast %cst_204 : f32 to vector<8x64xf32>
    %454 = arith.cmpf olt, %452, %453 : vector<8x64xf32>
    %cst_205 = arith.constant -1.000000e+00 : f32
    %cst_206 = arith.constant 1.000000e+00 : f32
    %455 = vector.broadcast %cst_205 : f32 to vector<8x64xf32>
    %456 = vector.broadcast %cst_206 : f32 to vector<8x64xf32>
    %457 = arith.select %454, %455, %456 : vector<8x64xi1>, vector<8x64xf32>
    %458 = math.absf %452 : vector<8x64xf32>
    %cst_207 = arith.constant 0.327591091 : f32
    %459 = vector.broadcast %cst_207 : f32 to vector<8x64xf32>
    %460 = arith.mulf %459, %458 : vector<8x64xf32>
    %cst_208 = arith.constant 1.000000e+00 : f32
    %461 = vector.broadcast %cst_208 : f32 to vector<8x64xf32>
    %462 = arith.addf %461, %460 : vector<8x64xf32>
    %cst_209 = arith.constant 1.000000e+00 : f32
    %463 = vector.broadcast %cst_209 : f32 to vector<8x64xf32>
    %464 = arith.divf %463, %462 : vector<8x64xf32>
    %cst_210 = arith.constant 1.06140542 : f32
    %465 = vector.broadcast %cst_210 : f32 to vector<8x64xf32>
    %466 = arith.mulf %465, %464 : vector<8x64xf32>
    %cst_211 = arith.constant -1.45315206 : f32
    %467 = vector.broadcast %cst_211 : f32 to vector<8x64xf32>
    %468 = arith.addf %466, %467 : vector<8x64xf32>
    %469 = arith.mulf %468, %464 : vector<8x64xf32>
    %cst_212 = arith.constant 1.42141378 : f32
    %470 = vector.broadcast %cst_212 : f32 to vector<8x64xf32>
    %471 = arith.addf %469, %470 : vector<8x64xf32>
    %472 = arith.mulf %471, %464 : vector<8x64xf32>
    %cst_213 = arith.constant -0.284496725 : f32
    %473 = vector.broadcast %cst_213 : f32 to vector<8x64xf32>
    %474 = arith.addf %472, %473 : vector<8x64xf32>
    %475 = arith.mulf %474, %464 : vector<8x64xf32>
    %cst_214 = arith.constant 0.254829586 : f32
    %476 = vector.broadcast %cst_214 : f32 to vector<8x64xf32>
    %477 = arith.addf %475, %476 : vector<8x64xf32>
    %478 = arith.mulf %477, %464 : vector<8x64xf32>
    %cst_215 = arith.constant 0.000000e+00 : f32
    %479 = vector.broadcast %cst_215 : f32 to vector<8x64xf32>
    %480 = arith.subf %479, %458 : vector<8x64xf32>
    %481 = arith.mulf %480, %458 : vector<8x64xf32>
    %482 = math.exp %481 : vector<8x64xf32>
    %483 = arith.mulf %478, %482 : vector<8x64xf32>
    %cst_216 = arith.constant 1.000000e+00 : f32
    %484 = vector.broadcast %cst_216 : f32 to vector<8x64xf32>
    %485 = arith.subf %484, %483 : vector<8x64xf32>
    %486 = arith.mulf %457, %485 : vector<8x64xf32>
    %cst_217 = arith.constant 1.000000e+00 : f32
    %487 = vector.broadcast %cst_217 : f32 to vector<8x64xf32>
    %488 = arith.addf %487, %486 : vector<8x64xf32>
    %489 = arith.mulf %450, %488 : vector<8x64xf32>
    %c1_218 = arith.constant 1 : index
    %c0_219 = arith.constant 0 : index
    %c0_220 = arith.constant 0 : index
    %490 = vector.load %arg19[%c1_218, %c0_219, %c0_220] : memref<2x64x32xf32, #tpu.memory_space<vmem>>, vector<1x64x32xf32>
    %491 = vector.shape_cast %490 : vector<1x64x32xf32> to vector<64x32xf32>
    %cst_221 = arith.constant dense<0.000000e+00> : vector<8x32xf32>
    %492 = tpu.matmul %489, %491, %cst_221 {dimension_numbers = #tpu.dot_dimension_numbers<[1], [0], [0], [1], [0, 0, 1, 1], [], []>} : vector<8x64xf32>, vector<64x32xf32>, vector<8x32xf32> -> vector<8x32xf32>
    %c1_222 = arith.constant 1 : index
    %c0_223 = arith.constant 0 : index
    %c0_224 = arith.constant 0 : index
    %493 = vector.load %arg20[%c1_222, %c0_223, %c0_224] : memref<2x1x32xf32, #tpu.memory_space<vmem>>, vector<1x1x32xf32>
    %494 = vector.shape_cast %493 : vector<1x1x32xf32> to vector<1x32xf32>
    %495 = vector.broadcast %494 : vector<1x32xf32> to vector<8x32xf32>
    %496 = arith.addf %492, %495 : vector<8x32xf32>
    %497 = arith.addf %441, %496 : vector<8x32xf32>
    %c1_225 = arith.constant 1 : index
    %c0_226 = arith.constant 0 : index
    %c0_227 = arith.constant 0 : index
    %498 = vector.load %arg21[%c1_225, %c0_226, %c0_227] : memref<2x1x32xf32, #tpu.memory_space<vmem>>, vector<1x1x32xf32>
    %499 = vector.shape_cast %498 : vector<1x1x32xf32> to vector<1x32xf32>
    %c1_228 = arith.constant 1 : index
    %c0_229 = arith.constant 0 : index
    %c0_230 = arith.constant 0 : index
    %500 = vector.load %arg22[%c1_228, %c0_229, %c0_230] : memref<2x1x32xf32, #tpu.memory_space<vmem>>, vector<1x1x32xf32>
    %501 = vector.shape_cast %500 : vector<1x1x32xf32> to vector<1x32xf32>
    %cst_231 = arith.constant dense<0.000000e+00> : vector<8xf32>
    %502 = vector.multi_reduction <add>, %497, %cst_231 [1] : vector<8x32xf32> to vector<8xf32>
    %503 = vector.shape_cast %502 : vector<8xf32> to vector<8x1xf32>
    %cst_232 = arith.constant 3.200000e+01 : f32
    %504 = vector.broadcast %cst_232 : f32 to vector<8x1xf32>
    %505 = arith.divf %503, %504 : vector<8x1xf32>
    %506 = vector.broadcast %505 : vector<8x1xf32> to vector<8x32xf32>
    %507 = arith.subf %497, %506 : vector<8x32xf32>
    %508 = arith.mulf %507, %507 : vector<8x32xf32>
    %cst_233 = arith.constant dense<0.000000e+00> : vector<8xf32>
    %509 = vector.multi_reduction <add>, %508, %cst_233 [1] : vector<8x32xf32> to vector<8xf32>
    %510 = vector.shape_cast %509 : vector<8xf32> to vector<8x1xf32>
    %cst_234 = arith.constant 3.200000e+01 : f32
    %511 = vector.broadcast %cst_234 : f32 to vector<8x1xf32>
    %512 = arith.divf %510, %511 : vector<8x1xf32>
    %513 = vector.broadcast %505 : vector<8x1xf32> to vector<8x32xf32>
    %514 = arith.subf %497, %513 : vector<8x32xf32>
    %cst_235 = arith.constant 9.99999974E-6 : f32
    %515 = vector.broadcast %cst_235 : f32 to vector<8x1xf32>
    %516 = arith.addf %512, %515 : vector<8x1xf32>
    %517 = math.rsqrt %516 : vector<8x1xf32>
    %518 = vector.broadcast %517 : vector<8x1xf32> to vector<8x32xf32>
    %519 = arith.mulf %514, %518 : vector<8x32xf32>
    %520 = vector.broadcast %499 : vector<1x32xf32> to vector<8x32xf32>
    %521 = arith.mulf %519, %520 : vector<8x32xf32>
    %522 = vector.broadcast %501 : vector<1x32xf32> to vector<8x32xf32>
    %523 = arith.addf %521, %522 : vector<8x32xf32>
    %c0_236 = arith.constant 0 : index
    %c0_237 = arith.constant 0 : index
    %524 = vector.load %arg23[%c0_236, %c0_237] : memref<1x32xf32, #tpu.memory_space<vmem>>, vector<1x32xf32>
    %c0_238 = arith.constant 0 : index
    %c0_239 = arith.constant 0 : index
    %525 = vector.load %arg24[%c0_238, %c0_239] : memref<1x32xf32, #tpu.memory_space<vmem>>, vector<1x32xf32>
    %cst_240 = arith.constant dense<0.000000e+00> : vector<8xf32>
    %526 = vector.multi_reduction <add>, %523, %cst_240 [1] : vector<8x32xf32> to vector<8xf32>
    %527 = vector.shape_cast %526 : vector<8xf32> to vector<8x1xf32>
    %cst_241 = arith.constant 3.200000e+01 : f32
    %528 = vector.broadcast %cst_241 : f32 to vector<8x1xf32>
    %529 = arith.divf %527, %528 : vector<8x1xf32>
    %530 = vector.broadcast %529 : vector<8x1xf32> to vector<8x32xf32>
    %531 = arith.subf %523, %530 : vector<8x32xf32>
    %532 = arith.mulf %531, %531 : vector<8x32xf32>
    %cst_242 = arith.constant dense<0.000000e+00> : vector<8xf32>
    %533 = vector.multi_reduction <add>, %532, %cst_242 [1] : vector<8x32xf32> to vector<8xf32>
    %534 = vector.shape_cast %533 : vector<8xf32> to vector<8x1xf32>
    %cst_243 = arith.constant 3.200000e+01 : f32
    %535 = vector.broadcast %cst_243 : f32 to vector<8x1xf32>
    %536 = arith.divf %534, %535 : vector<8x1xf32>
    %537 = vector.broadcast %529 : vector<8x1xf32> to vector<8x32xf32>
    %538 = arith.subf %523, %537 : vector<8x32xf32>
    %cst_244 = arith.constant 9.99999974E-6 : f32
    %539 = vector.broadcast %cst_244 : f32 to vector<8x1xf32>
    %540 = arith.addf %536, %539 : vector<8x1xf32>
    %541 = math.rsqrt %540 : vector<8x1xf32>
    %542 = vector.broadcast %541 : vector<8x1xf32> to vector<8x32xf32>
    %543 = arith.mulf %538, %542 : vector<8x32xf32>
    %544 = vector.broadcast %524 : vector<1x32xf32> to vector<8x32xf32>
    %545 = arith.mulf %543, %544 : vector<8x32xf32>
    %546 = vector.broadcast %525 : vector<1x32xf32> to vector<8x32xf32>
    %547 = arith.addf %545, %546 : vector<8x32xf32>
    %c0_245 = arith.constant 0 : index
    %c0_246 = arith.constant 0 : index
    %c0_247 = arith.constant 0 : index
    %548 = vector.load %arg2[%c0_245, %c0_246, %c0_247] : memref<1x8x4xf32, #tpu.memory_space<vmem>>, vector<1x8x4xf32>
    %549 = vector.shape_cast %548 : vector<1x8x4xf32> to vector<8x4xf32>
    %c0_248 = arith.constant 0 : index
    %c0_249 = arith.constant 0 : index
    %550 = vector.load %arg7[%c0_248, %c0_249] : memref<4x32xf32, #tpu.memory_space<vmem>>, vector<4x32xf32>
    %cst_250 = arith.constant dense<0.000000e+00> : vector<8x32xf32>
    %551 = tpu.matmul %549, %550, %cst_250 {dimension_numbers = #tpu.dot_dimension_numbers<[1], [0], [0], [1], [0, 0, 1, 1], [], []>} : vector<8x4xf32>, vector<4x32xf32>, vector<8x32xf32> -> vector<8x32xf32>
    %c0_251 = arith.constant 0 : index
    %c0_252 = arith.constant 0 : index
    %552 = vector.load %arg8[%c0_251, %c0_252] : memref<1x32xf32, #tpu.memory_space<vmem>>, vector<1x32xf32>
    %553 = vector.broadcast %552 : vector<1x32xf32> to vector<8x32xf32>
    %554 = arith.addf %551, %553 : vector<8x32xf32>
    %c0_253 = arith.constant 0 : index
    %c0_254 = arith.constant 0 : index
    %555 = vector.load %arg10[%c0_253, %c0_254] : memref<8x32xf32, #tpu.memory_space<vmem>>, vector<8x32xf32>
    %556 = arith.addf %554, %555 : vector<8x32xf32>
    %c0_255 = arith.constant 0 : index
    %c0_256 = arith.constant 0 : index
    %557 = vector.load %arg4[%c0_255, %c0_256] : memref<8x8xf32, #tpu.memory_space<vmem>>, vector<8x8xf32>
    %c0_257 = arith.constant 0 : index
    %c0_258 = arith.constant 0 : index
    %c0_259 = arith.constant 0 : index
    %558 = vector.load %arg25[%c0_257, %c0_258, %c0_259] : memref<2x32x96xf32, #tpu.memory_space<vmem>>, vector<1x32x96xf32>
    %559 = vector.shape_cast %558 : vector<1x32x96xf32> to vector<32x96xf32>
    %cst_260 = arith.constant dense<0.000000e+00> : vector<8x96xf32>
    %560 = tpu.matmul %556, %559, %cst_260 {dimension_numbers = #tpu.dot_dimension_numbers<[1], [0], [0], [1], [0, 0, 1, 1], [], []>} : vector<8x32xf32>, vector<32x96xf32>, vector<8x96xf32> -> vector<8x96xf32>
    %c0_261 = arith.constant 0 : index
    %c0_262 = arith.constant 0 : index
    %c0_263 = arith.constant 0 : index
    %561 = vector.load %arg26[%c0_261, %c0_262, %c0_263] : memref<2x1x96xf32, #tpu.memory_space<vmem>>, vector<1x1x96xf32>
    %562 = vector.shape_cast %561 : vector<1x1x96xf32> to vector<1x96xf32>
    %563 = vector.broadcast %562 : vector<1x96xf32> to vector<8x96xf32>
    %564 = arith.addf %560, %563 : vector<8x96xf32>
    %565 = vector.extract_strided_slice %564 {offsets = [0, 0], sizes = [8, 32], strides = [1, 1]} : vector<8x96xf32> to vector<8x32xf32>
    %566 = vector.extract_strided_slice %564 {offsets = [0, 32], sizes = [8, 32], strides = [1, 1]} : vector<8x96xf32> to vector<8x32xf32>
    %567 = vector.extract_strided_slice %564 {offsets = [0, 64], sizes = [8, 32], strides = [1, 1]} : vector<8x96xf32> to vector<8x32xf32>
    %c0_264 = arith.constant 0 : index
    %c0_265 = arith.constant 0 : index
    %c0_266 = arith.constant 0 : index
    %568 = vector.load %arg27[%c0_264, %c0_265, %c0_266] : memref<2x32x32xf32, #tpu.memory_space<vmem>>, vector<1x32x32xf32>
    %569 = vector.shape_cast %568 : vector<1x32x32xf32> to vector<32x32xf32>
    %c0_267 = arith.constant 0 : index
    %c0_268 = arith.constant 0 : index
    %c0_269 = arith.constant 0 : index
    %570 = vector.load %arg28[%c0_267, %c0_268, %c0_269] : memref<2x1x32xf32, #tpu.memory_space<vmem>>, vector<1x1x32xf32>
    %571 = vector.shape_cast %570 : vector<1x1x32xf32> to vector<1x32xf32>
    %cst_270 = arith.constant 5.000000e-01 : f32
    %572 = vector.broadcast %cst_270 : f32 to vector<8x32xf32>
    %573 = arith.mulf %565, %572 : vector<8x32xf32>
    %574 = vector.extract_strided_slice %573 {offsets = [0, 0], sizes = [8, 4], strides = [1, 1]} : vector<8x32xf32> to vector<8x4xf32>
    %575 = vector.extract_strided_slice %566 {offsets = [0, 0], sizes = [8, 4], strides = [1, 1]} : vector<8x32xf32> to vector<8x4xf32>
    %576 = vector.extract_strided_slice %567 {offsets = [0, 0], sizes = [8, 4], strides = [1, 1]} : vector<8x32xf32> to vector<8x4xf32>
    %cst_271 = arith.constant dense<0.000000e+00> : vector<8x8xf32>
    %577 = tpu.matmul %574, %575, %cst_271 {dimension_numbers = #tpu.dot_dimension_numbers<[1], [1], [0], [0], [0, 0, 1, 0], [], []>} : vector<8x4xf32>, vector<8x4xf32>, vector<8x8xf32> -> vector<8x8xf32>
    %578 = arith.addf %577, %557 : vector<8x8xf32>
    %cst_272 = arith.constant dense<0xFF800000> : vector<8xf32>
    %579 = vector.multi_reduction <maximumf>, %578, %cst_272 [1] : vector<8x8xf32> to vector<8xf32>
    %580 = vector.shape_cast %579 : vector<8xf32> to vector<8x1xf32>
    %581 = vector.broadcast %580 : vector<8x1xf32> to vector<8x8xf32>
    %582 = arith.subf %578, %581 : vector<8x8xf32>
    %583 = math.exp %582 : vector<8x8xf32>
    %cst_273 = arith.constant dense<0.000000e+00> : vector<8xf32>
    %584 = vector.multi_reduction <add>, %583, %cst_273 [1] : vector<8x8xf32> to vector<8xf32>
    %585 = vector.shape_cast %584 : vector<8xf32> to vector<8x1xf32>
    %586 = vector.broadcast %585 : vector<8x1xf32> to vector<8x8xf32>
    %587 = arith.divf %583, %586 : vector<8x8xf32>
    %cst_274 = arith.constant dense<0.000000e+00> : vector<8x4xf32>
    %588 = tpu.matmul %587, %576, %cst_274 {dimension_numbers = #tpu.dot_dimension_numbers<[1], [0], [0], [1], [0, 0, 1, 1], [], []>} : vector<8x8xf32>, vector<8x4xf32>, vector<8x4xf32> -> vector<8x4xf32>
    %c0_275 = arith.constant 0 : index
    %c0_276 = arith.constant 0 : index
    %589 = vector.load %arg50[%c0_275, %c0_276] : memref<8x32xf32, #tpu.memory_space<vmem>>, vector<8x4xf32>
    tpu.vector_store %arg50[%c0_275, %c0_276], %588 {strides = array<i32>} : memref<8x32xf32, #tpu.memory_space<vmem>>, vector<8x4xf32>,
    %590 = vector.extract_strided_slice %573 {offsets = [0, 4], sizes = [8, 4], strides = [1, 1]} : vector<8x32xf32> to vector<8x4xf32>
    %591 = vector.extract_strided_slice %566 {offsets = [0, 4], sizes = [8, 4], strides = [1, 1]} : vector<8x32xf32> to vector<8x4xf32>
    %592 = vector.extract_strided_slice %567 {offsets = [0, 4], sizes = [8, 4], strides = [1, 1]} : vector<8x32xf32> to vector<8x4xf32>
    %cst_277 = arith.constant dense<0.000000e+00> : vector<8x8xf32>
    %593 = tpu.matmul %590, %591, %cst_277 {dimension_numbers = #tpu.dot_dimension_numbers<[1], [1], [0], [0], [0, 0, 1, 0], [], []>} : vector<8x4xf32>, vector<8x4xf32>, vector<8x8xf32> -> vector<8x8xf32>
    %594 = arith.addf %593, %557 : vector<8x8xf32>
    %cst_278 = arith.constant dense<0xFF800000> : vector<8xf32>
    %595 = vector.multi_reduction <maximumf>, %594, %cst_278 [1] : vector<8x8xf32> to vector<8xf32>
    %596 = vector.shape_cast %595 : vector<8xf32> to vector<8x1xf32>
    %597 = vector.broadcast %596 : vector<8x1xf32> to vector<8x8xf32>
    %598 = arith.subf %594, %597 : vector<8x8xf32>
    %599 = math.exp %598 : vector<8x8xf32>
    %cst_279 = arith.constant dense<0.000000e+00> : vector<8xf32>
    %600 = vector.multi_reduction <add>, %599, %cst_279 [1] : vector<8x8xf32> to vector<8xf32>
    %601 = vector.shape_cast %600 : vector<8xf32> to vector<8x1xf32>
    %602 = vector.broadcast %601 : vector<8x1xf32> to vector<8x8xf32>
    %603 = arith.divf %599, %602 : vector<8x8xf32>
    %cst_280 = arith.constant dense<0.000000e+00> : vector<8x4xf32>
    %604 = tpu.matmul %603, %592, %cst_280 {dimension_numbers = #tpu.dot_dimension_numbers<[1], [0], [0], [1], [0, 0, 1, 1], [], []>} : vector<8x8xf32>, vector<8x4xf32>, vector<8x4xf32> -> vector<8x4xf32>
    %c0_281 = arith.constant 0 : index
    %c4_282 = arith.constant 4 : index
    %605 = vector.load %arg50[%c0_281, %c4_282] : memref<8x32xf32, #tpu.memory_space<vmem>>, vector<8x4xf32>
    tpu.vector_store %arg50[%c0_281, %c4_282], %604 {strides = array<i32>} : memref<8x32xf32, #tpu.memory_space<vmem>>, vector<8x4xf32>,
    %606 = vector.extract_strided_slice %573 {offsets = [0, 8], sizes = [8, 4], strides = [1, 1]} : vector<8x32xf32> to vector<8x4xf32>
    %607 = vector.extract_strided_slice %566 {offsets = [0, 8], sizes = [8, 4], strides = [1, 1]} : vector<8x32xf32> to vector<8x4xf32>
    %608 = vector.extract_strided_slice %567 {offsets = [0, 8], sizes = [8, 4], strides = [1, 1]} : vector<8x32xf32> to vector<8x4xf32>
    %cst_283 = arith.constant dense<0.000000e+00> : vector<8x8xf32>
    %609 = tpu.matmul %606, %607, %cst_283 {dimension_numbers = #tpu.dot_dimension_numbers<[1], [1], [0], [0], [0, 0, 1, 0], [], []>} : vector<8x4xf32>, vector<8x4xf32>, vector<8x8xf32> -> vector<8x8xf32>
    %610 = arith.addf %609, %557 : vector<8x8xf32>
    %cst_284 = arith.constant dense<0xFF800000> : vector<8xf32>
    %611 = vector.multi_reduction <maximumf>, %610, %cst_284 [1] : vector<8x8xf32> to vector<8xf32>
    %612 = vector.shape_cast %611 : vector<8xf32> to vector<8x1xf32>
    %613 = vector.broadcast %612 : vector<8x1xf32> to vector<8x8xf32>
    %614 = arith.subf %610, %613 : vector<8x8xf32>
    %615 = math.exp %614 : vector<8x8xf32>
    %cst_285 = arith.constant dense<0.000000e+00> : vector<8xf32>
    %616 = vector.multi_reduction <add>, %615, %cst_285 [1] : vector<8x8xf32> to vector<8xf32>
    %617 = vector.shape_cast %616 : vector<8xf32> to vector<8x1xf32>
    %618 = vector.broadcast %617 : vector<8x1xf32> to vector<8x8xf32>
    %619 = arith.divf %615, %618 : vector<8x8xf32>
    %cst_286 = arith.constant dense<0.000000e+00> : vector<8x4xf32>
    %620 = tpu.matmul %619, %608, %cst_286 {dimension_numbers = #tpu.dot_dimension_numbers<[1], [0], [0], [1], [0, 0, 1, 1], [], []>} : vector<8x8xf32>, vector<8x4xf32>, vector<8x4xf32> -> vector<8x4xf32>
    %c0_287 = arith.constant 0 : index
    %c8_288 = arith.constant 8 : index
    %621 = vector.load %arg50[%c0_287, %c8_288] : memref<8x32xf32, #tpu.memory_space<vmem>>, vector<8x4xf32>
    tpu.vector_store %arg50[%c0_287, %c8_288], %620 {strides = array<i32>} : memref<8x32xf32, #tpu.memory_space<vmem>>, vector<8x4xf32>,
    %622 = vector.extract_strided_slice %573 {offsets = [0, 12], sizes = [8, 4], strides = [1, 1]} : vector<8x32xf32> to vector<8x4xf32>
    %623 = vector.extract_strided_slice %566 {offsets = [0, 12], sizes = [8, 4], strides = [1, 1]} : vector<8x32xf32> to vector<8x4xf32>
    %624 = vector.extract_strided_slice %567 {offsets = [0, 12], sizes = [8, 4], strides = [1, 1]} : vector<8x32xf32> to vector<8x4xf32>
    %cst_289 = arith.constant dense<0.000000e+00> : vector<8x8xf32>
    %625 = tpu.matmul %622, %623, %cst_289 {dimension_numbers = #tpu.dot_dimension_numbers<[1], [1], [0], [0], [0, 0, 1, 0], [], []>} : vector<8x4xf32>, vector<8x4xf32>, vector<8x8xf32> -> vector<8x8xf32>
    %626 = arith.addf %625, %557 : vector<8x8xf32>
    %cst_290 = arith.constant dense<0xFF800000> : vector<8xf32>
    %627 = vector.multi_reduction <maximumf>, %626, %cst_290 [1] : vector<8x8xf32> to vector<8xf32>
    %628 = vector.shape_cast %627 : vector<8xf32> to vector<8x1xf32>
    %629 = vector.broadcast %628 : vector<8x1xf32> to vector<8x8xf32>
    %630 = arith.subf %626, %629 : vector<8x8xf32>
    %631 = math.exp %630 : vector<8x8xf32>
    %cst_291 = arith.constant dense<0.000000e+00> : vector<8xf32>
    %632 = vector.multi_reduction <add>, %631, %cst_291 [1] : vector<8x8xf32> to vector<8xf32>
    %633 = vector.shape_cast %632 : vector<8xf32> to vector<8x1xf32>
    %634 = vector.broadcast %633 : vector<8x1xf32> to vector<8x8xf32>
    %635 = arith.divf %631, %634 : vector<8x8xf32>
    %cst_292 = arith.constant dense<0.000000e+00> : vector<8x4xf32>
    %636 = tpu.matmul %635, %624, %cst_292 {dimension_numbers = #tpu.dot_dimension_numbers<[1], [0], [0], [1], [0, 0, 1, 1], [], []>} : vector<8x8xf32>, vector<8x4xf32>, vector<8x4xf32> -> vector<8x4xf32>
    %c0_293 = arith.constant 0 : index
    %c12_294 = arith.constant 12 : index
    %637 = vector.load %arg50[%c0_293, %c12_294] : memref<8x32xf32, #tpu.memory_space<vmem>>, vector<8x4xf32>
    tpu.vector_store %arg50[%c0_293, %c12_294], %636 {strides = array<i32>} : memref<8x32xf32, #tpu.memory_space<vmem>>, vector<8x4xf32>,
    %638 = vector.extract_strided_slice %573 {offsets = [0, 16], sizes = [8, 4], strides = [1, 1]} : vector<8x32xf32> to vector<8x4xf32>
    %639 = vector.extract_strided_slice %566 {offsets = [0, 16], sizes = [8, 4], strides = [1, 1]} : vector<8x32xf32> to vector<8x4xf32>
    %640 = vector.extract_strided_slice %567 {offsets = [0, 16], sizes = [8, 4], strides = [1, 1]} : vector<8x32xf32> to vector<8x4xf32>
    %cst_295 = arith.constant dense<0.000000e+00> : vector<8x8xf32>
    %641 = tpu.matmul %638, %639, %cst_295 {dimension_numbers = #tpu.dot_dimension_numbers<[1], [1], [0], [0], [0, 0, 1, 0], [], []>} : vector<8x4xf32>, vector<8x4xf32>, vector<8x8xf32> -> vector<8x8xf32>
    %642 = arith.addf %641, %557 : vector<8x8xf32>
    %cst_296 = arith.constant dense<0xFF800000> : vector<8xf32>
    %643 = vector.multi_reduction <maximumf>, %642, %cst_296 [1] : vector<8x8xf32> to vector<8xf32>
    %644 = vector.shape_cast %643 : vector<8xf32> to vector<8x1xf32>
    %645 = vector.broadcast %644 : vector<8x1xf32> to vector<8x8xf32>
    %646 = arith.subf %642, %645 : vector<8x8xf32>
    %647 = math.exp %646 : vector<8x8xf32>
    %cst_297 = arith.constant dense<0.000000e+00> : vector<8xf32>
    %648 = vector.multi_reduction <add>, %647, %cst_297 [1] : vector<8x8xf32> to vector<8xf32>
    %649 = vector.shape_cast %648 : vector<8xf32> to vector<8x1xf32>
    %650 = vector.broadcast %649 : vector<8x1xf32> to vector<8x8xf32>
    %651 = arith.divf %647, %650 : vector<8x8xf32>
    %cst_298 = arith.constant dense<0.000000e+00> : vector<8x4xf32>
    %652 = tpu.matmul %651, %640, %cst_298 {dimension_numbers = #tpu.dot_dimension_numbers<[1], [0], [0], [1], [0, 0, 1, 1], [], []>} : vector<8x8xf32>, vector<8x4xf32>, vector<8x4xf32> -> vector<8x4xf32>
    %c0_299 = arith.constant 0 : index
    %c16_300 = arith.constant 16 : index
    %653 = vector.load %arg50[%c0_299, %c16_300] : memref<8x32xf32, #tpu.memory_space<vmem>>, vector<8x4xf32>
    tpu.vector_store %arg50[%c0_299, %c16_300], %652 {strides = array<i32>} : memref<8x32xf32, #tpu.memory_space<vmem>>, vector<8x4xf32>,
    %654 = vector.extract_strided_slice %573 {offsets = [0, 20], sizes = [8, 4], strides = [1, 1]} : vector<8x32xf32> to vector<8x4xf32>
    %655 = vector.extract_strided_slice %566 {offsets = [0, 20], sizes = [8, 4], strides = [1, 1]} : vector<8x32xf32> to vector<8x4xf32>
    %656 = vector.extract_strided_slice %567 {offsets = [0, 20], sizes = [8, 4], strides = [1, 1]} : vector<8x32xf32> to vector<8x4xf32>
    %cst_301 = arith.constant dense<0.000000e+00> : vector<8x8xf32>
    %657 = tpu.matmul %654, %655, %cst_301 {dimension_numbers = #tpu.dot_dimension_numbers<[1], [1], [0], [0], [0, 0, 1, 0], [], []>} : vector<8x4xf32>, vector<8x4xf32>, vector<8x8xf32> -> vector<8x8xf32>
    %658 = arith.addf %657, %557 : vector<8x8xf32>
    %cst_302 = arith.constant dense<0xFF800000> : vector<8xf32>
    %659 = vector.multi_reduction <maximumf>, %658, %cst_302 [1] : vector<8x8xf32> to vector<8xf32>
    %660 = vector.shape_cast %659 : vector<8xf32> to vector<8x1xf32>
    %661 = vector.broadcast %660 : vector<8x1xf32> to vector<8x8xf32>
    %662 = arith.subf %658, %661 : vector<8x8xf32>
    %663 = math.exp %662 : vector<8x8xf32>
    %cst_303 = arith.constant dense<0.000000e+00> : vector<8xf32>
    %664 = vector.multi_reduction <add>, %663, %cst_303 [1] : vector<8x8xf32> to vector<8xf32>
    %665 = vector.shape_cast %664 : vector<8xf32> to vector<8x1xf32>
    %666 = vector.broadcast %665 : vector<8x1xf32> to vector<8x8xf32>
    %667 = arith.divf %663, %666 : vector<8x8xf32>
    %cst_304 = arith.constant dense<0.000000e+00> : vector<8x4xf32>
    %668 = tpu.matmul %667, %656, %cst_304 {dimension_numbers = #tpu.dot_dimension_numbers<[1], [0], [0], [1], [0, 0, 1, 1], [], []>} : vector<8x8xf32>, vector<8x4xf32>, vector<8x4xf32> -> vector<8x4xf32>
    %c0_305 = arith.constant 0 : index
    %c20_306 = arith.constant 20 : index
    %669 = vector.load %arg50[%c0_305, %c20_306] : memref<8x32xf32, #tpu.memory_space<vmem>>, vector<8x4xf32>
    tpu.vector_store %arg50[%c0_305, %c20_306], %668 {strides = array<i32>} : memref<8x32xf32, #tpu.memory_space<vmem>>, vector<8x4xf32>,
    %670 = vector.extract_strided_slice %573 {offsets = [0, 24], sizes = [8, 4], strides = [1, 1]} : vector<8x32xf32> to vector<8x4xf32>
    %671 = vector.extract_strided_slice %566 {offsets = [0, 24], sizes = [8, 4], strides = [1, 1]} : vector<8x32xf32> to vector<8x4xf32>
    %672 = vector.extract_strided_slice %567 {offsets = [0, 24], sizes = [8, 4], strides = [1, 1]} : vector<8x32xf32> to vector<8x4xf32>
    %cst_307 = arith.constant dense<0.000000e+00> : vector<8x8xf32>
    %673 = tpu.matmul %670, %671, %cst_307 {dimension_numbers = #tpu.dot_dimension_numbers<[1], [1], [0], [0], [0, 0, 1, 0], [], []>} : vector<8x4xf32>, vector<8x4xf32>, vector<8x8xf32> -> vector<8x8xf32>
    %674 = arith.addf %673, %557 : vector<8x8xf32>
    %cst_308 = arith.constant dense<0xFF800000> : vector<8xf32>
    %675 = vector.multi_reduction <maximumf>, %674, %cst_308 [1] : vector<8x8xf32> to vector<8xf32>
    %676 = vector.shape_cast %675 : vector<8xf32> to vector<8x1xf32>
    %677 = vector.broadcast %676 : vector<8x1xf32> to vector<8x8xf32>
    %678 = arith.subf %674, %677 : vector<8x8xf32>
    %679 = math.exp %678 : vector<8x8xf32>
    %cst_309 = arith.constant dense<0.000000e+00> : vector<8xf32>
    %680 = vector.multi_reduction <add>, %679, %cst_309 [1] : vector<8x8xf32> to vector<8xf32>
    %681 = vector.shape_cast %680 : vector<8xf32> to vector<8x1xf32>
    %682 = vector.broadcast %681 : vector<8x1xf32> to vector<8x8xf32>
    %683 = arith.divf %679, %682 : vector<8x8xf32>
    %cst_310 = arith.constant dense<0.000000e+00> : vector<8x4xf32>
    %684 = tpu.matmul %683, %672, %cst_310 {dimension_numbers = #tpu.dot_dimension_numbers<[1], [0], [0], [1], [0, 0, 1, 1], [], []>} : vector<8x8xf32>, vector<8x4xf32>, vector<8x4xf32> -> vector<8x4xf32>
    %c0_311 = arith.constant 0 : index
    %c24_312 = arith.constant 24 : index
    %685 = vector.load %arg50[%c0_311, %c24_312] : memref<8x32xf32, #tpu.memory_space<vmem>>, vector<8x4xf32>
    tpu.vector_store %arg50[%c0_311, %c24_312], %684 {strides = array<i32>} : memref<8x32xf32, #tpu.memory_space<vmem>>, vector<8x4xf32>,
    %686 = vector.extract_strided_slice %573 {offsets = [0, 28], sizes = [8, 4], strides = [1, 1]} : vector<8x32xf32> to vector<8x4xf32>
    %687 = vector.extract_strided_slice %566 {offsets = [0, 28], sizes = [8, 4], strides = [1, 1]} : vector<8x32xf32> to vector<8x4xf32>
    %688 = vector.extract_strided_slice %567 {offsets = [0, 28], sizes = [8, 4], strides = [1, 1]} : vector<8x32xf32> to vector<8x4xf32>
    %cst_313 = arith.constant dense<0.000000e+00> : vector<8x8xf32>
    %689 = tpu.matmul %686, %687, %cst_313 {dimension_numbers = #tpu.dot_dimension_numbers<[1], [1], [0], [0], [0, 0, 1, 0], [], []>} : vector<8x4xf32>, vector<8x4xf32>, vector<8x8xf32> -> vector<8x8xf32>
    %690 = arith.addf %689, %557 : vector<8x8xf32>
    %cst_314 = arith.constant dense<0xFF800000> : vector<8xf32>
    %691 = vector.multi_reduction <maximumf>, %690, %cst_314 [1] : vector<8x8xf32> to vector<8xf32>
    %692 = vector.shape_cast %691 : vector<8xf32> to vector<8x1xf32>
    %693 = vector.broadcast %692 : vector<8x1xf32> to vector<8x8xf32>
    %694 = arith.subf %690, %693 : vector<8x8xf32>
    %695 = math.exp %694 : vector<8x8xf32>
    %cst_315 = arith.constant dense<0.000000e+00> : vector<8xf32>
    %696 = vector.multi_reduction <add>, %695, %cst_315 [1] : vector<8x8xf32> to vector<8xf32>
    %697 = vector.shape_cast %696 : vector<8xf32> to vector<8x1xf32>
    %698 = vector.broadcast %697 : vector<8x1xf32> to vector<8x8xf32>
    %699 = arith.divf %695, %698 : vector<8x8xf32>
    %cst_316 = arith.constant dense<0.000000e+00> : vector<8x4xf32>
    %700 = tpu.matmul %699, %688, %cst_316 {dimension_numbers = #tpu.dot_dimension_numbers<[1], [0], [0], [1], [0, 0, 1, 1], [], []>} : vector<8x8xf32>, vector<8x4xf32>, vector<8x4xf32> -> vector<8x4xf32>
    %c0_317 = arith.constant 0 : index
    %c28_318 = arith.constant 28 : index
    %701 = vector.load %arg50[%c0_317, %c28_318] : memref<8x32xf32, #tpu.memory_space<vmem>>, vector<8x4xf32>
    tpu.vector_store %arg50[%c0_317, %c28_318], %700 {strides = array<i32>} : memref<8x32xf32, #tpu.memory_space<vmem>>, vector<8x4xf32>,
    %c0_319 = arith.constant 0 : index
    %c0_320 = arith.constant 0 : index
    %702 = vector.load %arg50[%c0_319, %c0_320] : memref<8x32xf32, #tpu.memory_space<vmem>>, vector<8x32xf32>
    %cst_321 = arith.constant dense<0.000000e+00> : vector<8x32xf32>
    %703 = tpu.matmul %702, %569, %cst_321 {dimension_numbers = #tpu.dot_dimension_numbers<[1], [0], [0], [1], [0, 0, 1, 1], [], []>} : vector<8x32xf32>, vector<32x32xf32>, vector<8x32xf32> -> vector<8x32xf32>
    %704 = vector.broadcast %571 : vector<1x32xf32> to vector<8x32xf32>
    %705 = arith.addf %703, %704 : vector<8x32xf32>
    %706 = arith.addf %556, %705 : vector<8x32xf32>
    %c0_322 = arith.constant 0 : index
    %c0_323 = arith.constant 0 : index
    %c0_324 = arith.constant 0 : index
    %707 = vector.load %arg29[%c0_322, %c0_323, %c0_324] : memref<2x1x32xf32, #tpu.memory_space<vmem>>, vector<1x1x32xf32>
    %708 = vector.shape_cast %707 : vector<1x1x32xf32> to vector<1x32xf32>
    %c0_325 = arith.constant 0 : index
    %c0_326 = arith.constant 0 : index
    %c0_327 = arith.constant 0 : index
    %709 = vector.load %arg30[%c0_325, %c0_326, %c0_327] : memref<2x1x32xf32, #tpu.memory_space<vmem>>, vector<1x1x32xf32>
    %710 = vector.shape_cast %709 : vector<1x1x32xf32> to vector<1x32xf32>
    %cst_328 = arith.constant dense<0.000000e+00> : vector<8xf32>
    %711 = vector.multi_reduction <add>, %706, %cst_328 [1] : vector<8x32xf32> to vector<8xf32>
    %712 = vector.shape_cast %711 : vector<8xf32> to vector<8x1xf32>
    %cst_329 = arith.constant 3.200000e+01 : f32
    %713 = vector.broadcast %cst_329 : f32 to vector<8x1xf32>
    %714 = arith.divf %712, %713 : vector<8x1xf32>
    %715 = vector.broadcast %714 : vector<8x1xf32> to vector<8x32xf32>
    %716 = arith.subf %706, %715 : vector<8x32xf32>
    %717 = arith.mulf %716, %716 : vector<8x32xf32>
    %cst_330 = arith.constant dense<0.000000e+00> : vector<8xf32>
    %718 = vector.multi_reduction <add>, %717, %cst_330 [1] : vector<8x32xf32> to vector<8xf32>
    %719 = vector.shape_cast %718 : vector<8xf32> to vector<8x1xf32>
    %cst_331 = arith.constant 3.200000e+01 : f32
    %720 = vector.broadcast %cst_331 : f32 to vector<8x1xf32>
    %721 = arith.divf %719, %720 : vector<8x1xf32>
    %722 = vector.broadcast %714 : vector<8x1xf32> to vector<8x32xf32>
    %723 = arith.subf %706, %722 : vector<8x32xf32>
    %cst_332 = arith.constant 9.99999974E-6 : f32
    %724 = vector.broadcast %cst_332 : f32 to vector<8x1xf32>
    %725 = arith.addf %721, %724 : vector<8x1xf32>
    %726 = math.rsqrt %725 : vector<8x1xf32>
    %727 = vector.broadcast %726 : vector<8x1xf32> to vector<8x32xf32>
    %728 = arith.mulf %723, %727 : vector<8x32xf32>
    %729 = vector.broadcast %708 : vector<1x32xf32> to vector<8x32xf32>
    %730 = arith.mulf %728, %729 : vector<8x32xf32>
    %731 = vector.broadcast %710 : vector<1x32xf32> to vector<8x32xf32>
    %732 = arith.addf %730, %731 : vector<8x32xf32>
    %c0_333 = arith.constant 0 : index
    %c0_334 = arith.constant 0 : index
    %c0_335 = arith.constant 0 : index
    %733 = vector.load %arg31[%c0_333, %c0_334, %c0_335] : memref<2x32x32xf32, #tpu.memory_space<vmem>>, vector<1x32x32xf32>
    %734 = vector.shape_cast %733 : vector<1x32x32xf32> to vector<32x32xf32>
    %cst_336 = arith.constant dense<0.000000e+00> : vector<8x32xf32>
    %735 = tpu.matmul %732, %734, %cst_336 {dimension_numbers = #tpu.dot_dimension_numbers<[1], [0], [0], [1], [0, 0, 1, 1], [], []>} : vector<8x32xf32>, vector<32x32xf32>, vector<8x32xf32> -> vector<8x32xf32>
    %c0_337 = arith.constant 0 : index
    %c0_338 = arith.constant 0 : index
    %c0_339 = arith.constant 0 : index
    %736 = vector.load %arg32[%c0_337, %c0_338, %c0_339] : memref<2x1x32xf32, #tpu.memory_space<vmem>>, vector<1x1x32xf32>
    %737 = vector.shape_cast %736 : vector<1x1x32xf32> to vector<1x32xf32>
    %738 = vector.broadcast %737 : vector<1x32xf32> to vector<8x32xf32>
    %739 = arith.addf %735, %738 : vector<8x32xf32>
    %c0_340 = arith.constant 0 : index
    %c0_341 = arith.constant 0 : index
    %c0_342 = arith.constant 0 : index
    %740 = vector.load %arg33[%c0_340, %c0_341, %c0_342] : memref<2x32x64xf32, #tpu.memory_space<vmem>>, vector<1x32x64xf32>
    %741 = vector.shape_cast %740 : vector<1x32x64xf32> to vector<32x64xf32>
    %cst_343 = arith.constant dense<0.000000e+00> : vector<8x64xf32>
    %742 = tpu.matmul %547, %741, %cst_343 {dimension_numbers = #tpu.dot_dimension_numbers<[1], [0], [0], [1], [0, 0, 1, 1], [], []>} : vector<8x32xf32>, vector<32x64xf32>, vector<8x64xf32> -> vector<8x64xf32>
    %c0_344 = arith.constant 0 : index
    %c0_345 = arith.constant 0 : index
    %c0_346 = arith.constant 0 : index
    %743 = vector.load %arg34[%c0_344, %c0_345, %c0_346] : memref<2x1x64xf32, #tpu.memory_space<vmem>>, vector<1x1x64xf32>
    %744 = vector.shape_cast %743 : vector<1x1x64xf32> to vector<1x64xf32>
    %745 = vector.broadcast %744 : vector<1x64xf32> to vector<8x64xf32>
    %746 = arith.addf %742, %745 : vector<8x64xf32>
    %747 = vector.extract_strided_slice %746 {offsets = [0, 0], sizes = [8, 32], strides = [1, 1]} : vector<8x64xf32> to vector<8x32xf32>
    %748 = vector.extract_strided_slice %746 {offsets = [0, 32], sizes = [8, 32], strides = [1, 1]} : vector<8x64xf32> to vector<8x32xf32>
    %c0_347 = arith.constant 0 : index
    %c0_348 = arith.constant 0 : index
    %c0_349 = arith.constant 0 : index
    %749 = vector.load %arg35[%c0_347, %c0_348, %c0_349] : memref<2x32x32xf32, #tpu.memory_space<vmem>>, vector<1x32x32xf32>
    %750 = vector.shape_cast %749 : vector<1x32x32xf32> to vector<32x32xf32>
    %c0_350 = arith.constant 0 : index
    %c0_351 = arith.constant 0 : index
    %c0_352 = arith.constant 0 : index
    %751 = vector.load %arg36[%c0_350, %c0_351, %c0_352] : memref<2x1x32xf32, #tpu.memory_space<vmem>>, vector<1x1x32xf32>
    %752 = vector.shape_cast %751 : vector<1x1x32xf32> to vector<1x32xf32>
    %cst_353 = arith.constant 5.000000e-01 : f32
    %753 = vector.broadcast %cst_353 : f32 to vector<8x32xf32>
    %754 = arith.mulf %739, %753 : vector<8x32xf32>
    %755 = vector.extract_strided_slice %754 {offsets = [0, 0], sizes = [8, 4], strides = [1, 1]} : vector<8x32xf32> to vector<8x4xf32>
    %756 = vector.extract_strided_slice %747 {offsets = [0, 0], sizes = [8, 4], strides = [1, 1]} : vector<8x32xf32> to vector<8x4xf32>
    %757 = vector.extract_strided_slice %748 {offsets = [0, 0], sizes = [8, 4], strides = [1, 1]} : vector<8x32xf32> to vector<8x4xf32>
    %cst_354 = arith.constant dense<0.000000e+00> : vector<8x8xf32>
    %758 = tpu.matmul %755, %756, %cst_354 {dimension_numbers = #tpu.dot_dimension_numbers<[1], [1], [0], [0], [0, 0, 1, 0], [], []>} : vector<8x4xf32>, vector<8x4xf32>, vector<8x8xf32> -> vector<8x8xf32>
    %cst_355 = arith.constant dense<0xFF800000> : vector<8xf32>
    %759 = vector.multi_reduction <maximumf>, %758, %cst_355 [1] : vector<8x8xf32> to vector<8xf32>
    %760 = vector.shape_cast %759 : vector<8xf32> to vector<8x1xf32>
    %761 = vector.broadcast %760 : vector<8x1xf32> to vector<8x8xf32>
    %762 = arith.subf %758, %761 : vector<8x8xf32>
    %763 = math.exp %762 : vector<8x8xf32>
    %cst_356 = arith.constant dense<0.000000e+00> : vector<8xf32>
    %764 = vector.multi_reduction <add>, %763, %cst_356 [1] : vector<8x8xf32> to vector<8xf32>
    %765 = vector.shape_cast %764 : vector<8xf32> to vector<8x1xf32>
    %766 = vector.broadcast %765 : vector<8x1xf32> to vector<8x8xf32>
    %767 = arith.divf %763, %766 : vector<8x8xf32>
    %cst_357 = arith.constant dense<0.000000e+00> : vector<8x4xf32>
    %768 = tpu.matmul %767, %757, %cst_357 {dimension_numbers = #tpu.dot_dimension_numbers<[1], [0], [0], [1], [0, 0, 1, 1], [], []>} : vector<8x8xf32>, vector<8x4xf32>, vector<8x4xf32> -> vector<8x4xf32>
    %c0_358 = arith.constant 0 : index
    %c0_359 = arith.constant 0 : index
    %769 = vector.load %arg50[%c0_358, %c0_359] : memref<8x32xf32, #tpu.memory_space<vmem>>, vector<8x4xf32>
    tpu.vector_store %arg50[%c0_358, %c0_359], %768 {strides = array<i32>} : memref<8x32xf32, #tpu.memory_space<vmem>>, vector<8x4xf32>,
    %770 = vector.extract_strided_slice %754 {offsets = [0, 4], sizes = [8, 4], strides = [1, 1]} : vector<8x32xf32> to vector<8x4xf32>
    %771 = vector.extract_strided_slice %747 {offsets = [0, 4], sizes = [8, 4], strides = [1, 1]} : vector<8x32xf32> to vector<8x4xf32>
    %772 = vector.extract_strided_slice %748 {offsets = [0, 4], sizes = [8, 4], strides = [1, 1]} : vector<8x32xf32> to vector<8x4xf32>
    %cst_360 = arith.constant dense<0.000000e+00> : vector<8x8xf32>
    %773 = tpu.matmul %770, %771, %cst_360 {dimension_numbers = #tpu.dot_dimension_numbers<[1], [1], [0], [0], [0, 0, 1, 0], [], []>} : vector<8x4xf32>, vector<8x4xf32>, vector<8x8xf32> -> vector<8x8xf32>
    %cst_361 = arith.constant dense<0xFF800000> : vector<8xf32>
    %774 = vector.multi_reduction <maximumf>, %773, %cst_361 [1] : vector<8x8xf32> to vector<8xf32>
    %775 = vector.shape_cast %774 : vector<8xf32> to vector<8x1xf32>
    %776 = vector.broadcast %775 : vector<8x1xf32> to vector<8x8xf32>
    %777 = arith.subf %773, %776 : vector<8x8xf32>
    %778 = math.exp %777 : vector<8x8xf32>
    %cst_362 = arith.constant dense<0.000000e+00> : vector<8xf32>
    %779 = vector.multi_reduction <add>, %778, %cst_362 [1] : vector<8x8xf32> to vector<8xf32>
    %780 = vector.shape_cast %779 : vector<8xf32> to vector<8x1xf32>
    %781 = vector.broadcast %780 : vector<8x1xf32> to vector<8x8xf32>
    %782 = arith.divf %778, %781 : vector<8x8xf32>
    %cst_363 = arith.constant dense<0.000000e+00> : vector<8x4xf32>
    %783 = tpu.matmul %782, %772, %cst_363 {dimension_numbers = #tpu.dot_dimension_numbers<[1], [0], [0], [1], [0, 0, 1, 1], [], []>} : vector<8x8xf32>, vector<8x4xf32>, vector<8x4xf32> -> vector<8x4xf32>
    %c0_364 = arith.constant 0 : index
    %c4_365 = arith.constant 4 : index
    %784 = vector.load %arg50[%c0_364, %c4_365] : memref<8x32xf32, #tpu.memory_space<vmem>>, vector<8x4xf32>
    tpu.vector_store %arg50[%c0_364, %c4_365], %783 {strides = array<i32>} : memref<8x32xf32, #tpu.memory_space<vmem>>, vector<8x4xf32>,
    %785 = vector.extract_strided_slice %754 {offsets = [0, 8], sizes = [8, 4], strides = [1, 1]} : vector<8x32xf32> to vector<8x4xf32>
    %786 = vector.extract_strided_slice %747 {offsets = [0, 8], sizes = [8, 4], strides = [1, 1]} : vector<8x32xf32> to vector<8x4xf32>
    %787 = vector.extract_strided_slice %748 {offsets = [0, 8], sizes = [8, 4], strides = [1, 1]} : vector<8x32xf32> to vector<8x4xf32>
    %cst_366 = arith.constant dense<0.000000e+00> : vector<8x8xf32>
    %788 = tpu.matmul %785, %786, %cst_366 {dimension_numbers = #tpu.dot_dimension_numbers<[1], [1], [0], [0], [0, 0, 1, 0], [], []>} : vector<8x4xf32>, vector<8x4xf32>, vector<8x8xf32> -> vector<8x8xf32>
    %cst_367 = arith.constant dense<0xFF800000> : vector<8xf32>
    %789 = vector.multi_reduction <maximumf>, %788, %cst_367 [1] : vector<8x8xf32> to vector<8xf32>
    %790 = vector.shape_cast %789 : vector<8xf32> to vector<8x1xf32>
    %791 = vector.broadcast %790 : vector<8x1xf32> to vector<8x8xf32>
    %792 = arith.subf %788, %791 : vector<8x8xf32>
    %793 = math.exp %792 : vector<8x8xf32>
    %cst_368 = arith.constant dense<0.000000e+00> : vector<8xf32>
    %794 = vector.multi_reduction <add>, %793, %cst_368 [1] : vector<8x8xf32> to vector<8xf32>
    %795 = vector.shape_cast %794 : vector<8xf32> to vector<8x1xf32>
    %796 = vector.broadcast %795 : vector<8x1xf32> to vector<8x8xf32>
    %797 = arith.divf %793, %796 : vector<8x8xf32>
    %cst_369 = arith.constant dense<0.000000e+00> : vector<8x4xf32>
    %798 = tpu.matmul %797, %787, %cst_369 {dimension_numbers = #tpu.dot_dimension_numbers<[1], [0], [0], [1], [0, 0, 1, 1], [], []>} : vector<8x8xf32>, vector<8x4xf32>, vector<8x4xf32> -> vector<8x4xf32>
    %c0_370 = arith.constant 0 : index
    %c8_371 = arith.constant 8 : index
    %799 = vector.load %arg50[%c0_370, %c8_371] : memref<8x32xf32, #tpu.memory_space<vmem>>, vector<8x4xf32>
    tpu.vector_store %arg50[%c0_370, %c8_371], %798 {strides = array<i32>} : memref<8x32xf32, #tpu.memory_space<vmem>>, vector<8x4xf32>,
    %800 = vector.extract_strided_slice %754 {offsets = [0, 12], sizes = [8, 4], strides = [1, 1]} : vector<8x32xf32> to vector<8x4xf32>
    %801 = vector.extract_strided_slice %747 {offsets = [0, 12], sizes = [8, 4], strides = [1, 1]} : vector<8x32xf32> to vector<8x4xf32>
    %802 = vector.extract_strided_slice %748 {offsets = [0, 12], sizes = [8, 4], strides = [1, 1]} : vector<8x32xf32> to vector<8x4xf32>
    %cst_372 = arith.constant dense<0.000000e+00> : vector<8x8xf32>
    %803 = tpu.matmul %800, %801, %cst_372 {dimension_numbers = #tpu.dot_dimension_numbers<[1], [1], [0], [0], [0, 0, 1, 0], [], []>} : vector<8x4xf32>, vector<8x4xf32>, vector<8x8xf32> -> vector<8x8xf32>
    %cst_373 = arith.constant dense<0xFF800000> : vector<8xf32>
    %804 = vector.multi_reduction <maximumf>, %803, %cst_373 [1] : vector<8x8xf32> to vector<8xf32>
    %805 = vector.shape_cast %804 : vector<8xf32> to vector<8x1xf32>
    %806 = vector.broadcast %805 : vector<8x1xf32> to vector<8x8xf32>
    %807 = arith.subf %803, %806 : vector<8x8xf32>
    %808 = math.exp %807 : vector<8x8xf32>
    %cst_374 = arith.constant dense<0.000000e+00> : vector<8xf32>
    %809 = vector.multi_reduction <add>, %808, %cst_374 [1] : vector<8x8xf32> to vector<8xf32>
    %810 = vector.shape_cast %809 : vector<8xf32> to vector<8x1xf32>
    %811 = vector.broadcast %810 : vector<8x1xf32> to vector<8x8xf32>
    %812 = arith.divf %808, %811 : vector<8x8xf32>
    %cst_375 = arith.constant dense<0.000000e+00> : vector<8x4xf32>
    %813 = tpu.matmul %812, %802, %cst_375 {dimension_numbers = #tpu.dot_dimension_numbers<[1], [0], [0], [1], [0, 0, 1, 1], [], []>} : vector<8x8xf32>, vector<8x4xf32>, vector<8x4xf32> -> vector<8x4xf32>
    %c0_376 = arith.constant 0 : index
    %c12_377 = arith.constant 12 : index
    %814 = vector.load %arg50[%c0_376, %c12_377] : memref<8x32xf32, #tpu.memory_space<vmem>>, vector<8x4xf32>
    tpu.vector_store %arg50[%c0_376, %c12_377], %813 {strides = array<i32>} : memref<8x32xf32, #tpu.memory_space<vmem>>, vector<8x4xf32>,
    %815 = vector.extract_strided_slice %754 {offsets = [0, 16], sizes = [8, 4], strides = [1, 1]} : vector<8x32xf32> to vector<8x4xf32>
    %816 = vector.extract_strided_slice %747 {offsets = [0, 16], sizes = [8, 4], strides = [1, 1]} : vector<8x32xf32> to vector<8x4xf32>
    %817 = vector.extract_strided_slice %748 {offsets = [0, 16], sizes = [8, 4], strides = [1, 1]} : vector<8x32xf32> to vector<8x4xf32>
    %cst_378 = arith.constant dense<0.000000e+00> : vector<8x8xf32>
    %818 = tpu.matmul %815, %816, %cst_378 {dimension_numbers = #tpu.dot_dimension_numbers<[1], [1], [0], [0], [0, 0, 1, 0], [], []>} : vector<8x4xf32>, vector<8x4xf32>, vector<8x8xf32> -> vector<8x8xf32>
    %cst_379 = arith.constant dense<0xFF800000> : vector<8xf32>
    %819 = vector.multi_reduction <maximumf>, %818, %cst_379 [1] : vector<8x8xf32> to vector<8xf32>
    %820 = vector.shape_cast %819 : vector<8xf32> to vector<8x1xf32>
    %821 = vector.broadcast %820 : vector<8x1xf32> to vector<8x8xf32>
    %822 = arith.subf %818, %821 : vector<8x8xf32>
    %823 = math.exp %822 : vector<8x8xf32>
    %cst_380 = arith.constant dense<0.000000e+00> : vector<8xf32>
    %824 = vector.multi_reduction <add>, %823, %cst_380 [1] : vector<8x8xf32> to vector<8xf32>
    %825 = vector.shape_cast %824 : vector<8xf32> to vector<8x1xf32>
    %826 = vector.broadcast %825 : vector<8x1xf32> to vector<8x8xf32>
    %827 = arith.divf %823, %826 : vector<8x8xf32>
    %cst_381 = arith.constant dense<0.000000e+00> : vector<8x4xf32>
    %828 = tpu.matmul %827, %817, %cst_381 {dimension_numbers = #tpu.dot_dimension_numbers<[1], [0], [0], [1], [0, 0, 1, 1], [], []>} : vector<8x8xf32>, vector<8x4xf32>, vector<8x4xf32> -> vector<8x4xf32>
    %c0_382 = arith.constant 0 : index
    %c16_383 = arith.constant 16 : index
    %829 = vector.load %arg50[%c0_382, %c16_383] : memref<8x32xf32, #tpu.memory_space<vmem>>, vector<8x4xf32>
    tpu.vector_store %arg50[%c0_382, %c16_383], %828 {strides = array<i32>} : memref<8x32xf32, #tpu.memory_space<vmem>>, vector<8x4xf32>,
    %830 = vector.extract_strided_slice %754 {offsets = [0, 20], sizes = [8, 4], strides = [1, 1]} : vector<8x32xf32> to vector<8x4xf32>
    %831 = vector.extract_strided_slice %747 {offsets = [0, 20], sizes = [8, 4], strides = [1, 1]} : vector<8x32xf32> to vector<8x4xf32>
    %832 = vector.extract_strided_slice %748 {offsets = [0, 20], sizes = [8, 4], strides = [1, 1]} : vector<8x32xf32> to vector<8x4xf32>
    %cst_384 = arith.constant dense<0.000000e+00> : vector<8x8xf32>
    %833 = tpu.matmul %830, %831, %cst_384 {dimension_numbers = #tpu.dot_dimension_numbers<[1], [1], [0], [0], [0, 0, 1, 0], [], []>} : vector<8x4xf32>, vector<8x4xf32>, vector<8x8xf32> -> vector<8x8xf32>
    %cst_385 = arith.constant dense<0xFF800000> : vector<8xf32>
    %834 = vector.multi_reduction <maximumf>, %833, %cst_385 [1] : vector<8x8xf32> to vector<8xf32>
    %835 = vector.shape_cast %834 : vector<8xf32> to vector<8x1xf32>
    %836 = vector.broadcast %835 : vector<8x1xf32> to vector<8x8xf32>
    %837 = arith.subf %833, %836 : vector<8x8xf32>
    %838 = math.exp %837 : vector<8x8xf32>
    %cst_386 = arith.constant dense<0.000000e+00> : vector<8xf32>
    %839 = vector.multi_reduction <add>, %838, %cst_386 [1] : vector<8x8xf32> to vector<8xf32>
    %840 = vector.shape_cast %839 : vector<8xf32> to vector<8x1xf32>
    %841 = vector.broadcast %840 : vector<8x1xf32> to vector<8x8xf32>
    %842 = arith.divf %838, %841 : vector<8x8xf32>
    %cst_387 = arith.constant dense<0.000000e+00> : vector<8x4xf32>
    %843 = tpu.matmul %842, %832, %cst_387 {dimension_numbers = #tpu.dot_dimension_numbers<[1], [0], [0], [1], [0, 0, 1, 1], [], []>} : vector<8x8xf32>, vector<8x4xf32>, vector<8x4xf32> -> vector<8x4xf32>
    %c0_388 = arith.constant 0 : index
    %c20_389 = arith.constant 20 : index
    %844 = vector.load %arg50[%c0_388, %c20_389] : memref<8x32xf32, #tpu.memory_space<vmem>>, vector<8x4xf32>
    tpu.vector_store %arg50[%c0_388, %c20_389], %843 {strides = array<i32>} : memref<8x32xf32, #tpu.memory_space<vmem>>, vector<8x4xf32>,
    %845 = vector.extract_strided_slice %754 {offsets = [0, 24], sizes = [8, 4], strides = [1, 1]} : vector<8x32xf32> to vector<8x4xf32>
    %846 = vector.extract_strided_slice %747 {offsets = [0, 24], sizes = [8, 4], strides = [1, 1]} : vector<8x32xf32> to vector<8x4xf32>
    %847 = vector.extract_strided_slice %748 {offsets = [0, 24], sizes = [8, 4], strides = [1, 1]} : vector<8x32xf32> to vector<8x4xf32>
    %cst_390 = arith.constant dense<0.000000e+00> : vector<8x8xf32>
    %848 = tpu.matmul %845, %846, %cst_390 {dimension_numbers = #tpu.dot_dimension_numbers<[1], [1], [0], [0], [0, 0, 1, 0], [], []>} : vector<8x4xf32>, vector<8x4xf32>, vector<8x8xf32> -> vector<8x8xf32>
    %cst_391 = arith.constant dense<0xFF800000> : vector<8xf32>
    %849 = vector.multi_reduction <maximumf>, %848, %cst_391 [1] : vector<8x8xf32> to vector<8xf32>
    %850 = vector.shape_cast %849 : vector<8xf32> to vector<8x1xf32>
    %851 = vector.broadcast %850 : vector<8x1xf32> to vector<8x8xf32>
    %852 = arith.subf %848, %851 : vector<8x8xf32>
    %853 = math.exp %852 : vector<8x8xf32>
    %cst_392 = arith.constant dense<0.000000e+00> : vector<8xf32>
    %854 = vector.multi_reduction <add>, %853, %cst_392 [1] : vector<8x8xf32> to vector<8xf32>
    %855 = vector.shape_cast %854 : vector<8xf32> to vector<8x1xf32>
    %856 = vector.broadcast %855 : vector<8x1xf32> to vector<8x8xf32>
    %857 = arith.divf %853, %856 : vector<8x8xf32>
    %cst_393 = arith.constant dense<0.000000e+00> : vector<8x4xf32>
    %858 = tpu.matmul %857, %847, %cst_393 {dimension_numbers = #tpu.dot_dimension_numbers<[1], [0], [0], [1], [0, 0, 1, 1], [], []>} : vector<8x8xf32>, vector<8x4xf32>, vector<8x4xf32> -> vector<8x4xf32>
    %c0_394 = arith.constant 0 : index
    %c24_395 = arith.constant 24 : index
    %859 = vector.load %arg50[%c0_394, %c24_395] : memref<8x32xf32, #tpu.memory_space<vmem>>, vector<8x4xf32>
    tpu.vector_store %arg50[%c0_394, %c24_395], %858 {strides = array<i32>} : memref<8x32xf32, #tpu.memory_space<vmem>>, vector<8x4xf32>,
    %860 = vector.extract_strided_slice %754 {offsets = [0, 28], sizes = [8, 4], strides = [1, 1]} : vector<8x32xf32> to vector<8x4xf32>
    %861 = vector.extract_strided_slice %747 {offsets = [0, 28], sizes = [8, 4], strides = [1, 1]} : vector<8x32xf32> to vector<8x4xf32>
    %862 = vector.extract_strided_slice %748 {offsets = [0, 28], sizes = [8, 4], strides = [1, 1]} : vector<8x32xf32> to vector<8x4xf32>
    %cst_396 = arith.constant dense<0.000000e+00> : vector<8x8xf32>
    %863 = tpu.matmul %860, %861, %cst_396 {dimension_numbers = #tpu.dot_dimension_numbers<[1], [1], [0], [0], [0, 0, 1, 0], [], []>} : vector<8x4xf32>, vector<8x4xf32>, vector<8x8xf32> -> vector<8x8xf32>
    %cst_397 = arith.constant dense<0xFF800000> : vector<8xf32>
    %864 = vector.multi_reduction <maximumf>, %863, %cst_397 [1] : vector<8x8xf32> to vector<8xf32>
    %865 = vector.shape_cast %864 : vector<8xf32> to vector<8x1xf32>
    %866 = vector.broadcast %865 : vector<8x1xf32> to vector<8x8xf32>
    %867 = arith.subf %863, %866 : vector<8x8xf32>
    %868 = math.exp %867 : vector<8x8xf32>
    %cst_398 = arith.constant dense<0.000000e+00> : vector<8xf32>
    %869 = vector.multi_reduction <add>, %868, %cst_398 [1] : vector<8x8xf32> to vector<8xf32>
    %870 = vector.shape_cast %869 : vector<8xf32> to vector<8x1xf32>
    %871 = vector.broadcast %870 : vector<8x1xf32> to vector<8x8xf32>
    %872 = arith.divf %868, %871 : vector<8x8xf32>
    %cst_399 = arith.constant dense<0.000000e+00> : vector<8x4xf32>
    %873 = tpu.matmul %872, %862, %cst_399 {dimension_numbers = #tpu.dot_dimension_numbers<[1], [0], [0], [1], [0, 0, 1, 1], [], []>} : vector<8x8xf32>, vector<8x4xf32>, vector<8x4xf32> -> vector<8x4xf32>
    %c0_400 = arith.constant 0 : index
    %c28_401 = arith.constant 28 : index
    %874 = vector.load %arg50[%c0_400, %c28_401] : memref<8x32xf32, #tpu.memory_space<vmem>>, vector<8x4xf32>
    tpu.vector_store %arg50[%c0_400, %c28_401], %873 {strides = array<i32>} : memref<8x32xf32, #tpu.memory_space<vmem>>, vector<8x4xf32>,
    %c0_402 = arith.constant 0 : index
    %c0_403 = arith.constant 0 : index
    %875 = vector.load %arg50[%c0_402, %c0_403] : memref<8x32xf32, #tpu.memory_space<vmem>>, vector<8x32xf32>
    %cst_404 = arith.constant dense<0.000000e+00> : vector<8x32xf32>
    %876 = tpu.matmul %875, %750, %cst_404 {dimension_numbers = #tpu.dot_dimension_numbers<[1], [0], [0], [1], [0, 0, 1, 1], [], []>} : vector<8x32xf32>, vector<32x32xf32>, vector<8x32xf32> -> vector<8x32xf32>
    %877 = vector.broadcast %752 : vector<1x32xf32> to vector<8x32xf32>
    %878 = arith.addf %876, %877 : vector<8x32xf32>
    %879 = arith.addf %732, %878 : vector<8x32xf32>
    %c0_405 = arith.constant 0 : index
    %c0_406 = arith.constant 0 : index
    %c0_407 = arith.constant 0 : index
    %880 = vector.load %arg37[%c0_405, %c0_406, %c0_407] : memref<2x1x32xf32, #tpu.memory_space<vmem>>, vector<1x1x32xf32>
    %881 = vector.shape_cast %880 : vector<1x1x32xf32> to vector<1x32xf32>
    %c0_408 = arith.constant 0 : index
    %c0_409 = arith.constant 0 : index
    %c0_410 = arith.constant 0 : index
    %882 = vector.load %arg38[%c0_408, %c0_409, %c0_410] : memref<2x1x32xf32, #tpu.memory_space<vmem>>, vector<1x1x32xf32>
    %883 = vector.shape_cast %882 : vector<1x1x32xf32> to vector<1x32xf32>
    %cst_411 = arith.constant dense<0.000000e+00> : vector<8xf32>
    %884 = vector.multi_reduction <add>, %879, %cst_411 [1] : vector<8x32xf32> to vector<8xf32>
    %885 = vector.shape_cast %884 : vector<8xf32> to vector<8x1xf32>
    %cst_412 = arith.constant 3.200000e+01 : f32
    %886 = vector.broadcast %cst_412 : f32 to vector<8x1xf32>
    %887 = arith.divf %885, %886 : vector<8x1xf32>
    %888 = vector.broadcast %887 : vector<8x1xf32> to vector<8x32xf32>
    %889 = arith.subf %879, %888 : vector<8x32xf32>
    %890 = arith.mulf %889, %889 : vector<8x32xf32>
    %cst_413 = arith.constant dense<0.000000e+00> : vector<8xf32>
    %891 = vector.multi_reduction <add>, %890, %cst_413 [1] : vector<8x32xf32> to vector<8xf32>
    %892 = vector.shape_cast %891 : vector<8xf32> to vector<8x1xf32>
    %cst_414 = arith.constant 3.200000e+01 : f32
    %893 = vector.broadcast %cst_414 : f32 to vector<8x1xf32>
    %894 = arith.divf %892, %893 : vector<8x1xf32>
    %895 = vector.broadcast %887 : vector<8x1xf32> to vector<8x32xf32>
    %896 = arith.subf %879, %895 : vector<8x32xf32>
    %cst_415 = arith.constant 9.99999974E-6 : f32
    %897 = vector.broadcast %cst_415 : f32 to vector<8x1xf32>
    %898 = arith.addf %894, %897 : vector<8x1xf32>
    %899 = math.rsqrt %898 : vector<8x1xf32>
    %900 = vector.broadcast %899 : vector<8x1xf32> to vector<8x32xf32>
    %901 = arith.mulf %896, %900 : vector<8x32xf32>
    %902 = vector.broadcast %881 : vector<1x32xf32> to vector<8x32xf32>
    %903 = arith.mulf %901, %902 : vector<8x32xf32>
    %904 = vector.broadcast %883 : vector<1x32xf32> to vector<8x32xf32>
    %905 = arith.addf %903, %904 : vector<8x32xf32>
    %c0_416 = arith.constant 0 : index
    %c0_417 = arith.constant 0 : index
    %c0_418 = arith.constant 0 : index
    %906 = vector.load %arg39[%c0_416, %c0_417, %c0_418] : memref<2x32x64xf32, #tpu.memory_space<vmem>>, vector<1x32x64xf32>
    %907 = vector.shape_cast %906 : vector<1x32x64xf32> to vector<32x64xf32>
    %cst_419 = arith.constant dense<0.000000e+00> : vector<8x64xf32>
    %908 = tpu.matmul %905, %907, %cst_419 {dimension_numbers = #tpu.dot_dimension_numbers<[1], [0], [0], [1], [0, 0, 1, 1], [], []>} : vector<8x32xf32>, vector<32x64xf32>, vector<8x64xf32> -> vector<8x64xf32>
    %c0_420 = arith.constant 0 : index
    %c0_421 = arith.constant 0 : index
    %c0_422 = arith.constant 0 : index
    %909 = vector.load %arg40[%c0_420, %c0_421, %c0_422] : memref<2x1x64xf32, #tpu.memory_space<vmem>>, vector<1x1x64xf32>
    %910 = vector.shape_cast %909 : vector<1x1x64xf32> to vector<1x64xf32>
    %911 = vector.broadcast %910 : vector<1x64xf32> to vector<8x64xf32>
    %912 = arith.addf %908, %911 : vector<8x64xf32>
    %cst_423 = arith.constant 5.000000e-01 : f32
    %913 = vector.broadcast %cst_423 : f32 to vector<8x64xf32>
    %914 = arith.mulf %913, %912 : vector<8x64xf32>
    %cst_424 = arith.constant 0.707106769 : f32
    %915 = vector.broadcast %cst_424 : f32 to vector<8x64xf32>
    %916 = arith.mulf %912, %915 : vector<8x64xf32>
    %cst_425 = arith.constant 0.000000e+00 : f32
    %917 = vector.broadcast %cst_425 : f32 to vector<8x64xf32>
    %918 = arith.cmpf olt, %916, %917 : vector<8x64xf32>
    %cst_426 = arith.constant -1.000000e+00 : f32
    %cst_427 = arith.constant 1.000000e+00 : f32
    %919 = vector.broadcast %cst_426 : f32 to vector<8x64xf32>
    %920 = vector.broadcast %cst_427 : f32 to vector<8x64xf32>
    %921 = arith.select %918, %919, %920 : vector<8x64xi1>, vector<8x64xf32>
    %922 = math.absf %916 : vector<8x64xf32>
    %cst_428 = arith.constant 0.327591091 : f32
    %923 = vector.broadcast %cst_428 : f32 to vector<8x64xf32>
    %924 = arith.mulf %923, %922 : vector<8x64xf32>
    %cst_429 = arith.constant 1.000000e+00 : f32
    %925 = vector.broadcast %cst_429 : f32 to vector<8x64xf32>
    %926 = arith.addf %925, %924 : vector<8x64xf32>
    %cst_430 = arith.constant 1.000000e+00 : f32
    %927 = vector.broadcast %cst_430 : f32 to vector<8x64xf32>
    %928 = arith.divf %927, %926 : vector<8x64xf32>
    %cst_431 = arith.constant 1.06140542 : f32
    %929 = vector.broadcast %cst_431 : f32 to vector<8x64xf32>
    %930 = arith.mulf %929, %928 : vector<8x64xf32>
    %cst_432 = arith.constant -1.45315206 : f32
    %931 = vector.broadcast %cst_432 : f32 to vector<8x64xf32>
    %932 = arith.addf %930, %931 : vector<8x64xf32>
    %933 = arith.mulf %932, %928 : vector<8x64xf32>
    %cst_433 = arith.constant 1.42141378 : f32
    %934 = vector.broadcast %cst_433 : f32 to vector<8x64xf32>
    %935 = arith.addf %933, %934 : vector<8x64xf32>
    %936 = arith.mulf %935, %928 : vector<8x64xf32>
    %cst_434 = arith.constant -0.284496725 : f32
    %937 = vector.broadcast %cst_434 : f32 to vector<8x64xf32>
    %938 = arith.addf %936, %937 : vector<8x64xf32>
    %939 = arith.mulf %938, %928 : vector<8x64xf32>
    %cst_435 = arith.constant 0.254829586 : f32
    %940 = vector.broadcast %cst_435 : f32 to vector<8x64xf32>
    %941 = arith.addf %939, %940 : vector<8x64xf32>
    %942 = arith.mulf %941, %928 : vector<8x64xf32>
    %cst_436 = arith.constant 0.000000e+00 : f32
    %943 = vector.broadcast %cst_436 : f32 to vector<8x64xf32>
    %944 = arith.subf %943, %922 : vector<8x64xf32>
    %945 = arith.mulf %944, %922 : vector<8x64xf32>
    %946 = math.exp %945 : vector<8x64xf32>
    %947 = arith.mulf %942, %946 : vector<8x64xf32>
    %cst_437 = arith.constant 1.000000e+00 : f32
    %948 = vector.broadcast %cst_437 : f32 to vector<8x64xf32>
    %949 = arith.subf %948, %947 : vector<8x64xf32>
    %950 = arith.mulf %921, %949 : vector<8x64xf32>
    %cst_438 = arith.constant 1.000000e+00 : f32
    %951 = vector.broadcast %cst_438 : f32 to vector<8x64xf32>
    %952 = arith.addf %951, %950 : vector<8x64xf32>
    %953 = arith.mulf %914, %952 : vector<8x64xf32>
    %c0_439 = arith.constant 0 : index
    %c0_440 = arith.constant 0 : index
    %c0_441 = arith.constant 0 : index
    %954 = vector.load %arg41[%c0_439, %c0_440, %c0_441] : memref<2x64x32xf32, #tpu.memory_space<vmem>>, vector<1x64x32xf32>
    %955 = vector.shape_cast %954 : vector<1x64x32xf32> to vector<64x32xf32>
    %cst_442 = arith.constant dense<0.000000e+00> : vector<8x32xf32>
    %956 = tpu.matmul %953, %955, %cst_442 {dimension_numbers = #tpu.dot_dimension_numbers<[1], [0], [0], [1], [0, 0, 1, 1], [], []>} : vector<8x64xf32>, vector<64x32xf32>, vector<8x32xf32> -> vector<8x32xf32>
    %c0_443 = arith.constant 0 : index
    %c0_444 = arith.constant 0 : index
    %c0_445 = arith.constant 0 : index
    %957 = vector.load %arg42[%c0_443, %c0_444, %c0_445] : memref<2x1x32xf32, #tpu.memory_space<vmem>>, vector<1x1x32xf32>
    %958 = vector.shape_cast %957 : vector<1x1x32xf32> to vector<1x32xf32>
    %959 = vector.broadcast %958 : vector<1x32xf32> to vector<8x32xf32>
    %960 = arith.addf %956, %959 : vector<8x32xf32>
    %961 = arith.addf %905, %960 : vector<8x32xf32>
    %c0_446 = arith.constant 0 : index
    %c0_447 = arith.constant 0 : index
    %c0_448 = arith.constant 0 : index
    %962 = vector.load %arg43[%c0_446, %c0_447, %c0_448] : memref<2x1x32xf32, #tpu.memory_space<vmem>>, vector<1x1x32xf32>
    %963 = vector.shape_cast %962 : vector<1x1x32xf32> to vector<1x32xf32>
    %c0_449 = arith.constant 0 : index
    %c0_450 = arith.constant 0 : index
    %c0_451 = arith.constant 0 : index
    %964 = vector.load %arg44[%c0_449, %c0_450, %c0_451] : memref<2x1x32xf32, #tpu.memory_space<vmem>>, vector<1x1x32xf32>
    %965 = vector.shape_cast %964 : vector<1x1x32xf32> to vector<1x32xf32>
    %cst_452 = arith.constant dense<0.000000e+00> : vector<8xf32>
    %966 = vector.multi_reduction <add>, %961, %cst_452 [1] : vector<8x32xf32> to vector<8xf32>
    %967 = vector.shape_cast %966 : vector<8xf32> to vector<8x1xf32>
    %cst_453 = arith.constant 3.200000e+01 : f32
    %968 = vector.broadcast %cst_453 : f32 to vector<8x1xf32>
    %969 = arith.divf %967, %968 : vector<8x1xf32>
    %970 = vector.broadcast %969 : vector<8x1xf32> to vector<8x32xf32>
    %971 = arith.subf %961, %970 : vector<8x32xf32>
    %972 = arith.mulf %971, %971 : vector<8x32xf32>
    %cst_454 = arith.constant dense<0.000000e+00> : vector<8xf32>
    %973 = vector.multi_reduction <add>, %972, %cst_454 [1] : vector<8x32xf32> to vector<8xf32>
    %974 = vector.shape_cast %973 : vector<8xf32> to vector<8x1xf32>
    %cst_455 = arith.constant 3.200000e+01 : f32
    %975 = vector.broadcast %cst_455 : f32 to vector<8x1xf32>
    %976 = arith.divf %974, %975 : vector<8x1xf32>
    %977 = vector.broadcast %969 : vector<8x1xf32> to vector<8x32xf32>
    %978 = arith.subf %961, %977 : vector<8x32xf32>
    %cst_456 = arith.constant 9.99999974E-6 : f32
    %979 = vector.broadcast %cst_456 : f32 to vector<8x1xf32>
    %980 = arith.addf %976, %979 : vector<8x1xf32>
    %981 = math.rsqrt %980 : vector<8x1xf32>
    %982 = vector.broadcast %981 : vector<8x1xf32> to vector<8x32xf32>
    %983 = arith.mulf %978, %982 : vector<8x32xf32>
    %984 = vector.broadcast %963 : vector<1x32xf32> to vector<8x32xf32>
    %985 = arith.mulf %983, %984 : vector<8x32xf32>
    %986 = vector.broadcast %965 : vector<1x32xf32> to vector<8x32xf32>
    %987 = arith.addf %985, %986 : vector<8x32xf32>
    %c1_457 = arith.constant 1 : index
    %c0_458 = arith.constant 0 : index
    %c0_459 = arith.constant 0 : index
    %988 = vector.load %arg25[%c1_457, %c0_458, %c0_459] : memref<2x32x96xf32, #tpu.memory_space<vmem>>, vector<1x32x96xf32>
    %989 = vector.shape_cast %988 : vector<1x32x96xf32> to vector<32x96xf32>
    %cst_460 = arith.constant dense<0.000000e+00> : vector<8x96xf32>
    %990 = tpu.matmul %987, %989, %cst_460 {dimension_numbers = #tpu.dot_dimension_numbers<[1], [0], [0], [1], [0, 0, 1, 1], [], []>} : vector<8x32xf32>, vector<32x96xf32>, vector<8x96xf32> -> vector<8x96xf32>
    %c1_461 = arith.constant 1 : index
    %c0_462 = arith.constant 0 : index
    %c0_463 = arith.constant 0 : index
    %991 = vector.load %arg26[%c1_461, %c0_462, %c0_463] : memref<2x1x96xf32, #tpu.memory_space<vmem>>, vector<1x1x96xf32>
    %992 = vector.shape_cast %991 : vector<1x1x96xf32> to vector<1x96xf32>
    %993 = vector.broadcast %992 : vector<1x96xf32> to vector<8x96xf32>
    %994 = arith.addf %990, %993 : vector<8x96xf32>
    %995 = vector.extract_strided_slice %994 {offsets = [0, 0], sizes = [8, 32], strides = [1, 1]} : vector<8x96xf32> to vector<8x32xf32>
    %996 = vector.extract_strided_slice %994 {offsets = [0, 32], sizes = [8, 32], strides = [1, 1]} : vector<8x96xf32> to vector<8x32xf32>
    %997 = vector.extract_strided_slice %994 {offsets = [0, 64], sizes = [8, 32], strides = [1, 1]} : vector<8x96xf32> to vector<8x32xf32>
    %c1_464 = arith.constant 1 : index
    %c0_465 = arith.constant 0 : index
    %c0_466 = arith.constant 0 : index
    %998 = vector.load %arg27[%c1_464, %c0_465, %c0_466] : memref<2x32x32xf32, #tpu.memory_space<vmem>>, vector<1x32x32xf32>
    %999 = vector.shape_cast %998 : vector<1x32x32xf32> to vector<32x32xf32>
    %c1_467 = arith.constant 1 : index
    %c0_468 = arith.constant 0 : index
    %c0_469 = arith.constant 0 : index
    %1000 = vector.load %arg28[%c1_467, %c0_468, %c0_469] : memref<2x1x32xf32, #tpu.memory_space<vmem>>, vector<1x1x32xf32>
    %1001 = vector.shape_cast %1000 : vector<1x1x32xf32> to vector<1x32xf32>
    %cst_470 = arith.constant 5.000000e-01 : f32
    %1002 = vector.broadcast %cst_470 : f32 to vector<8x32xf32>
    %1003 = arith.mulf %995, %1002 : vector<8x32xf32>
    %1004 = vector.extract_strided_slice %1003 {offsets = [0, 0], sizes = [8, 4], strides = [1, 1]} : vector<8x32xf32> to vector<8x4xf32>
    %1005 = vector.extract_strided_slice %996 {offsets = [0, 0], sizes = [8, 4], strides = [1, 1]} : vector<8x32xf32> to vector<8x4xf32>
    %1006 = vector.extract_strided_slice %997 {offsets = [0, 0], sizes = [8, 4], strides = [1, 1]} : vector<8x32xf32> to vector<8x4xf32>
    %cst_471 = arith.constant dense<0.000000e+00> : vector<8x8xf32>
    %1007 = tpu.matmul %1004, %1005, %cst_471 {dimension_numbers = #tpu.dot_dimension_numbers<[1], [1], [0], [0], [0, 0, 1, 0], [], []>} : vector<8x4xf32>, vector<8x4xf32>, vector<8x8xf32> -> vector<8x8xf32>
    %1008 = arith.addf %1007, %557 : vector<8x8xf32>
    %cst_472 = arith.constant dense<0xFF800000> : vector<8xf32>
    %1009 = vector.multi_reduction <maximumf>, %1008, %cst_472 [1] : vector<8x8xf32> to vector<8xf32>
    %1010 = vector.shape_cast %1009 : vector<8xf32> to vector<8x1xf32>
    %1011 = vector.broadcast %1010 : vector<8x1xf32> to vector<8x8xf32>
    %1012 = arith.subf %1008, %1011 : vector<8x8xf32>
    %1013 = math.exp %1012 : vector<8x8xf32>
    %cst_473 = arith.constant dense<0.000000e+00> : vector<8xf32>
    %1014 = vector.multi_reduction <add>, %1013, %cst_473 [1] : vector<8x8xf32> to vector<8xf32>
    %1015 = vector.shape_cast %1014 : vector<8xf32> to vector<8x1xf32>
    %1016 = vector.broadcast %1015 : vector<8x1xf32> to vector<8x8xf32>
    %1017 = arith.divf %1013, %1016 : vector<8x8xf32>
    %cst_474 = arith.constant dense<0.000000e+00> : vector<8x4xf32>
    %1018 = tpu.matmul %1017, %1006, %cst_474 {dimension_numbers = #tpu.dot_dimension_numbers<[1], [0], [0], [1], [0, 0, 1, 1], [], []>} : vector<8x8xf32>, vector<8x4xf32>, vector<8x4xf32> -> vector<8x4xf32>
    %c0_475 = arith.constant 0 : index
    %c0_476 = arith.constant 0 : index
    %1019 = vector.load %arg50[%c0_475, %c0_476] : memref<8x32xf32, #tpu.memory_space<vmem>>, vector<8x4xf32>
    tpu.vector_store %arg50[%c0_475, %c0_476], %1018 {strides = array<i32>} : memref<8x32xf32, #tpu.memory_space<vmem>>, vector<8x4xf32>,
    %1020 = vector.extract_strided_slice %1003 {offsets = [0, 4], sizes = [8, 4], strides = [1, 1]} : vector<8x32xf32> to vector<8x4xf32>
    %1021 = vector.extract_strided_slice %996 {offsets = [0, 4], sizes = [8, 4], strides = [1, 1]} : vector<8x32xf32> to vector<8x4xf32>
    %1022 = vector.extract_strided_slice %997 {offsets = [0, 4], sizes = [8, 4], strides = [1, 1]} : vector<8x32xf32> to vector<8x4xf32>
    %cst_477 = arith.constant dense<0.000000e+00> : vector<8x8xf32>
    %1023 = tpu.matmul %1020, %1021, %cst_477 {dimension_numbers = #tpu.dot_dimension_numbers<[1], [1], [0], [0], [0, 0, 1, 0], [], []>} : vector<8x4xf32>, vector<8x4xf32>, vector<8x8xf32> -> vector<8x8xf32>
    %1024 = arith.addf %1023, %557 : vector<8x8xf32>
    %cst_478 = arith.constant dense<0xFF800000> : vector<8xf32>
    %1025 = vector.multi_reduction <maximumf>, %1024, %cst_478 [1] : vector<8x8xf32> to vector<8xf32>
    %1026 = vector.shape_cast %1025 : vector<8xf32> to vector<8x1xf32>
    %1027 = vector.broadcast %1026 : vector<8x1xf32> to vector<8x8xf32>
    %1028 = arith.subf %1024, %1027 : vector<8x8xf32>
    %1029 = math.exp %1028 : vector<8x8xf32>
    %cst_479 = arith.constant dense<0.000000e+00> : vector<8xf32>
    %1030 = vector.multi_reduction <add>, %1029, %cst_479 [1] : vector<8x8xf32> to vector<8xf32>
    %1031 = vector.shape_cast %1030 : vector<8xf32> to vector<8x1xf32>
    %1032 = vector.broadcast %1031 : vector<8x1xf32> to vector<8x8xf32>
    %1033 = arith.divf %1029, %1032 : vector<8x8xf32>
    %cst_480 = arith.constant dense<0.000000e+00> : vector<8x4xf32>
    %1034 = tpu.matmul %1033, %1022, %cst_480 {dimension_numbers = #tpu.dot_dimension_numbers<[1], [0], [0], [1], [0, 0, 1, 1], [], []>} : vector<8x8xf32>, vector<8x4xf32>, vector<8x4xf32> -> vector<8x4xf32>
    %c0_481 = arith.constant 0 : index
    %c4_482 = arith.constant 4 : index
    %1035 = vector.load %arg50[%c0_481, %c4_482] : memref<8x32xf32, #tpu.memory_space<vmem>>, vector<8x4xf32>
    tpu.vector_store %arg50[%c0_481, %c4_482], %1034 {strides = array<i32>} : memref<8x32xf32, #tpu.memory_space<vmem>>, vector<8x4xf32>,
    %1036 = vector.extract_strided_slice %1003 {offsets = [0, 8], sizes = [8, 4], strides = [1, 1]} : vector<8x32xf32> to vector<8x4xf32>
    %1037 = vector.extract_strided_slice %996 {offsets = [0, 8], sizes = [8, 4], strides = [1, 1]} : vector<8x32xf32> to vector<8x4xf32>
    %1038 = vector.extract_strided_slice %997 {offsets = [0, 8], sizes = [8, 4], strides = [1, 1]} : vector<8x32xf32> to vector<8x4xf32>
    %cst_483 = arith.constant dense<0.000000e+00> : vector<8x8xf32>
    %1039 = tpu.matmul %1036, %1037, %cst_483 {dimension_numbers = #tpu.dot_dimension_numbers<[1], [1], [0], [0], [0, 0, 1, 0], [], []>} : vector<8x4xf32>, vector<8x4xf32>, vector<8x8xf32> -> vector<8x8xf32>
    %1040 = arith.addf %1039, %557 : vector<8x8xf32>
    %cst_484 = arith.constant dense<0xFF800000> : vector<8xf32>
    %1041 = vector.multi_reduction <maximumf>, %1040, %cst_484 [1] : vector<8x8xf32> to vector<8xf32>
    %1042 = vector.shape_cast %1041 : vector<8xf32> to vector<8x1xf32>
    %1043 = vector.broadcast %1042 : vector<8x1xf32> to vector<8x8xf32>
    %1044 = arith.subf %1040, %1043 : vector<8x8xf32>
    %1045 = math.exp %1044 : vector<8x8xf32>
    %cst_485 = arith.constant dense<0.000000e+00> : vector<8xf32>
    %1046 = vector.multi_reduction <add>, %1045, %cst_485 [1] : vector<8x8xf32> to vector<8xf32>
    %1047 = vector.shape_cast %1046 : vector<8xf32> to vector<8x1xf32>
    %1048 = vector.broadcast %1047 : vector<8x1xf32> to vector<8x8xf32>
    %1049 = arith.divf %1045, %1048 : vector<8x8xf32>
    %cst_486 = arith.constant dense<0.000000e+00> : vector<8x4xf32>
    %1050 = tpu.matmul %1049, %1038, %cst_486 {dimension_numbers = #tpu.dot_dimension_numbers<[1], [0], [0], [1], [0, 0, 1, 1], [], []>} : vector<8x8xf32>, vector<8x4xf32>, vector<8x4xf32> -> vector<8x4xf32>
    %c0_487 = arith.constant 0 : index
    %c8_488 = arith.constant 8 : index
    %1051 = vector.load %arg50[%c0_487, %c8_488] : memref<8x32xf32, #tpu.memory_space<vmem>>, vector<8x4xf32>
    tpu.vector_store %arg50[%c0_487, %c8_488], %1050 {strides = array<i32>} : memref<8x32xf32, #tpu.memory_space<vmem>>, vector<8x4xf32>,
    %1052 = vector.extract_strided_slice %1003 {offsets = [0, 12], sizes = [8, 4], strides = [1, 1]} : vector<8x32xf32> to vector<8x4xf32>
    %1053 = vector.extract_strided_slice %996 {offsets = [0, 12], sizes = [8, 4], strides = [1, 1]} : vector<8x32xf32> to vector<8x4xf32>
    %1054 = vector.extract_strided_slice %997 {offsets = [0, 12], sizes = [8, 4], strides = [1, 1]} : vector<8x32xf32> to vector<8x4xf32>
    %cst_489 = arith.constant dense<0.000000e+00> : vector<8x8xf32>
    %1055 = tpu.matmul %1052, %1053, %cst_489 {dimension_numbers = #tpu.dot_dimension_numbers<[1], [1], [0], [0], [0, 0, 1, 0], [], []>} : vector<8x4xf32>, vector<8x4xf32>, vector<8x8xf32> -> vector<8x8xf32>
    %1056 = arith.addf %1055, %557 : vector<8x8xf32>
    %cst_490 = arith.constant dense<0xFF800000> : vector<8xf32>
    %1057 = vector.multi_reduction <maximumf>, %1056, %cst_490 [1] : vector<8x8xf32> to vector<8xf32>
    %1058 = vector.shape_cast %1057 : vector<8xf32> to vector<8x1xf32>
    %1059 = vector.broadcast %1058 : vector<8x1xf32> to vector<8x8xf32>
    %1060 = arith.subf %1056, %1059 : vector<8x8xf32>
    %1061 = math.exp %1060 : vector<8x8xf32>
    %cst_491 = arith.constant dense<0.000000e+00> : vector<8xf32>
    %1062 = vector.multi_reduction <add>, %1061, %cst_491 [1] : vector<8x8xf32> to vector<8xf32>
    %1063 = vector.shape_cast %1062 : vector<8xf32> to vector<8x1xf32>
    %1064 = vector.broadcast %1063 : vector<8x1xf32> to vector<8x8xf32>
    %1065 = arith.divf %1061, %1064 : vector<8x8xf32>
    %cst_492 = arith.constant dense<0.000000e+00> : vector<8x4xf32>
    %1066 = tpu.matmul %1065, %1054, %cst_492 {dimension_numbers = #tpu.dot_dimension_numbers<[1], [0], [0], [1], [0, 0, 1, 1], [], []>} : vector<8x8xf32>, vector<8x4xf32>, vector<8x4xf32> -> vector<8x4xf32>
    %c0_493 = arith.constant 0 : index
    %c12_494 = arith.constant 12 : index
    %1067 = vector.load %arg50[%c0_493, %c12_494] : memref<8x32xf32, #tpu.memory_space<vmem>>, vector<8x4xf32>
    tpu.vector_store %arg50[%c0_493, %c12_494], %1066 {strides = array<i32>} : memref<8x32xf32, #tpu.memory_space<vmem>>, vector<8x4xf32>,
    %1068 = vector.extract_strided_slice %1003 {offsets = [0, 16], sizes = [8, 4], strides = [1, 1]} : vector<8x32xf32> to vector<8x4xf32>
    %1069 = vector.extract_strided_slice %996 {offsets = [0, 16], sizes = [8, 4], strides = [1, 1]} : vector<8x32xf32> to vector<8x4xf32>
    %1070 = vector.extract_strided_slice %997 {offsets = [0, 16], sizes = [8, 4], strides = [1, 1]} : vector<8x32xf32> to vector<8x4xf32>
    %cst_495 = arith.constant dense<0.000000e+00> : vector<8x8xf32>
    %1071 = tpu.matmul %1068, %1069, %cst_495 {dimension_numbers = #tpu.dot_dimension_numbers<[1], [1], [0], [0], [0, 0, 1, 0], [], []>} : vector<8x4xf32>, vector<8x4xf32>, vector<8x8xf32> -> vector<8x8xf32>
    %1072 = arith.addf %1071, %557 : vector<8x8xf32>
    %cst_496 = arith.constant dense<0xFF800000> : vector<8xf32>
    %1073 = vector.multi_reduction <maximumf>, %1072, %cst_496 [1] : vector<8x8xf32> to vector<8xf32>
    %1074 = vector.shape_cast %1073 : vector<8xf32> to vector<8x1xf32>
    %1075 = vector.broadcast %1074 : vector<8x1xf32> to vector<8x8xf32>
    %1076 = arith.subf %1072, %1075 : vector<8x8xf32>
    %1077 = math.exp %1076 : vector<8x8xf32>
    %cst_497 = arith.constant dense<0.000000e+00> : vector<8xf32>
    %1078 = vector.multi_reduction <add>, %1077, %cst_497 [1] : vector<8x8xf32> to vector<8xf32>
    %1079 = vector.shape_cast %1078 : vector<8xf32> to vector<8x1xf32>
    %1080 = vector.broadcast %1079 : vector<8x1xf32> to vector<8x8xf32>
    %1081 = arith.divf %1077, %1080 : vector<8x8xf32>
    %cst_498 = arith.constant dense<0.000000e+00> : vector<8x4xf32>
    %1082 = tpu.matmul %1081, %1070, %cst_498 {dimension_numbers = #tpu.dot_dimension_numbers<[1], [0], [0], [1], [0, 0, 1, 1], [], []>} : vector<8x8xf32>, vector<8x4xf32>, vector<8x4xf32> -> vector<8x4xf32>
    %c0_499 = arith.constant 0 : index
    %c16_500 = arith.constant 16 : index
    %1083 = vector.load %arg50[%c0_499, %c16_500] : memref<8x32xf32, #tpu.memory_space<vmem>>, vector<8x4xf32>
    tpu.vector_store %arg50[%c0_499, %c16_500], %1082 {strides = array<i32>} : memref<8x32xf32, #tpu.memory_space<vmem>>, vector<8x4xf32>,
    %1084 = vector.extract_strided_slice %1003 {offsets = [0, 20], sizes = [8, 4], strides = [1, 1]} : vector<8x32xf32> to vector<8x4xf32>
    %1085 = vector.extract_strided_slice %996 {offsets = [0, 20], sizes = [8, 4], strides = [1, 1]} : vector<8x32xf32> to vector<8x4xf32>
    %1086 = vector.extract_strided_slice %997 {offsets = [0, 20], sizes = [8, 4], strides = [1, 1]} : vector<8x32xf32> to vector<8x4xf32>
    %cst_501 = arith.constant dense<0.000000e+00> : vector<8x8xf32>
    %1087 = tpu.matmul %1084, %1085, %cst_501 {dimension_numbers = #tpu.dot_dimension_numbers<[1], [1], [0], [0], [0, 0, 1, 0], [], []>} : vector<8x4xf32>, vector<8x4xf32>, vector<8x8xf32> -> vector<8x8xf32>
    %1088 = arith.addf %1087, %557 : vector<8x8xf32>
    %cst_502 = arith.constant dense<0xFF800000> : vector<8xf32>
    %1089 = vector.multi_reduction <maximumf>, %1088, %cst_502 [1] : vector<8x8xf32> to vector<8xf32>
    %1090 = vector.shape_cast %1089 : vector<8xf32> to vector<8x1xf32>
    %1091 = vector.broadcast %1090 : vector<8x1xf32> to vector<8x8xf32>
    %1092 = arith.subf %1088, %1091 : vector<8x8xf32>
    %1093 = math.exp %1092 : vector<8x8xf32>
    %cst_503 = arith.constant dense<0.000000e+00> : vector<8xf32>
    %1094 = vector.multi_reduction <add>, %1093, %cst_503 [1] : vector<8x8xf32> to vector<8xf32>
    %1095 = vector.shape_cast %1094 : vector<8xf32> to vector<8x1xf32>
    %1096 = vector.broadcast %1095 : vector<8x1xf32> to vector<8x8xf32>
    %1097 = arith.divf %1093, %1096 : vector<8x8xf32>
    %cst_504 = arith.constant dense<0.000000e+00> : vector<8x4xf32>
    %1098 = tpu.matmul %1097, %1086, %cst_504 {dimension_numbers = #tpu.dot_dimension_numbers<[1], [0], [0], [1], [0, 0, 1, 1], [], []>} : vector<8x8xf32>, vector<8x4xf32>, vector<8x4xf32> -> vector<8x4xf32>
    %c0_505 = arith.constant 0 : index
    %c20_506 = arith.constant 20 : index
    %1099 = vector.load %arg50[%c0_505, %c20_506] : memref<8x32xf32, #tpu.memory_space<vmem>>, vector<8x4xf32>
    tpu.vector_store %arg50[%c0_505, %c20_506], %1098 {strides = array<i32>} : memref<8x32xf32, #tpu.memory_space<vmem>>, vector<8x4xf32>,
    %1100 = vector.extract_strided_slice %1003 {offsets = [0, 24], sizes = [8, 4], strides = [1, 1]} : vector<8x32xf32> to vector<8x4xf32>
    %1101 = vector.extract_strided_slice %996 {offsets = [0, 24], sizes = [8, 4], strides = [1, 1]} : vector<8x32xf32> to vector<8x4xf32>
    %1102 = vector.extract_strided_slice %997 {offsets = [0, 24], sizes = [8, 4], strides = [1, 1]} : vector<8x32xf32> to vector<8x4xf32>
    %cst_507 = arith.constant dense<0.000000e+00> : vector<8x8xf32>
    %1103 = tpu.matmul %1100, %1101, %cst_507 {dimension_numbers = #tpu.dot_dimension_numbers<[1], [1], [0], [0], [0, 0, 1, 0], [], []>} : vector<8x4xf32>, vector<8x4xf32>, vector<8x8xf32> -> vector<8x8xf32>
    %1104 = arith.addf %1103, %557 : vector<8x8xf32>
    %cst_508 = arith.constant dense<0xFF800000> : vector<8xf32>
    %1105 = vector.multi_reduction <maximumf>, %1104, %cst_508 [1] : vector<8x8xf32> to vector<8xf32>
    %1106 = vector.shape_cast %1105 : vector<8xf32> to vector<8x1xf32>
    %1107 = vector.broadcast %1106 : vector<8x1xf32> to vector<8x8xf32>
    %1108 = arith.subf %1104, %1107 : vector<8x8xf32>
    %1109 = math.exp %1108 : vector<8x8xf32>
    %cst_509 = arith.constant dense<0.000000e+00> : vector<8xf32>
    %1110 = vector.multi_reduction <add>, %1109, %cst_509 [1] : vector<8x8xf32> to vector<8xf32>
    %1111 = vector.shape_cast %1110 : vector<8xf32> to vector<8x1xf32>
    %1112 = vector.broadcast %1111 : vector<8x1xf32> to vector<8x8xf32>
    %1113 = arith.divf %1109, %1112 : vector<8x8xf32>
    %cst_510 = arith.constant dense<0.000000e+00> : vector<8x4xf32>
    %1114 = tpu.matmul %1113, %1102, %cst_510 {dimension_numbers = #tpu.dot_dimension_numbers<[1], [0], [0], [1], [0, 0, 1, 1], [], []>} : vector<8x8xf32>, vector<8x4xf32>, vector<8x4xf32> -> vector<8x4xf32>
    %c0_511 = arith.constant 0 : index
    %c24_512 = arith.constant 24 : index
    %1115 = vector.load %arg50[%c0_511, %c24_512] : memref<8x32xf32, #tpu.memory_space<vmem>>, vector<8x4xf32>
    tpu.vector_store %arg50[%c0_511, %c24_512], %1114 {strides = array<i32>} : memref<8x32xf32, #tpu.memory_space<vmem>>, vector<8x4xf32>,
    %1116 = vector.extract_strided_slice %1003 {offsets = [0, 28], sizes = [8, 4], strides = [1, 1]} : vector<8x32xf32> to vector<8x4xf32>
    %1117 = vector.extract_strided_slice %996 {offsets = [0, 28], sizes = [8, 4], strides = [1, 1]} : vector<8x32xf32> to vector<8x4xf32>
    %1118 = vector.extract_strided_slice %997 {offsets = [0, 28], sizes = [8, 4], strides = [1, 1]} : vector<8x32xf32> to vector<8x4xf32>
    %cst_513 = arith.constant dense<0.000000e+00> : vector<8x8xf32>
    %1119 = tpu.matmul %1116, %1117, %cst_513 {dimension_numbers = #tpu.dot_dimension_numbers<[1], [1], [0], [0], [0, 0, 1, 0], [], []>} : vector<8x4xf32>, vector<8x4xf32>, vector<8x8xf32> -> vector<8x8xf32>
    %1120 = arith.addf %1119, %557 : vector<8x8xf32>
    %cst_514 = arith.constant dense<0xFF800000> : vector<8xf32>
    %1121 = vector.multi_reduction <maximumf>, %1120, %cst_514 [1] : vector<8x8xf32> to vector<8xf32>
    %1122 = vector.shape_cast %1121 : vector<8xf32> to vector<8x1xf32>
    %1123 = vector.broadcast %1122 : vector<8x1xf32> to vector<8x8xf32>
    %1124 = arith.subf %1120, %1123 : vector<8x8xf32>
    %1125 = math.exp %1124 : vector<8x8xf32>
    %cst_515 = arith.constant dense<0.000000e+00> : vector<8xf32>
    %1126 = vector.multi_reduction <add>, %1125, %cst_515 [1] : vector<8x8xf32> to vector<8xf32>
    %1127 = vector.shape_cast %1126 : vector<8xf32> to vector<8x1xf32>
    %1128 = vector.broadcast %1127 : vector<8x1xf32> to vector<8x8xf32>
    %1129 = arith.divf %1125, %1128 : vector<8x8xf32>
    %cst_516 = arith.constant dense<0.000000e+00> : vector<8x4xf32>
    %1130 = tpu.matmul %1129, %1118, %cst_516 {dimension_numbers = #tpu.dot_dimension_numbers<[1], [0], [0], [1], [0, 0, 1, 1], [], []>} : vector<8x8xf32>, vector<8x4xf32>, vector<8x4xf32> -> vector<8x4xf32>
    %c0_517 = arith.constant 0 : index
    %c28_518 = arith.constant 28 : index
    %1131 = vector.load %arg50[%c0_517, %c28_518] : memref<8x32xf32, #tpu.memory_space<vmem>>, vector<8x4xf32>
    tpu.vector_store %arg50[%c0_517, %c28_518], %1130 {strides = array<i32>} : memref<8x32xf32, #tpu.memory_space<vmem>>, vector<8x4xf32>,
    %c0_519 = arith.constant 0 : index
    %c0_520 = arith.constant 0 : index
    %1132 = vector.load %arg50[%c0_519, %c0_520] : memref<8x32xf32, #tpu.memory_space<vmem>>, vector<8x32xf32>
    %cst_521 = arith.constant dense<0.000000e+00> : vector<8x32xf32>
    %1133 = tpu.matmul %1132, %999, %cst_521 {dimension_numbers = #tpu.dot_dimension_numbers<[1], [0], [0], [1], [0, 0, 1, 1], [], []>} : vector<8x32xf32>, vector<32x32xf32>, vector<8x32xf32> -> vector<8x32xf32>
    %1134 = vector.broadcast %1001 : vector<1x32xf32> to vector<8x32xf32>
    %1135 = arith.addf %1133, %1134 : vector<8x32xf32>
    %1136 = arith.addf %987, %1135 : vector<8x32xf32>
    %c1_522 = arith.constant 1 : index
    %c0_523 = arith.constant 0 : index
    %c0_524 = arith.constant 0 : index
    %1137 = vector.load %arg29[%c1_522, %c0_523, %c0_524] : memref<2x1x32xf32, #tpu.memory_space<vmem>>, vector<1x1x32xf32>
    %1138 = vector.shape_cast %1137 : vector<1x1x32xf32> to vector<1x32xf32>
    %c1_525 = arith.constant 1 : index
    %c0_526 = arith.constant 0 : index
    %c0_527 = arith.constant 0 : index
    %1139 = vector.load %arg30[%c1_525, %c0_526, %c0_527] : memref<2x1x32xf32, #tpu.memory_space<vmem>>, vector<1x1x32xf32>
    %1140 = vector.shape_cast %1139 : vector<1x1x32xf32> to vector<1x32xf32>
    %cst_528 = arith.constant dense<0.000000e+00> : vector<8xf32>
    %1141 = vector.multi_reduction <add>, %1136, %cst_528 [1] : vector<8x32xf32> to vector<8xf32>
    %1142 = vector.shape_cast %1141 : vector<8xf32> to vector<8x1xf32>
    %cst_529 = arith.constant 3.200000e+01 : f32
    %1143 = vector.broadcast %cst_529 : f32 to vector<8x1xf32>
    %1144 = arith.divf %1142, %1143 : vector<8x1xf32>
    %1145 = vector.broadcast %1144 : vector<8x1xf32> to vector<8x32xf32>
    %1146 = arith.subf %1136, %1145 : vector<8x32xf32>
    %1147 = arith.mulf %1146, %1146 : vector<8x32xf32>
    %cst_530 = arith.constant dense<0.000000e+00> : vector<8xf32>
    %1148 = vector.multi_reduction <add>, %1147, %cst_530 [1] : vector<8x32xf32> to vector<8xf32>
    %1149 = vector.shape_cast %1148 : vector<8xf32> to vector<8x1xf32>
    %cst_531 = arith.constant 3.200000e+01 : f32
    %1150 = vector.broadcast %cst_531 : f32 to vector<8x1xf32>
    %1151 = arith.divf %1149, %1150 : vector<8x1xf32>
    %1152 = vector.broadcast %1144 : vector<8x1xf32> to vector<8x32xf32>
    %1153 = arith.subf %1136, %1152 : vector<8x32xf32>
    %cst_532 = arith.constant 9.99999974E-6 : f32
    %1154 = vector.broadcast %cst_532 : f32 to vector<8x1xf32>
    %1155 = arith.addf %1151, %1154 : vector<8x1xf32>
    %1156 = math.rsqrt %1155 : vector<8x1xf32>
    %1157 = vector.broadcast %1156 : vector<8x1xf32> to vector<8x32xf32>
    %1158 = arith.mulf %1153, %1157 : vector<8x32xf32>
    %1159 = vector.broadcast %1138 : vector<1x32xf32> to vector<8x32xf32>
    %1160 = arith.mulf %1158, %1159 : vector<8x32xf32>
    %1161 = vector.broadcast %1140 : vector<1x32xf32> to vector<8x32xf32>
    %1162 = arith.addf %1160, %1161 : vector<8x32xf32>
    %c1_533 = arith.constant 1 : index
    %c0_534 = arith.constant 0 : index
    %c0_535 = arith.constant 0 : index
    %1163 = vector.load %arg31[%c1_533, %c0_534, %c0_535] : memref<2x32x32xf32, #tpu.memory_space<vmem>>, vector<1x32x32xf32>
    %1164 = vector.shape_cast %1163 : vector<1x32x32xf32> to vector<32x32xf32>
    %cst_536 = arith.constant dense<0.000000e+00> : vector<8x32xf32>
    %1165 = tpu.matmul %1162, %1164, %cst_536 {dimension_numbers = #tpu.dot_dimension_numbers<[1], [0], [0], [1], [0, 0, 1, 1], [], []>} : vector<8x32xf32>, vector<32x32xf32>, vector<8x32xf32> -> vector<8x32xf32>
    %c1_537 = arith.constant 1 : index
    %c0_538 = arith.constant 0 : index
    %c0_539 = arith.constant 0 : index
    %1166 = vector.load %arg32[%c1_537, %c0_538, %c0_539] : memref<2x1x32xf32, #tpu.memory_space<vmem>>, vector<1x1x32xf32>
    %1167 = vector.shape_cast %1166 : vector<1x1x32xf32> to vector<1x32xf32>
    %1168 = vector.broadcast %1167 : vector<1x32xf32> to vector<8x32xf32>
    %1169 = arith.addf %1165, %1168 : vector<8x32xf32>
    %c1_540 = arith.constant 1 : index
    %c0_541 = arith.constant 0 : index
    %c0_542 = arith.constant 0 : index
    %1170 = vector.load %arg33[%c1_540, %c0_541, %c0_542] : memref<2x32x64xf32, #tpu.memory_space<vmem>>, vector<1x32x64xf32>
    %1171 = vector.shape_cast %1170 : vector<1x32x64xf32> to vector<32x64xf32>
    %cst_543 = arith.constant dense<0.000000e+00> : vector<8x64xf32>
    %1172 = tpu.matmul %547, %1171, %cst_543 {dimension_numbers = #tpu.dot_dimension_numbers<[1], [0], [0], [1], [0, 0, 1, 1], [], []>} : vector<8x32xf32>, vector<32x64xf32>, vector<8x64xf32> -> vector<8x64xf32>
    %c1_544 = arith.constant 1 : index
    %c0_545 = arith.constant 0 : index
    %c0_546 = arith.constant 0 : index
    %1173 = vector.load %arg34[%c1_544, %c0_545, %c0_546] : memref<2x1x64xf32, #tpu.memory_space<vmem>>, vector<1x1x64xf32>
    %1174 = vector.shape_cast %1173 : vector<1x1x64xf32> to vector<1x64xf32>
    %1175 = vector.broadcast %1174 : vector<1x64xf32> to vector<8x64xf32>
    %1176 = arith.addf %1172, %1175 : vector<8x64xf32>
    %1177 = vector.extract_strided_slice %1176 {offsets = [0, 0], sizes = [8, 32], strides = [1, 1]} : vector<8x64xf32> to vector<8x32xf32>
    %1178 = vector.extract_strided_slice %1176 {offsets = [0, 32], sizes = [8, 32], strides = [1, 1]} : vector<8x64xf32> to vector<8x32xf32>
    %c1_547 = arith.constant 1 : index
    %c0_548 = arith.constant 0 : index
    %c0_549 = arith.constant 0 : index
    %1179 = vector.load %arg35[%c1_547, %c0_548, %c0_549] : memref<2x32x32xf32, #tpu.memory_space<vmem>>, vector<1x32x32xf32>
    %1180 = vector.shape_cast %1179 : vector<1x32x32xf32> to vector<32x32xf32>
    %c1_550 = arith.constant 1 : index
    %c0_551 = arith.constant 0 : index
    %c0_552 = arith.constant 0 : index
    %1181 = vector.load %arg36[%c1_550, %c0_551, %c0_552] : memref<2x1x32xf32, #tpu.memory_space<vmem>>, vector<1x1x32xf32>
    %1182 = vector.shape_cast %1181 : vector<1x1x32xf32> to vector<1x32xf32>
    %cst_553 = arith.constant 5.000000e-01 : f32
    %1183 = vector.broadcast %cst_553 : f32 to vector<8x32xf32>
    %1184 = arith.mulf %1169, %1183 : vector<8x32xf32>
    %1185 = vector.extract_strided_slice %1184 {offsets = [0, 0], sizes = [8, 4], strides = [1, 1]} : vector<8x32xf32> to vector<8x4xf32>
    %1186 = vector.extract_strided_slice %1177 {offsets = [0, 0], sizes = [8, 4], strides = [1, 1]} : vector<8x32xf32> to vector<8x4xf32>
    %1187 = vector.extract_strided_slice %1178 {offsets = [0, 0], sizes = [8, 4], strides = [1, 1]} : vector<8x32xf32> to vector<8x4xf32>
    %cst_554 = arith.constant dense<0.000000e+00> : vector<8x8xf32>
    %1188 = tpu.matmul %1185, %1186, %cst_554 {dimension_numbers = #tpu.dot_dimension_numbers<[1], [1], [0], [0], [0, 0, 1, 0], [], []>} : vector<8x4xf32>, vector<8x4xf32>, vector<8x8xf32> -> vector<8x8xf32>
    %cst_555 = arith.constant dense<0xFF800000> : vector<8xf32>
    %1189 = vector.multi_reduction <maximumf>, %1188, %cst_555 [1] : vector<8x8xf32> to vector<8xf32>
    %1190 = vector.shape_cast %1189 : vector<8xf32> to vector<8x1xf32>
    %1191 = vector.broadcast %1190 : vector<8x1xf32> to vector<8x8xf32>
    %1192 = arith.subf %1188, %1191 : vector<8x8xf32>
    %1193 = math.exp %1192 : vector<8x8xf32>
    %cst_556 = arith.constant dense<0.000000e+00> : vector<8xf32>
    %1194 = vector.multi_reduction <add>, %1193, %cst_556 [1] : vector<8x8xf32> to vector<8xf32>
    %1195 = vector.shape_cast %1194 : vector<8xf32> to vector<8x1xf32>
    %1196 = vector.broadcast %1195 : vector<8x1xf32> to vector<8x8xf32>
    %1197 = arith.divf %1193, %1196 : vector<8x8xf32>
    %cst_557 = arith.constant dense<0.000000e+00> : vector<8x4xf32>
    %1198 = tpu.matmul %1197, %1187, %cst_557 {dimension_numbers = #tpu.dot_dimension_numbers<[1], [0], [0], [1], [0, 0, 1, 1], [], []>} : vector<8x8xf32>, vector<8x4xf32>, vector<8x4xf32> -> vector<8x4xf32>
    %c0_558 = arith.constant 0 : index
    %c0_559 = arith.constant 0 : index
    %1199 = vector.load %arg50[%c0_558, %c0_559] : memref<8x32xf32, #tpu.memory_space<vmem>>, vector<8x4xf32>
    tpu.vector_store %arg50[%c0_558, %c0_559], %1198 {strides = array<i32>} : memref<8x32xf32, #tpu.memory_space<vmem>>, vector<8x4xf32>,
    %1200 = vector.extract_strided_slice %1184 {offsets = [0, 4], sizes = [8, 4], strides = [1, 1]} : vector<8x32xf32> to vector<8x4xf32>
    %1201 = vector.extract_strided_slice %1177 {offsets = [0, 4], sizes = [8, 4], strides = [1, 1]} : vector<8x32xf32> to vector<8x4xf32>
    %1202 = vector.extract_strided_slice %1178 {offsets = [0, 4], sizes = [8, 4], strides = [1, 1]} : vector<8x32xf32> to vector<8x4xf32>
    %cst_560 = arith.constant dense<0.000000e+00> : vector<8x8xf32>
    %1203 = tpu.matmul %1200, %1201, %cst_560 {dimension_numbers = #tpu.dot_dimension_numbers<[1], [1], [0], [0], [0, 0, 1, 0], [], []>} : vector<8x4xf32>, vector<8x4xf32>, vector<8x8xf32> -> vector<8x8xf32>
    %cst_561 = arith.constant dense<0xFF800000> : vector<8xf32>
    %1204 = vector.multi_reduction <maximumf>, %1203, %cst_561 [1] : vector<8x8xf32> to vector<8xf32>
    %1205 = vector.shape_cast %1204 : vector<8xf32> to vector<8x1xf32>
    %1206 = vector.broadcast %1205 : vector<8x1xf32> to vector<8x8xf32>
    %1207 = arith.subf %1203, %1206 : vector<8x8xf32>
    %1208 = math.exp %1207 : vector<8x8xf32>
    %cst_562 = arith.constant dense<0.000000e+00> : vector<8xf32>
    %1209 = vector.multi_reduction <add>, %1208, %cst_562 [1] : vector<8x8xf32> to vector<8xf32>
    %1210 = vector.shape_cast %1209 : vector<8xf32> to vector<8x1xf32>
    %1211 = vector.broadcast %1210 : vector<8x1xf32> to vector<8x8xf32>
    %1212 = arith.divf %1208, %1211 : vector<8x8xf32>
    %cst_563 = arith.constant dense<0.000000e+00> : vector<8x4xf32>
    %1213 = tpu.matmul %1212, %1202, %cst_563 {dimension_numbers = #tpu.dot_dimension_numbers<[1], [0], [0], [1], [0, 0, 1, 1], [], []>} : vector<8x8xf32>, vector<8x4xf32>, vector<8x4xf32> -> vector<8x4xf32>
    %c0_564 = arith.constant 0 : index
    %c4_565 = arith.constant 4 : index
    %1214 = vector.load %arg50[%c0_564, %c4_565] : memref<8x32xf32, #tpu.memory_space<vmem>>, vector<8x4xf32>
    tpu.vector_store %arg50[%c0_564, %c4_565], %1213 {strides = array<i32>} : memref<8x32xf32, #tpu.memory_space<vmem>>, vector<8x4xf32>,
    %1215 = vector.extract_strided_slice %1184 {offsets = [0, 8], sizes = [8, 4], strides = [1, 1]} : vector<8x32xf32> to vector<8x4xf32>
    %1216 = vector.extract_strided_slice %1177 {offsets = [0, 8], sizes = [8, 4], strides = [1, 1]} : vector<8x32xf32> to vector<8x4xf32>
    %1217 = vector.extract_strided_slice %1178 {offsets = [0, 8], sizes = [8, 4], strides = [1, 1]} : vector<8x32xf32> to vector<8x4xf32>
    %cst_566 = arith.constant dense<0.000000e+00> : vector<8x8xf32>
    %1218 = tpu.matmul %1215, %1216, %cst_566 {dimension_numbers = #tpu.dot_dimension_numbers<[1], [1], [0], [0], [0, 0, 1, 0], [], []>} : vector<8x4xf32>, vector<8x4xf32>, vector<8x8xf32> -> vector<8x8xf32>
    %cst_567 = arith.constant dense<0xFF800000> : vector<8xf32>
    %1219 = vector.multi_reduction <maximumf>, %1218, %cst_567 [1] : vector<8x8xf32> to vector<8xf32>
    %1220 = vector.shape_cast %1219 : vector<8xf32> to vector<8x1xf32>
    %1221 = vector.broadcast %1220 : vector<8x1xf32> to vector<8x8xf32>
    %1222 = arith.subf %1218, %1221 : vector<8x8xf32>
    %1223 = math.exp %1222 : vector<8x8xf32>
    %cst_568 = arith.constant dense<0.000000e+00> : vector<8xf32>
    %1224 = vector.multi_reduction <add>, %1223, %cst_568 [1] : vector<8x8xf32> to vector<8xf32>
    %1225 = vector.shape_cast %1224 : vector<8xf32> to vector<8x1xf32>
    %1226 = vector.broadcast %1225 : vector<8x1xf32> to vector<8x8xf32>
    %1227 = arith.divf %1223, %1226 : vector<8x8xf32>
    %cst_569 = arith.constant dense<0.000000e+00> : vector<8x4xf32>
    %1228 = tpu.matmul %1227, %1217, %cst_569 {dimension_numbers = #tpu.dot_dimension_numbers<[1], [0], [0], [1], [0, 0, 1, 1], [], []>} : vector<8x8xf32>, vector<8x4xf32>, vector<8x4xf32> -> vector<8x4xf32>
    %c0_570 = arith.constant 0 : index
    %c8_571 = arith.constant 8 : index
    %1229 = vector.load %arg50[%c0_570, %c8_571] : memref<8x32xf32, #tpu.memory_space<vmem>>, vector<8x4xf32>
    tpu.vector_store %arg50[%c0_570, %c8_571], %1228 {strides = array<i32>} : memref<8x32xf32, #tpu.memory_space<vmem>>, vector<8x4xf32>,
    %1230 = vector.extract_strided_slice %1184 {offsets = [0, 12], sizes = [8, 4], strides = [1, 1]} : vector<8x32xf32> to vector<8x4xf32>
    %1231 = vector.extract_strided_slice %1177 {offsets = [0, 12], sizes = [8, 4], strides = [1, 1]} : vector<8x32xf32> to vector<8x4xf32>
    %1232 = vector.extract_strided_slice %1178 {offsets = [0, 12], sizes = [8, 4], strides = [1, 1]} : vector<8x32xf32> to vector<8x4xf32>
    %cst_572 = arith.constant dense<0.000000e+00> : vector<8x8xf32>
    %1233 = tpu.matmul %1230, %1231, %cst_572 {dimension_numbers = #tpu.dot_dimension_numbers<[1], [1], [0], [0], [0, 0, 1, 0], [], []>} : vector<8x4xf32>, vector<8x4xf32>, vector<8x8xf32> -> vector<8x8xf32>
    %cst_573 = arith.constant dense<0xFF800000> : vector<8xf32>
    %1234 = vector.multi_reduction <maximumf>, %1233, %cst_573 [1] : vector<8x8xf32> to vector<8xf32>
    %1235 = vector.shape_cast %1234 : vector<8xf32> to vector<8x1xf32>
    %1236 = vector.broadcast %1235 : vector<8x1xf32> to vector<8x8xf32>
    %1237 = arith.subf %1233, %1236 : vector<8x8xf32>
    %1238 = math.exp %1237 : vector<8x8xf32>
    %cst_574 = arith.constant dense<0.000000e+00> : vector<8xf32>
    %1239 = vector.multi_reduction <add>, %1238, %cst_574 [1] : vector<8x8xf32> to vector<8xf32>
    %1240 = vector.shape_cast %1239 : vector<8xf32> to vector<8x1xf32>
    %1241 = vector.broadcast %1240 : vector<8x1xf32> to vector<8x8xf32>
    %1242 = arith.divf %1238, %1241 : vector<8x8xf32>
    %cst_575 = arith.constant dense<0.000000e+00> : vector<8x4xf32>
    %1243 = tpu.matmul %1242, %1232, %cst_575 {dimension_numbers = #tpu.dot_dimension_numbers<[1], [0], [0], [1], [0, 0, 1, 1], [], []>} : vector<8x8xf32>, vector<8x4xf32>, vector<8x4xf32> -> vector<8x4xf32>
    %c0_576 = arith.constant 0 : index
    %c12_577 = arith.constant 12 : index
    %1244 = vector.load %arg50[%c0_576, %c12_577] : memref<8x32xf32, #tpu.memory_space<vmem>>, vector<8x4xf32>
    tpu.vector_store %arg50[%c0_576, %c12_577], %1243 {strides = array<i32>} : memref<8x32xf32, #tpu.memory_space<vmem>>, vector<8x4xf32>,
    %1245 = vector.extract_strided_slice %1184 {offsets = [0, 16], sizes = [8, 4], strides = [1, 1]} : vector<8x32xf32> to vector<8x4xf32>
    %1246 = vector.extract_strided_slice %1177 {offsets = [0, 16], sizes = [8, 4], strides = [1, 1]} : vector<8x32xf32> to vector<8x4xf32>
    %1247 = vector.extract_strided_slice %1178 {offsets = [0, 16], sizes = [8, 4], strides = [1, 1]} : vector<8x32xf32> to vector<8x4xf32>
    %cst_578 = arith.constant dense<0.000000e+00> : vector<8x8xf32>
    %1248 = tpu.matmul %1245, %1246, %cst_578 {dimension_numbers = #tpu.dot_dimension_numbers<[1], [1], [0], [0], [0, 0, 1, 0], [], []>} : vector<8x4xf32>, vector<8x4xf32>, vector<8x8xf32> -> vector<8x8xf32>
    %cst_579 = arith.constant dense<0xFF800000> : vector<8xf32>
    %1249 = vector.multi_reduction <maximumf>, %1248, %cst_579 [1] : vector<8x8xf32> to vector<8xf32>
    %1250 = vector.shape_cast %1249 : vector<8xf32> to vector<8x1xf32>
    %1251 = vector.broadcast %1250 : vector<8x1xf32> to vector<8x8xf32>
    %1252 = arith.subf %1248, %1251 : vector<8x8xf32>
    %1253 = math.exp %1252 : vector<8x8xf32>
    %cst_580 = arith.constant dense<0.000000e+00> : vector<8xf32>
    %1254 = vector.multi_reduction <add>, %1253, %cst_580 [1] : vector<8x8xf32> to vector<8xf32>
    %1255 = vector.shape_cast %1254 : vector<8xf32> to vector<8x1xf32>
    %1256 = vector.broadcast %1255 : vector<8x1xf32> to vector<8x8xf32>
    %1257 = arith.divf %1253, %1256 : vector<8x8xf32>
    %cst_581 = arith.constant dense<0.000000e+00> : vector<8x4xf32>
    %1258 = tpu.matmul %1257, %1247, %cst_581 {dimension_numbers = #tpu.dot_dimension_numbers<[1], [0], [0], [1], [0, 0, 1, 1], [], []>} : vector<8x8xf32>, vector<8x4xf32>, vector<8x4xf32> -> vector<8x4xf32>
    %c0_582 = arith.constant 0 : index
    %c16_583 = arith.constant 16 : index
    %1259 = vector.load %arg50[%c0_582, %c16_583] : memref<8x32xf32, #tpu.memory_space<vmem>>, vector<8x4xf32>
    tpu.vector_store %arg50[%c0_582, %c16_583], %1258 {strides = array<i32>} : memref<8x32xf32, #tpu.memory_space<vmem>>, vector<8x4xf32>,
    %1260 = vector.extract_strided_slice %1184 {offsets = [0, 20], sizes = [8, 4], strides = [1, 1]} : vector<8x32xf32> to vector<8x4xf32>
    %1261 = vector.extract_strided_slice %1177 {offsets = [0, 20], sizes = [8, 4], strides = [1, 1]} : vector<8x32xf32> to vector<8x4xf32>
    %1262 = vector.extract_strided_slice %1178 {offsets = [0, 20], sizes = [8, 4], strides = [1, 1]} : vector<8x32xf32> to vector<8x4xf32>
    %cst_584 = arith.constant dense<0.000000e+00> : vector<8x8xf32>
    %1263 = tpu.matmul %1260, %1261, %cst_584 {dimension_numbers = #tpu.dot_dimension_numbers<[1], [1], [0], [0], [0, 0, 1, 0], [], []>} : vector<8x4xf32>, vector<8x4xf32>, vector<8x8xf32> -> vector<8x8xf32>
    %cst_585 = arith.constant dense<0xFF800000> : vector<8xf32>
    %1264 = vector.multi_reduction <maximumf>, %1263, %cst_585 [1] : vector<8x8xf32> to vector<8xf32>
    %1265 = vector.shape_cast %1264 : vector<8xf32> to vector<8x1xf32>
    %1266 = vector.broadcast %1265 : vector<8x1xf32> to vector<8x8xf32>
    %1267 = arith.subf %1263, %1266 : vector<8x8xf32>
    %1268 = math.exp %1267 : vector<8x8xf32>
    %cst_586 = arith.constant dense<0.000000e+00> : vector<8xf32>
    %1269 = vector.multi_reduction <add>, %1268, %cst_586 [1] : vector<8x8xf32> to vector<8xf32>
    %1270 = vector.shape_cast %1269 : vector<8xf32> to vector<8x1xf32>
    %1271 = vector.broadcast %1270 : vector<8x1xf32> to vector<8x8xf32>
    %1272 = arith.divf %1268, %1271 : vector<8x8xf32>
    %cst_587 = arith.constant dense<0.000000e+00> : vector<8x4xf32>
    %1273 = tpu.matmul %1272, %1262, %cst_587 {dimension_numbers = #tpu.dot_dimension_numbers<[1], [0], [0], [1], [0, 0, 1, 1], [], []>} : vector<8x8xf32>, vector<8x4xf32>, vector<8x4xf32> -> vector<8x4xf32>
    %c0_588 = arith.constant 0 : index
    %c20_589 = arith.constant 20 : index
    %1274 = vector.load %arg50[%c0_588, %c20_589] : memref<8x32xf32, #tpu.memory_space<vmem>>, vector<8x4xf32>
    tpu.vector_store %arg50[%c0_588, %c20_589], %1273 {strides = array<i32>} : memref<8x32xf32, #tpu.memory_space<vmem>>, vector<8x4xf32>,
    %1275 = vector.extract_strided_slice %1184 {offsets = [0, 24], sizes = [8, 4], strides = [1, 1]} : vector<8x32xf32> to vector<8x4xf32>
    %1276 = vector.extract_strided_slice %1177 {offsets = [0, 24], sizes = [8, 4], strides = [1, 1]} : vector<8x32xf32> to vector<8x4xf32>
    %1277 = vector.extract_strided_slice %1178 {offsets = [0, 24], sizes = [8, 4], strides = [1, 1]} : vector<8x32xf32> to vector<8x4xf32>
    %cst_590 = arith.constant dense<0.000000e+00> : vector<8x8xf32>
    %1278 = tpu.matmul %1275, %1276, %cst_590 {dimension_numbers = #tpu.dot_dimension_numbers<[1], [1], [0], [0], [0, 0, 1, 0], [], []>} : vector<8x4xf32>, vector<8x4xf32>, vector<8x8xf32> -> vector<8x8xf32>
    %cst_591 = arith.constant dense<0xFF800000> : vector<8xf32>
    %1279 = vector.multi_reduction <maximumf>, %1278, %cst_591 [1] : vector<8x8xf32> to vector<8xf32>
    %1280 = vector.shape_cast %1279 : vector<8xf32> to vector<8x1xf32>
    %1281 = vector.broadcast %1280 : vector<8x1xf32> to vector<8x8xf32>
    %1282 = arith.subf %1278, %1281 : vector<8x8xf32>
    %1283 = math.exp %1282 : vector<8x8xf32>
    %cst_592 = arith.constant dense<0.000000e+00> : vector<8xf32>
    %1284 = vector.multi_reduction <add>, %1283, %cst_592 [1] : vector<8x8xf32> to vector<8xf32>
    %1285 = vector.shape_cast %1284 : vector<8xf32> to vector<8x1xf32>
    %1286 = vector.broadcast %1285 : vector<8x1xf32> to vector<8x8xf32>
    %1287 = arith.divf %1283, %1286 : vector<8x8xf32>
    %cst_593 = arith.constant dense<0.000000e+00> : vector<8x4xf32>
    %1288 = tpu.matmul %1287, %1277, %cst_593 {dimension_numbers = #tpu.dot_dimension_numbers<[1], [0], [0], [1], [0, 0, 1, 1], [], []>} : vector<8x8xf32>, vector<8x4xf32>, vector<8x4xf32> -> vector<8x4xf32>
    %c0_594 = arith.constant 0 : index
    %c24_595 = arith.constant 24 : index
    %1289 = vector.load %arg50[%c0_594, %c24_595] : memref<8x32xf32, #tpu.memory_space<vmem>>, vector<8x4xf32>
    tpu.vector_store %arg50[%c0_594, %c24_595], %1288 {strides = array<i32>} : memref<8x32xf32, #tpu.memory_space<vmem>>, vector<8x4xf32>,
    %1290 = vector.extract_strided_slice %1184 {offsets = [0, 28], sizes = [8, 4], strides = [1, 1]} : vector<8x32xf32> to vector<8x4xf32>
    %1291 = vector.extract_strided_slice %1177 {offsets = [0, 28], sizes = [8, 4], strides = [1, 1]} : vector<8x32xf32> to vector<8x4xf32>
    %1292 = vector.extract_strided_slice %1178 {offsets = [0, 28], sizes = [8, 4], strides = [1, 1]} : vector<8x32xf32> to vector<8x4xf32>
    %cst_596 = arith.constant dense<0.000000e+00> : vector<8x8xf32>
    %1293 = tpu.matmul %1290, %1291, %cst_596 {dimension_numbers = #tpu.dot_dimension_numbers<[1], [1], [0], [0], [0, 0, 1, 0], [], []>} : vector<8x4xf32>, vector<8x4xf32>, vector<8x8xf32> -> vector<8x8xf32>
    %cst_597 = arith.constant dense<0xFF800000> : vector<8xf32>
    %1294 = vector.multi_reduction <maximumf>, %1293, %cst_597 [1] : vector<8x8xf32> to vector<8xf32>
    %1295 = vector.shape_cast %1294 : vector<8xf32> to vector<8x1xf32>
    %1296 = vector.broadcast %1295 : vector<8x1xf32> to vector<8x8xf32>
    %1297 = arith.subf %1293, %1296 : vector<8x8xf32>
    %1298 = math.exp %1297 : vector<8x8xf32>
    %cst_598 = arith.constant dense<0.000000e+00> : vector<8xf32>
    %1299 = vector.multi_reduction <add>, %1298, %cst_598 [1] : vector<8x8xf32> to vector<8xf32>
    %1300 = vector.shape_cast %1299 : vector<8xf32> to vector<8x1xf32>
    %1301 = vector.broadcast %1300 : vector<8x1xf32> to vector<8x8xf32>
    %1302 = arith.divf %1298, %1301 : vector<8x8xf32>
    %cst_599 = arith.constant dense<0.000000e+00> : vector<8x4xf32>
    %1303 = tpu.matmul %1302, %1292, %cst_599 {dimension_numbers = #tpu.dot_dimension_numbers<[1], [0], [0], [1], [0, 0, 1, 1], [], []>} : vector<8x8xf32>, vector<8x4xf32>, vector<8x4xf32> -> vector<8x4xf32>
    %c0_600 = arith.constant 0 : index
    %c28_601 = arith.constant 28 : index
    %1304 = vector.load %arg50[%c0_600, %c28_601] : memref<8x32xf32, #tpu.memory_space<vmem>>, vector<8x4xf32>
    tpu.vector_store %arg50[%c0_600, %c28_601], %1303 {strides = array<i32>} : memref<8x32xf32, #tpu.memory_space<vmem>>, vector<8x4xf32>,
    %c0_602 = arith.constant 0 : index
    %c0_603 = arith.constant 0 : index
    %1305 = vector.load %arg50[%c0_602, %c0_603] : memref<8x32xf32, #tpu.memory_space<vmem>>, vector<8x32xf32>
    %cst_604 = arith.constant dense<0.000000e+00> : vector<8x32xf32>
    %1306 = tpu.matmul %1305, %1180, %cst_604 {dimension_numbers = #tpu.dot_dimension_numbers<[1], [0], [0], [1], [0, 0, 1, 1], [], []>} : vector<8x32xf32>, vector<32x32xf32>, vector<8x32xf32> -> vector<8x32xf32>
    %1307 = vector.broadcast %1182 : vector<1x32xf32> to vector<8x32xf32>
    %1308 = arith.addf %1306, %1307 : vector<8x32xf32>
    %1309 = arith.addf %1162, %1308 : vector<8x32xf32>
    %c1_605 = arith.constant 1 : index
    %c0_606 = arith.constant 0 : index
    %c0_607 = arith.constant 0 : index
    %1310 = vector.load %arg37[%c1_605, %c0_606, %c0_607] : memref<2x1x32xf32, #tpu.memory_space<vmem>>, vector<1x1x32xf32>
    %1311 = vector.shape_cast %1310 : vector<1x1x32xf32> to vector<1x32xf32>
    %c1_608 = arith.constant 1 : index
    %c0_609 = arith.constant 0 : index
    %c0_610 = arith.constant 0 : index
    %1312 = vector.load %arg38[%c1_608, %c0_609, %c0_610] : memref<2x1x32xf32, #tpu.memory_space<vmem>>, vector<1x1x32xf32>
    %1313 = vector.shape_cast %1312 : vector<1x1x32xf32> to vector<1x32xf32>
    %cst_611 = arith.constant dense<0.000000e+00> : vector<8xf32>
    %1314 = vector.multi_reduction <add>, %1309, %cst_611 [1] : vector<8x32xf32> to vector<8xf32>
    %1315 = vector.shape_cast %1314 : vector<8xf32> to vector<8x1xf32>
    %cst_612 = arith.constant 3.200000e+01 : f32
    %1316 = vector.broadcast %cst_612 : f32 to vector<8x1xf32>
    %1317 = arith.divf %1315, %1316 : vector<8x1xf32>
    %1318 = vector.broadcast %1317 : vector<8x1xf32> to vector<8x32xf32>
    %1319 = arith.subf %1309, %1318 : vector<8x32xf32>
    %1320 = arith.mulf %1319, %1319 : vector<8x32xf32>
    %cst_613 = arith.constant dense<0.000000e+00> : vector<8xf32>
    %1321 = vector.multi_reduction <add>, %1320, %cst_613 [1] : vector<8x32xf32> to vector<8xf32>
    %1322 = vector.shape_cast %1321 : vector<8xf32> to vector<8x1xf32>
    %cst_614 = arith.constant 3.200000e+01 : f32
    %1323 = vector.broadcast %cst_614 : f32 to vector<8x1xf32>
    %1324 = arith.divf %1322, %1323 : vector<8x1xf32>
    %1325 = vector.broadcast %1317 : vector<8x1xf32> to vector<8x32xf32>
    %1326 = arith.subf %1309, %1325 : vector<8x32xf32>
    %cst_615 = arith.constant 9.99999974E-6 : f32
    %1327 = vector.broadcast %cst_615 : f32 to vector<8x1xf32>
    %1328 = arith.addf %1324, %1327 : vector<8x1xf32>
    %1329 = math.rsqrt %1328 : vector<8x1xf32>
    %1330 = vector.broadcast %1329 : vector<8x1xf32> to vector<8x32xf32>
    %1331 = arith.mulf %1326, %1330 : vector<8x32xf32>
    %1332 = vector.broadcast %1311 : vector<1x32xf32> to vector<8x32xf32>
    %1333 = arith.mulf %1331, %1332 : vector<8x32xf32>
    %1334 = vector.broadcast %1313 : vector<1x32xf32> to vector<8x32xf32>
    %1335 = arith.addf %1333, %1334 : vector<8x32xf32>
    %c1_616 = arith.constant 1 : index
    %c0_617 = arith.constant 0 : index
    %c0_618 = arith.constant 0 : index
    %1336 = vector.load %arg39[%c1_616, %c0_617, %c0_618] : memref<2x32x64xf32, #tpu.memory_space<vmem>>, vector<1x32x64xf32>
    %1337 = vector.shape_cast %1336 : vector<1x32x64xf32> to vector<32x64xf32>
    %cst_619 = arith.constant dense<0.000000e+00> : vector<8x64xf32>
    %1338 = tpu.matmul %1335, %1337, %cst_619 {dimension_numbers = #tpu.dot_dimension_numbers<[1], [0], [0], [1], [0, 0, 1, 1], [], []>} : vector<8x32xf32>, vector<32x64xf32>, vector<8x64xf32> -> vector<8x64xf32>
    %c1_620 = arith.constant 1 : index
    %c0_621 = arith.constant 0 : index
    %c0_622 = arith.constant 0 : index
    %1339 = vector.load %arg40[%c1_620, %c0_621, %c0_622] : memref<2x1x64xf32, #tpu.memory_space<vmem>>, vector<1x1x64xf32>
    %1340 = vector.shape_cast %1339 : vector<1x1x64xf32> to vector<1x64xf32>
    %1341 = vector.broadcast %1340 : vector<1x64xf32> to vector<8x64xf32>
    %1342 = arith.addf %1338, %1341 : vector<8x64xf32>
    %cst_623 = arith.constant 5.000000e-01 : f32
    %1343 = vector.broadcast %cst_623 : f32 to vector<8x64xf32>
    %1344 = arith.mulf %1343, %1342 : vector<8x64xf32>
    %cst_624 = arith.constant 0.707106769 : f32
    %1345 = vector.broadcast %cst_624 : f32 to vector<8x64xf32>
    %1346 = arith.mulf %1342, %1345 : vector<8x64xf32>
    %cst_625 = arith.constant 0.000000e+00 : f32
    %1347 = vector.broadcast %cst_625 : f32 to vector<8x64xf32>
    %1348 = arith.cmpf olt, %1346, %1347 : vector<8x64xf32>
    %cst_626 = arith.constant -1.000000e+00 : f32
    %cst_627 = arith.constant 1.000000e+00 : f32
    %1349 = vector.broadcast %cst_626 : f32 to vector<8x64xf32>
    %1350 = vector.broadcast %cst_627 : f32 to vector<8x64xf32>
    %1351 = arith.select %1348, %1349, %1350 : vector<8x64xi1>, vector<8x64xf32>
    %1352 = math.absf %1346 : vector<8x64xf32>
    %cst_628 = arith.constant 0.327591091 : f32
    %1353 = vector.broadcast %cst_628 : f32 to vector<8x64xf32>
    %1354 = arith.mulf %1353, %1352 : vector<8x64xf32>
    %cst_629 = arith.constant 1.000000e+00 : f32
    %1355 = vector.broadcast %cst_629 : f32 to vector<8x64xf32>
    %1356 = arith.addf %1355, %1354 : vector<8x64xf32>
    %cst_630 = arith.constant 1.000000e+00 : f32
    %1357 = vector.broadcast %cst_630 : f32 to vector<8x64xf32>
    %1358 = arith.divf %1357, %1356 : vector<8x64xf32>
    %cst_631 = arith.constant 1.06140542 : f32
    %1359 = vector.broadcast %cst_631 : f32 to vector<8x64xf32>
    %1360 = arith.mulf %1359, %1358 : vector<8x64xf32>
    %cst_632 = arith.constant -1.45315206 : f32
    %1361 = vector.broadcast %cst_632 : f32 to vector<8x64xf32>
    %1362 = arith.addf %1360, %1361 : vector<8x64xf32>
    %1363 = arith.mulf %1362, %1358 : vector<8x64xf32>
    %cst_633 = arith.constant 1.42141378 : f32
    %1364 = vector.broadcast %cst_633 : f32 to vector<8x64xf32>
    %1365 = arith.addf %1363, %1364 : vector<8x64xf32>
    %1366 = arith.mulf %1365, %1358 : vector<8x64xf32>
    %cst_634 = arith.constant -0.284496725 : f32
    %1367 = vector.broadcast %cst_634 : f32 to vector<8x64xf32>
    %1368 = arith.addf %1366, %1367 : vector<8x64xf32>
    %1369 = arith.mulf %1368, %1358 : vector<8x64xf32>
    %cst_635 = arith.constant 0.254829586 : f32
    %1370 = vector.broadcast %cst_635 : f32 to vector<8x64xf32>
    %1371 = arith.addf %1369, %1370 : vector<8x64xf32>
    %1372 = arith.mulf %1371, %1358 : vector<8x64xf32>
    %cst_636 = arith.constant 0.000000e+00 : f32
    %1373 = vector.broadcast %cst_636 : f32 to vector<8x64xf32>
    %1374 = arith.subf %1373, %1352 : vector<8x64xf32>
    %1375 = arith.mulf %1374, %1352 : vector<8x64xf32>
    %1376 = math.exp %1375 : vector<8x64xf32>
    %1377 = arith.mulf %1372, %1376 : vector<8x64xf32>
    %cst_637 = arith.constant 1.000000e+00 : f32
    %1378 = vector.broadcast %cst_637 : f32 to vector<8x64xf32>
    %1379 = arith.subf %1378, %1377 : vector<8x64xf32>
    %1380 = arith.mulf %1351, %1379 : vector<8x64xf32>
    %cst_638 = arith.constant 1.000000e+00 : f32
    %1381 = vector.broadcast %cst_638 : f32 to vector<8x64xf32>
    %1382 = arith.addf %1381, %1380 : vector<8x64xf32>
    %1383 = arith.mulf %1344, %1382 : vector<8x64xf32>
    %c1_639 = arith.constant 1 : index
    %c0_640 = arith.constant 0 : index
    %c0_641 = arith.constant 0 : index
    %1384 = vector.load %arg41[%c1_639, %c0_640, %c0_641] : memref<2x64x32xf32, #tpu.memory_space<vmem>>, vector<1x64x32xf32>
    %1385 = vector.shape_cast %1384 : vector<1x64x32xf32> to vector<64x32xf32>
    %cst_642 = arith.constant dense<0.000000e+00> : vector<8x32xf32>
    %1386 = tpu.matmul %1383, %1385, %cst_642 {dimension_numbers = #tpu.dot_dimension_numbers<[1], [0], [0], [1], [0, 0, 1, 1], [], []>} : vector<8x64xf32>, vector<64x32xf32>, vector<8x32xf32> -> vector<8x32xf32>
    %c1_643 = arith.constant 1 : index
    %c0_644 = arith.constant 0 : index
    %c0_645 = arith.constant 0 : index
    %1387 = vector.load %arg42[%c1_643, %c0_644, %c0_645] : memref<2x1x32xf32, #tpu.memory_space<vmem>>, vector<1x1x32xf32>
    %1388 = vector.shape_cast %1387 : vector<1x1x32xf32> to vector<1x32xf32>
    %1389 = vector.broadcast %1388 : vector<1x32xf32> to vector<8x32xf32>
    %1390 = arith.addf %1386, %1389 : vector<8x32xf32>
    %1391 = arith.addf %1335, %1390 : vector<8x32xf32>
    %c1_646 = arith.constant 1 : index
    %c0_647 = arith.constant 0 : index
    %c0_648 = arith.constant 0 : index
    %1392 = vector.load %arg43[%c1_646, %c0_647, %c0_648] : memref<2x1x32xf32, #tpu.memory_space<vmem>>, vector<1x1x32xf32>
    %1393 = vector.shape_cast %1392 : vector<1x1x32xf32> to vector<1x32xf32>
    %c1_649 = arith.constant 1 : index
    %c0_650 = arith.constant 0 : index
    %c0_651 = arith.constant 0 : index
    %1394 = vector.load %arg44[%c1_649, %c0_650, %c0_651] : memref<2x1x32xf32, #tpu.memory_space<vmem>>, vector<1x1x32xf32>
    %1395 = vector.shape_cast %1394 : vector<1x1x32xf32> to vector<1x32xf32>
    %cst_652 = arith.constant dense<0.000000e+00> : vector<8xf32>
    %1396 = vector.multi_reduction <add>, %1391, %cst_652 [1] : vector<8x32xf32> to vector<8xf32>
    %1397 = vector.shape_cast %1396 : vector<8xf32> to vector<8x1xf32>
    %cst_653 = arith.constant 3.200000e+01 : f32
    %1398 = vector.broadcast %cst_653 : f32 to vector<8x1xf32>
    %1399 = arith.divf %1397, %1398 : vector<8x1xf32>
    %1400 = vector.broadcast %1399 : vector<8x1xf32> to vector<8x32xf32>
    %1401 = arith.subf %1391, %1400 : vector<8x32xf32>
    %1402 = arith.mulf %1401, %1401 : vector<8x32xf32>
    %cst_654 = arith.constant dense<0.000000e+00> : vector<8xf32>
    %1403 = vector.multi_reduction <add>, %1402, %cst_654 [1] : vector<8x32xf32> to vector<8xf32>
    %1404 = vector.shape_cast %1403 : vector<8xf32> to vector<8x1xf32>
    %cst_655 = arith.constant 3.200000e+01 : f32
    %1405 = vector.broadcast %cst_655 : f32 to vector<8x1xf32>
    %1406 = arith.divf %1404, %1405 : vector<8x1xf32>
    %1407 = vector.broadcast %1399 : vector<8x1xf32> to vector<8x32xf32>
    %1408 = arith.subf %1391, %1407 : vector<8x32xf32>
    %cst_656 = arith.constant 9.99999974E-6 : f32
    %1409 = vector.broadcast %cst_656 : f32 to vector<8x1xf32>
    %1410 = arith.addf %1406, %1409 : vector<8x1xf32>
    %1411 = math.rsqrt %1410 : vector<8x1xf32>
    %1412 = vector.broadcast %1411 : vector<8x1xf32> to vector<8x32xf32>
    %1413 = arith.mulf %1408, %1412 : vector<8x32xf32>
    %1414 = vector.broadcast %1393 : vector<1x32xf32> to vector<8x32xf32>
    %1415 = arith.mulf %1413, %1414 : vector<8x32xf32>
    %1416 = vector.broadcast %1395 : vector<1x32xf32> to vector<8x32xf32>
    %1417 = arith.addf %1415, %1416 : vector<8x32xf32>
    %c0_657 = arith.constant 0 : index
    %c0_658 = arith.constant 0 : index
    %1418 = vector.load %arg45[%c0_657, %c0_658] : memref<1x32xf32, #tpu.memory_space<vmem>>, vector<1x32xf32>
    %c0_659 = arith.constant 0 : index
    %c0_660 = arith.constant 0 : index
    %1419 = vector.load %arg46[%c0_659, %c0_660] : memref<1x32xf32, #tpu.memory_space<vmem>>, vector<1x32xf32>
    %cst_661 = arith.constant dense<0.000000e+00> : vector<8xf32>
    %1420 = vector.multi_reduction <add>, %1417, %cst_661 [1] : vector<8x32xf32> to vector<8xf32>
    %1421 = vector.shape_cast %1420 : vector<8xf32> to vector<8x1xf32>
    %cst_662 = arith.constant 3.200000e+01 : f32
    %1422 = vector.broadcast %cst_662 : f32 to vector<8x1xf32>
    %1423 = arith.divf %1421, %1422 : vector<8x1xf32>
    %1424 = vector.broadcast %1423 : vector<8x1xf32> to vector<8x32xf32>
    %1425 = arith.subf %1417, %1424 : vector<8x32xf32>
    %1426 = arith.mulf %1425, %1425 : vector<8x32xf32>
    %cst_663 = arith.constant dense<0.000000e+00> : vector<8xf32>
    %1427 = vector.multi_reduction <add>, %1426, %cst_663 [1] : vector<8x32xf32> to vector<8xf32>
    %1428 = vector.shape_cast %1427 : vector<8xf32> to vector<8x1xf32>
    %cst_664 = arith.constant 3.200000e+01 : f32
    %1429 = vector.broadcast %cst_664 : f32 to vector<8x1xf32>
    %1430 = arith.divf %1428, %1429 : vector<8x1xf32>
    %1431 = vector.broadcast %1423 : vector<8x1xf32> to vector<8x32xf32>
    %1432 = arith.subf %1417, %1431 : vector<8x32xf32>
    %cst_665 = arith.constant 9.99999974E-6 : f32
    %1433 = vector.broadcast %cst_665 : f32 to vector<8x1xf32>
    %1434 = arith.addf %1430, %1433 : vector<8x1xf32>
    %1435 = math.rsqrt %1434 : vector<8x1xf32>
    %1436 = vector.broadcast %1435 : vector<8x1xf32> to vector<8x32xf32>
    %1437 = arith.mulf %1432, %1436 : vector<8x32xf32>
    %1438 = vector.broadcast %1418 : vector<1x32xf32> to vector<8x32xf32>
    %1439 = arith.mulf %1437, %1438 : vector<8x32xf32>
    %1440 = vector.broadcast %1419 : vector<1x32xf32> to vector<8x32xf32>
    %1441 = arith.addf %1439, %1440 : vector<8x32xf32>
    %c0_666 = arith.constant 0 : index
    %c0_667 = arith.constant 0 : index
    %1442 = vector.load %arg47[%c0_666, %c0_667] : memref<32x4xf32, #tpu.memory_space<vmem>>, vector<32x4xf32>
    %cst_668 = arith.constant dense<0.000000e+00> : vector<8x4xf32>
    %1443 = tpu.matmul %1441, %1442, %cst_668 {dimension_numbers = #tpu.dot_dimension_numbers<[1], [0], [0], [1], [0, 0, 1, 1], [], []>} : vector<8x32xf32>, vector<32x4xf32>, vector<8x4xf32> -> vector<8x4xf32>
    %c0_669 = arith.constant 0 : index
    %c0_670 = arith.constant 0 : index
    %1444 = vector.load %arg48[%c0_669, %c0_670] : memref<1x4xf32, #tpu.memory_space<vmem>>, vector<1x4xf32>
    %1445 = vector.broadcast %1444 : vector<1x4xf32> to vector<8x4xf32>
    %1446 = arith.addf %1443, %1445 : vector<8x4xf32>
    %c0_671 = arith.constant 0 : index
    %c0_672 = arith.constant 0 : index
    %c0_673 = arith.constant 0 : index
    %1447 = vector.load %arg49[%c0_671, %c0_672, %c0_673] : memref<1x8x4xf32, #tpu.memory_space<vmem>>, vector<1x8x4xf32>
    %1448 = vector.shape_cast %1447 : vector<1x8x4xf32> to vector<8x4xf32>
    %1449 = vector.shape_cast %1446 : vector<8x4xf32> to vector<1x8x4xf32>
    tpu.vector_store %arg49[%c0_671, %c0_672, %c0_673], %1449 {strides = array<i32>} : memref<1x8x4xf32, #tpu.memory_space<vmem>>, vector<1x8x4xf32>,
    return
  }
  func.func @transform_0(%arg0: i32) -> (i32, i32, i32) {
    %c0_i32 = arith.constant 0 : i32
    %c0_i32_0 = arith.constant 0 : i32
    %c0_i32_1 = arith.constant 0 : i32
    return %arg0, %c0_i32, %c0_i32_0 : i32, i32, i32
  }
  func.func @transform_1(%arg0: i32) -> (i32, i32, i32) {
    %c0_i32 = arith.constant 0 : i32
    %c0_i32_0 = arith.constant 0 : i32
    %c0_i32_1 = arith.constant 0 : i32
    return %arg0, %c0_i32, %c0_i32_0 : i32, i32, i32
  }
  func.func @transform_2(%arg0: i32) -> (i32, i32) {
    %c0_i32 = arith.constant 0 : i32
    %c0_i32_0 = arith.constant 0 : i32
    %c0_i32_1 = arith.constant 0 : i32
    return %c0_i32, %c0_i32_0 : i32, i32
  }
  func.func @transform_3(%arg0: i32) -> (i32, i32) {
    %c0_i32 = arith.constant 0 : i32
    %c0_i32_0 = arith.constant 0 : i32
    %c0_i32_1 = arith.constant 0 : i32
    return %c0_i32, %c0_i32_0 : i32, i32
  }
  func.func @transform_4(%arg0: i32) -> (i32, i32) {
    %c0_i32 = arith.constant 0 : i32
    %c0_i32_0 = arith.constant 0 : i32
    %c0_i32_1 = arith.constant 0 : i32
    return %c0_i32, %c0_i32_0 : i32, i32
  }
  func.func @transform_5(%arg0: i32) -> (i32, i32) {
    %c0_i32 = arith.constant 0 : i32
    %c0_i32_0 = arith.constant 0 : i32
    %c0_i32_1 = arith.constant 0 : i32
    return %c0_i32, %c0_i32_0 : i32, i32
  }
  func.func @transform_6(%arg0: i32) -> (i32, i32) {
    %c0_i32 = arith.constant 0 : i32
    %c0_i32_0 = arith.constant 0 : i32
    %c0_i32_1 = arith.constant 0 : i32
    return %c0_i32, %c0_i32_0 : i32, i32
  }
  func.func @transform_7(%arg0: i32) -> (i32, i32) {
    %c0_i32 = arith.constant 0 : i32
    %c0_i32_0 = arith.constant 0 : i32
    %c0_i32_1 = arith.constant 0 : i32
    return %c0_i32, %c0_i32_0 : i32, i32
  }
  func.func @transform_8(%arg0: i32) -> (i32, i32) {
    %c0_i32 = arith.constant 0 : i32
    %c0_i32_0 = arith.constant 0 : i32
    %c0_i32_1 = arith.constant 0 : i32
    return %c0_i32, %c0_i32_0 : i32, i32
  }
  func.func @transform_9(%arg0: i32) -> (i32, i32) {
    %c0_i32 = arith.constant 0 : i32
    %c0_i32_0 = arith.constant 0 : i32
    %c0_i32_1 = arith.constant 0 : i32
    return %c0_i32, %c0_i32_0 : i32, i32
  }
  func.func @transform_10(%arg0: i32) -> (i32, i32, i32) {
    %c0_i32 = arith.constant 0 : i32
    %c0_i32_0 = arith.constant 0 : i32
    %c0_i32_1 = arith.constant 0 : i32
    %c0_i32_2 = arith.constant 0 : i32
    return %c0_i32, %c0_i32_0, %c0_i32_1 : i32, i32, i32
  }
  func.func @transform_11(%arg0: i32) -> (i32, i32, i32) {
    %c0_i32 = arith.constant 0 : i32
    %c0_i32_0 = arith.constant 0 : i32
    %c0_i32_1 = arith.constant 0 : i32
    %c0_i32_2 = arith.constant 0 : i32
    return %c0_i32, %c0_i32_0, %c0_i32_1 : i32, i32, i32
  }
  func.func @transform_12(%arg0: i32) -> (i32, i32, i32) {
    %c0_i32 = arith.constant 0 : i32
    %c0_i32_0 = arith.constant 0 : i32
    %c0_i32_1 = arith.constant 0 : i32
    %c0_i32_2 = arith.constant 0 : i32
    return %c0_i32, %c0_i32_0, %c0_i32_1 : i32, i32, i32
  }
  func.func @transform_13(%arg0: i32) -> (i32, i32, i32) {
    %c0_i32 = arith.constant 0 : i32
    %c0_i32_0 = arith.constant 0 : i32
    %c0_i32_1 = arith.constant 0 : i32
    %c0_i32_2 = arith.constant 0 : i32
    return %c0_i32, %c0_i32_0, %c0_i32_1 : i32, i32, i32
  }
  func.func @transform_14(%arg0: i32) -> (i32, i32, i32) {
    %c0_i32 = arith.constant 0 : i32
    %c0_i32_0 = arith.constant 0 : i32
    %c0_i32_1 = arith.constant 0 : i32
    %c0_i32_2 = arith.constant 0 : i32
    return %c0_i32, %c0_i32_0, %c0_i32_1 : i32, i32, i32
  }
  func.func @transform_15(%arg0: i32) -> (i32, i32, i32) {
    %c0_i32 = arith.constant 0 : i32
    %c0_i32_0 = arith.constant 0 : i32
    %c0_i32_1 = arith.constant 0 : i32
    %c0_i32_2 = arith.constant 0 : i32
    return %c0_i32, %c0_i32_0, %c0_i32_1 : i32, i32, i32
  }
  func.func @transform_16(%arg0: i32) -> (i32, i32, i32) {
    %c0_i32 = arith.constant 0 : i32
    %c0_i32_0 = arith.constant 0 : i32
    %c0_i32_1 = arith.constant 0 : i32
    %c0_i32_2 = arith.constant 0 : i32
    return %c0_i32, %c0_i32_0, %c0_i32_1 : i32, i32, i32
  }
  func.func @transform_17(%arg0: i32) -> (i32, i32, i32) {
    %c0_i32 = arith.constant 0 : i32
    %c0_i32_0 = arith.constant 0 : i32
    %c0_i32_1 = arith.constant 0 : i32
    %c0_i32_2 = arith.constant 0 : i32
    return %c0_i32, %c0_i32_0, %c0_i32_1 : i32, i32, i32
  }
  func.func @transform_18(%arg0: i32) -> (i32, i32, i32) {
    %c0_i32 = arith.constant 0 : i32
    %c0_i32_0 = arith.constant 0 : i32
    %c0_i32_1 = arith.constant 0 : i32
    %c0_i32_2 = arith.constant 0 : i32
    return %c0_i32, %c0_i32_0, %c0_i32_1 : i32, i32, i32
  }
  func.func @transform_19(%arg0: i32) -> (i32, i32, i32) {
    %c0_i32 = arith.constant 0 : i32
    %c0_i32_0 = arith.constant 0 : i32
    %c0_i32_1 = arith.constant 0 : i32
    %c0_i32_2 = arith.constant 0 : i32
    return %c0_i32, %c0_i32_0, %c0_i32_1 : i32, i32, i32
  }
  func.func @transform_20(%arg0: i32) -> (i32, i32, i32) {
    %c0_i32 = arith.constant 0 : i32
    %c0_i32_0 = arith.constant 0 : i32
    %c0_i32_1 = arith.constant 0 : i32
    %c0_i32_2 = arith.constant 0 : i32
    return %c0_i32, %c0_i32_0, %c0_i32_1 : i32, i32, i32
  }
  func.func @transform_21(%arg0: i32) -> (i32, i32, i32) {
    %c0_i32 = arith.constant 0 : i32
    %c0_i32_0 = arith.constant 0 : i32
    %c0_i32_1 = arith.constant 0 : i32
    %c0_i32_2 = arith.constant 0 : i32
    return %c0_i32, %c0_i32_0, %c0_i32_1 : i32, i32, i32
  }
  func.func @transform_22(%arg0: i32) -> (i32, i32) {
    %c0_i32 = arith.constant 0 : i32
    %c0_i32_0 = arith.constant 0 : i32
    %c0_i32_1 = arith.constant 0 : i32
    return %c0_i32, %c0_i32_0 : i32, i32
  }
  func.func @transform_23(%arg0: i32) -> (i32, i32) {
    %c0_i32 = arith.constant 0 : i32
    %c0_i32_0 = arith.constant 0 : i32
    %c0_i32_1 = arith.constant 0 : i32
    return %c0_i32, %c0_i32_0 : i32, i32
  }
  func.func @transform_24(%arg0: i32) -> (i32, i32, i32) {
    %c0_i32 = arith.constant 0 : i32
    %c0_i32_0 = arith.constant 0 : i32
    %c0_i32_1 = arith.constant 0 : i32
    %c0_i32_2 = arith.constant 0 : i32
    return %c0_i32, %c0_i32_0, %c0_i32_1 : i32, i32, i32
  }
  func.func @transform_25(%arg0: i32) -> (i32, i32, i32) {
    %c0_i32 = arith.constant 0 : i32
    %c0_i32_0 = arith.constant 0 : i32
    %c0_i32_1 = arith.constant 0 : i32
    %c0_i32_2 = arith.constant 0 : i32
    return %c0_i32, %c0_i32_0, %c0_i32_1 : i32, i32, i32
  }
  func.func @transform_26(%arg0: i32) -> (i32, i32, i32) {
    %c0_i32 = arith.constant 0 : i32
    %c0_i32_0 = arith.constant 0 : i32
    %c0_i32_1 = arith.constant 0 : i32
    %c0_i32_2 = arith.constant 0 : i32
    return %c0_i32, %c0_i32_0, %c0_i32_1 : i32, i32, i32
  }
  func.func @transform_27(%arg0: i32) -> (i32, i32, i32) {
    %c0_i32 = arith.constant 0 : i32
    %c0_i32_0 = arith.constant 0 : i32
    %c0_i32_1 = arith.constant 0 : i32
    %c0_i32_2 = arith.constant 0 : i32
    return %c0_i32, %c0_i32_0, %c0_i32_1 : i32, i32, i32
  }
  func.func @transform_28(%arg0: i32) -> (i32, i32, i32) {
    %c0_i32 = arith.constant 0 : i32
    %c0_i32_0 = arith.constant 0 : i32
    %c0_i32_1 = arith.constant 0 : i32
    %c0_i32_2 = arith.constant 0 : i32
    return %c0_i32, %c0_i32_0, %c0_i32_1 : i32, i32, i32
  }
  func.func @transform_29(%arg0: i32) -> (i32, i32, i32) {
    %c0_i32 = arith.constant 0 : i32
    %c0_i32_0 = arith.constant 0 : i32
    %c0_i32_1 = arith.constant 0 : i32
    %c0_i32_2 = arith.constant 0 : i32
    return %c0_i32, %c0_i32_0, %c0_i32_1 : i32, i32, i32
  }
  func.func @transform_30(%arg0: i32) -> (i32, i32, i32) {
    %c0_i32 = arith.constant 0 : i32
    %c0_i32_0 = arith.constant 0 : i32
    %c0_i32_1 = arith.constant 0 : i32
    %c0_i32_2 = arith.constant 0 : i32
    return %c0_i32, %c0_i32_0, %c0_i32_1 : i32, i32, i32
  }
  func.func @transform_31(%arg0: i32) -> (i32, i32, i32) {
    %c0_i32 = arith.constant 0 : i32
    %c0_i32_0 = arith.constant 0 : i32
    %c0_i32_1 = arith.constant 0 : i32
    %c0_i32_2 = arith.constant 0 : i32
    return %c0_i32, %c0_i32_0, %c0_i32_1 : i32, i32, i32
  }
  func.func @transform_32(%arg0: i32) -> (i32, i32, i32) {
    %c0_i32 = arith.constant 0 : i32
    %c0_i32_0 = arith.constant 0 : i32
    %c0_i32_1 = arith.constant 0 : i32
    %c0_i32_2 = arith.constant 0 : i32
    return %c0_i32, %c0_i32_0, %c0_i32_1 : i32, i32, i32
  }
  func.func @transform_33(%arg0: i32) -> (i32, i32, i32) {
    %c0_i32 = arith.constant 0 : i32
    %c0_i32_0 = arith.constant 0 : i32
    %c0_i32_1 = arith.constant 0 : i32
    %c0_i32_2 = arith.constant 0 : i32
    return %c0_i32, %c0_i32_0, %c0_i32_1 : i32, i32, i32
  }
  func.func @transform_34(%arg0: i32) -> (i32, i32, i32) {
    %c0_i32 = arith.constant 0 : i32
    %c0_i32_0 = arith.constant 0 : i32
    %c0_i32_1 = arith.constant 0 : i32
    %c0_i32_2 = arith.constant 0 : i32
    return %c0_i32, %c0_i32_0, %c0_i32_1 : i32, i32, i32
  }
  func.func @transform_35(%arg0: i32) -> (i32, i32, i32) {
    %c0_i32 = arith.constant 0 : i32
    %c0_i32_0 = arith.constant 0 : i32
    %c0_i32_1 = arith.constant 0 : i32
    %c0_i32_2 = arith.constant 0 : i32
    return %c0_i32, %c0_i32_0, %c0_i32_1 : i32, i32, i32
  }
  func.func @transform_36(%arg0: i32) -> (i32, i32, i32) {
    %c0_i32 = arith.constant 0 : i32
    %c0_i32_0 = arith.constant 0 : i32
    %c0_i32_1 = arith.constant 0 : i32
    %c0_i32_2 = arith.constant 0 : i32
    return %c0_i32, %c0_i32_0, %c0_i32_1 : i32, i32, i32
  }
  func.func @transform_37(%arg0: i32) -> (i32, i32, i32) {
    %c0_i32 = arith.constant 0 : i32
    %c0_i32_0 = arith.constant 0 : i32
    %c0_i32_1 = arith.constant 0 : i32
    %c0_i32_2 = arith.constant 0 : i32
    return %c0_i32, %c0_i32_0, %c0_i32_1 : i32, i32, i32
  }
  func.func @transform_38(%arg0: i32) -> (i32, i32, i32) {
    %c0_i32 = arith.constant 0 : i32
    %c0_i32_0 = arith.constant 0 : i32
    %c0_i32_1 = arith.constant 0 : i32
    %c0_i32_2 = arith.constant 0 : i32
    return %c0_i32, %c0_i32_0, %c0_i32_1 : i32, i32, i32
  }
  func.func @transform_39(%arg0: i32) -> (i32, i32, i32) {
    %c0_i32 = arith.constant 0 : i32
    %c0_i32_0 = arith.constant 0 : i32
    %c0_i32_1 = arith.constant 0 : i32
    %c0_i32_2 = arith.constant 0 : i32
    return %c0_i32, %c0_i32_0, %c0_i32_1 : i32, i32, i32
  }
  func.func @transform_40(%arg0: i32) -> (i32, i32, i32) {
    %c0_i32 = arith.constant 0 : i32
    %c0_i32_0 = arith.constant 0 : i32
    %c0_i32_1 = arith.constant 0 : i32
    %c0_i32_2 = arith.constant 0 : i32
    return %c0_i32, %c0_i32_0, %c0_i32_1 : i32, i32, i32
  }
  func.func @transform_41(%arg0: i32) -> (i32, i32, i32) {
    %c0_i32 = arith.constant 0 : i32
    %c0_i32_0 = arith.constant 0 : i32
    %c0_i32_1 = arith.constant 0 : i32
    %c0_i32_2 = arith.constant 0 : i32
    return %c0_i32, %c0_i32_0, %c0_i32_1 : i32, i32, i32
  }
  func.func @transform_42(%arg0: i32) -> (i32, i32, i32) {
    %c0_i32 = arith.constant 0 : i32
    %c0_i32_0 = arith.constant 0 : i32
    %c0_i32_1 = arith.constant 0 : i32
    %c0_i32_2 = arith.constant 0 : i32
    return %c0_i32, %c0_i32_0, %c0_i32_1 : i32, i32, i32
  }
  func.func @transform_43(%arg0: i32) -> (i32, i32, i32) {
    %c0_i32 = arith.constant 0 : i32
    %c0_i32_0 = arith.constant 0 : i32
    %c0_i32_1 = arith.constant 0 : i32
    %c0_i32_2 = arith.constant 0 : i32
    return %c0_i32, %c0_i32_0, %c0_i32_1 : i32, i32, i32
  }
  func.func @transform_44(%arg0: i32) -> (i32, i32) {
    %c0_i32 = arith.constant 0 : i32
    %c0_i32_0 = arith.constant 0 : i32
    %c0_i32_1 = arith.constant 0 : i32
    return %c0_i32, %c0_i32_0 : i32, i32
  }
  func.func @transform_45(%arg0: i32) -> (i32, i32) {
    %c0_i32 = arith.constant 0 : i32
    %c0_i32_0 = arith.constant 0 : i32
    %c0_i32_1 = arith.constant 0 : i32
    return %c0_i32, %c0_i32_0 : i32, i32
  }
  func.func @transform_46(%arg0: i32) -> (i32, i32) {
    %c0_i32 = arith.constant 0 : i32
    %c0_i32_0 = arith.constant 0 : i32
    %c0_i32_1 = arith.constant 0 : i32
    return %c0_i32, %c0_i32_0 : i32, i32
  }
  func.func @transform_47(%arg0: i32) -> (i32, i32) {
    %c0_i32 = arith.constant 0 : i32
    %c0_i32_0 = arith.constant 0 : i32
    %c0_i32_1 = arith.constant 0 : i32
    return %c0_i32, %c0_i32_0 : i32, i32
  }
  func.func @transform_48(%arg0: i32) -> (i32, i32, i32) {
    %c0_i32 = arith.constant 0 : i32
    %c0_i32_0 = arith.constant 0 : i32
    %c0_i32_1 = arith.constant 0 : i32
    return %arg0, %c0_i32, %c0_i32_0 : i32, i32, i32
  }
}

</mosaic_0001>

<llo_original>
// kernel: transformer_forward.1
$region0: #{transformer_forward.1}
  #allocation0 [shape = 'u32[]', space=smem, size = 0x4, offset = 0x4, fixed_abs, tag = 'smem constant byte address 0x4 - core index']
  #allocation1 [shape = 'u32[72,128]{1,0:T(1,128)}', space=vmem, size = 0x9000, scoped, tag = 'internal scratch']
  #allocation2 [shape = 'f32[8,32]{1,0:T(8,128)}', space=vmem, size = 0x1000, scoped, tag = 'scratch operand']
  %s0 = inlined_call_operand.smem [shape: u32[49], index: -1, kind: input, shape index: {}]
  %s1 = sld [smem:[%s0]]
  %s2 = scalar_lea.smem %s0, 1
  %s3 = sld [smem:[%s2]]
  %s4 = scalar_lea.smem %s0, 2
  %s5 = sld [smem:[%s4]]
  %s6 = scalar_lea.smem %s0, 3
  %s7 = sld [smem:[%s6]]
  %s8 = scalar_lea.smem %s0, 4
  %s9 = sld [smem:[%s8]]
  %s10 = scalar_lea.smem %s0, 5
  %s11 = sld [smem:[%s10]]
  %s12 = scalar_lea.smem %s0, 6
  %s13 = sld [smem:[%s12]]
  %s14 = scalar_lea.smem %s0, 7
  %s15 = sld [smem:[%s14]]
  %s16 = scalar_lea.smem %s0, 8
  %s17 = sld [smem:[%s16]]
  %s18 = scalar_lea.smem %s0, 9
  %s19 = sld [smem:[%s18]]
  %s20 = scalar_lea.smem %s0, 10
  %s21 = sld [smem:[%s20]]
  %s22 = scalar_lea.smem %s0, 11
  %s23 = sld [smem:[%s22]]
  %s24 = scalar_lea.smem %s0, 12
  %s25 = sld [smem:[%s24]]
  %s26 = scalar_lea.smem %s0, 13
  %s27 = sld [smem:[%s26]]
  %s28 = scalar_lea.smem %s0, 14
  %s29 = sld [smem:[%s28]]
  %s30 = scalar_lea.smem %s0, 15
  %s31 = sld [smem:[%s30]]
  %s32 = scalar_lea.smem %s0, 16
  %s33 = sld [smem:[%s32]]
  %s34 = scalar_lea.smem %s0, 17
  %s35 = sld [smem:[%s34]]
  %s36 = scalar_lea.smem %s0, 18
  %s37 = sld [smem:[%s36]]
  %s38 = scalar_lea.smem %s0, 19
  %s39 = sld [smem:[%s38]]
  %s40 = scalar_lea.smem %s0, 20
  %s41 = sld [smem:[%s40]]
  %s42 = scalar_lea.smem %s0, 21
  %s43 = sld [smem:[%s42]]
  %s44 = scalar_lea.smem %s0, 22
  %s45 = sld [smem:[%s44]]
  %s46 = scalar_lea.smem %s0, 23
  %s47 = sld [smem:[%s46]]
  %s48 = scalar_lea.smem %s0, 24
  %s49 = sld [smem:[%s48]]
  %s50 = scalar_lea.smem %s0, 25
  %s51 = sld [smem:[%s50]]
  %s52 = scalar_lea.smem %s0, 26
  %s53 = sld [smem:[%s52]]
  %s54 = scalar_lea.smem %s0, 27
  %s55 = sld [smem:[%s54]]
  %s56 = scalar_lea.smem %s0, 28
  %s57 = sld [smem:[%s56]]
  %s58 = scalar_lea.smem %s0, 29
  %s59 = sld [smem:[%s58]]
  %s60 = scalar_lea.smem %s0, 30
  %s61 = sld [smem:[%s60]]
  %s62 = scalar_lea.smem %s0, 31
  %s63 = sld [smem:[%s62]]
  %s64 = scalar_lea.smem %s0, 32
  %s65 = sld [smem:[%s64]]
  %s66 = scalar_lea.smem %s0, 33
  %s67 = sld [smem:[%s66]]
  %s68 = scalar_lea.smem %s0, 34
  %s69 = sld [smem:[%s68]]
  %s70 = scalar_lea.smem %s0, 35
  %s71 = sld [smem:[%s70]]
  %s72 = scalar_lea.smem %s0, 36
  %s73 = sld [smem:[%s72]]
  %s74 = scalar_lea.smem %s0, 37
  %s75 = sld [smem:[%s74]]
  %s76 = scalar_lea.smem %s0, 38
  %s77 = sld [smem:[%s76]]
  %s78 = scalar_lea.smem %s0, 39
  %s79 = sld [smem:[%s78]]
  %s80 = scalar_lea.smem %s0, 40
  %s81 = sld [smem:[%s80]]
  %s82 = scalar_lea.smem %s0, 41
  %s83 = sld [smem:[%s82]]
  %s84 = scalar_lea.smem %s0, 42
  %s85 = sld [smem:[%s84]]
  %s86 = scalar_lea.smem %s0, 43
  %s87 = sld [smem:[%s86]]
  %s88 = scalar_lea.smem %s0, 44
  %s89 = sld [smem:[%s88]]
  %s90 = scalar_lea.smem %s0, 45
  %s91 = sld [smem:[%s90]]
  %s92 = scalar_lea.smem %s0, 46
  %s93 = sld [smem:[%s92]]
  %s94 = scalar_lea.smem %s0, 47
  %s95 = sld [smem:[%s94]]
  %s96 = scalar_lea.smem %s0, 48
  %s97 = sld [smem:[%s96]]
  %s98 = sld [smem:[#allocation0]]
  $region253: #{transformer_forward.1} parent=0
    _
  %s100 = ssub.s32 1, %s98
  %s101 = scalar_select 0, %s100, %s98
  $region1: #{transformer_forward.1} parent=0
    #allocation3 [shape = 'u8[32768]{0}', space=vmem, size = 0x8000, scoped, tag = 'input window, operand 30, single buffered']
    #allocation4 [shape = 's32[2]{0}', space=sflag, size = 0x8, scoped, tag = 'scoped memory for transformer_forward.1']
    #allocation5 [shape = 'u8[32768]{0}', space=vmem, size = 0x8000, scoped, tag = 'input window, operand 32, single buffered']
    #allocation6 [shape = 's32[1]{0}', space=sflag, size = 0x4, scoped, tag = 'scoped memory for transformer_forward.1']
    #allocation7 [shape = 'u8[32768]{0}', space=vmem, size = 0x8000, scoped, tag = 'input window, operand 34, single buffered']
    #allocation8 [shape = 'u8[32768]{0}', space=vmem, size = 0x8000, scoped, tag = 'input window, operand 38, single buffered']
    #allocation9 [shape = 's32[1]{0}', space=sflag, size = 0x4, scoped, tag = 'scoped memory for transformer_forward.1']
    #allocation10 [shape = 'u8[512]{0}', space=vmem, size = 0x400, scoped, tag = 'input window, operand 44, single buffered']
    #allocation11 [shape = 'u8[512]{0}', space=vmem, size = 0x400, scoped, tag = 'input window, operand 45, single buffered']
    #allocation12 [shape = 's32[1]{0}', space=sflag, size = 0x4, scoped, tag = 'scoped memory for transformer_forward.1']
    #allocation13 [shape = 'u8[512]{0}', space=vmem, size = 0x400, scoped, tag = 'input window, operand 47, single buffered']
    %102 = vsyncpa [#allocation4], 0
    %103 = vsyncpa [#allocation6], 0
    %104 = vsyncpa [#allocation9], 0
    %105 = vsyncpa [#allocation12], 0
    loop: start=0, step=1, limit=4
    $region2: #{transformer_forward.1} parent=1 // loop_pre_header
      _
    $region3: #{transformer_forward.1} parent=1 // loop_header
      %s107 = sphi 0, %s111
      %p108 = scmp.ge.s32.totalorder %s107, 4
      %s117 = sphi 0, %s119
      %s120 = sphi 0, %s117
      %s121 = sphi 0, %s120
      %s137 = sphi 0, %s121
      %s143 = sphi 0, %s145
      %s146 = sphi 0, %s143
      %s147 = sphi 0, %s146
      %s163 = sphi 0, %s147
      %s167 = sphi 0, %s167
      %s169 = sphi 0, %s167
      %s170 = sphi 0, %s169
      %s184 = sphi 0, %s170
      %s188 = sphi 0, %s188
      %s190 = sphi 0, %s188
      %s191 = sphi 0, %s190
      %s205 = sphi 0, %s191
      %s209 = sphi 0, %s209
      %s211 = sphi 0, %s209
      %s212 = sphi 0, %s211
      %s226 = sphi 0, %s212
      %s230 = sphi 0, %s230
      %s232 = sphi 0, %s230
      %s233 = sphi 0, %s232
      %s247 = sphi 0, %s233
      %s251 = sphi 0, %s251
      %s253 = sphi 0, %s251
      %s254 = sphi 0, %s253
      %s268 = sphi 0, %s254
      %s272 = sphi 0, %s272
      %s274 = sphi 0, %s272
      %s275 = sphi 0, %s274
      %s289 = sphi 0, %s275
      %s293 = sphi 0, %s293
      %s295 = sphi 0, %s293
      %s296 = sphi 0, %s295
      %s310 = sphi 0, %s296
      %s314 = sphi 0, %s314
      %s316 = sphi 0, %s314
      %s317 = sphi 0, %s316
      %s331 = sphi 0, %s317
      %s335 = sphi 0, %s335
      %s337 = sphi 0, %s335
      %s338 = sphi 0, %s337
      %s352 = sphi 0, %s338
      %s356 = sphi 0, %s356
      %s358 = sphi 0, %s356
      %s359 = sphi 0, %s358
      %s373 = sphi 0, %s359
      %s377 = sphi 0, %s377
      %s379 = sphi 0, %s377
      %s380 = sphi 0, %s379
      %s394 = sphi 0, %s380
      %s398 = sphi 0, %s398
      %s400 = sphi 0, %s398
      %s401 = sphi 0, %s400
      %s415 = sphi 0, %s401
      %s419 = sphi 0, %s419
      %s421 = sphi 0, %s419
      %s422 = sphi 0, %s421
      %s436 = sphi 0, %s422
      %s440 = sphi 0, %s440
      %s442 = sphi 0, %s440
      %s443 = sphi 0, %s442
      %s457 = sphi 0, %s443
      %s461 = sphi 0, %s461
      %s463 = sphi 0, %s461
      %s464 = sphi 0, %s463
      %s478 = sphi 0, %s464
      %s482 = sphi 0, %s482
      %s484 = sphi 0, %s482
      %s485 = sphi 0, %s484
      %s499 = sphi 0, %s485
      %s503 = sphi 0, %s503
      %s505 = sphi 0, %s503
      %s506 = sphi 0, %s505
      %s520 = sphi 0, %s506
      %s524 = sphi 0, %s524
      %s526 = sphi 0, %s524
      %s527 = sphi 0, %s526
      %s541 = sphi 0, %s527
      %s545 = sphi 0, %s545
      %s547 = sphi 0, %s545
      %s548 = sphi 0, %s547
      %s562 = sphi 0, %s548
      %s566 = sphi 0, %s566
      %s568 = sphi 0, %s566
      %s569 = sphi 0, %s568
      %s583 = sphi 0, %s569
      %s587 = sphi 0, %s587
      %s589 = sphi 0, %s587
      %s590 = sphi 0, %s589
      %s604 = sphi 0, %s590
      %s608 = sphi 0, %s608
      %s610 = sphi 0, %s608
      %s611 = sphi 0, %s610
      %s625 = sphi 0, %s611
      %s629 = sphi 0, %s629
      %s631 = sphi 0, %s629
      %s632 = sphi 0, %s631
      %s646 = sphi 0, %s632
      %s650 = sphi 0, %s650
      %s652 = sphi 0, %s650
      %s653 = sphi 0, %s652
      %s667 = sphi 0, %s653
      %s671 = sphi 0, %s671
      %s673 = sphi 0, %s671
      %s674 = sphi 0, %s673
      %s688 = sphi 0, %s674
      %s692 = sphi 0, %s692
      %s694 = sphi 0, %s692
      %s695 = sphi 0, %s694
      %s709 = sphi 0, %s695
      %s713 = sphi 0, %s713
      %s715 = sphi 0, %s713
      %s716 = sphi 0, %s715
      %s730 = sphi 0, %s716
      %s734 = sphi 0, %s734
      %s736 = sphi 0, %s734
      %s737 = sphi 0, %s736
      %s751 = sphi 0, %s737
      %s755 = sphi 0, %s755
      %s757 = sphi 0, %s755
      %s758 = sphi 0, %s757
      %s772 = sphi 0, %s758
      %s776 = sphi 0, %s776
      %s778 = sphi 0, %s776
      %s779 = sphi 0, %s778
      %s793 = sphi 0, %s779
      %s797 = sphi 0, %s797
      %s799 = sphi 0, %s797
      %s800 = sphi 0, %s799
      %s814 = sphi 0, %s800
      %s818 = sphi 0, %s818
      %s820 = sphi 0, %s818
      %s821 = sphi 0, %s820
      %s835 = sphi 0, %s821
      %s839 = sphi 0, %s839
      %s841 = sphi 0, %s839
      %s842 = sphi 0, %s841
      %s856 = sphi 0, %s842
      %s860 = sphi 0, %s860
      %s862 = sphi 0, %s860
      %s863 = sphi 0, %s862
      %s877 = sphi 0, %s863
      %s881 = sphi 0, %s881
      %s883 = sphi 0, %s881
      %s884 = sphi 0, %s883
      %s898 = sphi 0, %s884
      %s902 = sphi 0, %s902
      %s904 = sphi 0, %s902
      %s905 = sphi 0, %s904
      %s919 = sphi 0, %s905
      %s923 = sphi 0, %s923
      %s925 = sphi 0, %s923
      %s926 = sphi 0, %s925
      %s940 = sphi 0, %s926
      %s944 = sphi 0, %s944
      %s946 = sphi 0, %s944
      %s947 = sphi 0, %s946
      %s961 = sphi 0, %s947
      %s965 = sphi 0, %s965
      %s967 = sphi 0, %s965
      %s968 = sphi 0, %s967
      %s982 = sphi 0, %s968
      %s986 = sphi 0, %s986
      %s988 = sphi 0, %s986
      %s989 = sphi 0, %s988
      %s1003 = sphi 0, %s989
      %s1007 = sphi 0, %s1007
      %s1009 = sphi 0, %s1007
      %s1010 = sphi 0, %s1009
      %s1024 = sphi 0, %s1010
      %s1028 = sphi 0, %s1028
      %s1030 = sphi 0, %s1028
      %s1031 = sphi 0, %s1030
      %s1045 = sphi 0, %s1031
      %s1049 = sphi 0, %s1049
      %s1051 = sphi 0, %s1049
      %s1052 = sphi 0, %s1051
      %s1066 = sphi 0, %s1052
      %s1070 = sphi 0, %s1070
      %s1072 = sphi 0, %s1070
      %s1073 = sphi 0, %s1072
      %s1087 = sphi 0, %s1073
      %s1091 = sphi 0, %s1091
      %s1093 = sphi 0, %s1091
      %s1094 = sphi 0, %s1093
      %s1108 = sphi 0, %s1094
      %s1112 = sphi 0, %s1112
      %s1114 = sphi 0, %s1112
      %s1115 = sphi 0, %s1114
      %s1129 = sphi 0, %s1115
      %s1135 = sphi 0, %s1137
      %s1138 = sphi 0, %s1135
      %s1139 = sphi 0, %s1138
      %s1155 = sphi 0, %s1139
    $region4: #{transformer_forward.1} parent=1 // loop_header_branch
      %110 = sbr.rel (%p108) target = $region8
    $region5: #{transformer_forward.1} parent=1 // loop_body
      %s112 = ssub.s32 %s107, 1
      %s113 = ssub.s32 %s107, 2
      %s114 = sadd.s32 %s107, 1
      %s115 = ssub.s32 %s107, %s114
      %p116 = scmp.eq.s32.totalorder %s115, 0
      %s118 = sadd.s32 %s117, 1
      %s119 = scalar_select %p116, %s117, %s118
      %p122 = pneg %p116
      %p123 = scmp.eq.s32.totalorder %s107, 1
      %p124 = por %p122, %p123
      %p125 = scmp.ne.s32.totalorder %s117, %s120
      %p126 = scmp.eq.s32.totalorder %s107, 0
      %p127 = por %p125, %p126
      %p128 = scmp.ne.s32.totalorder %s117, %s120
      %p129 = scmp.eq.s32.totalorder %s112, 1
      %p130 = por %p128, %p129
      %p131 = scmp.ne.s32.totalorder %s120, %s121
      %p132 = scmp.eq.s32.totalorder %s112, 0
      %p133 = por %p131, %p132
      %p134 = scmp.ne.s32.totalorder %s120, %s121
      %p135 = scmp.eq.s32.totalorder %s113, 1
      %p136 = por %p134, %p135
      %p138 = scmp.ne.s32.totalorder %s121, %s137
      %p139 = scmp.eq.s32.totalorder %s113, 0
      %p140 = por %p138, %p139
      %s141 = ssub.s32 %s107, %s114
      %p142 = scmp.eq.s32.totalorder %s141, 0
      %s144 = sadd.s32 %s143, 1
      %s145 = scalar_select %p142, %s143, %s144
      %p148 = pneg %p142
      %p149 = scmp.eq.s32.totalorder %s107, 1
      %p150 = por %p148, %p149
      %p151 = scmp.ne.s32.totalorder %s143, %s146
      %p152 = scmp.eq.s32.totalorder %s107, 0
      %p153 = por %p151, %p152
      %p154 = scmp.ne.s32.totalorder %s143, %s146
      %p155 = scmp.eq.s32.totalorder %s112, 1
      %p156 = por %p154, %p155
      %p157 = scmp.ne.s32.totalorder %s146, %s147
      %p158 = scmp.eq.s32.totalorder %s112, 0
      %p159 = por %p157, %p158
      %p160 = scmp.ne.s32.totalorder %s146, %s147
      %p161 = scmp.eq.s32.totalorder %s113, 1
      %p162 = por %p160, %p161
      %p164 = scmp.ne.s32.totalorder %s147, %s163
      %p165 = scmp.eq.s32.totalorder %s113, 0
      %p166 = por %p164, %p165
      %s168 = sadd.s32 %s167, 1
      %p171 = scmp.eq.s32.totalorder %s107, 1
      %p172 = scmp.ne.s32.totalorder %s167, %s169
      %p173 = scmp.eq.s32.totalorder %s107, 0
      %p174 = por %p172, %p173
      %p175 = scmp.ne.s32.totalorder %s167, %s169
      %p176 = scmp.eq.s32.totalorder %s112, 1
      %p177 = por %p175, %p176
      %p178 = scmp.ne.s32.totalorder %s169, %s170
      %p179 = scmp.eq.s32.totalorder %s112, 0
      %p180 = por %p178, %p179
      %p181 = scmp.ne.s32.totalorder %s169, %s170
      %p182 = scmp.eq.s32.totalorder %s113, 1
      %p183 = por %p181, %p182
      %p185 = scmp.ne.s32.totalorder %s170, %s184
      %p186 = scmp.eq.s32.totalorder %s113, 0
      %p187 = por %p185, %p186
      %s189 = sadd.s32 %s188, 1
      %p192 = scmp.eq.s32.totalorder %s107, 1
      %p193 = scmp.ne.s32.totalorder %s188, %s190
      %p194 = scmp.eq.s32.totalorder %s107, 0
      %p195 = por %p193, %p194
      %p196 = scmp.ne.s32.totalorder %s188, %s190
      %p197 = scmp.eq.s32.totalorder %s112, 1
      %p198 = por %p196, %p197
      %p199 = scmp.ne.s32.totalorder %s190, %s191
      %p200 = scmp.eq.s32.totalorder %s112, 0
      %p201 = por %p199, %p200
      %p202 = scmp.ne.s32.totalorder %s190, %s191
      %p203 = scmp.eq.s32.totalorder %s113, 1
      %p204 = por %p202, %p203
      %p206 = scmp.ne.s32.totalorder %s191, %s205
      %p207 = scmp.eq.s32.totalorder %s113, 0
      %p208 = por %p206, %p207
      %s210 = sadd.s32 %s209, 1
      %p213 = scmp.eq.s32.totalorder %s107, 1
      %p214 = scmp.ne.s32.totalorder %s209, %s211
      %p215 = scmp.eq.s32.totalorder %s107, 0
      %p216 = por %p214, %p215
      %p217 = scmp.ne.s32.totalorder %s209, %s211
      %p218 = scmp.eq.s32.totalorder %s112, 1
      %p219 = por %p217, %p218
      %p220 = scmp.ne.s32.totalorder %s211, %s212
      %p221 = scmp.eq.s32.totalorder %s112, 0
      %p222 = por %p220, %p221
      %p223 = scmp.ne.s32.totalorder %s211, %s212
      %p224 = scmp.eq.s32.totalorder %s113, 1
      %p225 = por %p223, %p224
      %p227 = scmp.ne.s32.totalorder %s212, %s226
      %p228 = scmp.eq.s32.totalorder %s113, 0
      %p229 = por %p227, %p228
      %s231 = sadd.s32 %s230, 1
      %p234 = scmp.eq.s32.totalorder %s107, 1
      %p235 = scmp.ne.s32.totalorder %s230, %s232
      %p236 = scmp.eq.s32.totalorder %s107, 0
      %p237 = por %p235, %p236
      %p238 = scmp.ne.s32.totalorder %s230, %s232
      %p239 = scmp.eq.s32.totalorder %s112, 1
      %p240 = por %p238, %p239
      %p241 = scmp.ne.s32.totalorder %s232, %s233
      %p242 = scmp.eq.s32.totalorder %s112, 0
      %p243 = por %p241, %p242
      %p244 = scmp.ne.s32.totalorder %s232, %s233
      %p245 = scmp.eq.s32.totalorder %s113, 1
      %p246 = por %p244, %p245
      %p248 = scmp.ne.s32.totalorder %s233, %s247
      %p249 = scmp.eq.s32.totalorder %s113, 0
      %p250 = por %p248, %p249
      %s252 = sadd.s32 %s251, 1
      %p255 = scmp.eq.s32.totalorder %s107, 1
      %p256 = scmp.ne.s32.totalorder %s251, %s253
      %p257 = scmp.eq.s32.totalorder %s107, 0
      %p258 = por %p256, %p257
      %p259 = scmp.ne.s32.totalorder %s251, %s253
      %p260 = scmp.eq.s32.totalorder %s112, 1
      %p261 = por %p259, %p260
      %p262 = scmp.ne.s32.totalorder %s253, %s254
      %p263 = scmp.eq.s32.totalorder %s112, 0
      %p264 = por %p262, %p263
      %p265 = scmp.ne.s32.totalorder %s253, %s254
      %p266 = scmp.eq.s32.totalorder %s113, 1
      %p267 = por %p265, %p266
      %p269 = scmp.ne.s32.totalorder %s254, %s268
      %p270 = scmp.eq.s32.totalorder %s113, 0
      %p271 = por %p269, %p270
      %s273 = sadd.s32 %s272, 1
      %p276 = scmp.eq.s32.totalorder %s107, 1
      %p277 = scmp.ne.s32.totalorder %s272, %s274
      %p278 = scmp.eq.s32.totalorder %s107, 0
      %p279 = por %p277, %p278
      %p280 = scmp.ne.s32.totalorder %s272, %s274
      %p281 = scmp.eq.s32.totalorder %s112, 1
      %p282 = por %p280, %p281
      %p283 = scmp.ne.s32.totalorder %s274, %s275
      %p284 = scmp.eq.s32.totalorder %s112, 0
      %p285 = por %p283, %p284
      %p286 = scmp.ne.s32.totalorder %s274, %s275
      %p287 = scmp.eq.s32.totalorder %s113, 1
      %p288 = por %p286, %p287
      %p290 = scmp.ne.s32.totalorder %s275, %s289
      %p291 = scmp.eq.s32.totalorder %s113, 0
      %p292 = por %p290, %p291
      %s294 = sadd.s32 %s293, 1
      %p297 = scmp.eq.s32.totalorder %s107, 1
      %p298 = scmp.ne.s32.totalorder %s293, %s295
      %p299 = scmp.eq.s32.totalorder %s107, 0
      %p300 = por %p298, %p299
      %p301 = scmp.ne.s32.totalorder %s293, %s295
      %p302 = scmp.eq.s32.totalorder %s112, 1
      %p303 = por %p301, %p302
      %p304 = scmp.ne.s32.totalorder %s295, %s296
      %p305 = scmp.eq.s32.totalorder %s112, 0
      %p306 = por %p304, %p305
      %p307 = scmp.ne.s32.totalorder %s295, %s296
      %p308 = scmp.eq.s32.totalorder %s113, 1
      %p309 = por %p307, %p308
      %p311 = scmp.ne.s32.totalorder %s296, %s310
      %p312 = scmp.eq.s32.totalorder %s113, 0
      %p313 = por %p311, %p312
      %s315 = sadd.s32 %s314, 1
      %p318 = scmp.eq.s32.totalorder %s107, 1
      %p319 = scmp.ne.s32.totalorder %s314, %s316
      %p320 = scmp.eq.s32.totalorder %s107, 0
      %p321 = por %p319, %p320
      %p322 = scmp.ne.s32.totalorder %s314, %s316
      %p323 = scmp.eq.s32.totalorder %s112, 1
      %p324 = por %p322, %p323
      %p325 = scmp.ne.s32.totalorder %s316, %s317
      %p326 = scmp.eq.s32.totalorder %s112, 0
      %p327 = por %p325, %p326
      %p328 = scmp.ne.s32.totalorder %s316, %s317
      %p329 = scmp.eq.s32.totalorder %s113, 1
      %p330 = por %p328, %p329
      %p332 = scmp.ne.s32.totalorder %s317, %s331
      %p333 = scmp.eq.s32.totalorder %s113, 0
      %p334 = por %p332, %p333
      %s336 = sadd.s32 %s335, 1
      %p339 = scmp.eq.s32.totalorder %s107, 1
      %p340 = scmp.ne.s32.totalorder %s335, %s337
      %p341 = scmp.eq.s32.totalorder %s107, 0
      %p342 = por %p340, %p341
      %p343 = scmp.ne.s32.totalorder %s335, %s337
      %p344 = scmp.eq.s32.totalorder %s112, 1
      %p345 = por %p343, %p344
      %p346 = scmp.ne.s32.totalorder %s337, %s338
      %p347 = scmp.eq.s32.totalorder %s112, 0
      %p348 = por %p346, %p347
      %p349 = scmp.ne.s32.totalorder %s337, %s338
      %p350 = scmp.eq.s32.totalorder %s113, 1
      %p351 = por %p349, %p350
      %p353 = scmp.ne.s32.totalorder %s338, %s352
      %p354 = scmp.eq.s32.totalorder %s113, 0
      %p355 = por %p353, %p354
      %s357 = sadd.s32 %s356, 1
      %p360 = scmp.eq.s32.totalorder %s107, 1
      %p361 = scmp.ne.s32.totalorder %s356, %s358
      %p362 = scmp.eq.s32.totalorder %s107, 0
      %p363 = por %p361, %p362
      %p364 = scmp.ne.s32.totalorder %s356, %s358
      %p365 = scmp.eq.s32.totalorder %s112, 1
      %p366 = por %p364, %p365
      %p367 = scmp.ne.s32.totalorder %s358, %s359
      %p368 = scmp.eq.s32.totalorder %s112, 0
      %p369 = por %p367, %p368
      %p370 = scmp.ne.s32.totalorder %s358, %s359
      %p371 = scmp.eq.s32.totalorder %s113, 1
      %p372 = por %p370, %p371
      %p374 = scmp.ne.s32.totalorder %s359, %s373
      %p375 = scmp.eq.s32.totalorder %s113, 0
      %p376 = por %p374, %p375
      %s378 = sadd.s32 %s377, 1
      %p381 = scmp.eq.s32.totalorder %s107, 1
      %p382 = scmp.ne.s32.totalorder %s377, %s379
      %p383 = scmp.eq.s32.totalorder %s107, 0
      %p384 = por %p382, %p383
      %p385 = scmp.ne.s32.totalorder %s377, %s379
      %p386 = scmp.eq.s32.totalorder %s112, 1
      %p387 = por %p385, %p386
      %p388 = scmp.ne.s32.totalorder %s379, %s380
      %p389 = scmp.eq.s32.totalorder %s112, 0
      %p390 = por %p388, %p389
      %p391 = scmp.ne.s32.totalorder %s379, %s380
      %p392 = scmp.eq.s32.totalorder %s113, 1
      %p393 = por %p391, %p392
      %p395 = scmp.ne.s32.totalorder %s380, %s394
      %p396 = scmp.eq.s32.totalorder %s113, 0
      %p397 = por %p395, %p396
      %s399 = sadd.s32 %s398, 1
      %p402 = scmp.eq.s32.totalorder %s107, 1
      %p403 = scmp.ne.s32.totalorder %s398, %s400
      %p404 = scmp.eq.s32.totalorder %s107, 0
      %p405 = por %p403, %p404
      %p406 = scmp.ne.s32.totalorder %s398, %s400
      %p407 = scmp.eq.s32.totalorder %s112, 1
      %p408 = por %p406, %p407
      %p409 = scmp.ne.s32.totalorder %s400, %s401
      %p410 = scmp.eq.s32.totalorder %s112, 0
      %p411 = por %p409, %p410
      %p412 = scmp.ne.s32.totalorder %s400, %s401
      %p413 = scmp.eq.s32.totalorder %s113, 1
      %p414 = por %p412, %p413
      %p416 = scmp.ne.s32.totalorder %s401, %s415
      %p417 = scmp.eq.s32.totalorder %s113, 0
      %p418 = por %p416, %p417
      %s420 = sadd.s32 %s419, 1
      %p423 = scmp.eq.s32.totalorder %s107, 1
      %p424 = scmp.ne.s32.totalorder %s419, %s421
      %p425 = scmp.eq.s32.totalorder %s107, 0
      %p426 = por %p424, %p425
      %p427 = scmp.ne.s32.totalorder %s419, %s421
      %p428 = scmp.eq.s32.totalorder %s112, 1
      %p429 = por %p427, %p428
      %p430 = scmp.ne.s32.totalorder %s421, %s422
      %p431 = scmp.eq.s32.totalorder %s112, 0
      %p432 = por %p430, %p431
      %p433 = scmp.ne.s32.totalorder %s421, %s422
      %p434 = scmp.eq.s32.totalorder %s113, 1
      %p435 = por %p433, %p434
      %p437 = scmp.ne.s32.totalorder %s422, %s436
      %p438 = scmp.eq.s32.totalorder %s113, 0
      %p439 = por %p437, %p438
      %s441 = sadd.s32 %s440, 1
      %p444 = scmp.eq.s32.totalorder %s107, 1
      %p445 = scmp.ne.s32.totalorder %s440, %s442
      %p446 = scmp.eq.s32.totalorder %s107, 0
      %p447 = por %p445, %p446
      %p448 = scmp.ne.s32.totalorder %s440, %s442
      %p449 = scmp.eq.s32.totalorder %s112, 1
      %p450 = por %p448, %p449
      %p451 = scmp.ne.s32.totalorder %s442, %s443
      %p452 = scmp.eq.s32.totalorder %s112, 0
      %p453 = por %p451, %p452
      %p454 = scmp.ne.s32.totalorder %s442, %s443
      %p455 = scmp.eq.s32.totalorder %s113, 1
      %p456 = por %p454, %p455
      %p458 = scmp.ne.s32.totalorder %s443, %s457
      %p459 = scmp.eq.s32.totalorder %s113, 0
      %p460 = por %p458, %p459
      %s462 = sadd.s32 %s461, 1
      %p465 = scmp.eq.s32.totalorder %s107, 1
      %p466 = scmp.ne.s32.totalorder %s461, %s463
      %p467 = scmp.eq.s32.totalorder %s107, 0
      %p468 = por %p466, %p467
      %p469 = scmp.ne.s32.totalorder %s461, %s463
      %p470 = scmp.eq.s32.totalorder %s112, 1
      %p471 = por %p469, %p470
      %p472 = scmp.ne.s32.totalorder %s463, %s464
      %p473 = scmp.eq.s32.totalorder %s112, 0
      %p474 = por %p472, %p473
      %p475 = scmp.ne.s32.totalorder %s463, %s464
      %p476 = scmp.eq.s32.totalorder %s113, 1
      %p477 = por %p475, %p476
      %p479 = scmp.ne.s32.totalorder %s464, %s478
      %p480 = scmp.eq.s32.totalorder %s113, 0
      %p481 = por %p479, %p480
      %s483 = sadd.s32 %s482, 1
      %p486 = scmp.eq.s32.totalorder %s107, 1
      %p487 = scmp.ne.s32.totalorder %s482, %s484
      %p488 = scmp.eq.s32.totalorder %s107, 0
      %p489 = por %p487, %p488
      %p490 = scmp.ne.s32.totalorder %s482, %s484
      %p491 = scmp.eq.s32.totalorder %s112, 1
      %p492 = por %p490, %p491
      %p493 = scmp.ne.s32.totalorder %s484, %s485
      %p494 = scmp.eq.s32.totalorder %s112, 0
      %p495 = por %p493, %p494
      %p496 = scmp.ne.s32.totalorder %s484, %s485
      %p497 = scmp.eq.s32.totalorder %s113, 1
      %p498 = por %p496, %p497
      %p500 = scmp.ne.s32.totalorder %s485, %s499
      %p501 = scmp.eq.s32.totalorder %s113, 0
      %p502 = por %p500, %p501
      %s504 = sadd.s32 %s503, 1
      %p507 = scmp.eq.s32.totalorder %s107, 1
      %p508 = scmp.ne.s32.totalorder %s503, %s505
      %p509 = scmp.eq.s32.totalorder %s107, 0
      %p510 = por %p508, %p509
      %p511 = scmp.ne.s32.totalorder %s503, %s505
      %p512 = scmp.eq.s32.totalorder %s112, 1
      %p513 = por %p511, %p512
      %p514 = scmp.ne.s32.totalorder %s505, %s506
      %p515 = scmp.eq.s32.totalorder %s112, 0
      %p516 = por %p514, %p515
      %p517 = scmp.ne.s32.totalorder %s505, %s506
      %p518 = scmp.eq.s32.totalorder %s113, 1
      %p519 = por %p517, %p518
      %p521 = scmp.ne.s32.totalorder %s506, %s520
      %p522 = scmp.eq.s32.totalorder %s113, 0
      %p523 = por %p521, %p522
      %s525 = sadd.s32 %s524, 1
      %p528 = scmp.eq.s32.totalorder %s107, 1
      %p529 = scmp.ne.s32.totalorder %s524, %s526
      %p530 = scmp.eq.s32.totalorder %s107, 0
      %p531 = por %p529, %p530
      %p532 = scmp.ne.s32.totalorder %s524, %s526
      %p533 = scmp.eq.s32.totalorder %s112, 1
      %p534 = por %p532, %p533
      %p535 = scmp.ne.s32.totalorder %s526, %s527
      %p536 = scmp.eq.s32.totalorder %s112, 0
      %p537 = por %p535, %p536
      %p538 = scmp.ne.s32.totalorder %s526, %s527
      %p539 = scmp.eq.s32.totalorder %s113, 1
      %p540 = por %p538, %p539
      %p542 = scmp.ne.s32.totalorder %s527, %s541
      %p543 = scmp.eq.s32.totalorder %s113, 0
      %p544 = por %p542, %p543
      %s546 = sadd.s32 %s545, 1
      %p549 = scmp.eq.s32.totalorder %s107, 1
      %p550 = scmp.ne.s32.totalorder %s545, %s547
      %p551 = scmp.eq.s32.totalorder %s107, 0
      %p552 = por %p550, %p551
      %p553 = scmp.ne.s32.totalorder %s545, %s547
      %p554 = scmp.eq.s32.totalorder %s112, 1
      %p555 = por %p553, %p554
      %p556 = scmp.ne.s32.totalorder %s547, %s548
      %p557 = scmp.eq.s32.totalorder %s112, 0
      %p558 = por %p556, %p557
      %p559 = scmp.ne.s32.totalorder %s547, %s548
      %p560 = scmp.eq.s32.totalorder %s113, 1
      %p561 = por %p559, %p560
      %p563 = scmp.ne.s32.totalorder %s548, %s562
      %p564 = scmp.eq.s32.totalorder %s113, 0
      %p565 = por %p563, %p564
      %s567 = sadd.s32 %s566, 1
      %p570 = scmp.eq.s32.totalorder %s107, 1
      %p571 = scmp.ne.s32.totalorder %s566, %s568
      %p572 = scmp.eq.s32.totalorder %s107, 0
      %p573 = por %p571, %p572
      %p574 = scmp.ne.s32.totalorder %s566, %s568
      %p575 = scmp.eq.s32.totalorder %s112, 1
      %p576 = por %p574, %p575
      %p577 = scmp.ne.s32.totalorder %s568, %s569
      %p578 = scmp.eq.s32.totalorder %s112, 0
      %p579 = por %p577, %p578
      %p580 = scmp.ne.s32.totalorder %s568, %s569
      %p581 = scmp.eq.s32.totalorder %s113, 1
      %p582 = por %p580, %p581
      %p584 = scmp.ne.s32.totalorder %s569, %s583
      %p585 = scmp.eq.s32.totalorder %s113, 0
      %p586 = por %p584, %p585
      %s588 = sadd.s32 %s587, 1
      %p591 = scmp.eq.s32.totalorder %s107, 1
      %p592 = scmp.ne.s32.totalorder %s587, %s589
      %p593 = scmp.eq.s32.totalorder %s107, 0
      %p594 = por %p592, %p593
      %p595 = scmp.ne.s32.totalorder %s587, %s589
      %p596 = scmp.eq.s32.totalorder %s112, 1
      %p597 = por %p595, %p596
      %p598 = scmp.ne.s32.totalorder %s589, %s590
      %p599 = scmp.eq.s32.totalorder %s112, 0
      %p600 = por %p598, %p599
      %p601 = scmp.ne.s32.totalorder %s589, %s590
      %p602 = scmp.eq.s32.totalorder %s113, 1
      %p603 = por %p601, %p602
      %p605 = scmp.ne.s32.totalorder %s590, %s604
      %p606 = scmp.eq.s32.totalorder %s113, 0
      %p607 = por %p605, %p606
      %s609 = sadd.s32 %s608, 1
      %p612 = scmp.eq.s32.totalorder %s107, 1
      %p613 = scmp.ne.s32.totalorder %s608, %s610
      %p614 = scmp.eq.s32.totalorder %s107, 0
      %p615 = por %p613, %p614
      %p616 = scmp.ne.s32.totalorder %s608, %s610
      %p617 = scmp.eq.s32.totalorder %s112, 1
      %p618 = por %p616, %p617
      %p619 = scmp.ne.s32.totalorder %s610, %s611
      %p620 = scmp.eq.s32.totalorder %s112, 0
      %p621 = por %p619, %p620
      %p622 = scmp.ne.s32.totalorder %s610, %s611
      %p623 = scmp.eq.s32.totalorder %s113, 1
      %p624 = por %p622, %p623
      %p626 = scmp.ne.s32.totalorder %s611, %s625
      %p627 = scmp.eq.s32.totalorder %s113, 0
      %p628 = por %p626, %p627
      %s630 = sadd.s32 %s629, 1
      %p633 = scmp.eq.s32.totalorder %s107, 1
      %p634 = scmp.ne.s32.totalorder %s629, %s631
      %p635 = scmp.eq.s32.totalorder %s107, 0
      %p636 = por %p634, %p635
      %p637 = scmp.ne.s32.totalorder %s629, %s631
      %p638 = scmp.eq.s32.totalorder %s112, 1
      %p639 = por %p637, %p638
      %p640 = scmp.ne.s32.totalorder %s631, %s632
      %p641 = scmp.eq.s32.totalorder %s112, 0
      %p642 = por %p640, %p641
      %p643 = scmp.ne.s32.totalorder %s631, %s632
      %p644 = scmp.eq.s32.totalorder %s113, 1
      %p645 = por %p643, %p644
      %p647 = scmp.ne.s32.totalorder %s632, %s646
      %p648 = scmp.eq.s32.totalorder %s113, 0
      %p649 = por %p647, %p648
      %s651 = sadd.s32 %s650, 1
      %p654 = scmp.eq.s32.totalorder %s107, 1
      %p655 = scmp.ne.s32.totalorder %s650, %s652
      %p656 = scmp.eq.s32.totalorder %s107, 0
      %p657 = por %p655, %p656
      %p658 = scmp.ne.s32.totalorder %s650, %s652
      %p659 = scmp.eq.s32.totalorder %s112, 1
      %p660 = por %p658, %p659
      %p661 = scmp.ne.s32.totalorder %s652, %s653
      %p662 = scmp.eq.s32.totalorder %s112, 0
      %p663 = por %p661, %p662
      %p664 = scmp.ne.s32.totalorder %s652, %s653
      %p665 = scmp.eq.s32.totalorder %s113, 1
      %p666 = por %p664, %p665
      %p668 = scmp.ne.s32.totalorder %s653, %s667
      %p669 = scmp.eq.s32.totalorder %s113, 0
      %p670 = por %p668, %p669
      %s672 = sadd.s32 %s671, 1
      %p675 = scmp.eq.s32.totalorder %s107, 1
      %p676 = scmp.ne.s32.totalorder %s671, %s673
      %p677 = scmp.eq.s32.totalorder %s107, 0
      %p678 = por %p676, %p677
      %p679 = scmp.ne.s32.totalorder %s671, %s673
      %p680 = scmp.eq.s32.totalorder %s112, 1
      %p681 = por %p679, %p680
      %p682 = scmp.ne.s32.totalorder %s673, %s674
      %p683 = scmp.eq.s32.totalorder %s112, 0
      %p684 = por %p682, %p683
      %p685 = scmp.ne.s32.totalorder %s673, %s674
      %p686 = scmp.eq.s32.totalorder %s113, 1
      %p687 = por %p685, %p686
      %p689 = scmp.ne.s32.totalorder %s674, %s688
      %p690 = scmp.eq.s32.totalorder %s113, 0
      %p691 = por %p689, %p690
      %s693 = sadd.s32 %s692, 1
      %p696 = scmp.eq.s32.totalorder %s107, 1
      %p697 = scmp.ne.s32.totalorder %s692, %s694
      %p698 = scmp.eq.s32.totalorder %s107, 0
      %p699 = por %p697, %p698
      %p700 = scmp.ne.s32.totalorder %s692, %s694
      %p701 = scmp.eq.s32.totalorder %s112, 1
      %p702 = por %p700, %p701
      %p703 = scmp.ne.s32.totalorder %s694, %s695
      %p704 = scmp.eq.s32.totalorder %s112, 0
      %p705 = por %p703, %p704
      %p706 = scmp.ne.s32.totalorder %s694, %s695
      %p707 = scmp.eq.s32.totalorder %s113, 1
      %p708 = por %p706, %p707
      %p710 = scmp.ne.s32.totalorder %s695, %s709
      %p711 = scmp.eq.s32.totalorder %s113, 0
      %p712 = por %p710, %p711
      %s714 = sadd.s32 %s713, 1
      %p717 = scmp.eq.s32.totalorder %s107, 1
      %p718 = scmp.ne.s32.totalorder %s713, %s715
      %p719 = scmp.eq.s32.totalorder %s107, 0
      %p720 = por %p718, %p719
      %p721 = scmp.ne.s32.totalorder %s713, %s715
      %p722 = scmp.eq.s32.totalorder %s112, 1
      %p723 = por %p721, %p722
      %p724 = scmp.ne.s32.totalorder %s715, %s716
      %p725 = scmp.eq.s32.totalorder %s112, 0
      %p726 = por %p724, %p725
      %p727 = scmp.ne.s32.totalorder %s715, %s716
      %p728 = scmp.eq.s32.totalorder %s113, 1
      %p729 = por %p727, %p728
      %p731 = scmp.ne.s32.totalorder %s716, %s730
      %p732 = scmp.eq.s32.totalorder %s113, 0
      %p733 = por %p731, %p732
      %s735 = sadd.s32 %s734, 1
      %p738 = scmp.eq.s32.totalorder %s107, 1
      %p739 = scmp.ne.s32.totalorder %s734, %s736
      %p740 = scmp.eq.s32.totalorder %s107, 0
      %p741 = por %p739, %p740
      %p742 = scmp.ne.s32.totalorder %s734, %s736
      %p743 = scmp.eq.s32.totalorder %s112, 1
      %p744 = por %p742, %p743
      %p745 = scmp.ne.s32.totalorder %s736, %s737
      %p746 = scmp.eq.s32.totalorder %s112, 0
      %p747 = por %p745, %p746
      %p748 = scmp.ne.s32.totalorder %s736, %s737
      %p749 = scmp.eq.s32.totalorder %s113, 1
      %p750 = por %p748, %p749
      %p752 = scmp.ne.s32.totalorder %s737, %s751
      %p753 = scmp.eq.s32.totalorder %s113, 0
      %p754 = por %p752, %p753
      %s756 = sadd.s32 %s755, 1
      %p759 = scmp.eq.s32.totalorder %s107, 1
      %p760 = scmp.ne.s32.totalorder %s755, %s757
      %p761 = scmp.eq.s32.totalorder %s107, 0
      %p762 = por %p760, %p761
      %p763 = scmp.ne.s32.totalorder %s755, %s757
      %p764 = scmp.eq.s32.totalorder %s112, 1
      %p765 = por %p763, %p764
      %p766 = scmp.ne.s32.totalorder %s757, %s758
      %p767 = scmp.eq.s32.totalorder %s112, 0
      %p768 = por %p766, %p767
      %p769 = scmp.ne.s32.totalorder %s757, %s758
      %p770 = scmp.eq.s32.totalorder %s113, 1
      %p771 = por %p769, %p770
      %p773 = scmp.ne.s32.totalorder %s758, %s772
      %p774 = scmp.eq.s32.totalorder %s113, 0
      %p775 = por %p773, %p774
      %s777 = sadd.s32 %s776, 1
      %p780 = scmp.eq.s32.totalorder %s107, 1
      %p781 = scmp.ne.s32.totalorder %s776, %s778
      %p782 = scmp.eq.s32.totalorder %s107, 0
      %p783 = por %p781, %p782
      %p784 = scmp.ne.s32.totalorder %s776, %s778
      %p785 = scmp.eq.s32.totalorder %s112, 1
      %p786 = por %p784, %p785
      %p787 = scmp.ne.s32.totalorder %s778, %s779
      %p788 = scmp.eq.s32.totalorder %s112, 0
      %p789 = por %p787, %p788
      %p790 = scmp.ne.s32.totalorder %s778, %s779
      %p791 = scmp.eq.s32.totalorder %s113, 1
      %p792 = por %p790, %p791
      %p794 = scmp.ne.s32.totalorder %s779, %s793
      %p795 = scmp.eq.s32.totalorder %s113, 0
      %p796 = por %p794, %p795
      %s798 = sadd.s32 %s797, 1
      %p801 = scmp.eq.s32.totalorder %s107, 1
      %p802 = scmp.ne.s32.totalorder %s797, %s799
      %p803 = scmp.eq.s32.totalorder %s107, 0
      %p804 = por %p802, %p803
      %p805 = scmp.ne.s32.totalorder %s797, %s799
      %p806 = scmp.eq.s32.totalorder %s112, 1
      %p807 = por %p805, %p806
      %p808 = scmp.ne.s32.totalorder %s799, %s800
      %p809 = scmp.eq.s32.totalorder %s112, 0
      %p810 = por %p808, %p809
      %p811 = scmp.ne.s32.totalorder %s799, %s800
      %p812 = scmp.eq.s32.totalorder %s113, 1
      %p813 = por %p811, %p812
      %p815 = scmp.ne.s32.totalorder %s800, %s814
      %p816 = scmp.eq.s32.totalorder %s113, 0
      %p817 = por %p815, %p816
      %s819 = sadd.s32 %s818, 1
      %p822 = scmp.eq.s32.totalorder %s107, 1
      %p823 = scmp.ne.s32.totalorder %s818, %s820
      %p824 = scmp.eq.s32.totalorder %s107, 0
      %p825 = por %p823, %p824
      %p826 = scmp.ne.s32.totalorder %s818, %s820
      %p827 = scmp.eq.s32.totalorder %s112, 1
      %p828 = por %p826, %p827
      %p829 = scmp.ne.s32.totalorder %s820, %s821
      %p830 = scmp.eq.s32.totalorder %s112, 0
      %p831 = por %p829, %p830
      %p832 = scmp.ne.s32.totalorder %s820, %s821
      %p833 = scmp.eq.s32.totalorder %s113, 1
      %p834 = por %p832, %p833
      %p836 = scmp.ne.s32.totalorder %s821, %s835
      %p837 = scmp.eq.s32.totalorder %s113, 0
      %p838 = por %p836, %p837
      %s840 = sadd.s32 %s839, 1
      %p843 = scmp.eq.s32.totalorder %s107, 1
      %p844 = scmp.ne.s32.totalorder %s839, %s841
      %p845 = scmp.eq.s32.totalorder %s107, 0
      %p846 = por %p844, %p845
      %p847 = scmp.ne.s32.totalorder %s839, %s841
      %p848 = scmp.eq.s32.totalorder %s112, 1
      %p849 = por %p847, %p848
      %p850 = scmp.ne.s32.totalorder %s841, %s842
      %p851 = scmp.eq.s32.totalorder %s112, 0
      %p852 = por %p850, %p851
      %p853 = scmp.ne.s32.totalorder %s841, %s842
      %p854 = scmp.eq.s32.totalorder %s113, 1
      %p855 = por %p853, %p854
      %p857 = scmp.ne.s32.totalorder %s842, %s856
      %p858 = scmp.eq.s32.totalorder %s113, 0
      %p859 = por %p857, %p858
      %s861 = sadd.s32 %s860, 1
      %p864 = scmp.eq.s32.totalorder %s107, 1
      %p865 = scmp.ne.s32.totalorder %s860, %s862
      %p866 = scmp.eq.s32.totalorder %s107, 0
      %p867 = por %p865, %p866
      %p868 = scmp.ne.s32.totalorder %s860, %s862
      %p869 = scmp.eq.s32.totalorder %s112, 1
      %p870 = por %p868, %p869
      %p871 = scmp.ne.s32.totalorder %s862, %s863
      %p872 = scmp.eq.s32.totalorder %s112, 0
      %p873 = por %p871, %p872
      %p874 = scmp.ne.s32.totalorder %s862, %s863
      %p875 = scmp.eq.s32.totalorder %s113, 1
      %p876 = por %p874, %p875
      %p878 = scmp.ne.s32.totalorder %s863, %s877
      %p879 = scmp.eq.s32.totalorder %s113, 0
      %p880 = por %p878, %p879
      %s882 = sadd.s32 %s881, 1
      %p885 = scmp.eq.s32.totalorder %s107, 1
      %p886 = scmp.ne.s32.totalorder %s881, %s883
      %p887 = scmp.eq.s32.totalorder %s107, 0
      %p888 = por %p886, %p887
      %p889 = scmp.ne.s32.totalorder %s881, %s883
      %p890 = scmp.eq.s32.totalorder %s112, 1
      %p891 = por %p889, %p890
      %p892 = scmp.ne.s32.totalorder %s883, %s884
      %p893 = scmp.eq.s32.totalorder %s112, 0
      %p894 = por %p892, %p893
      %p895 = scmp.ne.s32.totalorder %s883, %s884
      %p896 = scmp.eq.s32.totalorder %s113, 1
      %p897 = por %p895, %p896
      %p899 = scmp.ne.s32.totalorder %s884, %s898
      %p900 = scmp.eq.s32.totalorder %s113, 0
      %p901 = por %p899, %p900
      %s903 = sadd.s32 %s902, 1
      %p906 = scmp.eq.s32.totalorder %s107, 1
      %p907 = scmp.ne.s32.totalorder %s902, %s904
      %p908 = scmp.eq.s32.totalorder %s107, 0
      %p909 = por %p907, %p908
      %p910 = scmp.ne.s32.totalorder %s902, %s904
      %p911 = scmp.eq.s32.totalorder %s112, 1
      %p912 = por %p910, %p911
      %p913 = scmp.ne.s32.totalorder %s904, %s905
      %p914 = scmp.eq.s32.totalorder %s112, 0
      %p915 = por %p913, %p914
      %p916 = scmp.ne.s32.totalorder %s904, %s905
      %p917 = scmp.eq.s32.totalorder %s113, 1
      %p918 = por %p916, %p917
      %p920 = scmp.ne.s32.totalorder %s905, %s919
      %p921 = scmp.eq.s32.totalorder %s113, 0
      %p922 = por %p920, %p921
      %s924 = sadd.s32 %s923, 1
      %p927 = scmp.eq.s32.totalorder %s107, 1
      %p928 = scmp.ne.s32.totalorder %s923, %s925
      %p929 = scmp.eq.s32.totalorder %s107, 0
      %p930 = por %p928, %p929
      %p931 = scmp.ne.s32.totalorder %s923, %s925
      %p932 = scmp.eq.s32.totalorder %s112, 1
      %p933 = por %p931, %p932
      %p934 = scmp.ne.s32.totalorder %s925, %s926
      %p935 = scmp.eq.s32.totalorder %s112, 0
      %p936 = por %p934, %p935
      %p937 = scmp.ne.s32.totalorder %s925, %s926
      %p938 = scmp.eq.s32.totalorder %s113, 1
      %p939 = por %p937, %p938
      %p941 = scmp.ne.s32.totalorder %s926, %s940
      %p942 = scmp.eq.s32.totalorder %s113, 0
      %p943 = por %p941, %p942
      %s945 = sadd.s32 %s944, 1
      %p948 = scmp.eq.s32.totalorder %s107, 1
      %p949 = scmp.ne.s32.totalorder %s944, %s946
      %p950 = scmp.eq.s32.totalorder %s107, 0
      %p951 = por %p949, %p950
      %p952 = scmp.ne.s32.totalorder %s944, %s946
      %p953 = scmp.eq.s32.totalorder %s112, 1
      %p954 = por %p952, %p953
      %p955 = scmp.ne.s32.totalorder %s946, %s947
      %p956 = scmp.eq.s32.totalorder %s112, 0
      %p957 = por %p955, %p956
      %p958 = scmp.ne.s32.totalorder %s946, %s947
      %p959 = scmp.eq.s32.totalorder %s113, 1
      %p960 = por %p958, %p959
      %p962 = scmp.ne.s32.totalorder %s947, %s961
      %p963 = scmp.eq.s32.totalorder %s113, 0
      %p964 = por %p962, %p963
      %s966 = sadd.s32 %s965, 1
      %p969 = scmp.eq.s32.totalorder %s107, 1
      %p970 = scmp.ne.s32.totalorder %s965, %s967
      %p971 = scmp.eq.s32.totalorder %s107, 0
      %p972 = por %p970, %p971
      %p973 = scmp.ne.s32.totalorder %s965, %s967
      %p974 = scmp.eq.s32.totalorder %s112, 1
      %p975 = por %p973, %p974
      %p976 = scmp.ne.s32.totalorder %s967, %s968
      %p977 = scmp.eq.s32.totalorder %s112, 0
      %p978 = por %p976, %p977
      %p979 = scmp.ne.s32.totalorder %s967, %s968
      %p980 = scmp.eq.s32.totalorder %s113, 1
      %p981 = por %p979, %p980
      %p983 = scmp.ne.s32.totalorder %s968, %s982
      %p984 = scmp.eq.s32.totalorder %s113, 0
      %p985 = por %p983, %p984
      %s987 = sadd.s32 %s986, 1
      %p990 = scmp.eq.s32.totalorder %s107, 1
      %p991 = scmp.ne.s32.totalorder %s986, %s988
      %p992 = scmp.eq.s32.totalorder %s107, 0
      %p993 = por %p991, %p992
      %p994 = scmp.ne.s32.totalorder %s986, %s988
      %p995 = scmp.eq.s32.totalorder %s112, 1
      %p996 = por %p994, %p995
      %p997 = scmp.ne.s32.totalorder %s988, %s989
      %p998 = scmp.eq.s32.totalorder %s112, 0
      %p999 = por %p997, %p998
      %p1000 = scmp.ne.s32.totalorder %s988, %s989
      %p1001 = scmp.eq.s32.totalorder %s113, 1
      %p1002 = por %p1000, %p1001
      %p1004 = scmp.ne.s32.totalorder %s989, %s1003
      %p1005 = scmp.eq.s32.totalorder %s113, 0
      %p1006 = por %p1004, %p1005
      %s1008 = sadd.s32 %s1007, 1
      %p1011 = scmp.eq.s32.totalorder %s107, 1
      %p1012 = scmp.ne.s32.totalorder %s1007, %s1009
      %p1013 = scmp.eq.s32.totalorder %s107, 0
      %p1014 = por %p1012, %p1013
      %p1015 = scmp.ne.s32.totalorder %s1007, %s1009
      %p1016 = scmp.eq.s32.totalorder %s112, 1
      %p1017 = por %p1015, %p1016
      %p1018 = scmp.ne.s32.totalorder %s1009, %s1010
      %p1019 = scmp.eq.s32.totalorder %s112, 0
      %p1020 = por %p1018, %p1019
      %p1021 = scmp.ne.s32.totalorder %s1009, %s1010
      %p1022 = scmp.eq.s32.totalorder %s113, 1
      %p1023 = por %p1021, %p1022
      %p1025 = scmp.ne.s32.totalorder %s1010, %s1024
      %p1026 = scmp.eq.s32.totalorder %s113, 0
      %p1027 = por %p1025, %p1026
      %s1029 = sadd.s32 %s1028, 1
      %p1032 = scmp.eq.s32.totalorder %s107, 1
      %p1033 = scmp.ne.s32.totalorder %s1028, %s1030
      %p1034 = scmp.eq.s32.totalorder %s107, 0
      %p1035 = por %p1033, %p1034
      %p1036 = scmp.ne.s32.totalorder %s1028, %s1030
      %p1037 = scmp.eq.s32.totalorder %s112, 1
      %p1038 = por %p1036, %p1037
      %p1039 = scmp.ne.s32.totalorder %s1030, %s1031
      %p1040 = scmp.eq.s32.totalorder %s112, 0
      %p1041 = por %p1039, %p1040
      %p1042 = scmp.ne.s32.totalorder %s1030, %s1031
      %p1043 = scmp.eq.s32.totalorder %s113, 1
      %p1044 = por %p1042, %p1043
      %p1046 = scmp.ne.s32.totalorder %s1031, %s1045
      %p1047 = scmp.eq.s32.totalorder %s113, 0
      %p1048 = por %p1046, %p1047
      %s1050 = sadd.s32 %s1049, 1
      %p1053 = scmp.eq.s32.totalorder %s107, 1
      %p1054 = scmp.ne.s32.totalorder %s1049, %s1051
      %p1055 = scmp.eq.s32.totalorder %s107, 0
      %p1056 = por %p1054, %p1055
      %p1057 = scmp.ne.s32.totalorder %s1049, %s1051
      %p1058 = scmp.eq.s32.totalorder %s112, 1
      %p1059 = por %p1057, %p1058
      %p1060 = scmp.ne.s32.totalorder %s1051, %s1052
      %p1061 = scmp.eq.s32.totalorder %s112, 0
      %p1062 = por %p1060, %p1061
      %p1063 = scmp.ne.s32.totalorder %s1051, %s1052
      %p1064 = scmp.eq.s32.totalorder %s113, 1
      %p1065 = por %p1063, %p1064
      %p1067 = scmp.ne.s32.totalorder %s1052, %s1066
      %p1068 = scmp.eq.s32.totalorder %s113, 0
      %p1069 = por %p1067, %p1068
      %s1071 = sadd.s32 %s1070, 1
      %p1074 = scmp.eq.s32.totalorder %s107, 1
      %p1075 = scmp.ne.s32.totalorder %s1070, %s1072
      %p1076 = scmp.eq.s32.totalorder %s107, 0
      %p1077 = por %p1075, %p1076
      %p1078 = scmp.ne.s32.totalorder %s1070, %s1072
      %p1079 = scmp.eq.s32.totalorder %s112, 1
      %p1080 = por %p1078, %p1079
      %p1081 = scmp.ne.s32.totalorder %s1072, %s1073
      %p1082 = scmp.eq.s32.totalorder %s112, 0
      %p1083 = por %p1081, %p1082
      %p1084 = scmp.ne.s32.totalorder %s1072, %s1073
      %p1085 = scmp.eq.s32.totalorder %s113, 1
      %p1086 = por %p1084, %p1085
      %p1088 = scmp.ne.s32.totalorder %s1073, %s1087
      %p1089 = scmp.eq.s32.totalorder %s113, 0
      %p1090 = por %p1088, %p1089
      %s1092 = sadd.s32 %s1091, 1
      %p1095 = scmp.eq.s32.totalorder %s107, 1
      %p1096 = scmp.ne.s32.totalorder %s1091, %s1093
      %p1097 = scmp.eq.s32.totalorder %s107, 0
      %p1098 = por %p1096, %p1097
      %p1099 = scmp.ne.s32.totalorder %s1091, %s1093
      %p1100 = scmp.eq.s32.totalorder %s112, 1
      %p1101 = por %p1099, %p1100
      %p1102 = scmp.ne.s32.totalorder %s1093, %s1094
      %p1103 = scmp.eq.s32.totalorder %s112, 0
      %p1104 = por %p1102, %p1103
      %p1105 = scmp.ne.s32.totalorder %s1093, %s1094
      %p1106 = scmp.eq.s32.totalorder %s113, 1
      %p1107 = por %p1105, %p1106
      %p1109 = scmp.ne.s32.totalorder %s1094, %s1108
      %p1110 = scmp.eq.s32.totalorder %s113, 0
      %p1111 = por %p1109, %p1110
      %s1113 = sadd.s32 %s1112, 1
      %p1116 = scmp.eq.s32.totalorder %s107, 1
      %p1117 = scmp.ne.s32.totalorder %s1112, %s1114
      %p1118 = scmp.eq.s32.totalorder %s107, 0
      %p1119 = por %p1117, %p1118
      %p1120 = scmp.ne.s32.totalorder %s1112, %s1114
      %p1121 = scmp.eq.s32.totalorder %s112, 1
      %p1122 = por %p1120, %p1121
      %p1123 = scmp.ne.s32.totalorder %s1114, %s1115
      %p1124 = scmp.eq.s32.totalorder %s112, 0
      %p1125 = por %p1123, %p1124
      %p1126 = scmp.ne.s32.totalorder %s1114, %s1115
      %p1127 = scmp.eq.s32.totalorder %s113, 1
      %p1128 = por %p1126, %p1127
      %p1130 = scmp.ne.s32.totalorder %s1115, %s1129
      %p1131 = scmp.eq.s32.totalorder %s113, 0
      %p1132 = por %p1130, %p1131
      %s1133 = ssub.s32 %s107, %s114
      %p1134 = scmp.eq.s32.totalorder %s1133, 0
      %s1136 = sadd.s32 %s1135, 1
      %s1137 = scalar_select %p1134, %s1135, %s1136
      %p1140 = pneg %p1134
      %p1141 = scmp.eq.s32.totalorder %s107, 1
      %p1142 = por %p1140, %p1141
      %p1143 = scmp.ne.s32.totalorder %s1135, %s1138
      %p1144 = scmp.eq.s32.totalorder %s107, 0
      %p1145 = por %p1143, %p1144
      %p1146 = scmp.ne.s32.totalorder %s1135, %s1138
      %p1147 = scmp.eq.s32.totalorder %s112, 1
      %p1148 = por %p1146, %p1147
      %p1149 = scmp.ne.s32.totalorder %s1138, %s1139
      %p1150 = scmp.eq.s32.totalorder %s112, 0
      %p1151 = por %p1149, %p1150
      %p1152 = scmp.ne.s32.totalorder %s1138, %s1139
      %p1153 = scmp.eq.s32.totalorder %s113, 1
      %p1154 = por %p1152, %p1153
      %p1156 = scmp.ne.s32.totalorder %s1139, %s1155
      %p1157 = scmp.eq.s32.totalorder %s113, 0
      %p1158 = por %p1156, %p1157
      %p1159 = scmp.le.s32.totalorder 1, %s107
      %p1160 = scmp.lt.s32.totalorder %s107, 3
      %p1161 = pnand %p1159, %p1160
      %p1162 = pneg %p1161
      // Predicated region
      $region9: #{transformer_forward.1} parent=5 // pred_check
        _
      $region10: #{transformer_forward.1} parent=5 // pred_check_branch
        %1164 = sbr.rel (%p1161) target = $region12
      $region11: #{transformer_forward.1} parent=5 // pred_region
        %s1165 = ssub.s32 %s107, 1
        // Predicated region
        $region13: #{transformer_forward.1} parent=11 // pred_check
          %p1166 = pneg %p180
        $region14: #{transformer_forward.1} parent=11 // pred_check_branch
          %1168 = sbr.rel (%p1166) target = $region16
        $region15: #{transformer_forward.1} parent=11 // pred_region
          _
        $region16: #{transformer_forward.1} parent=11 // pred_fallthru
          _
        // Predicated region
        $region17: #{transformer_forward.1} parent=11 // pred_check
          %p1169 = pneg %p201
        $region18: #{transformer_forward.1} parent=11 // pred_check_branch
          %1171 = sbr.rel (%p1169) target = $region20
        $region19: #{transformer_forward.1} parent=11 // pred_region
          _
        $region20: #{transformer_forward.1} parent=11 // pred_fallthru
          _
        // Predicated region
        $region21: #{transformer_forward.1} parent=11 // pred_check
          %p1172 = pneg %p222
        $region22: #{transformer_forward.1} parent=11 // pred_check_branch
          %1174 = sbr.rel (%p1172) target = $region24
        $region23: #{transformer_forward.1} parent=11 // pred_region
          _
        $region24: #{transformer_forward.1} parent=11 // pred_fallthru
          _
        // Predicated region
        $region25: #{transformer_forward.1} parent=11 // pred_check
          %p1175 = pneg %p243
        $region26: #{transformer_forward.1} parent=11 // pred_check_branch
          %1177 = sbr.rel (%p1175) target = $region28
        $region27: #{transformer_forward.1} parent=11 // pred_region
          _
        $region28: #{transformer_forward.1} parent=11 // pred_fallthru
          _
        // Predicated region
        $region29: #{transformer_forward.1} parent=11 // pred_check
          %p1178 = pneg %p264
        $region30: #{transformer_forward.1} parent=11 // pred_check_branch
          %1180 = sbr.rel (%p1178) target = $region32
        $region31: #{transformer_forward.1} parent=11 // pred_region
          _
        $region32: #{transformer_forward.1} parent=11 // pred_fallthru
          _
        // Predicated region
        $region33: #{transformer_forward.1} parent=11 // pred_check
          %p1181 = pneg %p285
        $region34: #{transformer_forward.1} parent=11 // pred_check_branch
          %1183 = sbr.rel (%p1181) target = $region36
        $region35: #{transformer_forward.1} parent=11 // pred_region
          _
        $region36: #{transformer_forward.1} parent=11 // pred_fallthru
          _
        // Predicated region
        $region37: #{transformer_forward.1} parent=11 // pred_check
          %p1184 = pneg %p306
        $region38: #{transformer_forward.1} parent=11 // pred_check_branch
          %1186 = sbr.rel (%p1184) target = $region40
        $region39: #{transformer_forward.1} parent=11 // pred_region
          _
        $region40: #{transformer_forward.1} parent=11 // pred_fallthru
          _
        // Predicated region
        $region41: #{transformer_forward.1} parent=11 // pred_check
          %p1187 = pneg %p327
        $region42: #{transformer_forward.1} parent=11 // pred_check_branch
          %1189 = sbr.rel (%p1187) target = $region44
        $region43: #{transformer_forward.1} parent=11 // pred_region
          _
        $region44: #{transformer_forward.1} parent=11 // pred_fallthru
          _
        // Predicated region
        $region45: #{transformer_forward.1} parent=11 // pred_check
          %p1190 = pneg %p348
        $region46: #{transformer_forward.1} parent=11 // pred_check_branch
          %1192 = sbr.rel (%p1190) target = $region48
        $region47: #{transformer_forward.1} parent=11 // pred_region
          _
        $region48: #{transformer_forward.1} parent=11 // pred_fallthru
          _
        // Predicated region
        $region49: #{transformer_forward.1} parent=11 // pred_check
          %p1193 = pneg %p369
        $region50: #{transformer_forward.1} parent=11 // pred_check_branch
          %1195 = sbr.rel (%p1193) target = $region52
        $region51: #{transformer_forward.1} parent=11 // pred_region
          _
        $region52: #{transformer_forward.1} parent=11 // pred_fallthru
          _
        // Predicated region
        $region53: #{transformer_forward.1} parent=11 // pred_check
          %p1196 = pneg %p390
        $region54: #{transformer_forward.1} parent=11 // pred_check_branch
          %1198 = sbr.rel (%p1196) target = $region56
        $region55: #{transformer_forward.1} parent=11 // pred_region
          _
        $region56: #{transformer_forward.1} parent=11 // pred_fallthru
          _
        // Predicated region
        $region57: #{transformer_forward.1} parent=11 // pred_check
          %p1199 = pneg %p411
        $region58: #{transformer_forward.1} parent=11 // pred_check_branch
          %1201 = sbr.rel (%p1199) target = $region60
        $region59: #{transformer_forward.1} parent=11 // pred_region
          _
        $region60: #{transformer_forward.1} parent=11 // pred_fallthru
          _
        // Predicated region
        $region61: #{transformer_forward.1} parent=11 // pred_check
          %p1202 = pneg %p432
        $region62: #{transformer_forward.1} parent=11 // pred_check_branch
          %1204 = sbr.rel (%p1202) target = $region64
        $region63: #{transformer_forward.1} parent=11 // pred_region
          _
        $region64: #{transformer_forward.1} parent=11 // pred_fallthru
          _
        // Predicated region
        $region65: #{transformer_forward.1} parent=11 // pred_check
          %p1205 = pneg %p453
        $region66: #{transformer_forward.1} parent=11 // pred_check_branch
          %1207 = sbr.rel (%p1205) target = $region68
        $region67: #{transformer_forward.1} parent=11 // pred_region
          _
        $region68: #{transformer_forward.1} parent=11 // pred_fallthru
          _
        // Predicated region
        $region69: #{transformer_forward.1} parent=11 // pred_check
          %p1208 = pneg %p474
        $region70: #{transformer_forward.1} parent=11 // pred_check_branch
          %1210 = sbr.rel (%p1208) target = $region72
        $region71: #{transformer_forward.1} parent=11 // pred_region
          _
        $region72: #{transformer_forward.1} parent=11 // pred_fallthru
          _
        // Predicated region
        $region73: #{transformer_forward.1} parent=11 // pred_check
          %p1211 = pneg %p495
        $region74: #{transformer_forward.1} parent=11 // pred_check_branch
          %1213 = sbr.rel (%p1211) target = $region76
        $region75: #{transformer_forward.1} parent=11 // pred_region
          _
        $region76: #{transformer_forward.1} parent=11 // pred_fallthru
          _
        // Predicated region
        $region77: #{transformer_forward.1} parent=11 // pred_check
          %p1214 = pneg %p516
        $region78: #{transformer_forward.1} parent=11 // pred_check_branch
          %1216 = sbr.rel (%p1214) target = $region80
        $region79: #{transformer_forward.1} parent=11 // pred_region
          _
        $region80: #{transformer_forward.1} parent=11 // pred_fallthru
          _
        // Predicated region
        $region81: #{transformer_forward.1} parent=11 // pred_check
          %p1217 = pneg %p537
        $region82: #{transformer_forward.1} parent=11 // pred_check_branch
          %1219 = sbr.rel (%p1217) target = $region84
        $region83: #{transformer_forward.1} parent=11 // pred_region
          _
        $region84: #{transformer_forward.1} parent=11 // pred_fallthru
          _
        // Predicated region
        $region85: #{transformer_forward.1} parent=11 // pred_check
          %p1220 = pneg %p558
        $region86: #{transformer_forward.1} parent=11 // pred_check_branch
          %1222 = sbr.rel (%p1220) target = $region88
        $region87: #{transformer_forward.1} parent=11 // pred_region
          _
        $region88: #{transformer_forward.1} parent=11 // pred_fallthru
          _
        // Predicated region
        $region89: #{transformer_forward.1} parent=11 // pred_check
          %p1223 = pneg %p579
        $region90: #{transformer_forward.1} parent=11 // pred_check_branch
          %1225 = sbr.rel (%p1223) target = $region92
        $region91: #{transformer_forward.1} parent=11 // pred_region
          _
        $region92: #{transformer_forward.1} parent=11 // pred_fallthru
          _
        // Predicated region
        $region93: #{transformer_forward.1} parent=11 // pred_check
          %p1226 = pneg %p600
        $region94: #{transformer_forward.1} parent=11 // pred_check_branch
          %1228 = sbr.rel (%p1226) target = $region96
        $region95: #{transformer_forward.1} parent=11 // pred_region
          _
        $region96: #{transformer_forward.1} parent=11 // pred_fallthru
          _
        // Predicated region
        $region97: #{transformer_forward.1} parent=11 // pred_check
          %p1229 = pneg %p621
        $region98: #{transformer_forward.1} parent=11 // pred_check_branch
          %1231 = sbr.rel (%p1229) target = $region100
        $region99: #{transformer_forward.1} parent=11 // pred_region
          _
        $region100: #{transformer_forward.1} parent=11 // pred_fallthru
          _
        // Predicated region
        $region101: #{transformer_forward.1} parent=11 // pred_check
          %p1232 = pneg %p642
        $region102: #{transformer_forward.1} parent=11 // pred_check_branch
          %1234 = sbr.rel (%p1232) target = $region104
        $region103: #{transformer_forward.1} parent=11 // pred_region
          _
        $region104: #{transformer_forward.1} parent=11 // pred_fallthru
          _
        // Predicated region
        $region105: #{transformer_forward.1} parent=11 // pred_check
          %p1235 = pneg %p663
        $region106: #{transformer_forward.1} parent=11 // pred_check_branch
          %1237 = sbr.rel (%p1235) target = $region108
        $region107: #{transformer_forward.1} parent=11 // pred_region
          _
        $region108: #{transformer_forward.1} parent=11 // pred_fallthru
          _
        // Predicated region
        $region109: #{transformer_forward.1} parent=11 // pred_check
          %p1238 = pneg %p684
        $region110: #{transformer_forward.1} parent=11 // pred_check_branch
          %1240 = sbr.rel (%p1238) target = $region112
        $region111: #{transformer_forward.1} parent=11 // pred_region
          _
        $region112: #{transformer_forward.1} parent=11 // pred_fallthru
          _
        // Predicated region
        $region113: #{transformer_forward.1} parent=11 // pred_check
          %p1241 = pneg %p705
        $region114: #{transformer_forward.1} parent=11 // pred_check_branch
          %1243 = sbr.rel (%p1241) target = $region116
        $region115: #{transformer_forward.1} parent=11 // pred_region
          _
        $region116: #{transformer_forward.1} parent=11 // pred_fallthru
          _
        // Predicated region
        $region117: #{transformer_forward.1} parent=11 // pred_check
          %p1244 = pneg %p726
        $region118: #{transformer_forward.1} parent=11 // pred_check_branch
          %1246 = sbr.rel (%p1244) target = $region120
        $region119: #{transformer_forward.1} parent=11 // pred_region
          _
        $region120: #{transformer_forward.1} parent=11 // pred_fallthru
          _
        // Predicated region
        $region121: #{transformer_forward.1} parent=11 // pred_check
          %p1247 = pneg %p747
        $region122: #{transformer_forward.1} parent=11 // pred_check_branch
          %1249 = sbr.rel (%p1247) target = $region124
        $region123: #{transformer_forward.1} parent=11 // pred_region
          _
        $region124: #{transformer_forward.1} parent=11 // pred_fallthru
          _
        // Predicated region
        $region125: #{transformer_forward.1} parent=11 // pred_check
          %p1250 = pneg %p768
        $region126: #{transformer_forward.1} parent=11 // pred_check_branch
          %1252 = sbr.rel (%p1250) target = $region128
        $region127: #{transformer_forward.1} parent=11 // pred_region
          %1254 = vsyncadd [#allocation4], 0
          %s1255 = sshll.u32 %s61, 4
          %s1256 = int_to_ptr.hbm [resolvable:$true] %s1255
          %s1257 = sshll.u32 [#allocation3], 4
          %s1258 = int_to_ptr.vmem [resolvable:$true] %s1257
          %1263 = dma.hbm_to_vmem [thread:$0]  %s1256, 1024, %s1258, [#allocation4], 128, 128, 8
        $region128: #{transformer_forward.1} parent=11 // pred_fallthru
          _
        // Predicated region
        $region129: #{transformer_forward.1} parent=11 // pred_check
          %p1264 = pneg %p789
        $region130: #{transformer_forward.1} parent=11 // pred_check_branch
          %1266 = sbr.rel (%p1264) target = $region132
        $region131: #{transformer_forward.1} parent=11 // pred_region
          _
        $region132: #{transformer_forward.1} parent=11 // pred_fallthru
          _
        // Predicated region
        $region133: #{transformer_forward.1} parent=11 // pred_check
          %p1267 = pneg %p810
        $region134: #{transformer_forward.1} parent=11 // pred_check_branch
          %1269 = sbr.rel (%p1267) target = $region136
        $region135: #{transformer_forward.1} parent=11 // pred_region
          %1271 = vsyncadd [#allocation6], 0
          %s1272 = sshll.u32 %s65, 4
          %s1273 = int_to_ptr.hbm [resolvable:$true] %s1272
          %s1274 = sshll.u32 [#allocation5], 4
          %s1275 = int_to_ptr.vmem [resolvable:$true] %s1274
          %1280 = dma.hbm_to_vmem [thread:$0]  %s1273, 1024, %s1275, [#allocation6], 128, 128, 8
        $region136: #{transformer_forward.1} parent=11 // pred_fallthru
          _
        // Predicated region
        $region137: #{transformer_forward.1} parent=11 // pred_check
          %p1281 = pneg %p831
        $region138: #{transformer_forward.1} parent=11 // pred_check_branch
          %1283 = sbr.rel (%p1281) target = $region140
        $region139: #{transformer_forward.1} parent=11 // pred_region
          _
        $region140: #{transformer_forward.1} parent=11 // pred_fallthru
          _
        // Predicated region
        $region141: #{transformer_forward.1} parent=11 // pred_check
          %p1284 = pneg %p852
        $region142: #{transformer_forward.1} parent=11 // pred_check_branch
          %1286 = sbr.rel (%p1284) target = $region144
        $region143: #{transformer_forward.1} parent=11 // pred_region
          %1288 = vsyncadd [#allocation6], 0
          %s1289 = sshll.u32 %s69, 4
          %s1290 = int_to_ptr.hbm [resolvable:$true] %s1289
          %s1291 = sshll.u32 [#allocation7], 4
          %s1292 = int_to_ptr.vmem [resolvable:$true] %s1291
          %1297 = dma.hbm_to_vmem [thread:$0]  %s1290, 1024, %s1292, [#allocation6], 128, 128, 8
        $region144: #{transformer_forward.1} parent=11 // pred_fallthru
          _
        // Predicated region
        $region145: #{transformer_forward.1} parent=11 // pred_check
          %p1298 = pneg %p873
        $region146: #{transformer_forward.1} parent=11 // pred_check_branch
          %1300 = sbr.rel (%p1298) target = $region148
        $region147: #{transformer_forward.1} parent=11 // pred_region
          _
        $region148: #{transformer_forward.1} parent=11 // pred_fallthru
          _
        // Predicated region
        $region149: #{transformer_forward.1} parent=11 // pred_check
          %p1301 = pneg %p894
        $region150: #{transformer_forward.1} parent=11 // pred_check_branch
          %1303 = sbr.rel (%p1301) target = $region152
        $region151: #{transformer_forward.1} parent=11 // pred_region
          _
        $region152: #{transformer_forward.1} parent=11 // pred_fallthru
          _
        // Predicated region
        $region153: #{transformer_forward.1} parent=11 // pred_check
          %p1304 = pneg %p915
        $region154: #{transformer_forward.1} parent=11 // pred_check_branch
          %1306 = sbr.rel (%p1304) target = $region156
        $region155: #{transformer_forward.1} parent=11 // pred_region
          _
        $region156: #{transformer_forward.1} parent=11 // pred_fallthru
          _
        // Predicated region
        $region157: #{transformer_forward.1} parent=11 // pred_check
          %p1307 = pneg %p936
        $region158: #{transformer_forward.1} parent=11 // pred_check_branch
          %1309 = sbr.rel (%p1307) target = $region160
        $region159: #{transformer_forward.1} parent=11 // pred_region
          %1311 = vsyncadd [#allocation9], 0
          %s1312 = sshll.u32 %s77, 4
          %s1313 = int_to_ptr.hbm [resolvable:$true] %s1312
          %s1314 = sshll.u32 [#allocation8], 4
          %s1315 = int_to_ptr.vmem [resolvable:$true] %s1314
          %1320 = dma.hbm_to_vmem [thread:$0]  %s1313, 1024, %s1315, [#allocation9], 128, 128, 8
        $region160: #{transformer_forward.1} parent=11 // pred_fallthru
          _
        // Predicated region
        $region161: #{transformer_forward.1} parent=11 // pred_check
          %p1321 = pneg %p957
        $region162: #{transformer_forward.1} parent=11 // pred_check_branch
          %1323 = sbr.rel (%p1321) target = $region164
        $region163: #{transformer_forward.1} parent=11 // pred_region
          _
        $region164: #{transformer_forward.1} parent=11 // pred_fallthru
          _
        // Predicated region
        $region165: #{transformer_forward.1} parent=11 // pred_check
          %p1324 = pneg %p978
        $region166: #{transformer_forward.1} parent=11 // pred_check_branch
          %1326 = sbr.rel (%p1324) target = $region168
        $region167: #{transformer_forward.1} parent=11 // pred_region
          _
        $region168: #{transformer_forward.1} parent=11 // pred_fallthru
          _
        // Predicated region
        $region169: #{transformer_forward.1} parent=11 // pred_check
          %p1327 = pneg %p999
        $region170: #{transformer_forward.1} parent=11 // pred_check_branch
          %1329 = sbr.rel (%p1327) target = $region172
        $region171: #{transformer_forward.1} parent=11 // pred_region
          _
        $region172: #{transformer_forward.1} parent=11 // pred_fallthru
          _
        // Predicated region
        $region173: #{transformer_forward.1} parent=11 // pred_check
          %p1330 = pneg %p1020
        $region174: #{transformer_forward.1} parent=11 // pred_check_branch
          %1332 = sbr.rel (%p1330) target = $region176
        $region175: #{transformer_forward.1} parent=11 // pred_region
          _
        $region176: #{transformer_forward.1} parent=11 // pred_fallthru
          _
        // Predicated region
        $region177: #{transformer_forward.1} parent=11 // pred_check
          %p1333 = pneg %p1041
        $region178: #{transformer_forward.1} parent=11 // pred_check_branch
          %1335 = sbr.rel (%p1333) target = $region180
        $region179: #{transformer_forward.1} parent=11 // pred_region
          _
        $region180: #{transformer_forward.1} parent=11 // pred_fallthru
          _
        // Predicated region
        $region181: #{transformer_forward.1} parent=11 // pred_check
          %p1336 = pneg %p1062
        $region182: #{transformer_forward.1} parent=11 // pred_check_branch
          %1338 = sbr.rel (%p1336) target = $region184
        $region183: #{transformer_forward.1} parent=11 // pred_region
          %1340 = vsyncadd [#allocation9], 0
          %s1342 = sshll.u32 %s89, 4
          %s1343 = int_to_ptr.hbm [resolvable:$true] %s1342
          %s1344 = sshll.u32 [#allocation10], 4
          %s1345 = int_to_ptr.vmem [resolvable:$true] %s1344
          %1347 = dma.hbm_to_vmem [thread:$0]  %s1343, 16, %s1345, [#allocation9]
        $region184: #{transformer_forward.1} parent=11 // pred_fallthru
          _
        // Predicated region
        $region185: #{transformer_forward.1} parent=11 // pred_check
          %p1348 = pneg %p1083
        $region186: #{transformer_forward.1} parent=11 // pred_check_branch
          %1350 = sbr.rel (%p1348) target = $region188
        $region187: #{transformer_forward.1} parent=11 // pred_region
          %1352 = vsyncadd [#allocation12], 0
          %s1354 = sshll.u32 %s91, 4
          %s1355 = int_to_ptr.hbm [resolvable:$true] %s1354
          %s1356 = sshll.u32 [#allocation11], 4
          %s1357 = int_to_ptr.vmem [resolvable:$true] %s1356
          %1359 = dma.hbm_to_vmem [thread:$0]  %s1355, 16, %s1357, [#allocation12]
        $region188: #{transformer_forward.1} parent=11 // pred_fallthru
          _
        // Predicated region
        $region189: #{transformer_forward.1} parent=11 // pred_check
          %p1360 = pneg %p1104
        $region190: #{transformer_forward.1} parent=11 // pred_check_branch
          %1362 = sbr.rel (%p1360) target = $region192
        $region191: #{transformer_forward.1} parent=11 // pred_region
          _
        $region192: #{transformer_forward.1} parent=11 // pred_fallthru
          _
        // Predicated region
        $region193: #{transformer_forward.1} parent=11 // pred_check
          %p1363 = pneg %p1125
        $region194: #{transformer_forward.1} parent=11 // pred_check_branch
          %1365 = sbr.rel (%p1363) target = $region196
        $region195: #{transformer_forward.1} parent=11 // pred_region
          %1367 = vsyncadd [#allocation12], 0
          %s1369 = sshll.u32 %s95, 4
          %s1370 = int_to_ptr.hbm [resolvable:$true] %s1369
          %s1371 = sshll.u32 [#allocation13], 4
          %s1372 = int_to_ptr.vmem [resolvable:$true] %s1371
          %1374 = dma.hbm_to_vmem [thread:$0]  %s1370, 16, %s1372, [#allocation12]
        $region196: #{transformer_forward.1} parent=11 // pred_fallthru
          _
      $region12: #{transformer_forward.1} parent=5 // pred_fallthru
        _
      %p1375 = scmp.lt.s32.totalorder %s107, 2
      // Predicated region
      $region197: #{transformer_forward.1} parent=5 // pred_check
        %p1376 = pneg %p1375
      $region198: #{transformer_forward.1} parent=5 // pred_check_branch
        %1378 = sbr.rel (%p1376) target = $region200
      $region199: #{transformer_forward.1} parent=5 // pred_region
        // Predicated region
        $region201: #{transformer_forward.1} parent=199 // pred_check
          %p1379 = pneg %p127
        $region202: #{transformer_forward.1} parent=199 // pred_check_branch
          %1381 = sbr.rel (%p1379) target = $region204
        $region203: #{transformer_forward.1} parent=199 // pred_region
          %p1382 = scmp.lt.s32.totalorder %s107, 1
          %s1383 = scalar_select %p1382, %s107, 1
          %s1384 = smul.addr %s1383, 8
          %s1385 = scalar_lea.vmem %s1, %s1384
        $region204: #{transformer_forward.1} parent=199 // pred_fallthru
          _
        // Predicated region
        $region205: #{transformer_forward.1} parent=199 // pred_check
          %p1386 = pneg %p153
        $region206: #{transformer_forward.1} parent=199 // pred_check_branch
          %1388 = sbr.rel (%p1386) target = $region208
        $region207: #{transformer_forward.1} parent=199 // pred_region
          %p1389 = scmp.lt.s32.totalorder %s107, 1
          %s1390 = scalar_select %p1389, %s107, 1
          %s1391 = smul.addr %s1390, 8
          %s1392 = scalar_lea.vmem %s3, %s1391
        $region208: #{transformer_forward.1} parent=199 // pred_fallthru
          _
      $region200: #{transformer_forward.1} parent=5 // pred_fallthru
        _
      %p1393 = scmp.le.s32.totalorder 1, %s107
      %p1394 = scmp.lt.s32.totalorder %s107, 3
      %p1395 = pnand %p1393, %p1394
      %p1396 = pneg %p1395
      // Predicated region
      $region209: #{transformer_forward.1} parent=5 // pred_check
        _
      $region210: #{transformer_forward.1} parent=5 // pred_check_branch
        %1398 = sbr.rel (%p1395) target = $region212
      $region211: #{transformer_forward.1} parent=5 // pred_region
        %s1399 = ssub.s32 %s107, 1
        // Predicated region
        $region213: #{transformer_forward.1} parent=211 // pred_check
          %p1400 = pneg %p768
        $region214: #{transformer_forward.1} parent=211 // pred_check_branch
          %1402 = sbr.rel (%p1400) target = $region216
        $region215: #{transformer_forward.1} parent=211 // pred_region
          %1404 = dma.done [#allocation4], 1024
        $region216: #{transformer_forward.1} parent=211 // pred_fallthru
          _
        // Predicated region
        $region217: #{transformer_forward.1} parent=211 // pred_check
          %p1405 = pneg %p810
        $region218: #{transformer_forward.1} parent=211 // pred_check_branch
          %1407 = sbr.rel (%p1405) target = $region220
        $region219: #{transformer_forward.1} parent=211 // pred_region
          %1409 = dma.done [#allocation6], 1024
        $region220: #{transformer_forward.1} parent=211 // pred_fallthru
          _
        // Predicated region
        $region221: #{transformer_forward.1} parent=211 // pred_check
          %p1410 = pneg %p852
        $region222: #{transformer_forward.1} parent=211 // pred_check_branch
          %1412 = sbr.rel (%p1410) target = $region224
        $region223: #{transformer_forward.1} parent=211 // pred_region
          %1414 = dma.done [#allocation6], 1024
        $region224: #{transformer_forward.1} parent=211 // pred_fallthru
          _
        // Predicated region
        $region225: #{transformer_forward.1} parent=211 // pred_check
          %p1415 = pneg %p936
        $region226: #{transformer_forward.1} parent=211 // pred_check_branch
          %1417 = sbr.rel (%p1415) target = $region228
        $region227: #{transformer_forward.1} parent=211 // pred_region
          %1419 = dma.done [#allocation9], 1024
        $region228: #{transformer_forward.1} parent=211 // pred_fallthru
          _
        // Predicated region
        $region229: #{transformer_forward.1} parent=211 // pred_check
          %p1420 = pneg %p1062
        $region230: #{transformer_forward.1} parent=211 // pred_check_branch
          %1422 = sbr.rel (%p1420) target = $region232
        $region231: #{transformer_forward.1} parent=211 // pred_region
          %1424 = dma.done [#allocation9], 16
        $region232: #{transformer_forward.1} parent=211 // pred_fallthru
          _
        // Predicated region
        $region233: #{transformer_forward.1} parent=211 // pred_check
          %p1425 = pneg %p1083
        $region234: #{transformer_forward.1} parent=211 // pred_check_branch
          %1427 = sbr.rel (%p1425) target = $region236
        $region235: #{transformer_forward.1} parent=211 // pred_region
          %1429 = dma.done [#allocation12], 16
        $region236: #{transformer_forward.1} parent=211 // pred_fallthru
          _
        // Predicated region
        $region237: #{transformer_forward.1} parent=211 // pred_check
          %p1430 = pneg %p1125
        $region238: #{transformer_forward.1} parent=211 // pred_check_branch
          %1432 = sbr.rel (%p1430) target = $region240
        $region239: #{transformer_forward.1} parent=211 // pred_region
          %1434 = dma.done [#allocation12], 16
        $region240: #{transformer_forward.1} parent=211 // pred_fallthru
          _
        %p1435 = scmp.lt.s32.totalorder %s112, 1
        %s1436 = scalar_select %p1435, %s112, 1
        %s1437 = smul.addr %s1436, 8
        %s1438 = scalar_lea.vmem %s1, %s1437
        %p1439 = pneg %p133
        %p1440 = pneg %p130
        %p1441 = scmp.lt.s32.totalorder %s112, 1
        %s1442 = scalar_select %p1441, %s112, 1
        %s1443 = smul.addr %s1442, 8
        %s1444 = scalar_lea.vmem %s3, %s1443
        %p1445 = pneg %p159
        %p1446 = pneg %p156
        %p1447 = pneg %p180
        %p1448 = pneg %p177
        %p1449 = pneg %p201
        %p1450 = pneg %p198
        %p1451 = pneg %p222
        %p1452 = pneg %p219
        %p1453 = pneg %p243
        %p1454 = pneg %p240
        %p1455 = pneg %p264
        %p1456 = pneg %p261
        %p1457 = pneg %p285
        %p1458 = pneg %p282
        %p1459 = pneg %p306
        %p1460 = pneg %p303
        %p1461 = pneg %p327
        %p1462 = pneg %p324
        %p1463 = pneg %p348
        %p1464 = pneg %p345
        %p1465 = pneg %p369
        %p1466 = pneg %p366
        %p1467 = pneg %p390
        %p1468 = pneg %p387
        %p1469 = pneg %p411
        %p1470 = pneg %p408
        %p1471 = pneg %p432
        %p1472 = pneg %p429
        %p1473 = pneg %p453
        %p1474 = pneg %p450
        %p1475 = pneg %p474
        %p1476 = pneg %p471
        %p1477 = pneg %p495
        %p1478 = pneg %p492
        %p1479 = pneg %p516
        %p1480 = pneg %p513
        %p1481 = pneg %p537
        %p1482 = pneg %p534
        %p1483 = pneg %p558
        %p1484 = pneg %p555
        %p1485 = pneg %p579
        %p1486 = pneg %p576
        %p1487 = pneg %p600
        %p1488 = pneg %p597
        %p1489 = pneg %p621
        %p1490 = pneg %p618
        %p1491 = pneg %p642
        %p1492 = pneg %p639
        %p1493 = pneg %p663
        %p1494 = pneg %p660
        %p1495 = pneg %p684
        %p1496 = pneg %p681
        %p1497 = pneg %p705
        %p1498 = pneg %p702
        %p1499 = pneg %p726
        %p1500 = pneg %p723
        %p1501 = pneg %p747
        %p1502 = pneg %p744
        %p1503 = pneg %p768
        %p1504 = pneg %p765
        %p1505 = pneg %p789
        %p1506 = pneg %p786
        %p1507 = pneg %p810
        %p1508 = pneg %p807
        %p1509 = pneg %p831
        %p1510 = pneg %p828
        %p1511 = pneg %p852
        %p1512 = pneg %p849
        %p1513 = pneg %p873
        %p1514 = pneg %p870
        %p1515 = pneg %p894
        %p1516 = pneg %p891
        %p1517 = pneg %p915
        %p1518 = pneg %p912
        %p1519 = pneg %p936
        %p1520 = pneg %p933
        %p1521 = pneg %p957
        %p1522 = pneg %p954
        %p1523 = pneg %p978
        %p1524 = pneg %p975
        %p1525 = pneg %p999
        %p1526 = pneg %p996
        %p1527 = pneg %p1020
        %p1528 = pneg %p1017
        %p1529 = pneg %p1041
        %p1530 = pneg %p1038
        %p1531 = pneg %p1062
        %p1532 = pneg %p1059
        %p1533 = pneg %p1083
        %p1534 = pneg %p1080
        %p1535 = pneg %p1104
        %p1536 = pneg %p1101
        %p1537 = pneg %p1125
        %p1538 = pneg %p1122
        %p1539 = pneg %p1151
        %p1540 = pneg %p1148
        %p1541 = scmp.lt.s32.totalorder %s112, 1
        %s1542 = scalar_select %p1541, %s112, 1
        %s1543 = smul.addr %s1542, 8
        %s1544 = scalar_lea.vmem %s97, %s1543
        %p1545 = scmp.lt.s32.totalorder %s112, 1
        %s1546 = scalar_select %p1545, %s112, 1
        %s1547 = smul.addr %s1546, 8
        %s1548 = scalar_lea.vmem %s1, %s1547
        %p1549 = scmp.lt.s32.totalorder %s112, 1
        %s1550 = scalar_select %p1549, %s112, 1
        %s1551 = smul.addr %s1550, 8
        %s1552 = scalar_lea.vmem %s3, %s1551
        %p1553 = scmp.lt.s32.totalorder %s112, 1
        %s1554 = scalar_select %p1553, %s112, 1
        %s1555 = smul.addr %s1554, 8
        %s1556 = scalar_lea.vmem %s97, %s1555
        %v1557 = vld [vmem:[%s1548] sm:$0xff]
        %v1558 = vld [vmem:[%s9] sm:$0xf]
        %v1559 = vld [vmem:[%s11] sm:$0x1]
        %v1561 = vperm.slane %v1559, 0
        %vm1563 = vcmask 31744
        %v1565 = vsel %vm1563, %v1557, 0
        %vm1567 = vcmask 1043456
        %v1569 = vsel %vm1567, %v1558, 0
        %1571 = vmatpush.msra.mxu0 0.0
        %1572 = vmatpush.msra.mxu0 0.0
        %1573 = vmatpush.msra.mxu0 0.0
        %1574 = vmatpush.msra.mxu0 0.0
        %1575 = vmatpush.msra.mxu0 0.0
        %1576 = vmatpush.msra.mxu0 0.0
        %1577 = vmatpush.msra.mxu0 0.0
        %1578 = vmatpush.msra.mxu0 0.0
        %1579 = vmatpush.msra.mxu0 0.0
        %1580 = vmatpush.msra.mxu0 0.0
        %1581 = vmatpush.msra.mxu0 0.0
        %1582 = vmatpush.msra.mxu0 0.0
        %1583 = vmatpush.msra.mxu0 0.0
        %1584 = vmatpush.msra.mxu0 0.0
        %1585 = vmatpush.msra.mxu0 0.0
        %1586 = vmatpush.msra.mxu0 %v1569
        %1587 = vmatmul.f32.gmra.mxu0 %v1565
        %v1588 = vpop.f32.mrf.mxu0
        %v1589 = vadd.f32 %v1561, %v1588
        %1590 = vdwg.mxu0
        %v1591 = vld [vmem:[%s17] sm:$0xff]
        %v1592 = vadd.f32 %v1589, %v1591
        %v1593 = vld [vmem:[%s5] sm:$0xff]
        %v1594 = vld [vmem:[%s21] sm:$0xff]
        %v1595 = vld [vmem:[%s21 + $0x8] sm:$0xff]
        %v1596 = vld [vmem:[%s21 + $0x10] sm:$0xff]
        %v1597 = vld [vmem:[%s21 + $0x18] sm:$0xff]
        %v1598 = vld [vmem:[%s23] sm:$0x1]
        %v1600 = vperm.slane %v1598, 0
        %vm1602 = vcmask 261120
        %v1604 = vsel %vm1602, %v1592, 0
        %1606 = vmatpush.msra.mxu0 0.0
        %1607 = vmatpush.msra.mxu0 0.0
        %1608 = vmatpush.msra.mxu0 0.0
        %1609 = vmatpush.msra.mxu0 0.0
        %1610 = vmatpush.msra.mxu0 0.0
        %1611 = vmatpush.msra.mxu0 0.0
        %1612 = vmatpush.msra.mxu0 0.0
        %1613 = vmatpush.msra.mxu0 0.0
        %1614 = vmatpush.msra.mxu0 0.0
        %1615 = vmatpush.msra.mxu0 0.0
        %1616 = vmatpush.msra.mxu0 0.0
        %1617 = vmatpush.msra.mxu0 0.0
        %1618 = vmatpush.msra.mxu0 %v1597
        %1619 = vmatpush.msra.mxu0 %v1596
        %1620 = vmatpush.msra.mxu0 %v1595
        %1621 = vmatpush.msra.mxu0 %v1594
        %1622 = vmatmul.f32.gmra.mxu0 %v1604
        %v1623 = vpop.f32.mrf.mxu0
        %v1624 = vadd.f32 %v1600, %v1623
        %1625 = vdwg.mxu0
        %v1626 = vld [vmem:[%s25] sm:$0xff]
        %v1627 = vld [vmem:[%s25 + $0x8] sm:$0xff]
        %v1628 = vld [vmem:[%s25 + $0x10] sm:$0xff]
        %v1629 = vld [vmem:[%s25 + $0x18] sm:$0xff]
        %v1630 = vld [vmem:[%s27] sm:$0x1]
        %v1631 = vmul.f32 %v1624, 0.5
        %1633 = vrot.lane.b32.xlu0 %v1624, 96
        %v1634 = vpop.permute.xlu0 %1633
        %v1636 = vsel %vm1563, %v1631, 0
        %v1638 = vsel %vm1563, %v1634, 0
        %1640 = vmatpush.xpose.msra.mxu0 0.0
        %1641 = vmatpush.xpose.msra.mxu0 0.0
        %1642 = vmatpush.xpose.msra.mxu0 0.0
        %1643 = vmatpush.xpose.msra.mxu0 0.0
        %1644 = vmatpush.xpose.msra.mxu0 0.0
        %1645 = vmatpush.xpose.msra.mxu0 0.0
        %1646 = vmatpush.xpose.msra.mxu0 0.0
        %1647 = vmatpush.xpose.msra.mxu0 0.0
        %1648 = vmatpush.xpose.msra.mxu0 0.0
        %1649 = vmatpush.xpose.msra.mxu0 0.0
        %1650 = vmatpush.xpose.msra.mxu0 0.0
        %1651 = vmatpush.xpose.msra.mxu0 0.0
        %1652 = vmatpush.xpose.msra.mxu0 0.0
        %1653 = vmatpush.xpose.msra.mxu0 0.0
        %1654 = vmatpush.xpose.msra.mxu0 0.0
        %1655 = vmatpush.xpose.msra.mxu0 %v1638
        %1656 = vmatmul.f32.gmra.mxu0 %v1636
        %v1657 = vpop.f32.mrf.mxu0
        %v1658 = vadd.f32 %v1593, %v1657
        %1659 = vdwg.mxu0
        %vm1660 = vcmask 64512
        %v1661 = vsel %vm1660, %v1658, -inf
        %1662 = vmax.xlane.f32.xlu0 %v1661
        %v1663 = vpop.xlane.xlu0 %1662
        %v1664 = vsub.f32 %v1658, %v1663
        %v1665 = vmul.f32 %v1664, 1.442695
        %v1666 = vpow.pop %v1665
        %v1667 = vsel %vm1660, %v1666, 0.0
        %1668 = vadd.xlane.f32.xlu0 %v1667
        %v1669 = vpop.xlane.xlu0 %1668
        %v1670 = vrcp.pop %v1669
        %v1671 = vmul.f32 %v1669, %v1670
        %v1672 = vsub.f32 1.0, %v1671
        %v1673 = vmul.f32 %v1670, %v1672
        %v1674 = vadd.f32 %v1670, %v1673
        %vm1675 = vweird.f32 %v1669
        %vm1676 = vweird.f32 %v1670
        %vm1677 = vmor %vm1675, %vm1676
        %v1678 = vsel %vm1677, %v1670, %v1674
        %v1679 = vand.u32 2147483647, %v1669
        %vm1680 = vcmp.eq.f32.partialorder %v1679, 8.507059e+37
        %v1681 = vand.u32 %v1669, 2147483648
        %v1682 = vor.u32 1.1754944e-38, %v1681
        %v1683 = vsel %vm1680, %v1682, %v1678
        %v1684 = vmul.f32 %v1666, %v1683
        %1685 = vrot.lane.b32.xlu0 %v1624, 64
        %v1686 = vpop.permute.xlu0 %1685
        %v1689 = vsel %vm1660, %v1684, 0
        %1691 = vmatpush.msra.mxu0 0.0
        %1692 = vmatpush.msra.mxu0 0.0
        %1693 = vmatpush.msra.mxu0 0.0
        %1694 = vmatpush.msra.mxu0 0.0
        %1695 = vmatpush.msra.mxu0 0.0
        %1696 = vmatpush.msra.mxu0 0.0
        %1697 = vmatpush.msra.mxu0 0.0
        %1698 = vmatpush.msra.mxu0 0.0
        %1699 = vmatpush.msra.mxu0 0.0
        %1700 = vmatpush.msra.mxu0 0.0
        %1701 = vmatpush.msra.mxu0 0.0
        %1702 = vmatpush.msra.mxu0 0.0
        %1703 = vmatpush.msra.mxu0 0.0
        %1704 = vmatpush.msra.mxu0 0.0
        %1705 = vmatpush.msra.mxu0 0.0
        %1706 = vmatpush.msra.mxu0 %v1686
        %1707 = vmatmul.f32.gmra.mxu0 %v1689
        %v1708 = vpop.f32.mrf.mxu0
        %v1709 = vadd.f32 0.0, %v1708
        %1710 = vdwg.mxu0
        %1711 = vst.msk [vmem:[#allocation2] sm:$0xff] %vm1563, %v1709
        %1712 = vrot.lane.b32.xlu0 %v1631, 124
        %v1713 = vpop.permute.xlu0 %1712
        %1714 = vrot.lane.b32.xlu0 %v1624, 92
        %v1715 = vpop.permute.xlu0 %1714
        %v1716 = vsel %vm1563, %v1713, 0
        %v1718 = vsel %vm1563, %v1715, 0
        %1720 = vmatpush.xpose.msra.mxu0 0.0
        %1721 = vmatpush.xpose.msra.mxu0 0.0
        %1722 = vmatpush.xpose.msra.mxu0 0.0
        %1723 = vmatpush.xpose.msra.mxu0 0.0
        %1724 = vmatpush.xpose.msra.mxu0 0.0
        %1725 = vmatpush.xpose.msra.mxu0 0.0
        %1726 = vmatpush.xpose.msra.mxu0 0.0
        %1727 = vmatpush.xpose.msra.mxu0 0.0
        %1728 = vmatpush.xpose.msra.mxu0 0.0
        %1729 = vmatpush.xpose.msra.mxu0 0.0
        %1730 = vmatpush.xpose.msra.mxu0 0.0
        %1731 = vmatpush.xpose.msra.mxu0 0.0
        %1732 = vmatpush.xpose.msra.mxu0 0.0
        %1733 = vmatpush.xpose.msra.mxu0 0.0
        %1734 = vmatpush.xpose.msra.mxu0 0.0
        %1735 = vmatpush.xpose.msra.mxu0 %v1718
        %1736 = vmatmul.f32.gmra.mxu0 %v1716
        %v1737 = vpop.f32.mrf.mxu0
        %v1738 = vadd.f32 %v1593, %v1737
        %1739 = vdwg.mxu0
        %v1740 = vsel %vm1660, %v1738, -inf
        %1741 = vmax.xlane.f32.xlu0 %v1740
        %v1742 = vpop.xlane.xlu0 %1741
        %v1743 = vsub.f32 %v1738, %v1742
        %v1744 = vmul.f32 %v1743, 1.442695
        %v1745 = vpow.pop %v1744
        %v1746 = vsel %vm1660, %v1745, 0.0
        %1747 = vadd.xlane.f32.xlu0 %v1746
        %v1748 = vpop.xlane.xlu0 %1747
        %v1749 = vrcp.pop %v1748
        %v1750 = vmul.f32 %v1748, %v1749
        %v1751 = vsub.f32 1.0, %v1750
        %v1752 = vmul.f32 %v1749, %v1751
        %v1753 = vadd.f32 %v1749, %v1752
        %vm1754 = vweird.f32 %v1748
        %vm1755 = vweird.f32 %v1749
        %vm1756 = vmor %vm1754, %vm1755
        %v1757 = vsel %vm1756, %v1749, %v1753
        %v1758 = vand.u32 2147483647, %v1748
        %vm1759 = vcmp.eq.f32.partialorder %v1758, 8.507059e+37
        %v1760 = vand.u32 %v1748, 2147483648
        %v1761 = vor.u32 1.1754944e-38, %v1760
        %v1762 = vsel %vm1759, %v1761, %v1757
        %v1763 = vmul.f32 %v1745, %v1762
        %1764 = vrot.lane.b32.xlu0 %v1624, 60
        %v1765 = vpop.permute.xlu0 %1764
        %v1768 = vsel %vm1660, %v1763, 0
        %1770 = vmatpush.msra.mxu0 0.0
        %1771 = vmatpush.msra.mxu0 0.0
        %1772 = vmatpush.msra.mxu0 0.0
        %1773 = vmatpush.msra.mxu0 0.0
        %1774 = vmatpush.msra.mxu0 0.0
        %1775 = vmatpush.msra.mxu0 0.0
        %1776 = vmatpush.msra.mxu0 0.0
        %1777 = vmatpush.msra.mxu0 0.0
        %1778 = vmatpush.msra.mxu0 0.0
        %1779 = vmatpush.msra.mxu0 0.0
        %1780 = vmatpush.msra.mxu0 0.0
        %1781 = vmatpush.msra.mxu0 0.0
        %1782 = vmatpush.msra.mxu0 0.0
        %1783 = vmatpush.msra.mxu0 0.0
        %1784 = vmatpush.msra.mxu0 0.0
        %1785 = vmatpush.msra.mxu0 %v1765
        %1786 = vmatmul.f32.gmra.mxu0 %v1768
        %v1787 = vpop.f32.mrf.mxu0
        %v1788 = vadd.f32 0.0, %v1787
        %1789 = vdwg.mxu0
        %1791 = vrot.lane.b32.xlu0 %v1788, 4
        %v1792 = vpop.permute.xlu0 %1791
        %vm1794 = vcmask 64544
        %1795 = vst.msk [vmem:[#allocation2] sm:$0xff] %vm1794, %v1792
        %1796 = vrot.lane.b32.xlu0 %v1631, 120
        %v1797 = vpop.permute.xlu0 %1796
        %1798 = vrot.lane.b32.xlu0 %v1624, 88
        %v1799 = vpop.permute.xlu0 %1798
        %v1800 = vsel %vm1563, %v1797, 0
        %v1802 = vsel %vm1563, %v1799, 0
        %1804 = vmatpush.xpose.msra.mxu0 0.0
        %1805 = vmatpush.xpose.msra.mxu0 0.0
        %1806 = vmatpush.xpose.msra.mxu0 0.0
        %1807 = vmatpush.xpose.msra.mxu0 0.0
        %1808 = vmatpush.xpose.msra.mxu0 0.0
        %1809 = vmatpush.xpose.msra.mxu0 0.0
        %1810 = vmatpush.xpose.msra.mxu0 0.0
        %1811 = vmatpush.xpose.msra.mxu0 0.0
        %1812 = vmatpush.xpose.msra.mxu0 0.0
        %1813 = vmatpush.xpose.msra.mxu0 0.0
        %1814 = vmatpush.xpose.msra.mxu0 0.0
        %1815 = vmatpush.xpose.msra.mxu0 0.0
        %1816 = vmatpush.xpose.msra.mxu0 0.0
        %1817 = vmatpush.xpose.msra.mxu0 0.0
        %1818 = vmatpush.xpose.msra.mxu0 0.0
        %1819 = vmatpush.xpose.msra.mxu0 %v1802
        %1820 = vmatmul.f32.gmra.mxu0 %v1800
        %v1821 = vpop.f32.mrf.mxu0
        %v1822 = vadd.f32 %v1593, %v1821
        %1823 = vdwg.mxu0
        %v1824 = vsel %vm1660, %v1822, -inf
        %1825 = vmax.xlane.f32.xlu0 %v1824
        %v1826 = vpop.xlane.xlu0 %1825
        %v1827 = vsub.f32 %v1822, %v1826
        %v1828 = vmul.f32 %v1827, 1.442695
        %v1829 = vpow.pop %v1828
        %v1830 = vsel %vm1660, %v1829, 0.0
        %1831 = vadd.xlane.f32.xlu0 %v1830
        %v1832 = vpop.xlane.xlu0 %1831
        %v1833 = vrcp.pop %v1832
        %v1834 = vmul.f32 %v1832, %v1833
        %v1835 = vsub.f32 1.0, %v1834
        %v1836 = vmul.f32 %v1833, %v1835
        %v1837 = vadd.f32 %v1833, %v1836
        %vm1838 = vweird.f32 %v1832
        %vm1839 = vweird.f32 %v1833
        %vm1840 = vmor %vm1838, %vm1839
        %v1841 = vsel %vm1840, %v1833, %v1837
        %v1842 = vand.u32 2147483647, %v1832
        %vm1843 = vcmp.eq.f32.partialorder %v1842, 8.507059e+37
        %v1844 = vand.u32 %v1832, 2147483648
        %v1845 = vor.u32 1.1754944e-38, %v1844
        %v1846 = vsel %vm1843, %v1845, %v1841
        %v1847 = vmul.f32 %v1829, %v1846
        %1848 = vrot.lane.b32.xlu0 %v1624, 56
        %v1849 = vpop.permute.xlu0 %1848
        %v1852 = vsel %vm1660, %v1847, 0
        %1854 = vmatpush.msra.mxu0 0.0
        %1855 = vmatpush.msra.mxu0 0.0
        %1856 = vmatpush.msra.mxu0 0.0
        %1857 = vmatpush.msra.mxu0 0.0
        %1858 = vmatpush.msra.mxu0 0.0
        %1859 = vmatpush.msra.mxu0 0.0
        %1860 = vmatpush.msra.mxu0 0.0
        %1861 = vmatpush.msra.mxu0 0.0
        %1862 = vmatpush.msra.mxu0 0.0
        %1863 = vmatpush.msra.mxu0 0.0
        %1864 = vmatpush.msra.mxu0 0.0
        %1865 = vmatpush.msra.mxu0 0.0
        %1866 = vmatpush.msra.mxu0 0.0
        %1867 = vmatpush.msra.mxu0 0.0
        %1868 = vmatpush.msra.mxu0 0.0
        %1869 = vmatpush.msra.mxu0 %v1849
        %1870 = vmatmul.f32.gmra.mxu0 %v1852
        %v1871 = vpop.f32.mrf.mxu0
        %v1872 = vadd.f32 0.0, %v1871
        %1873 = vdwg.mxu0
        %1875 = vrot.lane.b32.xlu0 %v1872, 8
        %v1876 = vpop.permute.xlu0 %1875
        %vm1878 = vcmask 97344
        %1879 = vst.msk [vmem:[#allocation2] sm:$0xff] %vm1878, %v1876
        %1880 = vrot.lane.b32.xlu0 %v1631, 116
        %v1881 = vpop.permute.xlu0 %1880
        %1882 = vrot.lane.b32.xlu0 %v1624, 84
        %v1883 = vpop.permute.xlu0 %1882
        %v1884 = vsel %vm1563, %v1881, 0
        %v1886 = vsel %vm1563, %v1883, 0
        %1888 = vmatpush.xpose.msra.mxu0 0.0
        %1889 = vmatpush.xpose.msra.mxu0 0.0
        %1890 = vmatpush.xpose.msra.mxu0 0.0
        %1891 = vmatpush.xpose.msra.mxu0 0.0
        %1892 = vmatpush.xpose.msra.mxu0 0.0
        %1893 = vmatpush.xpose.msra.mxu0 0.0
        %1894 = vmatpush.xpose.msra.mxu0 0.0
        %1895 = vmatpush.xpose.msra.mxu0 0.0
        %1896 = vmatpush.xpose.msra.mxu0 0.0
        %1897 = vmatpush.xpose.msra.mxu0 0.0
        %1898 = vmatpush.xpose.msra.mxu0 0.0
        %1899 = vmatpush.xpose.msra.mxu0 0.0
        %1900 = vmatpush.xpose.msra.mxu0 0.0
        %1901 = vmatpush.xpose.msra.mxu0 0.0
        %1902 = vmatpush.xpose.msra.mxu0 0.0
        %1903 = vmatpush.xpose.msra.mxu0 %v1886
        %1904 = vmatmul.f32.gmra.mxu0 %v1884
        %v1905 = vpop.f32.mrf.mxu0
        %v1906 = vadd.f32 %v1593, %v1905
        %1907 = vdwg.mxu0
        %v1908 = vsel %vm1660, %v1906, -inf
        %1909 = vmax.xlane.f32.xlu0 %v1908
        %v1910 = vpop.xlane.xlu0 %1909
        %v1911 = vsub.f32 %v1906, %v1910
        %v1912 = vmul.f32 %v1911, 1.442695
        %v1913 = vpow.pop %v1912
        %v1914 = vsel %vm1660, %v1913, 0.0
        %1915 = vadd.xlane.f32.xlu0 %v1914
        %v1916 = vpop.xlane.xlu0 %1915
        %v1917 = vrcp.pop %v1916
        %v1918 = vmul.f32 %v1916, %v1917
        %v1919 = vsub.f32 1.0, %v1918
        %v1920 = vmul.f32 %v1917, %v1919
        %v1921 = vadd.f32 %v1917, %v1920
        %vm1922 = vweird.f32 %v1916
        %vm1923 = vweird.f32 %v1917
        %vm1924 = vmor %vm1922, %vm1923
        %v1925 = vsel %vm1924, %v1917, %v1921
        %v1926 = vand.u32 2147483647, %v1916
        %vm1927 = vcmp.eq.f32.partialorder %v1926, 8.507059e+37
        %v1928 = vand.u32 %v1916, 2147483648
        %v1929 = vor.u32 1.1754944e-38, %v1928
        %v1930 = vsel %vm1927, %v1929, %v1925
        %v1931 = vmul.f32 %v1913, %v1930
        %1932 = vrot.lane.b32.xlu0 %v1624, 52
        %v1933 = vpop.permute.xlu0 %1932
        %v1936 = vsel %vm1660, %v1931, 0
        %1938 = vmatpush.msra.mxu0 0.0
        %1939 = vmatpush.msra.mxu0 0.0
        %1940 = vmatpush.msra.mxu0 0.0
        %1941 = vmatpush.msra.mxu0 0.0
        %1942 = vmatpush.msra.mxu0 0.0
        %1943 = vmatpush.msra.mxu0 0.0
        %1944 = vmatpush.msra.mxu0 0.0
        %1945 = vmatpush.msra.mxu0 0.0
        %1946 = vmatpush.msra.mxu0 0.0
        %1947 = vmatpush.msra.mxu0 0.0
        %1948 = vmatpush.msra.mxu0 0.0
        %1949 = vmatpush.msra.mxu0 0.0
        %1950 = vmatpush.msra.mxu0 0.0
        %1951 = vmatpush.msra.mxu0 0.0
        %1952 = vmatpush.msra.mxu0 0.0
        %1953 = vmatpush.msra.mxu0 %v1933
        %1954 = vmatmul.f32.gmra.mxu0 %v1936
        %v1955 = vpop.f32.mrf.mxu0
        %v1956 = vadd.f32 0.0, %v1955
        %1957 = vdwg.mxu0
        %1959 = vrot.lane.b32.xlu0 %v1956, 12
        %v1960 = vpop.permute.xlu0 %1959
        %vm1962 = vcmask 130144
        %1963 = vst.msk [vmem:[#allocation2] sm:$0xff] %vm1962, %v1960
        %1964 = vrot.lane.b32.xlu0 %v1631, 112
        %v1965 = vpop.permute.xlu0 %1964
        %1966 = vrot.lane.b32.xlu0 %v1624, 80
        %v1967 = vpop.permute.xlu0 %1966
        %v1968 = vsel %vm1563, %v1965, 0
        %v1970 = vsel %vm1563, %v1967, 0
        %1972 = vmatpush.xpose.msra.mxu0 0.0
        %1973 = vmatpush.xpose.msra.mxu0 0.0
        %1974 = vmatpush.xpose.msra.mxu0 0.0
        %1975 = vmatpush.xpose.msra.mxu0 0.0
        %1976 = vmatpush.xpose.msra.mxu0 0.0
        %1977 = vmatpush.xpose.msra.mxu0 0.0
        %1978 = vmatpush.xpose.msra.mxu0 0.0
        %1979 = vmatpush.xpose.msra.mxu0 0.0
        %1980 = vmatpush.xpose.msra.mxu0 0.0
        %1981 = vmatpush.xpose.msra.mxu0 0.0
        %1982 = vmatpush.xpose.msra.mxu0 0.0
        %1983 = vmatpush.xpose.msra.mxu0 0.0
        %1984 = vmatpush.xpose.msra.mxu0 0.0
        %1985 = vmatpush.xpose.msra.mxu0 0.0
        %1986 = vmatpush.xpose.msra.mxu0 0.0
        %1987 = vmatpush.xpose.msra.mxu0 %v1970
        %1988 = vmatmul.f32.gmra.mxu0 %v1968
        %v1989 = vpop.f32.mrf.mxu0
        %v1990 = vadd.f32 %v1593, %v1989
        %1991 = vdwg.mxu0
        %v1992 = vsel %vm1660, %v1990, -inf
        %1993 = vmax.xlane.f32.xlu0 %v1992
        %v1994 = vpop.xlane.xlu0 %1993
        %v1995 = vsub.f32 %v1990, %v1994
        %v1996 = vmul.f32 %v1995, 1.442695
        %v1997 = vpow.pop %v1996
        %v1998 = vsel %vm1660, %v1997, 0.0
        %1999 = vadd.xlane.f32.xlu0 %v1998
        %v2000 = vpop.xlane.xlu0 %1999
        %v2001 = vrcp.pop %v2000
        %v2002 = vmul.f32 %v2000, %v2001
        %v2003 = vsub.f32 1.0, %v2002
        %v2004 = vmul.f32 %v2001, %v2003
        %v2005 = vadd.f32 %v2001, %v2004
        %vm2006 = vweird.f32 %v2000
        %vm2007 = vweird.f32 %v2001
        %vm2008 = vmor %vm2006, %vm2007
        %v2009 = vsel %vm2008, %v2001, %v2005
        %v2010 = vand.u32 2147483647, %v2000
        %vm2011 = vcmp.eq.f32.partialorder %v2010, 8.507059e+37
        %v2012 = vand.u32 %v2000, 2147483648
        %v2013 = vor.u32 1.1754944e-38, %v2012
        %v2014 = vsel %vm2011, %v2013, %v2009
        %v2015 = vmul.f32 %v1997, %v2014
        %2016 = vrot.lane.b32.xlu0 %v1624, 48
        %v2017 = vpop.permute.xlu0 %2016
        %v2020 = vsel %vm1660, %v2015, 0
        %2022 = vmatpush.msra.mxu0 0.0
        %2023 = vmatpush.msra.mxu0 0.0
        %2024 = vmatpush.msra.mxu0 0.0
        %2025 = vmatpush.msra.mxu0 0.0
        %2026 = vmatpush.msra.mxu0 0.0
        %2027 = vmatpush.msra.mxu0 0.0
        %2028 = vmatpush.msra.mxu0 0.0
        %2029 = vmatpush.msra.mxu0 0.0
        %2030 = vmatpush.msra.mxu0 0.0
        %2031 = vmatpush.msra.mxu0 0.0
        %2032 = vmatpush.msra.mxu0 0.0
        %2033 = vmatpush.msra.mxu0 0.0
        %2034 = vmatpush.msra.mxu0 0.0
        %2035 = vmatpush.msra.mxu0 0.0
        %2036 = vmatpush.msra.mxu0 0.0
        %2037 = vmatpush.msra.mxu0 %v2017
        %2038 = vmatmul.f32.gmra.mxu0 %v2020
        %v2039 = vpop.f32.mrf.mxu0
        %v2040 = vadd.f32 0.0, %v2039
        %2041 = vdwg.mxu0
        %2043 = vrot.lane.b32.xlu0 %v2040, 16
        %v2044 = vpop.permute.xlu0 %2043
        %vm2046 = vcmask 162944
        %2047 = vst.msk [vmem:[#allocation2] sm:$0xff] %vm2046, %v2044
        %2048 = vrot.lane.b32.xlu0 %v1631, 108
        %v2049 = vpop.permute.xlu0 %2048
        %2050 = vrot.lane.b32.xlu0 %v1624, 76
        %v2051 = vpop.permute.xlu0 %2050
        %v2052 = vsel %vm1563, %v2049, 0
        %v2054 = vsel %vm1563, %v2051, 0
        %2056 = vmatpush.xpose.msra.mxu0 0.0
        %2057 = vmatpush.xpose.msra.mxu0 0.0
        %2058 = vmatpush.xpose.msra.mxu0 0.0
        %2059 = vmatpush.xpose.msra.mxu0 0.0
        %2060 = vmatpush.xpose.msra.mxu0 0.0
        %2061 = vmatpush.xpose.msra.mxu0 0.0
        %2062 = vmatpush.xpose.msra.mxu0 0.0
        %2063 = vmatpush.xpose.msra.mxu0 0.0
        %2064 = vmatpush.xpose.msra.mxu0 0.0
        %2065 = vmatpush.xpose.msra.mxu0 0.0
        %2066 = vmatpush.xpose.msra.mxu0 0.0
        %2067 = vmatpush.xpose.msra.mxu0 0.0
        %2068 = vmatpush.xpose.msra.mxu0 0.0
        %2069 = vmatpush.xpose.msra.mxu0 0.0
        %2070 = vmatpush.xpose.msra.mxu0 0.0
        %2071 = vmatpush.xpose.msra.mxu0 %v2054
        %2072 = vmatmul.f32.gmra.mxu0 %v2052
        %v2073 = vpop.f32.mrf.mxu0
        %v2074 = vadd.f32 %v1593, %v2073
        %2075 = vdwg.mxu0
        %v2076 = vsel %vm1660, %v2074, -inf
        %2077 = vmax.xlane.f32.xlu0 %v2076
        %v2078 = vpop.xlane.xlu0 %2077
        %v2079 = vsub.f32 %v2074, %v2078
        %v2080 = vmul.f32 %v2079, 1.442695
        %v2081 = vpow.pop %v2080
        %v2082 = vsel %vm1660, %v2081, 0.0
        %2083 = vadd.xlane.f32.xlu0 %v2082
        %v2084 = vpop.xlane.xlu0 %2083
        %v2085 = vrcp.pop %v2084
        %v2086 = vmul.f32 %v2084, %v2085
        %v2087 = vsub.f32 1.0, %v2086
        %v2088 = vmul.f32 %v2085, %v2087
        %v2089 = vadd.f32 %v2085, %v2088
        %vm2090 = vweird.f32 %v2084
        %vm2091 = vweird.f32 %v2085
        %vm2092 = vmor %vm2090, %vm2091
        %v2093 = vsel %vm2092, %v2085, %v2089
        %v2094 = vand.u32 2147483647, %v2084
        %vm2095 = vcmp.eq.f32.partialorder %v2094, 8.507059e+37
        %v2096 = vand.u32 %v2084, 2147483648
        %v2097 = vor.u32 1.1754944e-38, %v2096
        %v2098 = vsel %vm2095, %v2097, %v2093
        %v2099 = vmul.f32 %v2081, %v2098
        %2100 = vrot.lane.b32.xlu0 %v1624, 44
        %v2101 = vpop.permute.xlu0 %2100
        %v2104 = vsel %vm1660, %v2099, 0
        %2106 = vmatpush.msra.mxu0 0.0
        %2107 = vmatpush.msra.mxu0 0.0
        %2108 = vmatpush.msra.mxu0 0.0
        %2109 = vmatpush.msra.mxu0 0.0
        %2110 = vmatpush.msra.mxu0 0.0
        %2111 = vmatpush.msra.mxu0 0.0
        %2112 = vmatpush.msra.mxu0 0.0
        %2113 = vmatpush.msra.mxu0 0.0
        %2114 = vmatpush.msra.mxu0 0.0
        %2115 = vmatpush.msra.mxu0 0.0
        %2116 = vmatpush.msra.mxu0 0.0
        %2117 = vmatpush.msra.mxu0 0.0
        %2118 = vmatpush.msra.mxu0 0.0
        %2119 = vmatpush.msra.mxu0 0.0
        %2120 = vmatpush.msra.mxu0 0.0
        %2121 = vmatpush.msra.mxu0 %v2101
        %2122 = vmatmul.f32.gmra.mxu0 %v2104
        %v2123 = vpop.f32.mrf.mxu0
        %v2124 = vadd.f32 0.0, %v2123
        %2125 = vdwg.mxu0
        %2127 = vrot.lane.b32.xlu0 %v2124, 20
        %v2128 = vpop.permute.xlu0 %2127
        %vm2130 = vcmask 195744
        %2131 = vst.msk [vmem:[#allocation2] sm:$0xff] %vm2130, %v2128
        %2132 = vrot.lane.b32.xlu0 %v1631, 104
        %v2133 = vpop.permute.xlu0 %2132
        %2134 = vrot.lane.b32.xlu0 %v1624, 72
        %v2135 = vpop.permute.xlu0 %2134
        %v2136 = vsel %vm1563, %v2133, 0
        %v2138 = vsel %vm1563, %v2135, 0
        %2140 = vmatpush.xpose.msra.mxu0 0.0
        %2141 = vmatpush.xpose.msra.mxu0 0.0
        %2142 = vmatpush.xpose.msra.mxu0 0.0
        %2143 = vmatpush.xpose.msra.mxu0 0.0
        %2144 = vmatpush.xpose.msra.mxu0 0.0
        %2145 = vmatpush.xpose.msra.mxu0 0.0
        %2146 = vmatpush.xpose.msra.mxu0 0.0
        %2147 = vmatpush.xpose.msra.mxu0 0.0
        %2148 = vmatpush.xpose.msra.mxu0 0.0
        %2149 = vmatpush.xpose.msra.mxu0 0.0
        %2150 = vmatpush.xpose.msra.mxu0 0.0
        %2151 = vmatpush.xpose.msra.mxu0 0.0
        %2152 = vmatpush.xpose.msra.mxu0 0.0
        %2153 = vmatpush.xpose.msra.mxu0 0.0
        %2154 = vmatpush.xpose.msra.mxu0 0.0
        %2155 = vmatpush.xpose.msra.mxu0 %v2138
        %2156 = vmatmul.f32.gmra.mxu0 %v2136
        %v2157 = vpop.f32.mrf.mxu0
        %v2158 = vadd.f32 %v1593, %v2157
        %2159 = vdwg.mxu0
        %v2160 = vsel %vm1660, %v2158, -inf
        %2161 = vmax.xlane.f32.xlu0 %v2160
        %v2162 = vpop.xlane.xlu0 %2161
        %v2163 = vsub.f32 %v2158, %v2162
        %v2164 = vmul.f32 %v2163, 1.442695
        %v2165 = vpow.pop %v2164
        %v2166 = vsel %vm1660, %v2165, 0.0
        %2167 = vadd.xlane.f32.xlu0 %v2166
        %v2168 = vpop.xlane.xlu0 %2167
        %v2169 = vrcp.pop %v2168
        %v2170 = vmul.f32 %v2168, %v2169
        %v2171 = vsub.f32 1.0, %v2170
        %v2172 = vmul.f32 %v2169, %v2171
        %v2173 = vadd.f32 %v2169, %v2172
        %vm2174 = vweird.f32 %v2168
        %vm2175 = vweird.f32 %v2169
        %vm2176 = vmor %vm2174, %vm2175
        %v2177 = vsel %vm2176, %v2169, %v2173
        %v2178 = vand.u32 2147483647, %v2168
        %vm2179 = vcmp.eq.f32.partialorder %v2178, 8.507059e+37
        %v2180 = vand.u32 %v2168, 2147483648
        %v2181 = vor.u32 1.1754944e-38, %v2180
        %v2182 = vsel %vm2179, %v2181, %v2177
        %v2183 = vmul.f32 %v2165, %v2182
        %2184 = vrot.lane.b32.xlu0 %v1624, 40
        %v2185 = vpop.permute.xlu0 %2184
        %v2188 = vsel %vm1660, %v2183, 0
        %2190 = vmatpush.msra.mxu0 0.0
        %2191 = vmatpush.msra.mxu0 0.0
        %2192 = vmatpush.msra.mxu0 0.0
        %2193 = vmatpush.msra.mxu0 0.0
        %2194 = vmatpush.msra.mxu0 0.0
        %2195 = vmatpush.msra.mxu0 0.0
        %2196 = vmatpush.msra.mxu0 0.0
        %2197 = vmatpush.msra.mxu0 0.0
        %2198 = vmatpush.msra.mxu0 0.0
        %2199 = vmatpush.msra.mxu0 0.0
        %2200 = vmatpush.msra.mxu0 0.0
        %2201 = vmatpush.msra.mxu0 0.0
        %2202 = vmatpush.msra.mxu0 0.0
        %2203 = vmatpush.msra.mxu0 0.0
        %2204 = vmatpush.msra.mxu0 0.0
        %2205 = vmatpush.msra.mxu0 %v2185
        %2206 = vmatmul.f32.gmra.mxu0 %v2188
        %v2207 = vpop.f32.mrf.mxu0
        %v2208 = vadd.f32 0.0, %v2207
        %2209 = vdwg.mxu0
        %2211 = vrot.lane.b32.xlu0 %v2208, 24
        %v2212 = vpop.permute.xlu0 %2211
        %vm2214 = vcmask 228544
        %2215 = vst.msk [vmem:[#allocation2] sm:$0xff] %vm2214, %v2212
        %2216 = vrot.lane.b32.xlu0 %v1631, 100
        %v2217 = vpop.permute.xlu0 %2216
        %2218 = vrot.lane.b32.xlu0 %v1624, 68
        %v2219 = vpop.permute.xlu0 %2218
        %v2220 = vsel %vm1563, %v2217, 0
        %v2222 = vsel %vm1563, %v2219, 0
        %2224 = vmatpush.xpose.msra.mxu0 0.0
        %2225 = vmatpush.xpose.msra.mxu0 0.0
        %2226 = vmatpush.xpose.msra.mxu0 0.0
        %2227 = vmatpush.xpose.msra.mxu0 0.0
        %2228 = vmatpush.xpose.msra.mxu0 0.0
        %2229 = vmatpush.xpose.msra.mxu0 0.0
        %2230 = vmatpush.xpose.msra.mxu0 0.0
        %2231 = vmatpush.xpose.msra.mxu0 0.0
        %2232 = vmatpush.xpose.msra.mxu0 0.0
        %2233 = vmatpush.xpose.msra.mxu0 0.0
        %2234 = vmatpush.xpose.msra.mxu0 0.0
        %2235 = vmatpush.xpose.msra.mxu0 0.0
        %2236 = vmatpush.xpose.msra.mxu0 0.0
        %2237 = vmatpush.xpose.msra.mxu0 0.0
        %2238 = vmatpush.xpose.msra.mxu0 0.0
        %2239 = vmatpush.xpose.msra.mxu0 %v2222
        %2240 = vmatmul.f32.gmra.mxu0 %v2220
        %v2241 = vpop.f32.mrf.mxu0
        %v2242 = vadd.f32 %v1593, %v2241
        %2243 = vdwg.mxu0
        %v2244 = vsel %vm1660, %v2242, -inf
        %2245 = vmax.xlane.f32.xlu0 %v2244
        %v2246 = vpop.xlane.xlu0 %2245
        %v2247 = vsub.f32 %v2242, %v2246
        %v2248 = vmul.f32 %v2247, 1.442695
        %v2249 = vpow.pop %v2248
        %v2250 = vsel %vm1660, %v2249, 0.0
        %2251 = vadd.xlane.f32.xlu0 %v2250
        %v2252 = vpop.xlane.xlu0 %2251
        %v2253 = vrcp.pop %v2252
        %v2254 = vmul.f32 %v2252, %v2253
        %v2255 = vsub.f32 1.0, %v2254
        %v2256 = vmul.f32 %v2253, %v2255
        %v2257 = vadd.f32 %v2253, %v2256
        %vm2258 = vweird.f32 %v2252
        %vm2259 = vweird.f32 %v2253
        %vm2260 = vmor %vm2258, %vm2259
        %v2261 = vsel %vm2260, %v2253, %v2257
        %v2262 = vand.u32 2147483647, %v2252
        %vm2263 = vcmp.eq.f32.partialorder %v2262, 8.507059e+37
        %v2264 = vand.u32 %v2252, 2147483648
        %v2265 = vor.u32 1.1754944e-38, %v2264
        %v2266 = vsel %vm2263, %v2265, %v2261
        %v2267 = vmul.f32 %v2249, %v2266
        %2268 = vrot.lane.b32.xlu0 %v1624, 36
        %v2269 = vpop.permute.xlu0 %2268
        %v2272 = vsel %vm1660, %v2267, 0
        %2274 = vmatpush.msra.mxu0 0.0
        %2275 = vmatpush.msra.mxu0 0.0
        %2276 = vmatpush.msra.mxu0 0.0
        %2277 = vmatpush.msra.mxu0 0.0
        %2278 = vmatpush.msra.mxu0 0.0
        %2279 = vmatpush.msra.mxu0 0.0
        %2280 = vmatpush.msra.mxu0 0.0
        %2281 = vmatpush.msra.mxu0 0.0
        %2282 = vmatpush.msra.mxu0 0.0
        %2283 = vmatpush.msra.mxu0 0.0
        %2284 = vmatpush.msra.mxu0 0.0
        %2285 = vmatpush.msra.mxu0 0.0
        %2286 = vmatpush.msra.mxu0 0.0
        %2287 = vmatpush.msra.mxu0 0.0
        %2288 = vmatpush.msra.mxu0 0.0
        %2289 = vmatpush.msra.mxu0 %v2269
        %2290 = vmatmul.f32.gmra.mxu0 %v2272
        %v2291 = vpop.f32.mrf.mxu0
        %v2292 = vadd.f32 0.0, %v2291
        %2293 = vdwg.mxu0
        %2295 = vrot.lane.b32.xlu0 %v2292, 28
        %v2296 = vpop.permute.xlu0 %2295
        %vm2298 = vcmask 261344
        %2299 = vst.msk [vmem:[#allocation2] sm:$0xff] %vm2298, %v2296
        %v2300 = vld [vmem:[#allocation2] sm:$0xff]
        %v2302 = vperm.slane %v1630, 0
        %v2305 = vsel %vm1602, %v2300, 0
        %2307 = vmatpush.msra.mxu0 0.0
        %2308 = vmatpush.msra.mxu0 0.0
        %2309 = vmatpush.msra.mxu0 0.0
        %2310 = vmatpush.msra.mxu0 0.0
        %2311 = vmatpush.msra.mxu0 0.0
        %2312 = vmatpush.msra.mxu0 0.0
        %2313 = vmatpush.msra.mxu0 0.0
        %2314 = vmatpush.msra.mxu0 0.0
        %2315 = vmatpush.msra.mxu0 0.0
        %2316 = vmatpush.msra.mxu0 0.0
        %2317 = vmatpush.msra.mxu0 0.0
        %2318 = vmatpush.msra.mxu0 0.0
        %2319 = vmatpush.msra.mxu0 %v1629
        %2320 = vmatpush.msra.mxu0 %v1628
        %2321 = vmatpush.msra.mxu0 %v1627
        %2322 = vmatpush.msra.mxu0 %v1626
        %2323 = vmatmul.f32.gmra.mxu0 %v2305
        %v2324 = vpop.f32.mrf.mxu0
        %v2325 = vadd.f32 %v2302, %v2324
        %2326 = vdwg.mxu0
        %v2327 = vadd.f32 %v1592, %v2325
        %v2328 = vld [vmem:[%s29] sm:$0x1]
        %v2329 = vld [vmem:[%s31] sm:$0x1]
        %v2330 = vsel %vm1602, %v2327, 0.0
        %2331 = vadd.xlane.f32.xlu0 %v2330
        %v2332 = vpop.xlane.xlu0 %2331
        %v2333 = vrcp.pop 32.0
        %v2334 = vmul.f32 32.0, %v2333
        %v2335 = vsub.f32 1.0, %v2334
        %v2336 = vmul.f32 %v2333, %v2335
        %v2337 = vadd.f32 %v2333, %v2336
        %vm2338 = vweird.f32 %v2333
        %v2339 = vsel %vm2338, %v2333, %v2337
        %v2340 = vmul.f32 %v2332, %v2339
        %v2341 = vsub.f32 %v2327, %v2340
        %v2342 = vmul.f32 %v2341, %v2341
        %v2343 = vsel %vm1602, %v2342, 0.0
        %2344 = vadd.xlane.f32.xlu0 %v2343
        %v2345 = vpop.xlane.xlu0 %2344
        %v2346 = vmul.f32 %v2345, %v2339
        %v2347 = vadd.f32 %v2346, 1e-05
        %v2348 = vrsqrt.pop %v2347
        %v2349 = vmul.f32 %v2348, %v2347
        %v2350 = vmul.f32 %v2349, %v2348
        %v2351 = vmul.f32 0.5, %v2350
        %v2352 = vsub.f32 1.5, %v2351
        %v2353 = vmul.f32 %v2348, %v2352
        %vm2354 = vweird.f32 %v2347
        %vm2355 = vweird.f32 %v2348
        %vm2356 = vmor %vm2354, %vm2355
        %v2357 = vsel %vm2356, %v2348, %v2353
        %v2358 = vmul.f32 %v2341, %v2357
        %v2360 = vperm.slane %v2328, 0
        %v2362 = vmul.f32 %v2358, %v2360
        %v2364 = vperm.slane %v2329, 0
        %v2366 = vadd.f32 %v2362, %v2364
        %v2367 = vld [vmem:[%s33] sm:$0xff]
        %v2368 = vld [vmem:[%s33 + $0x8] sm:$0xff]
        %v2369 = vld [vmem:[%s33 + $0x10] sm:$0xff]
        %v2370 = vld [vmem:[%s33 + $0x18] sm:$0xff]
        %v2371 = vld [vmem:[%s35] sm:$0x1]
        %v2373 = vperm.slane %v2371, 0
        %v2376 = vsel %vm1602, %v2366, 0
        %2378 = vmatpush.msra.mxu0 0.0
        %2379 = vmatpush.msra.mxu0 0.0
        %2380 = vmatpush.msra.mxu0 0.0
        %2381 = vmatpush.msra.mxu0 0.0
        %2382 = vmatpush.msra.mxu0 0.0
        %2383 = vmatpush.msra.mxu0 0.0
        %2384 = vmatpush.msra.mxu0 0.0
        %2385 = vmatpush.msra.mxu0 0.0
        %2386 = vmatpush.msra.mxu0 0.0
        %2387 = vmatpush.msra.mxu0 0.0
        %2388 = vmatpush.msra.mxu0 0.0
        %2389 = vmatpush.msra.mxu0 0.0
        %2390 = vmatpush.msra.mxu0 %v2370
        %2391 = vmatpush.msra.mxu0 %v2369
        %2392 = vmatpush.msra.mxu0 %v2368
        %2393 = vmatpush.msra.mxu0 %v2367
        %2394 = vmatmul.f32.gmra.mxu0 %v2376
        %v2395 = vpop.f32.mrf.mxu0
        %v2396 = vadd.f32 %v2373, %v2395
        %2397 = vdwg.mxu0
        %v2398 = vmul.f32 %v2396, 0.5
        %v2399 = vmul.f32 %v2396, 0.70710677
        %vm2400 = vcmp.lt.f32.partialorder %v2399, 0.0
        %v2401 = vsel %vm2400, -1.0, 1.0
        %v2402 = vand.u32 2147483647, %v2399
        %v2403 = vmul.f32 %v2402, 0.3275911
        %v2404 = vadd.f32 %v2403, 1.0
        %v2405 = vrcp.pop %v2404
        %v2406 = vmul.f32 %v2404, %v2405
        %v2407 = vsub.f32 1.0, %v2406
        %v2408 = vmul.f32 %v2405, %v2407
        %v2409 = vadd.f32 %v2405, %v2408
        %vm2410 = vweird.f32 %v2404
        %vm2411 = vweird.f32 %v2405
        %vm2412 = vmor %vm2410, %vm2411
        %v2413 = vsel %vm2412, %v2405, %v2409
        %v2414 = vand.u32 2147483647, %v2404
        %vm2415 = vcmp.eq.f32.partialorder %v2414, 8.507059e+37
        %v2416 = vand.u32 %v2404, 2147483648
        %v2417 = vor.u32 1.1754944e-38, %v2416
        %v2418 = vsel %vm2415, %v2417, %v2413
        %v2419 = vmul.f32 1.0, %v2418
        %v2420 = vmul.f32 %v2419, 1.0614054
        %v2421 = vadd.f32 %v2420, -1.4531521
        %v2422 = vmul.f32 %v2421, %v2419
        %v2423 = vadd.f32 %v2422, 1.4214138
        %v2424 = vmul.f32 %v2423, %v2419
        %v2425 = vadd.f32 %v2424, -0.28449672
        %v2426 = vmul.f32 %v2425, %v2419
        %v2427 = vadd.f32 %v2426, 0.2548296
        %v2428 = vmul.f32 %v2427, %v2419
        %v2429 = vsub.f32 0.0, %v2402
        %v2430 = vmul.f32 %v2429, %v2402
        %v2431 = vmul.f32 %v2430, 1.442695
        %v2432 = vpow.pop %v2431
        %v2433 = vmul.f32 %v2428, %v2432
        %v2434 = vsub.f32 1.0, %v2433
        %v2435 = vmul.f32 %v2401, %v2434
        %v2436 = vadd.f32 %v2435, 1.0
        %v2437 = vmul.f32 %v2398, %v2436
        %v2438 = vld [vmem:[%s37] sm:$0xff]
        %v2439 = vld [vmem:[%s37 + $0x8] sm:$0xff]
        %v2440 = vld [vmem:[%s37 + $0x10] sm:$0xff]
        %v2441 = vld [vmem:[%s37 + $0x18] sm:$0xff]
        %v2442 = vld [vmem:[%s37 + $0x20] sm:$0xff]
        %v2443 = vld [vmem:[%s37 + $0x28] sm:$0xff]
        %v2444 = vld [vmem:[%s37 + $0x30] sm:$0xff]
        %v2445 = vld [vmem:[%s37 + $0x38] sm:$0xff]
        %v2446 = vld [vmem:[%s39] sm:$0x1]
        %v2448 = vperm.slane %v2446, 0
        %vm2450 = vcmask 523264
        %v2452 = vsel %vm2450, %v2437, 0
        %2454 = vmatpush.msra.mxu0 0.0
        %2455 = vmatpush.msra.mxu0 0.0
        %2456 = vmatpush.msra.mxu0 0.0
        %2457 = vmatpush.msra.mxu0 0.0
        %2458 = vmatpush.msra.mxu0 0.0
        %2459 = vmatpush.msra.mxu0 0.0
        %2460 = vmatpush.msra.mxu0 0.0
        %2461 = vmatpush.msra.mxu0 0.0
        %2462 = vmatpush.msra.mxu0 %v2445
        %2463 = vmatpush.msra.mxu0 %v2444
        %2464 = vmatpush.msra.mxu0 %v2443
        %2465 = vmatpush.msra.mxu0 %v2442
        %2466 = vmatpush.msra.mxu0 %v2441
        %2467 = vmatpush.msra.mxu0 %v2440
        %2468 = vmatpush.msra.mxu0 %v2439
        %2469 = vmatpush.msra.mxu0 %v2438
        %2470 = vmatmul.f32.gmra.mxu0 %v2452
        %v2471 = vpop.f32.mrf.mxu0
        %v2472 = vadd.f32 %v2448, %v2471
        %2473 = vdwg.mxu0
        %v2474 = vadd.f32 %v2366, %v2472
        %v2475 = vld [vmem:[%s41] sm:$0x1]
        %v2476 = vld [vmem:[%s43] sm:$0x1]
        %v2477 = vsel %vm1602, %v2474, 0.0
        %2478 = vadd.xlane.f32.xlu0 %v2477
        %v2479 = vpop.xlane.xlu0 %2478
        %v2480 = vmul.f32 %v2479, %v2339
        %v2481 = vsub.f32 %v2474, %v2480
        %v2482 = vmul.f32 %v2481, %v2481
        %v2483 = vsel %vm1602, %v2482, 0.0
        %2484 = vadd.xlane.f32.xlu0 %v2483
        %v2485 = vpop.xlane.xlu0 %2484
        %v2486 = vmul.f32 %v2485, %v2339
        %v2487 = vadd.f32 %v2486, 1e-05
        %v2488 = vrsqrt.pop %v2487
        %v2489 = vmul.f32 %v2488, %v2487
        %v2490 = vmul.f32 %v2489, %v2488
        %v2491 = vmul.f32 0.5, %v2490
        %v2492 = vsub.f32 1.5, %v2491
        %v2493 = vmul.f32 %v2488, %v2492
        %vm2494 = vweird.f32 %v2487
        %vm2495 = vweird.f32 %v2488
        %vm2496 = vmor %vm2494, %vm2495
        %v2497 = vsel %vm2496, %v2488, %v2493
        %v2498 = vmul.f32 %v2481, %v2497
        %v2500 = vperm.slane %v2475, 0
        %v2502 = vmul.f32 %v2498, %v2500
        %v2504 = vperm.slane %v2476, 0
        %v2506 = vadd.f32 %v2502, %v2504
        %s2507 = scalar_lea.vmem %s21, 32
        %v2508 = vld [vmem:[%s2507] sm:$0xff]
        %v2509 = vld [vmem:[%s2507 + $0x8] sm:$0xff]
        %v2510 = vld [vmem:[%s2507 + $0x10] sm:$0xff]
        %v2511 = vld [vmem:[%s2507 + $0x18] sm:$0xff]
        %s2512 = scalar_lea.vmem %s23, 1
        %v2513 = vld [vmem:[%s2512] sm:$0x1]
        %v2515 = vperm.slane %v2513, 0
        %v2518 = vsel %vm1602, %v2506, 0
        %2520 = vmatpush.msra.mxu0 0.0
        %2521 = vmatpush.msra.mxu0 0.0
        %2522 = vmatpush.msra.mxu0 0.0
        %2523 = vmatpush.msra.mxu0 0.0
        %2524 = vmatpush.msra.mxu0 0.0
        %2525 = vmatpush.msra.mxu0 0.0
        %2526 = vmatpush.msra.mxu0 0.0
        %2527 = vmatpush.msra.mxu0 0.0
        %2528 = vmatpush.msra.mxu0 0.0
        %2529 = vmatpush.msra.mxu0 0.0
        %2530 = vmatpush.msra.mxu0 0.0
        %2531 = vmatpush.msra.mxu0 0.0
        %2532 = vmatpush.msra.mxu0 %v2511
        %2533 = vmatpush.msra.mxu0 %v2510
        %2534 = vmatpush.msra.mxu0 %v2509
        %2535 = vmatpush.msra.mxu0 %v2508
        %2536 = vmatmul.f32.gmra.mxu0 %v2518
        %v2537 = vpop.f32.mrf.mxu0
        %v2538 = vadd.f32 %v2515, %v2537
        %2539 = vdwg.mxu0
        %s2540 = scalar_lea.vmem %s25, 32
        %v2541 = vld [vmem:[%s2540] sm:$0xff]
        %v2542 = vld [vmem:[%s2540 + $0x8] sm:$0xff]
        %v2543 = vld [vmem:[%s2540 + $0x10] sm:$0xff]
        %v2544 = vld [vmem:[%s2540 + $0x18] sm:$0xff]
        %s2545 = scalar_lea.vmem %s27, 1
        %v2546 = vld [vmem:[%s2545] sm:$0x1]
        %v2547 = vmul.f32 %v2538, 0.5
        %2549 = vrot.lane.b32.xlu0 %v2538, 96
        %v2550 = vpop.permute.xlu0 %2549
        %v2552 = vsel %vm1563, %v2547, 0
        %v2554 = vsel %vm1563, %v2550, 0
        %2556 = vmatpush.xpose.msra.mxu0 0.0
        %2557 = vmatpush.xpose.msra.mxu0 0.0
        %2558 = vmatpush.xpose.msra.mxu0 0.0
        %2559 = vmatpush.xpose.msra.mxu0 0.0
        %2560 = vmatpush.xpose.msra.mxu0 0.0
        %2561 = vmatpush.xpose.msra.mxu0 0.0
        %2562 = vmatpush.xpose.msra.mxu0 0.0
        %2563 = vmatpush.xpose.msra.mxu0 0.0
        %2564 = vmatpush.xpose.msra.mxu0 0.0
        %2565 = vmatpush.xpose.msra.mxu0 0.0
        %2566 = vmatpush.xpose.msra.mxu0 0.0
        %2567 = vmatpush.xpose.msra.mxu0 0.0
        %2568 = vmatpush.xpose.msra.mxu0 0.0
        %2569 = vmatpush.xpose.msra.mxu0 0.0
        %2570 = vmatpush.xpose.msra.mxu0 0.0
        %2571 = vmatpush.xpose.msra.mxu0 %v2554
        %2572 = vmatmul.f32.gmra.mxu0 %v2552
        %v2573 = vpop.f32.mrf.mxu0
        %v2574 = vadd.f32 %v1593, %v2573
        %2575 = vdwg.mxu0
        %v2576 = vsel %vm1660, %v2574, -inf
        %2577 = vmax.xlane.f32.xlu0 %v2576
        %v2578 = vpop.xlane.xlu0 %2577
        %v2579 = vsub.f32 %v2574, %v2578
        %v2580 = vmul.f32 %v2579, 1.442695
        %v2581 = vpow.pop %v2580
        %v2582 = vsel %vm1660, %v2581, 0.0
        %2583 = vadd.xlane.f32.xlu0 %v2582
        %v2584 = vpop.xlane.xlu0 %2583
        %v2585 = vrcp.pop %v2584
        %v2586 = vmul.f32 %v2584, %v2585
        %v2587 = vsub.f32 1.0, %v2586
        %v2588 = vmul.f32 %v2585, %v2587
        %v2589 = vadd.f32 %v2585, %v2588
        %vm2590 = vweird.f32 %v2584
        %vm2591 = vweird.f32 %v2585
        %vm2592 = vmor %vm2590, %vm2591
        %v2593 = vsel %vm2592, %v2585, %v2589
        %v2594 = vand.u32 2147483647, %v2584
        %vm2595 = vcmp.eq.f32.partialorder %v2594, 8.507059e+37
        %v2596 = vand.u32 %v2584, 2147483648
        %v2597 = vor.u32 1.1754944e-38, %v2596
        %v2598 = vsel %vm2595, %v2597, %v2593
        %v2599 = vmul.f32 %v2581, %v2598
        %2600 = vrot.lane.b32.xlu0 %v2538, 64
        %v2601 = vpop.permute.xlu0 %2600
        %v2604 = vsel %vm1660, %v2599, 0
        %2606 = vmatpush.msra.mxu0 0.0
        %2607 = vmatpush.msra.mxu0 0.0
        %2608 = vmatpush.msra.mxu0 0.0
        %2609 = vmatpush.msra.mxu0 0.0
        %2610 = vmatpush.msra.mxu0 0.0
        %2611 = vmatpush.msra.mxu0 0.0
        %2612 = vmatpush.msra.mxu0 0.0
        %2613 = vmatpush.msra.mxu0 0.0
        %2614 = vmatpush.msra.mxu0 0.0
        %2615 = vmatpush.msra.mxu0 0.0
        %2616 = vmatpush.msra.mxu0 0.0
        %2617 = vmatpush.msra.mxu0 0.0
        %2618 = vmatpush.msra.mxu0 0.0
        %2619 = vmatpush.msra.mxu0 0.0
        %2620 = vmatpush.msra.mxu0 0.0
        %2621 = vmatpush.msra.mxu0 %v2601
        %2622 = vmatmul.f32.gmra.mxu0 %v2604
        %v2623 = vpop.f32.mrf.mxu0
        %v2624 = vadd.f32 0.0, %v2623
        %2625 = vdwg.mxu0
        %2626 = vst.msk [vmem:[#allocation2] sm:$0xff] %vm1563, %v2624
        %2627 = vrot.lane.b32.xlu0 %v2547, 124
        %v2628 = vpop.permute.xlu0 %2627
        %2629 = vrot.lane.b32.xlu0 %v2538, 92
        %v2630 = vpop.permute.xlu0 %2629
        %v2631 = vsel %vm1563, %v2628, 0
        %v2633 = vsel %vm1563, %v2630, 0
        %2635 = vmatpush.xpose.msra.mxu0 0.0
        %2636 = vmatpush.xpose.msra.mxu0 0.0
        %2637 = vmatpush.xpose.msra.mxu0 0.0
        %2638 = vmatpush.xpose.msra.mxu0 0.0
        %2639 = vmatpush.xpose.msra.mxu0 0.0
        %2640 = vmatpush.xpose.msra.mxu0 0.0
        %2641 = vmatpush.xpose.msra.mxu0 0.0
        %2642 = vmatpush.xpose.msra.mxu0 0.0
        %2643 = vmatpush.xpose.msra.mxu0 0.0
        %2644 = vmatpush.xpose.msra.mxu0 0.0
        %2645 = vmatpush.xpose.msra.mxu0 0.0
        %2646 = vmatpush.xpose.msra.mxu0 0.0
        %2647 = vmatpush.xpose.msra.mxu0 0.0
        %2648 = vmatpush.xpose.msra.mxu0 0.0
        %2649 = vmatpush.xpose.msra.mxu0 0.0
        %2650 = vmatpush.xpose.msra.mxu0 %v2633
        %2651 = vmatmul.f32.gmra.mxu0 %v2631
        %v2652 = vpop.f32.mrf.mxu0
        %v2653 = vadd.f32 %v1593, %v2652
        %2654 = vdwg.mxu0
        %v2655 = vsel %vm1660, %v2653, -inf
        %2656 = vmax.xlane.f32.xlu0 %v2655
        %v2657 = vpop.xlane.xlu0 %2656
        %v2658 = vsub.f32 %v2653, %v2657
        %v2659 = vmul.f32 %v2658, 1.442695
        %v2660 = vpow.pop %v2659
        %v2661 = vsel %vm1660, %v2660, 0.0
        %2662 = vadd.xlane.f32.xlu0 %v2661
        %v2663 = vpop.xlane.xlu0 %2662
        %v2664 = vrcp.pop %v2663
        %v2665 = vmul.f32 %v2663, %v2664
        %v2666 = vsub.f32 1.0, %v2665
        %v2667 = vmul.f32 %v2664, %v2666
        %v2668 = vadd.f32 %v2664, %v2667
        %vm2669 = vweird.f32 %v2663
        %vm2670 = vweird.f32 %v2664
        %vm2671 = vmor %vm2669, %vm2670
        %v2672 = vsel %vm2671, %v2664, %v2668
        %v2673 = vand.u32 2147483647, %v2663
        %vm2674 = vcmp.eq.f32.partialorder %v2673, 8.507059e+37
        %v2675 = vand.u32 %v2663, 2147483648
        %v2676 = vor.u32 1.1754944e-38, %v2675
        %v2677 = vsel %vm2674, %v2676, %v2672
        %v2678 = vmul.f32 %v2660, %v2677
        %2679 = vrot.lane.b32.xlu0 %v2538, 60
        %v2680 = vpop.permute.xlu0 %2679
        %v2683 = vsel %vm1660, %v2678, 0
        %2685 = vmatpush.msra.mxu0 0.0
        %2686 = vmatpush.msra.mxu0 0.0
        %2687 = vmatpush.msra.mxu0 0.0
        %2688 = vmatpush.msra.mxu0 0.0
        %2689 = vmatpush.msra.mxu0 0.0
        %2690 = vmatpush.msra.mxu0 0.0
        %2691 = vmatpush.msra.mxu0 0.0
        %2692 = vmatpush.msra.mxu0 0.0
        %2693 = vmatpush.msra.mxu0 0.0
        %2694 = vmatpush.msra.mxu0 0.0
        %2695 = vmatpush.msra.mxu0 0.0
        %2696 = vmatpush.msra.mxu0 0.0
        %2697 = vmatpush.msra.mxu0 0.0
        %2698 = vmatpush.msra.mxu0 0.0
        %2699 = vmatpush.msra.mxu0 0.0
        %2700 = vmatpush.msra.mxu0 %v2680
        %2701 = vmatmul.f32.gmra.mxu0 %v2683
        %v2702 = vpop.f32.mrf.mxu0
        %v2703 = vadd.f32 0.0, %v2702
        %2704 = vdwg.mxu0
        %2706 = vrot.lane.b32.xlu0 %v2703, 4
        %v2707 = vpop.permute.xlu0 %2706
        %2709 = vst.msk [vmem:[#allocation2] sm:$0xff] %vm1794, %v2707
        %2710 = vrot.lane.b32.xlu0 %v2547, 120
        %v2711 = vpop.permute.xlu0 %2710
        %2712 = vrot.lane.b32.xlu0 %v2538, 88
        %v2713 = vpop.permute.xlu0 %2712
        %v2714 = vsel %vm1563, %v2711, 0
        %v2716 = vsel %vm1563, %v2713, 0
        %2718 = vmatpush.xpose.msra.mxu0 0.0
        %2719 = vmatpush.xpose.msra.mxu0 0.0
        %2720 = vmatpush.xpose.msra.mxu0 0.0
        %2721 = vmatpush.xpose.msra.mxu0 0.0
        %2722 = vmatpush.xpose.msra.mxu0 0.0
        %2723 = vmatpush.xpose.msra.mxu0 0.0
        %2724 = vmatpush.xpose.msra.mxu0 0.0
        %2725 = vmatpush.xpose.msra.mxu0 0.0
        %2726 = vmatpush.xpose.msra.mxu0 0.0
        %2727 = vmatpush.xpose.msra.mxu0 0.0
        %2728 = vmatpush.xpose.msra.mxu0 0.0
        %2729 = vmatpush.xpose.msra.mxu0 0.0
        %2730 = vmatpush.xpose.msra.mxu0 0.0
        %2731 = vmatpush.xpose.msra.mxu0 0.0
        %2732 = vmatpush.xpose.msra.mxu0 0.0
        %2733 = vmatpush.xpose.msra.mxu0 %v2716
        %2734 = vmatmul.f32.gmra.mxu0 %v2714
        %v2735 = vpop.f32.mrf.mxu0
        %v2736 = vadd.f32 %v1593, %v2735
        %2737 = vdwg.mxu0
        %v2738 = vsel %vm1660, %v2736, -inf
        %2739 = vmax.xlane.f32.xlu0 %v2738
        %v2740 = vpop.xlane.xlu0 %2739
        %v2741 = vsub.f32 %v2736, %v2740
        %v2742 = vmul.f32 %v2741, 1.442695
        %v2743 = vpow.pop %v2742
        %v2744 = vsel %vm1660, %v2743, 0.0
        %2745 = vadd.xlane.f32.xlu0 %v2744
        %v2746 = vpop.xlane.xlu0 %2745
        %v2747 = vrcp.pop %v2746
        %v2748 = vmul.f32 %v2746, %v2747
        %v2749 = vsub.f32 1.0, %v2748
        %v2750 = vmul.f32 %v2747, %v2749
        %v2751 = vadd.f32 %v2747, %v2750
        %vm2752 = vweird.f32 %v2746
        %vm2753 = vweird.f32 %v2747
        %vm2754 = vmor %vm2752, %vm2753
        %v2755 = vsel %vm2754, %v2747, %v2751
        %v2756 = vand.u32 2147483647, %v2746
        %vm2757 = vcmp.eq.f32.partialorder %v2756, 8.507059e+37
        %v2758 = vand.u32 %v2746, 2147483648
        %v2759 = vor.u32 1.1754944e-38, %v2758
        %v2760 = vsel %vm2757, %v2759, %v2755
        %v2761 = vmul.f32 %v2743, %v2760
        %2762 = vrot.lane.b32.xlu0 %v2538, 56
        %v2763 = vpop.permute.xlu0 %2762
        %v2766 = vsel %vm1660, %v2761, 0
        %2768 = vmatpush.msra.mxu0 0.0
        %2769 = vmatpush.msra.mxu0 0.0
        %2770 = vmatpush.msra.mxu0 0.0
        %2771 = vmatpush.msra.mxu0 0.0
        %2772 = vmatpush.msra.mxu0 0.0
        %2773 = vmatpush.msra.mxu0 0.0
        %2774 = vmatpush.msra.mxu0 0.0
        %2775 = vmatpush.msra.mxu0 0.0
        %2776 = vmatpush.msra.mxu0 0.0
        %2777 = vmatpush.msra.mxu0 0.0
        %2778 = vmatpush.msra.mxu0 0.0
        %2779 = vmatpush.msra.mxu0 0.0
        %2780 = vmatpush.msra.mxu0 0.0
        %2781 = vmatpush.msra.mxu0 0.0
        %2782 = vmatpush.msra.mxu0 0.0
        %2783 = vmatpush.msra.mxu0 %v2763
        %2784 = vmatmul.f32.gmra.mxu0 %v2766
        %v2785 = vpop.f32.mrf.mxu0
        %v2786 = vadd.f32 0.0, %v2785
        %2787 = vdwg.mxu0
        %2789 = vrot.lane.b32.xlu0 %v2786, 8
        %v2790 = vpop.permute.xlu0 %2789
        %2792 = vst.msk [vmem:[#allocation2] sm:$0xff] %vm1878, %v2790
        %2793 = vrot.lane.b32.xlu0 %v2547, 116
        %v2794 = vpop.permute.xlu0 %2793
        %2795 = vrot.lane.b32.xlu0 %v2538, 84
        %v2796 = vpop.permute.xlu0 %2795
        %v2797 = vsel %vm1563, %v2794, 0
        %v2799 = vsel %vm1563, %v2796, 0
        %2801 = vmatpush.xpose.msra.mxu0 0.0
        %2802 = vmatpush.xpose.msra.mxu0 0.0
        %2803 = vmatpush.xpose.msra.mxu0 0.0
        %2804 = vmatpush.xpose.msra.mxu0 0.0
        %2805 = vmatpush.xpose.msra.mxu0 0.0
        %2806 = vmatpush.xpose.msra.mxu0 0.0
        %2807 = vmatpush.xpose.msra.mxu0 0.0
        %2808 = vmatpush.xpose.msra.mxu0 0.0
        %2809 = vmatpush.xpose.msra.mxu0 0.0
        %2810 = vmatpush.xpose.msra.mxu0 0.0
        %2811 = vmatpush.xpose.msra.mxu0 0.0
        %2812 = vmatpush.xpose.msra.mxu0 0.0
        %2813 = vmatpush.xpose.msra.mxu0 0.0
        %2814 = vmatpush.xpose.msra.mxu0 0.0
        %2815 = vmatpush.xpose.msra.mxu0 0.0
        %2816 = vmatpush.xpose.msra.mxu0 %v2799
        %2817 = vmatmul.f32.gmra.mxu0 %v2797
        %v2818 = vpop.f32.mrf.mxu0
        %v2819 = vadd.f32 %v1593, %v2818
        %2820 = vdwg.mxu0
        %v2821 = vsel %vm1660, %v2819, -inf
        %2822 = vmax.xlane.f32.xlu0 %v2821
        %v2823 = vpop.xlane.xlu0 %2822
        %v2824 = vsub.f32 %v2819, %v2823
        %v2825 = vmul.f32 %v2824, 1.442695
        %v2826 = vpow.pop %v2825
        %v2827 = vsel %vm1660, %v2826, 0.0
        %2828 = vadd.xlane.f32.xlu0 %v2827
        %v2829 = vpop.xlane.xlu0 %2828
        %v2830 = vrcp.pop %v2829
        %v2831 = vmul.f32 %v2829, %v2830
        %v2832 = vsub.f32 1.0, %v2831
        %v2833 = vmul.f32 %v2830, %v2832
        %v2834 = vadd.f32 %v2830, %v2833
        %vm2835 = vweird.f32 %v2829
        %vm2836 = vweird.f32 %v2830
        %vm2837 = vmor %vm2835, %vm2836
        %v2838 = vsel %vm2837, %v2830, %v2834
        %v2839 = vand.u32 2147483647, %v2829
        %vm2840 = vcmp.eq.f32.partialorder %v2839, 8.507059e+37
        %v2841 = vand.u32 %v2829, 2147483648
        %v2842 = vor.u32 1.1754944e-38, %v2841
        %v2843 = vsel %vm2840, %v2842, %v2838
        %v2844 = vmul.f32 %v2826, %v2843
        %2845 = vrot.lane.b32.xlu0 %v2538, 52
        %v2846 = vpop.permute.xlu0 %2845
        %v2849 = vsel %vm1660, %v2844, 0
        %2851 = vmatpush.msra.mxu0 0.0
        %2852 = vmatpush.msra.mxu0 0.0
        %2853 = vmatpush.msra.mxu0 0.0
        %2854 = vmatpush.msra.mxu0 0.0
        %2855 = vmatpush.msra.mxu0 0.0
        %2856 = vmatpush.msra.mxu0 0.0
        %2857 = vmatpush.msra.mxu0 0.0
        %2858 = vmatpush.msra.mxu0 0.0
        %2859 = vmatpush.msra.mxu0 0.0
        %2860 = vmatpush.msra.mxu0 0.0
        %2861 = vmatpush.msra.mxu0 0.0
        %2862 = vmatpush.msra.mxu0 0.0
        %2863 = vmatpush.msra.mxu0 0.0
        %2864 = vmatpush.msra.mxu0 0.0
        %2865 = vmatpush.msra.mxu0 0.0
        %2866 = vmatpush.msra.mxu0 %v2846
        %2867 = vmatmul.f32.gmra.mxu0 %v2849
        %v2868 = vpop.f32.mrf.mxu0
        %v2869 = vadd.f32 0.0, %v2868
        %2870 = vdwg.mxu0
        %2872 = vrot.lane.b32.xlu0 %v2869, 12
        %v2873 = vpop.permute.xlu0 %2872
        %2875 = vst.msk [vmem:[#allocation2] sm:$0xff] %vm1962, %v2873
        %2876 = vrot.lane.b32.xlu0 %v2547, 112
        %v2877 = vpop.permute.xlu0 %2876
        %2878 = vrot.lane.b32.xlu0 %v2538, 80
        %v2879 = vpop.permute.xlu0 %2878
        %v2880 = vsel %vm1563, %v2877, 0
        %v2882 = vsel %vm1563, %v2879, 0
        %2884 = vmatpush.xpose.msra.mxu0 0.0
        %2885 = vmatpush.xpose.msra.mxu0 0.0
        %2886 = vmatpush.xpose.msra.mxu0 0.0
        %2887 = vmatpush.xpose.msra.mxu0 0.0
        %2888 = vmatpush.xpose.msra.mxu0 0.0
        %2889 = vmatpush.xpose.msra.mxu0 0.0
        %2890 = vmatpush.xpose.msra.mxu0 0.0
        %2891 = vmatpush.xpose.msra.mxu0 0.0
        %2892 = vmatpush.xpose.msra.mxu0 0.0
        %2893 = vmatpush.xpose.msra.mxu0 0.0
        %2894 = vmatpush.xpose.msra.mxu0 0.0
        %2895 = vmatpush.xpose.msra.mxu0 0.0
        %2896 = vmatpush.xpose.msra.mxu0 0.0
        %2897 = vmatpush.xpose.msra.mxu0 0.0
        %2898 = vmatpush.xpose.msra.mxu0 0.0
        %2899 = vmatpush.xpose.msra.mxu0 %v2882
        %2900 = vmatmul.f32.gmra.mxu0 %v2880
        %v2901 = vpop.f32.mrf.mxu0
        %v2902 = vadd.f32 %v1593, %v2901
        %2903 = vdwg.mxu0
        %v2904 = vsel %vm1660, %v2902, -inf
        %2905 = vmax.xlane.f32.xlu0 %v2904
        %v2906 = vpop.xlane.xlu0 %2905
        %v2907 = vsub.f32 %v2902, %v2906
        %v2908 = vmul.f32 %v2907, 1.442695
        %v2909 = vpow.pop %v2908
        %v2910 = vsel %vm1660, %v2909, 0.0
        %2911 = vadd.xlane.f32.xlu0 %v2910
        %v2912 = vpop.xlane.xlu0 %2911
        %v2913 = vrcp.pop %v2912
        %v2914 = vmul.f32 %v2912, %v2913
        %v2915 = vsub.f32 1.0, %v2914
        %v2916 = vmul.f32 %v2913, %v2915
        %v2917 = vadd.f32 %v2913, %v2916
        %vm2918 = vweird.f32 %v2912
        %vm2919 = vweird.f32 %v2913
        %vm2920 = vmor %vm2918, %vm2919
        %v2921 = vsel %vm2920, %v2913, %v2917
        %v2922 = vand.u32 2147483647, %v2912
        %vm2923 = vcmp.eq.f32.partialorder %v2922, 8.507059e+37
        %v2924 = vand.u32 %v2912, 2147483648
        %v2925 = vor.u32 1.1754944e-38, %v2924
        %v2926 = vsel %vm2923, %v2925, %v2921
        %v2927 = vmul.f32 %v2909, %v2926
        %2928 = vrot.lane.b32.xlu0 %v2538, 48
        %v2929 = vpop.permute.xlu0 %2928
        %v2932 = vsel %vm1660, %v2927, 0
        %2934 = vmatpush.msra.mxu0 0.0
        %2935 = vmatpush.msra.mxu0 0.0
        %2936 = vmatpush.msra.mxu0 0.0
        %2937 = vmatpush.msra.mxu0 0.0
        %2938 = vmatpush.msra.mxu0 0.0
        %2939 = vmatpush.msra.mxu0 0.0
        %2940 = vmatpush.msra.mxu0 0.0
        %2941 = vmatpush.msra.mxu0 0.0
        %2942 = vmatpush.msra.mxu0 0.0
        %2943 = vmatpush.msra.mxu0 0.0
        %2944 = vmatpush.msra.mxu0 0.0
        %2945 = vmatpush.msra.mxu0 0.0
        %2946 = vmatpush.msra.mxu0 0.0
        %2947 = vmatpush.msra.mxu0 0.0
        %2948 = vmatpush.msra.mxu0 0.0
        %2949 = vmatpush.msra.mxu0 %v2929
        %2950 = vmatmul.f32.gmra.mxu0 %v2932
        %v2951 = vpop.f32.mrf.mxu0
        %v2952 = vadd.f32 0.0, %v2951
        %2953 = vdwg.mxu0
        %2955 = vrot.lane.b32.xlu0 %v2952, 16
        %v2956 = vpop.permute.xlu0 %2955
        %2958 = vst.msk [vmem:[#allocation2] sm:$0xff] %vm2046, %v2956
        %2959 = vrot.lane.b32.xlu0 %v2547, 108
        %v2960 = vpop.permute.xlu0 %2959
        %2961 = vrot.lane.b32.xlu0 %v2538, 76
        %v2962 = vpop.permute.xlu0 %2961
        %v2963 = vsel %vm1563, %v2960, 0
        %v2965 = vsel %vm1563, %v2962, 0
        %2967 = vmatpush.xpose.msra.mxu0 0.0
        %2968 = vmatpush.xpose.msra.mxu0 0.0
        %2969 = vmatpush.xpose.msra.mxu0 0.0
        %2970 = vmatpush.xpose.msra.mxu0 0.0
        %2971 = vmatpush.xpose.msra.mxu0 0.0
        %2972 = vmatpush.xpose.msra.mxu0 0.0
        %2973 = vmatpush.xpose.msra.mxu0 0.0
        %2974 = vmatpush.xpose.msra.mxu0 0.0
        %2975 = vmatpush.xpose.msra.mxu0 0.0
        %2976 = vmatpush.xpose.msra.mxu0 0.0
        %2977 = vmatpush.xpose.msra.mxu0 0.0
        %2978 = vmatpush.xpose.msra.mxu0 0.0
        %2979 = vmatpush.xpose.msra.mxu0 0.0
        %2980 = vmatpush.xpose.msra.mxu0 0.0
        %2981 = vmatpush.xpose.msra.mxu0 0.0
        %2982 = vmatpush.xpose.msra.mxu0 %v2965
        %2983 = vmatmul.f32.gmra.mxu0 %v2963
        %v2984 = vpop.f32.mrf.mxu0
        %v2985 = vadd.f32 %v1593, %v2984
        %2986 = vdwg.mxu0
        %v2987 = vsel %vm1660, %v2985, -inf
        %2988 = vmax.xlane.f32.xlu0 %v2987
        %v2989 = vpop.xlane.xlu0 %2988
        %v2990 = vsub.f32 %v2985, %v2989
        %v2991 = vmul.f32 %v2990, 1.442695
        %v2992 = vpow.pop %v2991
        %v2993 = vsel %vm1660, %v2992, 0.0
        %2994 = vadd.xlane.f32.xlu0 %v2993
        %v2995 = vpop.xlane.xlu0 %2994
        %v2996 = vrcp.pop %v2995
        %v2997 = vmul.f32 %v2995, %v2996
        %v2998 = vsub.f32 1.0, %v2997
        %v2999 = vmul.f32 %v2996, %v2998
        %v3000 = vadd.f32 %v2996, %v2999
        %vm3001 = vweird.f32 %v2995
        %vm3002 = vweird.f32 %v2996
        %vm3003 = vmor %vm3001, %vm3002
        %v3004 = vsel %vm3003, %v2996, %v3000
        %v3005 = vand.u32 2147483647, %v2995
        %vm3006 = vcmp.eq.f32.partialorder %v3005, 8.507059e+37
        %v3007 = vand.u32 %v2995, 2147483648
        %v3008 = vor.u32 1.1754944e-38, %v3007
        %v3009 = vsel %vm3006, %v3008, %v3004
        %v3010 = vmul.f32 %v2992, %v3009
        %3011 = vrot.lane.b32.xlu0 %v2538, 44
        %v3012 = vpop.permute.xlu0 %3011
        %v3015 = vsel %vm1660, %v3010, 0
        %3017 = vmatpush.msra.mxu0 0.0
        %3018 = vmatpush.msra.mxu0 0.0
        %3019 = vmatpush.msra.mxu0 0.0
        %3020 = vmatpush.msra.mxu0 0.0
        %3021 = vmatpush.msra.mxu0 0.0
        %3022 = vmatpush.msra.mxu0 0.0
        %3023 = vmatpush.msra.mxu0 0.0
        %3024 = vmatpush.msra.mxu0 0.0
        %3025 = vmatpush.msra.mxu0 0.0
        %3026 = vmatpush.msra.mxu0 0.0
        %3027 = vmatpush.msra.mxu0 0.0
        %3028 = vmatpush.msra.mxu0 0.0
        %3029 = vmatpush.msra.mxu0 0.0
        %3030 = vmatpush.msra.mxu0 0.0
        %3031 = vmatpush.msra.mxu0 0.0
        %3032 = vmatpush.msra.mxu0 %v3012
        %3033 = vmatmul.f32.gmra.mxu0 %v3015
        %v3034 = vpop.f32.mrf.mxu0
        %v3035 = vadd.f32 0.0, %v3034
        %3036 = vdwg.mxu0
        %3038 = vrot.lane.b32.xlu0 %v3035, 20
        %v3039 = vpop.permute.xlu0 %3038
        %3041 = vst.msk [vmem:[#allocation2] sm:$0xff] %vm2130, %v3039
        %3042 = vrot.lane.b32.xlu0 %v2547, 104
        %v3043 = vpop.permute.xlu0 %3042
        %3044 = vrot.lane.b32.xlu0 %v2538, 72
        %v3045 = vpop.permute.xlu0 %3044
        %v3046 = vsel %vm1563, %v3043, 0
        %v3048 = vsel %vm1563, %v3045, 0
        %3050 = vmatpush.xpose.msra.mxu0 0.0
        %3051 = vmatpush.xpose.msra.mxu0 0.0
        %3052 = vmatpush.xpose.msra.mxu0 0.0
        %3053 = vmatpush.xpose.msra.mxu0 0.0
        %3054 = vmatpush.xpose.msra.mxu0 0.0
        %3055 = vmatpush.xpose.msra.mxu0 0.0
        %3056 = vmatpush.xpose.msra.mxu0 0.0
        %3057 = vmatpush.xpose.msra.mxu0 0.0
        %3058 = vmatpush.xpose.msra.mxu0 0.0
        %3059 = vmatpush.xpose.msra.mxu0 0.0
        %3060 = vmatpush.xpose.msra.mxu0 0.0
        %3061 = vmatpush.xpose.msra.mxu0 0.0
        %3062 = vmatpush.xpose.msra.mxu0 0.0
        %3063 = vmatpush.xpose.msra.mxu0 0.0
        %3064 = vmatpush.xpose.msra.mxu0 0.0
        %3065 = vmatpush.xpose.msra.mxu0 %v3048
        %3066 = vmatmul.f32.gmra.mxu0 %v3046
        %v3067 = vpop.f32.mrf.mxu0
        %v3068 = vadd.f32 %v1593, %v3067
        %3069 = vdwg.mxu0
        %v3070 = vsel %vm1660, %v3068, -inf
        %3071 = vmax.xlane.f32.xlu0 %v3070
        %v3072 = vpop.xlane.xlu0 %3071
        %v3073 = vsub.f32 %v3068, %v3072
        %v3074 = vmul.f32 %v3073, 1.442695
        %v3075 = vpow.pop %v3074
        %v3076 = vsel %vm1660, %v3075, 0.0
        %3077 = vadd.xlane.f32.xlu0 %v3076
        %v3078 = vpop.xlane.xlu0 %3077
        %v3079 = vrcp.pop %v3078
        %v3080 = vmul.f32 %v3078, %v3079
        %v3081 = vsub.f32 1.0, %v3080
        %v3082 = vmul.f32 %v3079, %v3081
        %v3083 = vadd.f32 %v3079, %v3082
        %vm3084 = vweird.f32 %v3078
        %vm3085 = vweird.f32 %v3079
        %vm3086 = vmor %vm3084, %vm3085
        %v3087 = vsel %vm3086, %v3079, %v3083
        %v3088 = vand.u32 2147483647, %v3078
        %vm3089 = vcmp.eq.f32.partialorder %v3088, 8.507059e+37
        %v3090 = vand.u32 %v3078, 2147483648
        %v3091 = vor.u32 1.1754944e-38, %v3090
        %v3092 = vsel %vm3089, %v3091, %v3087
        %v3093 = vmul.f32 %v3075, %v3092
        %3094 = vrot.lane.b32.xlu0 %v2538, 40
        %v3095 = vpop.permute.xlu0 %3094
        %v3098 = vsel %vm1660, %v3093, 0
        %3100 = vmatpush.msra.mxu0 0.0
        %3101 = vmatpush.msra.mxu0 0.0
        %3102 = vmatpush.msra.mxu0 0.0
        %3103 = vmatpush.msra.mxu0 0.0
        %3104 = vmatpush.msra.mxu0 0.0
        %3105 = vmatpush.msra.mxu0 0.0
        %3106 = vmatpush.msra.mxu0 0.0
        %3107 = vmatpush.msra.mxu0 0.0
        %3108 = vmatpush.msra.mxu0 0.0
        %3109 = vmatpush.msra.mxu0 0.0
        %3110 = vmatpush.msra.mxu0 0.0
        %3111 = vmatpush.msra.mxu0 0.0
        %3112 = vmatpush.msra.mxu0 0.0
        %3113 = vmatpush.msra.mxu0 0.0
        %3114 = vmatpush.msra.mxu0 0.0
        %3115 = vmatpush.msra.mxu0 %v3095
        %3116 = vmatmul.f32.gmra.mxu0 %v3098
        %v3117 = vpop.f32.mrf.mxu0
        %v3118 = vadd.f32 0.0, %v3117
        %3119 = vdwg.mxu0
        %3121 = vrot.lane.b32.xlu0 %v3118, 24
        %v3122 = vpop.permute.xlu0 %3121
        %3124 = vst.msk [vmem:[#allocation2] sm:$0xff] %vm2214, %v3122
        %3125 = vrot.lane.b32.xlu0 %v2547, 100
        %v3126 = vpop.permute.xlu0 %3125
        %3127 = vrot.lane.b32.xlu0 %v2538, 68
        %v3128 = vpop.permute.xlu0 %3127
        %v3129 = vsel %vm1563, %v3126, 0
        %v3131 = vsel %vm1563, %v3128, 0
        %3133 = vmatpush.xpose.msra.mxu0 0.0
        %3134 = vmatpush.xpose.msra.mxu0 0.0
        %3135 = vmatpush.xpose.msra.mxu0 0.0
        %3136 = vmatpush.xpose.msra.mxu0 0.0
        %3137 = vmatpush.xpose.msra.mxu0 0.0
        %3138 = vmatpush.xpose.msra.mxu0 0.0
        %3139 = vmatpush.xpose.msra.mxu0 0.0
        %3140 = vmatpush.xpose.msra.mxu0 0.0
        %3141 = vmatpush.xpose.msra.mxu0 0.0
        %3142 = vmatpush.xpose.msra.mxu0 0.0
        %3143 = vmatpush.xpose.msra.mxu0 0.0
        %3144 = vmatpush.xpose.msra.mxu0 0.0
        %3145 = vmatpush.xpose.msra.mxu0 0.0
        %3146 = vmatpush.xpose.msra.mxu0 0.0
        %3147 = vmatpush.xpose.msra.mxu0 0.0
        %3148 = vmatpush.xpose.msra.mxu0 %v3131
        %3149 = vmatmul.f32.gmra.mxu0 %v3129
        %v3150 = vpop.f32.mrf.mxu0
        %v3151 = vadd.f32 %v1593, %v3150
        %3152 = vdwg.mxu0
        %v3153 = vsel %vm1660, %v3151, -inf
        %3154 = vmax.xlane.f32.xlu0 %v3153
        %v3155 = vpop.xlane.xlu0 %3154
        %v3156 = vsub.f32 %v3151, %v3155
        %v3157 = vmul.f32 %v3156, 1.442695
        %v3158 = vpow.pop %v3157
        %v3159 = vsel %vm1660, %v3158, 0.0
        %3160 = vadd.xlane.f32.xlu0 %v3159
        %v3161 = vpop.xlane.xlu0 %3160
        %v3162 = vrcp.pop %v3161
        %v3163 = vmul.f32 %v3161, %v3162
        %v3164 = vsub.f32 1.0, %v3163
        %v3165 = vmul.f32 %v3162, %v3164
        %v3166 = vadd.f32 %v3162, %v3165
        %vm3167 = vweird.f32 %v3161
        %vm3168 = vweird.f32 %v3162
        %vm3169 = vmor %vm3167, %vm3168
        %v3170 = vsel %vm3169, %v3162, %v3166
        %v3171 = vand.u32 2147483647, %v3161
        %vm3172 = vcmp.eq.f32.partialorder %v3171, 8.507059e+37
        %v3173 = vand.u32 %v3161, 2147483648
        %v3174 = vor.u32 1.1754944e-38, %v3173
        %v3175 = vsel %vm3172, %v3174, %v3170
        %v3176 = vmul.f32 %v3158, %v3175
        %3177 = vrot.lane.b32.xlu0 %v2538, 36
        %v3178 = vpop.permute.xlu0 %3177
        %v3181 = vsel %vm1660, %v3176, 0
        %3183 = vmatpush.msra.mxu0 0.0
        %3184 = vmatpush.msra.mxu0 0.0
        %3185 = vmatpush.msra.mxu0 0.0
        %3186 = vmatpush.msra.mxu0 0.0
        %3187 = vmatpush.msra.mxu0 0.0
        %3188 = vmatpush.msra.mxu0 0.0
        %3189 = vmatpush.msra.mxu0 0.0
        %3190 = vmatpush.msra.mxu0 0.0
        %3191 = vmatpush.msra.mxu0 0.0
        %3192 = vmatpush.msra.mxu0 0.0
        %3193 = vmatpush.msra.mxu0 0.0
        %3194 = vmatpush.msra.mxu0 0.0
        %3195 = vmatpush.msra.mxu0 0.0
        %3196 = vmatpush.msra.mxu0 0.0
        %3197 = vmatpush.msra.mxu0 0.0
        %3198 = vmatpush.msra.mxu0 %v3178
        %3199 = vmatmul.f32.gmra.mxu0 %v3181
        %v3200 = vpop.f32.mrf.mxu0
        %v3201 = vadd.f32 0.0, %v3200
        %3202 = vdwg.mxu0
        %3204 = vrot.lane.b32.xlu0 %v3201, 28
        %v3205 = vpop.permute.xlu0 %3204
        %3207 = vst.msk [vmem:[#allocation2] sm:$0xff] %vm2298, %v3205
        %v3208 = vld [vmem:[#allocation2] sm:$0xff]
        %v3210 = vperm.slane %v2546, 0
        %v3213 = vsel %vm1602, %v3208, 0
        %3215 = vmatpush.msra.mxu0 0.0
        %3216 = vmatpush.msra.mxu0 0.0
        %3217 = vmatpush.msra.mxu0 0.0
        %3218 = vmatpush.msra.mxu0 0.0
        %3219 = vmatpush.msra.mxu0 0.0
        %3220 = vmatpush.msra.mxu0 0.0
        %3221 = vmatpush.msra.mxu0 0.0
        %3222 = vmatpush.msra.mxu0 0.0
        %3223 = vmatpush.msra.mxu0 0.0
        %3224 = vmatpush.msra.mxu0 0.0
        %3225 = vmatpush.msra.mxu0 0.0
        %3226 = vmatpush.msra.mxu0 0.0
        %3227 = vmatpush.msra.mxu0 %v2544
        %3228 = vmatpush.msra.mxu0 %v2543
        %3229 = vmatpush.msra.mxu0 %v2542
        %3230 = vmatpush.msra.mxu0 %v2541
        %3231 = vmatmul.f32.gmra.mxu0 %v3213
        %v3232 = vpop.f32.mrf.mxu0
        %v3233 = vadd.f32 %v3210, %v3232
        %3234 = vdwg.mxu0
        %v3235 = vadd.f32 %v2506, %v3233
        %s3236 = scalar_lea.vmem %s29, 1
        %v3237 = vld [vmem:[%s3236] sm:$0x1]
        %s3238 = scalar_lea.vmem %s31, 1
        %v3239 = vld [vmem:[%s3238] sm:$0x1]
        %v3240 = vsel %vm1602, %v3235, 0.0
        %3241 = vadd.xlane.f32.xlu0 %v3240
        %v3242 = vpop.xlane.xlu0 %3241
        %v3243 = vmul.f32 %v3242, %v2339
        %v3244 = vsub.f32 %v3235, %v3243
        %v3245 = vmul.f32 %v3244, %v3244
        %v3246 = vsel %vm1602, %v3245, 0.0
        %3247 = vadd.xlane.f32.xlu0 %v3246
        %v3248 = vpop.xlane.xlu0 %3247
        %v3249 = vmul.f32 %v3248, %v2339
        %v3250 = vadd.f32 %v3249, 1e-05
        %v3251 = vrsqrt.pop %v3250
        %v3252 = vmul.f32 %v3251, %v3250
        %v3253 = vmul.f32 %v3252, %v3251
        %v3254 = vmul.f32 0.5, %v3253
        %v3255 = vsub.f32 1.5, %v3254
        %v3256 = vmul.f32 %v3251, %v3255
        %vm3257 = vweird.f32 %v3250
        %vm3258 = vweird.f32 %v3251
        %vm3259 = vmor %vm3257, %vm3258
        %v3260 = vsel %vm3259, %v3251, %v3256
        %v3261 = vmul.f32 %v3244, %v3260
        %v3263 = vperm.slane %v3237, 0
        %v3265 = vmul.f32 %v3261, %v3263
        %v3267 = vperm.slane %v3239, 0
        %v3269 = vadd.f32 %v3265, %v3267
        %s3270 = scalar_lea.vmem %s33, 32
        %v3271 = vld [vmem:[%s3270] sm:$0xff]
        %v3272 = vld [vmem:[%s3270 + $0x8] sm:$0xff]
        %v3273 = vld [vmem:[%s3270 + $0x10] sm:$0xff]
        %v3274 = vld [vmem:[%s3270 + $0x18] sm:$0xff]
        %s3275 = scalar_lea.vmem %s35, 1
        %v3276 = vld [vmem:[%s3275] sm:$0x1]
        %v3278 = vperm.slane %v3276, 0
        %v3281 = vsel %vm1602, %v3269, 0
        %3283 = vmatpush.msra.mxu0 0.0
        %3284 = vmatpush.msra.mxu0 0.0
        %3285 = vmatpush.msra.mxu0 0.0
        %3286 = vmatpush.msra.mxu0 0.0
        %3287 = vmatpush.msra.mxu0 0.0
        %3288 = vmatpush.msra.mxu0 0.0
        %3289 = vmatpush.msra.mxu0 0.0
        %3290 = vmatpush.msra.mxu0 0.0
        %3291 = vmatpush.msra.mxu0 0.0
        %3292 = vmatpush.msra.mxu0 0.0
        %3293 = vmatpush.msra.mxu0 0.0
        %3294 = vmatpush.msra.mxu0 0.0
        %3295 = vmatpush.msra.mxu0 %v3274
        %3296 = vmatpush.msra.mxu0 %v3273
        %3297 = vmatpush.msra.mxu0 %v3272
        %3298 = vmatpush.msra.mxu0 %v3271
        %3299 = vmatmul.f32.gmra.mxu0 %v3281
        %v3300 = vpop.f32.mrf.mxu0
        %v3301 = vadd.f32 %v3278, %v3300
        %3302 = vdwg.mxu0
        %v3303 = vmul.f32 %v3301, 0.5
        %v3304 = vmul.f32 %v3301, 0.70710677
        %vm3305 = vcmp.lt.f32.partialorder %v3304, 0.0
        %v3306 = vsel %vm3305, -1.0, 1.0
        %v3307 = vand.u32 2147483647, %v3304
        %v3308 = vmul.f32 %v3307, 0.3275911
        %v3309 = vadd.f32 %v3308, 1.0
        %v3310 = vrcp.pop %v3309
        %v3311 = vmul.f32 %v3309, %v3310
        %v3312 = vsub.f32 1.0, %v3311
        %v3313 = vmul.f32 %v3310, %v3312
        %v3314 = vadd.f32 %v3310, %v3313
        %vm3315 = vweird.f32 %v3309
        %vm3316 = vweird.f32 %v3310
        %vm3317 = vmor %vm3315, %vm3316
        %v3318 = vsel %vm3317, %v3310, %v3314
        %v3319 = vand.u32 2147483647, %v3309
        %vm3320 = vcmp.eq.f32.partialorder %v3319, 8.507059e+37
        %v3321 = vand.u32 %v3309, 2147483648
        %v3322 = vor.u32 1.1754944e-38, %v3321
        %v3323 = vsel %vm3320, %v3322, %v3318
        %v3324 = vmul.f32 1.0, %v3323
        %v3325 = vmul.f32 %v3324, 1.0614054
        %v3326 = vadd.f32 %v3325, -1.4531521
        %v3327 = vmul.f32 %v3326, %v3324
        %v3328 = vadd.f32 %v3327, 1.4214138
        %v3329 = vmul.f32 %v3328, %v3324
        %v3330 = vadd.f32 %v3329, -0.28449672
        %v3331 = vmul.f32 %v3330, %v3324
        %v3332 = vadd.f32 %v3331, 0.2548296
        %v3333 = vmul.f32 %v3332, %v3324
        %v3334 = vsub.f32 0.0, %v3307
        %v3335 = vmul.f32 %v3334, %v3307
        %v3336 = vmul.f32 %v3335, 1.442695
        %v3337 = vpow.pop %v3336
        %v3338 = vmul.f32 %v3333, %v3337
        %v3339 = vsub.f32 1.0, %v3338
        %v3340 = vmul.f32 %v3306, %v3339
        %v3341 = vadd.f32 %v3340, 1.0
        %v3342 = vmul.f32 %v3303, %v3341
        %s3343 = scalar_lea.vmem %s37, 64
        %v3344 = vld [vmem:[%s3343] sm:$0xff]
        %v3345 = vld [vmem:[%s3343 + $0x8] sm:$0xff]
        %v3346 = vld [vmem:[%s3343 + $0x10] sm:$0xff]
        %v3347 = vld [vmem:[%s3343 + $0x18] sm:$0xff]
        %v3348 = vld [vmem:[%s3343 + $0x20] sm:$0xff]
        %v3349 = vld [vmem:[%s3343 + $0x28] sm:$0xff]
        %v3350 = vld [vmem:[%s3343 + $0x30] sm:$0xff]
        %v3351 = vld [vmem:[%s3343 + $0x38] sm:$0xff]
        %s3352 = scalar_lea.vmem %s39, 1
        %v3353 = vld [vmem:[%s3352] sm:$0x1]
        %v3355 = vperm.slane %v3353, 0
        %v3358 = vsel %vm2450, %v3342, 0
        %3360 = vmatpush.msra.mxu0 0.0
        %3361 = vmatpush.msra.mxu0 0.0
        %3362 = vmatpush.msra.mxu0 0.0
        %3363 = vmatpush.msra.mxu0 0.0
        %3364 = vmatpush.msra.mxu0 0.0
        %3365 = vmatpush.msra.mxu0 0.0
        %3366 = vmatpush.msra.mxu0 0.0
        %3367 = vmatpush.msra.mxu0 0.0
        %3368 = vmatpush.msra.mxu0 %v3351
        %3369 = vmatpush.msra.mxu0 %v3350
        %3370 = vmatpush.msra.mxu0 %v3349
        %3371 = vmatpush.msra.mxu0 %v3348
        %3372 = vmatpush.msra.mxu0 %v3347
        %3373 = vmatpush.msra.mxu0 %v3346
        %3374 = vmatpush.msra.mxu0 %v3345
        %3375 = vmatpush.msra.mxu0 %v3344
        %3376 = vmatmul.f32.gmra.mxu0 %v3358
        %v3377 = vpop.f32.mrf.mxu0
        %v3378 = vadd.f32 %v3355, %v3377
        %3379 = vdwg.mxu0
        %v3380 = vadd.f32 %v3269, %v3378
        %s3381 = scalar_lea.vmem %s41, 1
        %v3382 = vld [vmem:[%s3381] sm:$0x1]
        %s3383 = scalar_lea.vmem %s43, 1
        %v3384 = vld [vmem:[%s3383] sm:$0x1]
        %v3385 = vsel %vm1602, %v3380, 0.0
        %3386 = vadd.xlane.f32.xlu0 %v3385
        %v3387 = vpop.xlane.xlu0 %3386
        %v3388 = vmul.f32 %v3387, %v2339
        %v3389 = vsub.f32 %v3380, %v3388
        %v3390 = vmul.f32 %v3389, %v3389
        %v3391 = vsel %vm1602, %v3390, 0.0
        %3392 = vadd.xlane.f32.xlu0 %v3391
        %v3393 = vpop.xlane.xlu0 %3392
        %v3394 = vmul.f32 %v3393, %v2339
        %v3395 = vadd.f32 %v3394, 1e-05
        %v3396 = vrsqrt.pop %v3395
        %v3397 = vmul.f32 %v3396, %v3395
        %v3398 = vmul.f32 %v3397, %v3396
        %v3399 = vmul.f32 0.5, %v3398
        %v3400 = vsub.f32 1.5, %v3399
        %v3401 = vmul.f32 %v3396, %v3400
        %vm3402 = vweird.f32 %v3395
        %vm3403 = vweird.f32 %v3396
        %vm3404 = vmor %vm3402, %vm3403
        %v3405 = vsel %vm3404, %v3396, %v3401
        %v3406 = vmul.f32 %v3389, %v3405
        %v3408 = vperm.slane %v3382, 0
        %v3410 = vmul.f32 %v3406, %v3408
        %v3412 = vperm.slane %v3384, 0
        %v3414 = vadd.f32 %v3410, %v3412
        %v3415 = vld [vmem:[%s45] sm:$0x1]
        %v3416 = vld [vmem:[%s47] sm:$0x1]
        %v3417 = vsel %vm1602, %v3414, 0.0
        %3418 = vadd.xlane.f32.xlu0 %v3417
        %v3419 = vpop.xlane.xlu0 %3418
        %v3420 = vmul.f32 %v3419, %v2339
        %v3421 = vsub.f32 %v3414, %v3420
        %v3422 = vmul.f32 %v3421, %v3421
        %v3423 = vsel %vm1602, %v3422, 0.0
        %3424 = vadd.xlane.f32.xlu0 %v3423
        %v3425 = vpop.xlane.xlu0 %3424
        %v3426 = vmul.f32 %v3425, %v2339
        %v3427 = vadd.f32 %v3426, 1e-05
        %v3428 = vrsqrt.pop %v3427
        %v3429 = vmul.f32 %v3428, %v3427
        %v3430 = vmul.f32 %v3429, %v3428
        %v3431 = vmul.f32 0.5, %v3430
        %v3432 = vsub.f32 1.5, %v3431
        %v3433 = vmul.f32 %v3428, %v3432
        %vm3434 = vweird.f32 %v3427
        %vm3435 = vweird.f32 %v3428
        %vm3436 = vmor %vm3434, %vm3435
        %v3437 = vsel %vm3436, %v3428, %v3433
        %v3438 = vmul.f32 %v3421, %v3437
        %v3440 = vperm.slane %v3415, 0
        %v3442 = vmul.f32 %v3438, %v3440
        %v3444 = vperm.slane %v3416, 0
        %v3446 = vadd.f32 %v3442, %v3444
        %v3447 = vld [vmem:[%s1552] sm:$0xff]
        %v3448 = vld [vmem:[%s13] sm:$0xf]
        %v3449 = vld [vmem:[%s15] sm:$0x1]
        %v3451 = vperm.slane %v3449, 0
        %v3454 = vsel %vm1563, %v3447, 0
        %v3457 = vsel %vm1567, %v3448, 0
        %3459 = vmatpush.msra.mxu0 0.0
        %3460 = vmatpush.msra.mxu0 0.0
        %3461 = vmatpush.msra.mxu0 0.0
        %3462 = vmatpush.msra.mxu0 0.0
        %3463 = vmatpush.msra.mxu0 0.0
        %3464 = vmatpush.msra.mxu0 0.0
        %3465 = vmatpush.msra.mxu0 0.0
        %3466 = vmatpush.msra.mxu0 0.0
        %3467 = vmatpush.msra.mxu0 0.0
        %3468 = vmatpush.msra.mxu0 0.0
        %3469 = vmatpush.msra.mxu0 0.0
        %3470 = vmatpush.msra.mxu0 0.0
        %3471 = vmatpush.msra.mxu0 0.0
        %3472 = vmatpush.msra.mxu0 0.0
        %3473 = vmatpush.msra.mxu0 0.0
        %3474 = vmatpush.msra.mxu0 %v3457
        %3475 = vmatmul.f32.gmra.mxu0 %v3454
        %v3476 = vpop.f32.mrf.mxu0
        %v3477 = vadd.f32 %v3451, %v3476
        %3478 = vdwg.mxu0
        %v3479 = vld [vmem:[%s19] sm:$0xff]
        %v3480 = vadd.f32 %v3477, %v3479
        %v3481 = vld [vmem:[%s7] sm:$0xff]
        %v3482 = vld [vmem:[%s49] sm:$0xff]
        %v3483 = vld [vmem:[%s49 + $0x8] sm:$0xff]
        %v3484 = vld [vmem:[%s49 + $0x10] sm:$0xff]
        %v3485 = vld [vmem:[%s49 + $0x18] sm:$0xff]
        %v3486 = vld [vmem:[%s51] sm:$0x1]
        %v3488 = vperm.slane %v3486, 0
        %v3491 = vsel %vm1602, %v3480, 0
        %3493 = vmatpush.msra.mxu0 0.0
        %3494 = vmatpush.msra.mxu0 0.0
        %3495 = vmatpush.msra.mxu0 0.0
        %3496 = vmatpush.msra.mxu0 0.0
        %3497 = vmatpush.msra.mxu0 0.0
        %3498 = vmatpush.msra.mxu0 0.0
        %3499 = vmatpush.msra.mxu0 0.0
        %3500 = vmatpush.msra.mxu0 0.0
        %3501 = vmatpush.msra.mxu0 0.0
        %3502 = vmatpush.msra.mxu0 0.0
        %3503 = vmatpush.msra.mxu0 0.0
        %3504 = vmatpush.msra.mxu0 0.0
        %3505 = vmatpush.msra.mxu0 %v3485
        %3506 = vmatpush.msra.mxu0 %v3484
        %3507 = vmatpush.msra.mxu0 %v3483
        %3508 = vmatpush.msra.mxu0 %v3482
        %3509 = vmatmul.f32.gmra.mxu0 %v3491
        %v3510 = vpop.f32.mrf.mxu0
        %v3511 = vadd.f32 %v3488, %v3510
        %3512 = vdwg.mxu0
        %v3513 = vld [vmem:[%s53] sm:$0xff]
        %v3514 = vld [vmem:[%s53 + $0x8] sm:$0xff]
        %v3515 = vld [vmem:[%s53 + $0x10] sm:$0xff]
        %v3516 = vld [vmem:[%s53 + $0x18] sm:$0xff]
        %v3517 = vld [vmem:[%s55] sm:$0x1]
        %v3518 = vmul.f32 %v3511, 0.5
        %3520 = vrot.lane.b32.xlu0 %v3511, 96
        %v3521 = vpop.permute.xlu0 %3520
        %v3523 = vsel %vm1563, %v3518, 0
        %v3525 = vsel %vm1563, %v3521, 0
        %3527 = vmatpush.xpose.msra.mxu0 0.0
        %3528 = vmatpush.xpose.msra.mxu0 0.0
        %3529 = vmatpush.xpose.msra.mxu0 0.0
        %3530 = vmatpush.xpose.msra.mxu0 0.0
        %3531 = vmatpush.xpose.msra.mxu0 0.0
        %3532 = vmatpush.xpose.msra.mxu0 0.0
        %3533 = vmatpush.xpose.msra.mxu0 0.0
        %3534 = vmatpush.xpose.msra.mxu0 0.0
        %3535 = vmatpush.xpose.msra.mxu0 0.0
        %3536 = vmatpush.xpose.msra.mxu0 0.0
        %3537 = vmatpush.xpose.msra.mxu0 0.0
        %3538 = vmatpush.xpose.msra.mxu0 0.0
        %3539 = vmatpush.xpose.msra.mxu0 0.0
        %3540 = vmatpush.xpose.msra.mxu0 0.0
        %3541 = vmatpush.xpose.msra.mxu0 0.0
        %3542 = vmatpush.xpose.msra.mxu0 %v3525
        %3543 = vmatmul.f32.gmra.mxu0 %v3523
        %v3544 = vpop.f32.mrf.mxu0
        %v3545 = vadd.f32 %v3481, %v3544
        %3546 = vdwg.mxu0
        %v3547 = vsel %vm1660, %v3545, -inf
        %3548 = vmax.xlane.f32.xlu0 %v3547
        %v3549 = vpop.xlane.xlu0 %3548
        %v3550 = vsub.f32 %v3545, %v3549
        %v3551 = vmul.f32 %v3550, 1.442695
        %v3552 = vpow.pop %v3551
        %v3553 = vsel %vm1660, %v3552, 0.0
        %3554 = vadd.xlane.f32.xlu0 %v3553
        %v3555 = vpop.xlane.xlu0 %3554
        %v3556 = vrcp.pop %v3555
        %v3557 = vmul.f32 %v3555, %v3556
        %v3558 = vsub.f32 1.0, %v3557
        %v3559 = vmul.f32 %v3556, %v3558
        %v3560 = vadd.f32 %v3556, %v3559
        %vm3561 = vweird.f32 %v3555
        %vm3562 = vweird.f32 %v3556
        %vm3563 = vmor %vm3561, %vm3562
        %v3564 = vsel %vm3563, %v3556, %v3560
        %v3565 = vand.u32 2147483647, %v3555
        %vm3566 = vcmp.eq.f32.partialorder %v3565, 8.507059e+37
        %v3567 = vand.u32 %v3555, 2147483648
        %v3568 = vor.u32 1.1754944e-38, %v3567
        %v3569 = vsel %vm3566, %v3568, %v3564
        %v3570 = vmul.f32 %v3552, %v3569
        %3571 = vrot.lane.b32.xlu0 %v3511, 64
        %v3572 = vpop.permute.xlu0 %3571
        %v3575 = vsel %vm1660, %v3570, 0
        %3577 = vmatpush.msra.mxu0 0.0
        %3578 = vmatpush.msra.mxu0 0.0
        %3579 = vmatpush.msra.mxu0 0.0
        %3580 = vmatpush.msra.mxu0 0.0
        %3581 = vmatpush.msra.mxu0 0.0
        %3582 = vmatpush.msra.mxu0 0.0
        %3583 = vmatpush.msra.mxu0 0.0
        %3584 = vmatpush.msra.mxu0 0.0
        %3585 = vmatpush.msra.mxu0 0.0
        %3586 = vmatpush.msra.mxu0 0.0
        %3587 = vmatpush.msra.mxu0 0.0
        %3588 = vmatpush.msra.mxu0 0.0
        %3589 = vmatpush.msra.mxu0 0.0
        %3590 = vmatpush.msra.mxu0 0.0
        %3591 = vmatpush.msra.mxu0 0.0
        %3592 = vmatpush.msra.mxu0 %v3572
        %3593 = vmatmul.f32.gmra.mxu0 %v3575
        %v3594 = vpop.f32.mrf.mxu0
        %v3595 = vadd.f32 0.0, %v3594
        %3596 = vdwg.mxu0
        %3597 = vst.msk [vmem:[#allocation2] sm:$0xff] %vm1563, %v3595
        %3598 = vrot.lane.b32.xlu0 %v3518, 124
        %v3599 = vpop.permute.xlu0 %3598
        %3600 = vrot.lane.b32.xlu0 %v3511, 92
        %v3601 = vpop.permute.xlu0 %3600
        %v3602 = vsel %vm1563, %v3599, 0
        %v3604 = vsel %vm1563, %v3601, 0
        %3606 = vmatpush.xpose.msra.mxu0 0.0
        %3607 = vmatpush.xpose.msra.mxu0 0.0
        %3608 = vmatpush.xpose.msra.mxu0 0.0
        %3609 = vmatpush.xpose.msra.mxu0 0.0
        %3610 = vmatpush.xpose.msra.mxu0 0.0
        %3611 = vmatpush.xpose.msra.mxu0 0.0
        %3612 = vmatpush.xpose.msra.mxu0 0.0
        %3613 = vmatpush.xpose.msra.mxu0 0.0
        %3614 = vmatpush.xpose.msra.mxu0 0.0
        %3615 = vmatpush.xpose.msra.mxu0 0.0
        %3616 = vmatpush.xpose.msra.mxu0 0.0
        %3617 = vmatpush.xpose.msra.mxu0 0.0
        %3618 = vmatpush.xpose.msra.mxu0 0.0
        %3619 = vmatpush.xpose.msra.mxu0 0.0
        %3620 = vmatpush.xpose.msra.mxu0 0.0
        %3621 = vmatpush.xpose.msra.mxu0 %v3604
        %3622 = vmatmul.f32.gmra.mxu0 %v3602
        %v3623 = vpop.f32.mrf.mxu0
        %v3624 = vadd.f32 %v3481, %v3623
        %3625 = vdwg.mxu0
        %v3626 = vsel %vm1660, %v3624, -inf
        %3627 = vmax.xlane.f32.xlu0 %v3626
        %v3628 = vpop.xlane.xlu0 %3627
        %v3629 = vsub.f32 %v3624, %v3628
        %v3630 = vmul.f32 %v3629, 1.442695
        %v3631 = vpow.pop %v3630
        %v3632 = vsel %vm1660, %v3631, 0.0
        %3633 = vadd.xlane.f32.xlu0 %v3632
        %v3634 = vpop.xlane.xlu0 %3633
        %v3635 = vrcp.pop %v3634
        %v3636 = vmul.f32 %v3634, %v3635
        %v3637 = vsub.f32 1.0, %v3636
        %v3638 = vmul.f32 %v3635, %v3637
        %v3639 = vadd.f32 %v3635, %v3638
        %vm3640 = vweird.f32 %v3634
        %vm3641 = vweird.f32 %v3635
        %vm3642 = vmor %vm3640, %vm3641
        %v3643 = vsel %vm3642, %v3635, %v3639
        %v3644 = vand.u32 2147483647, %v3634
        %vm3645 = vcmp.eq.f32.partialorder %v3644, 8.507059e+37
        %v3646 = vand.u32 %v3634, 2147483648
        %v3647 = vor.u32 1.1754944e-38, %v3646
        %v3648 = vsel %vm3645, %v3647, %v3643
        %v3649 = vmul.f32 %v3631, %v3648
        %3650 = vrot.lane.b32.xlu0 %v3511, 60
        %v3651 = vpop.permute.xlu0 %3650
        %v3654 = vsel %vm1660, %v3649, 0
        %3656 = vmatpush.msra.mxu0 0.0
        %3657 = vmatpush.msra.mxu0 0.0
        %3658 = vmatpush.msra.mxu0 0.0
        %3659 = vmatpush.msra.mxu0 0.0
        %3660 = vmatpush.msra.mxu0 0.0
        %3661 = vmatpush.msra.mxu0 0.0
        %3662 = vmatpush.msra.mxu0 0.0
        %3663 = vmatpush.msra.mxu0 0.0
        %3664 = vmatpush.msra.mxu0 0.0
        %3665 = vmatpush.msra.mxu0 0.0
        %3666 = vmatpush.msra.mxu0 0.0
        %3667 = vmatpush.msra.mxu0 0.0
        %3668 = vmatpush.msra.mxu0 0.0
        %3669 = vmatpush.msra.mxu0 0.0
        %3670 = vmatpush.msra.mxu0 0.0
        %3671 = vmatpush.msra.mxu0 %v3651
        %3672 = vmatmul.f32.gmra.mxu0 %v3654
        %v3673 = vpop.f32.mrf.mxu0
        %v3674 = vadd.f32 0.0, %v3673
        %3675 = vdwg.mxu0
        %3677 = vrot.lane.b32.xlu0 %v3674, 4
        %v3678 = vpop.permute.xlu0 %3677
        %3680 = vst.msk [vmem:[#allocation2] sm:$0xff] %vm1794, %v3678
        %3681 = vrot.lane.b32.xlu0 %v3518, 120
        %v3682 = vpop.permute.xlu0 %3681
        %3683 = vrot.lane.b32.xlu0 %v3511, 88
        %v3684 = vpop.permute.xlu0 %3683
        %v3685 = vsel %vm1563, %v3682, 0
        %v3687 = vsel %vm1563, %v3684, 0
        %3689 = vmatpush.xpose.msra.mxu0 0.0
        %3690 = vmatpush.xpose.msra.mxu0 0.0
        %3691 = vmatpush.xpose.msra.mxu0 0.0
        %3692 = vmatpush.xpose.msra.mxu0 0.0
        %3693 = vmatpush.xpose.msra.mxu0 0.0
        %3694 = vmatpush.xpose.msra.mxu0 0.0
        %3695 = vmatpush.xpose.msra.mxu0 0.0
        %3696 = vmatpush.xpose.msra.mxu0 0.0
        %3697 = vmatpush.xpose.msra.mxu0 0.0
        %3698 = vmatpush.xpose.msra.mxu0 0.0
        %3699 = vmatpush.xpose.msra.mxu0 0.0
        %3700 = vmatpush.xpose.msra.mxu0 0.0
        %3701 = vmatpush.xpose.msra.mxu0 0.0
        %3702 = vmatpush.xpose.msra.mxu0 0.0
        %3703 = vmatpush.xpose.msra.mxu0 0.0
        %3704 = vmatpush.xpose.msra.mxu0 %v3687
        %3705 = vmatmul.f32.gmra.mxu0 %v3685
        %v3706 = vpop.f32.mrf.mxu0
        %v3707 = vadd.f32 %v3481, %v3706
        %3708 = vdwg.mxu0
        %v3709 = vsel %vm1660, %v3707, -inf
        %3710 = vmax.xlane.f32.xlu0 %v3709
        %v3711 = vpop.xlane.xlu0 %3710
        %v3712 = vsub.f32 %v3707, %v3711
        %v3713 = vmul.f32 %v3712, 1.442695
        %v3714 = vpow.pop %v3713
        %v3715 = vsel %vm1660, %v3714, 0.0
        %3716 = vadd.xlane.f32.xlu0 %v3715
        %v3717 = vpop.xlane.xlu0 %3716
        %v3718 = vrcp.pop %v3717
        %v3719 = vmul.f32 %v3717, %v3718
        %v3720 = vsub.f32 1.0, %v3719
        %v3721 = vmul.f32 %v3718, %v3720
        %v3722 = vadd.f32 %v3718, %v3721
        %vm3723 = vweird.f32 %v3717
        %vm3724 = vweird.f32 %v3718
        %vm3725 = vmor %vm3723, %vm3724
        %v3726 = vsel %vm3725, %v3718, %v3722
        %v3727 = vand.u32 2147483647, %v3717
        %vm3728 = vcmp.eq.f32.partialorder %v3727, 8.507059e+37
        %v3729 = vand.u32 %v3717, 2147483648
        %v3730 = vor.u32 1.1754944e-38, %v3729
        %v3731 = vsel %vm3728, %v3730, %v3726
        %v3732 = vmul.f32 %v3714, %v3731
        %3733 = vrot.lane.b32.xlu0 %v3511, 56
        %v3734 = vpop.permute.xlu0 %3733
        %v3737 = vsel %vm1660, %v3732, 0
        %3739 = vmatpush.msra.mxu0 0.0
        %3740 = vmatpush.msra.mxu0 0.0
        %3741 = vmatpush.msra.mxu0 0.0
        %3742 = vmatpush.msra.mxu0 0.0
        %3743 = vmatpush.msra.mxu0 0.0
        %3744 = vmatpush.msra.mxu0 0.0
        %3745 = vmatpush.msra.mxu0 0.0
        %3746 = vmatpush.msra.mxu0 0.0
        %3747 = vmatpush.msra.mxu0 0.0
        %3748 = vmatpush.msra.mxu0 0.0
        %3749 = vmatpush.msra.mxu0 0.0
        %3750 = vmatpush.msra.mxu0 0.0
        %3751 = vmatpush.msra.mxu0 0.0
        %3752 = vmatpush.msra.mxu0 0.0
        %3753 = vmatpush.msra.mxu0 0.0
        %3754 = vmatpush.msra.mxu0 %v3734
        %3755 = vmatmul.f32.gmra.mxu0 %v3737
        %v3756 = vpop.f32.mrf.mxu0
        %v3757 = vadd.f32 0.0, %v3756
        %3758 = vdwg.mxu0
        %3760 = vrot.lane.b32.xlu0 %v3757, 8
        %v3761 = vpop.permute.xlu0 %3760
        %3763 = vst.msk [vmem:[#allocation2] sm:$0xff] %vm1878, %v3761
        %3764 = vrot.lane.b32.xlu0 %v3518, 116
        %v3765 = vpop.permute.xlu0 %3764
        %3766 = vrot.lane.b32.xlu0 %v3511, 84
        %v3767 = vpop.permute.xlu0 %3766
        %v3768 = vsel %vm1563, %v3765, 0
        %v3770 = vsel %vm1563, %v3767, 0
        %3772 = vmatpush.xpose.msra.mxu0 0.0
        %3773 = vmatpush.xpose.msra.mxu0 0.0
        %3774 = vmatpush.xpose.msra.mxu0 0.0
        %3775 = vmatpush.xpose.msra.mxu0 0.0
        %3776 = vmatpush.xpose.msra.mxu0 0.0
        %3777 = vmatpush.xpose.msra.mxu0 0.0
        %3778 = vmatpush.xpose.msra.mxu0 0.0
        %3779 = vmatpush.xpose.msra.mxu0 0.0
        %3780 = vmatpush.xpose.msra.mxu0 0.0
        %3781 = vmatpush.xpose.msra.mxu0 0.0
        %3782 = vmatpush.xpose.msra.mxu0 0.0
        %3783 = vmatpush.xpose.msra.mxu0 0.0
        %3784 = vmatpush.xpose.msra.mxu0 0.0
        %3785 = vmatpush.xpose.msra.mxu0 0.0
        %3786 = vmatpush.xpose.msra.mxu0 0.0
        %3787 = vmatpush.xpose.msra.mxu0 %v3770
        %3788 = vmatmul.f32.gmra.mxu0 %v3768
        %v3789 = vpop.f32.mrf.mxu0
        %v3790 = vadd.f32 %v3481, %v3789
        %3791 = vdwg.mxu0
        %v3792 = vsel %vm1660, %v3790, -inf
        %3793 = vmax.xlane.f32.xlu0 %v3792
        %v3794 = vpop.xlane.xlu0 %3793
        %v3795 = vsub.f32 %v3790, %v3794
        %v3796 = vmul.f32 %v3795, 1.442695
        %v3797 = vpow.pop %v3796
        %v3798 = vsel %vm1660, %v3797, 0.0
        %3799 = vadd.xlane.f32.xlu0 %v3798
        %v3800 = vpop.xlane.xlu0 %3799
        %v3801 = vrcp.pop %v3800
        %v3802 = vmul.f32 %v3800, %v3801
        %v3803 = vsub.f32 1.0, %v3802
        %v3804 = vmul.f32 %v3801, %v3803
        %v3805 = vadd.f32 %v3801, %v3804
        %vm3806 = vweird.f32 %v3800
        %vm3807 = vweird.f32 %v3801
        %vm3808 = vmor %vm3806, %vm3807
        %v3809 = vsel %vm3808, %v3801, %v3805
        %v3810 = vand.u32 2147483647, %v3800
        %vm3811 = vcmp.eq.f32.partialorder %v3810, 8.507059e+37
        %v3812 = vand.u32 %v3800, 2147483648
        %v3813 = vor.u32 1.1754944e-38, %v3812
        %v3814 = vsel %vm3811, %v3813, %v3809
        %v3815 = vmul.f32 %v3797, %v3814
        %3816 = vrot.lane.b32.xlu0 %v3511, 52
        %v3817 = vpop.permute.xlu0 %3816
        %v3820 = vsel %vm1660, %v3815, 0
        %3822 = vmatpush.msra.mxu0 0.0
        %3823 = vmatpush.msra.mxu0 0.0
        %3824 = vmatpush.msra.mxu0 0.0
        %3825 = vmatpush.msra.mxu0 0.0
        %3826 = vmatpush.msra.mxu0 0.0
        %3827 = vmatpush.msra.mxu0 0.0
        %3828 = vmatpush.msra.mxu0 0.0
        %3829 = vmatpush.msra.mxu0 0.0
        %3830 = vmatpush.msra.mxu0 0.0
        %3831 = vmatpush.msra.mxu0 0.0
        %3832 = vmatpush.msra.mxu0 0.0
        %3833 = vmatpush.msra.mxu0 0.0
        %3834 = vmatpush.msra.mxu0 0.0
        %3835 = vmatpush.msra.mxu0 0.0
        %3836 = vmatpush.msra.mxu0 0.0
        %3837 = vmatpush.msra.mxu0 %v3817
        %3838 = vmatmul.f32.gmra.mxu0 %v3820
        %v3839 = vpop.f32.mrf.mxu0
        %v3840 = vadd.f32 0.0, %v3839
        %3841 = vdwg.mxu0
        %3843 = vrot.lane.b32.xlu0 %v3840, 12
        %v3844 = vpop.permute.xlu0 %3843
        %3846 = vst.msk [vmem:[#allocation2] sm:$0xff] %vm1962, %v3844
        %3847 = vrot.lane.b32.xlu0 %v3518, 112
        %v3848 = vpop.permute.xlu0 %3847
        %3849 = vrot.lane.b32.xlu0 %v3511, 80
        %v3850 = vpop.permute.xlu0 %3849
        %v3851 = vsel %vm1563, %v3848, 0
        %v3853 = vsel %vm1563, %v3850, 0
        %3855 = vmatpush.xpose.msra.mxu0 0.0
        %3856 = vmatpush.xpose.msra.mxu0 0.0
        %3857 = vmatpush.xpose.msra.mxu0 0.0
        %3858 = vmatpush.xpose.msra.mxu0 0.0
        %3859 = vmatpush.xpose.msra.mxu0 0.0
        %3860 = vmatpush.xpose.msra.mxu0 0.0
        %3861 = vmatpush.xpose.msra.mxu0 0.0
        %3862 = vmatpush.xpose.msra.mxu0 0.0
        %3863 = vmatpush.xpose.msra.mxu0 0.0
        %3864 = vmatpush.xpose.msra.mxu0 0.0
        %3865 = vmatpush.xpose.msra.mxu0 0.0
        %3866 = vmatpush.xpose.msra.mxu0 0.0
        %3867 = vmatpush.xpose.msra.mxu0 0.0
        %3868 = vmatpush.xpose.msra.mxu0 0.0
        %3869 = vmatpush.xpose.msra.mxu0 0.0
        %3870 = vmatpush.xpose.msra.mxu0 %v3853
        %3871 = vmatmul.f32.gmra.mxu0 %v3851
        %v3872 = vpop.f32.mrf.mxu0
        %v3873 = vadd.f32 %v3481, %v3872
        %3874 = vdwg.mxu0
        %v3875 = vsel %vm1660, %v3873, -inf
        %3876 = vmax.xlane.f32.xlu0 %v3875
        %v3877 = vpop.xlane.xlu0 %3876
        %v3878 = vsub.f32 %v3873, %v3877
        %v3879 = vmul.f32 %v3878, 1.442695
        %v3880 = vpow.pop %v3879
        %v3881 = vsel %vm1660, %v3880, 0.0
        %3882 = vadd.xlane.f32.xlu0 %v3881
        %v3883 = vpop.xlane.xlu0 %3882
        %v3884 = vrcp.pop %v3883
        %v3885 = vmul.f32 %v3883, %v3884
        %v3886 = vsub.f32 1.0, %v3885
        %v3887 = vmul.f32 %v3884, %v3886
        %v3888 = vadd.f32 %v3884, %v3887
        %vm3889 = vweird.f32 %v3883
        %vm3890 = vweird.f32 %v3884
        %vm3891 = vmor %vm3889, %vm3890
        %v3892 = vsel %vm3891, %v3884, %v3888
        %v3893 = vand.u32 2147483647, %v3883
        %vm3894 = vcmp.eq.f32.partialorder %v3893, 8.507059e+37
        %v3895 = vand.u32 %v3883, 2147483648
        %v3896 = vor.u32 1.1754944e-38, %v3895
        %v3897 = vsel %vm3894, %v3896, %v3892
        %v3898 = vmul.f32 %v3880, %v3897
        %3899 = vrot.lane.b32.xlu0 %v3511, 48
        %v3900 = vpop.permute.xlu0 %3899
        %v3903 = vsel %vm1660, %v3898, 0
        %3905 = vmatpush.msra.mxu0 0.0
        %3906 = vmatpush.msra.mxu0 0.0
        %3907 = vmatpush.msra.mxu0 0.0
        %3908 = vmatpush.msra.mxu0 0.0
        %3909 = vmatpush.msra.mxu0 0.0
        %3910 = vmatpush.msra.mxu0 0.0
        %3911 = vmatpush.msra.mxu0 0.0
        %3912 = vmatpush.msra.mxu0 0.0
        %3913 = vmatpush.msra.mxu0 0.0
        %3914 = vmatpush.msra.mxu0 0.0
        %3915 = vmatpush.msra.mxu0 0.0
        %3916 = vmatpush.msra.mxu0 0.0
        %3917 = vmatpush.msra.mxu0 0.0
        %3918 = vmatpush.msra.mxu0 0.0
        %3919 = vmatpush.msra.mxu0 0.0
        %3920 = vmatpush.msra.mxu0 %v3900
        %3921 = vmatmul.f32.gmra.mxu0 %v3903
        %v3922 = vpop.f32.mrf.mxu0
        %v3923 = vadd.f32 0.0, %v3922
        %3924 = vdwg.mxu0
        %3926 = vrot.lane.b32.xlu0 %v3923, 16
        %v3927 = vpop.permute.xlu0 %3926
        %3929 = vst.msk [vmem:[#allocation2] sm:$0xff] %vm2046, %v3927
        %3930 = vrot.lane.b32.xlu0 %v3518, 108
        %v3931 = vpop.permute.xlu0 %3930
        %3932 = vrot.lane.b32.xlu0 %v3511, 76
        %v3933 = vpop.permute.xlu0 %3932
        %v3934 = vsel %vm1563, %v3931, 0
        %v3936 = vsel %vm1563, %v3933, 0
        %3938 = vmatpush.xpose.msra.mxu0 0.0
        %3939 = vmatpush.xpose.msra.mxu0 0.0
        %3940 = vmatpush.xpose.msra.mxu0 0.0
        %3941 = vmatpush.xpose.msra.mxu0 0.0
        %3942 = vmatpush.xpose.msra.mxu0 0.0
        %3943 = vmatpush.xpose.msra.mxu0 0.0
        %3944 = vmatpush.xpose.msra.mxu0 0.0
        %3945 = vmatpush.xpose.msra.mxu0 0.0
        %3946 = vmatpush.xpose.msra.mxu0 0.0
        %3947 = vmatpush.xpose.msra.mxu0 0.0
        %3948 = vmatpush.xpose.msra.mxu0 0.0
        %3949 = vmatpush.xpose.msra.mxu0 0.0
        %3950 = vmatpush.xpose.msra.mxu0 0.0
        %3951 = vmatpush.xpose.msra.mxu0 0.0
        %3952 = vmatpush.xpose.msra.mxu0 0.0
        %3953 = vmatpush.xpose.msra.mxu0 %v3936
        %3954 = vmatmul.f32.gmra.mxu0 %v3934
        %v3955 = vpop.f32.mrf.mxu0
        %v3956 = vadd.f32 %v3481, %v3955
        %3957 = vdwg.mxu0
        %v3958 = vsel %vm1660, %v3956, -inf
        %3959 = vmax.xlane.f32.xlu0 %v3958
        %v3960 = vpop.xlane.xlu0 %3959
        %v3961 = vsub.f32 %v3956, %v3960
        %v3962 = vmul.f32 %v3961, 1.442695
        %v3963 = vpow.pop %v3962
        %v3964 = vsel %vm1660, %v3963, 0.0
        %3965 = vadd.xlane.f32.xlu0 %v3964
        %v3966 = vpop.xlane.xlu0 %3965
        %v3967 = vrcp.pop %v3966
        %v3968 = vmul.f32 %v3966, %v3967
        %v3969 = vsub.f32 1.0, %v3968
        %v3970 = vmul.f32 %v3967, %v3969
        %v3971 = vadd.f32 %v3967, %v3970
        %vm3972 = vweird.f32 %v3966
        %vm3973 = vweird.f32 %v3967
        %vm3974 = vmor %vm3972, %vm3973
        %v3975 = vsel %vm3974, %v3967, %v3971
        %v3976 = vand.u32 2147483647, %v3966
        %vm3977 = vcmp.eq.f32.partialorder %v3976, 8.507059e+37
        %v3978 = vand.u32 %v3966, 2147483648
        %v3979 = vor.u32 1.1754944e-38, %v3978
        %v3980 = vsel %vm3977, %v3979, %v3975
        %v3981 = vmul.f32 %v3963, %v3980
        %3982 = vrot.lane.b32.xlu0 %v3511, 44
        %v3983 = vpop.permute.xlu0 %3982
        %v3986 = vsel %vm1660, %v3981, 0
        %3988 = vmatpush.msra.mxu0 0.0
        %3989 = vmatpush.msra.mxu0 0.0
        %3990 = vmatpush.msra.mxu0 0.0
        %3991 = vmatpush.msra.mxu0 0.0
        %3992 = vmatpush.msra.mxu0 0.0
        %3993 = vmatpush.msra.mxu0 0.0
        %3994 = vmatpush.msra.mxu0 0.0
        %3995 = vmatpush.msra.mxu0 0.0
        %3996 = vmatpush.msra.mxu0 0.0
        %3997 = vmatpush.msra.mxu0 0.0
        %3998 = vmatpush.msra.mxu0 0.0
        %3999 = vmatpush.msra.mxu0 0.0
        %4000 = vmatpush.msra.mxu0 0.0
        %4001 = vmatpush.msra.mxu0 0.0
        %4002 = vmatpush.msra.mxu0 0.0
        %4003 = vmatpush.msra.mxu0 %v3983
        %4004 = vmatmul.f32.gmra.mxu0 %v3986
        %v4005 = vpop.f32.mrf.mxu0
        %v4006 = vadd.f32 0.0, %v4005
        %4007 = vdwg.mxu0
        %4009 = vrot.lane.b32.xlu0 %v4006, 20
        %v4010 = vpop.permute.xlu0 %4009
        %4012 = vst.msk [vmem:[#allocation2] sm:$0xff] %vm2130, %v4010
        %4013 = vrot.lane.b32.xlu0 %v3518, 104
        %v4014 = vpop.permute.xlu0 %4013
        %4015 = vrot.lane.b32.xlu0 %v3511, 72
        %v4016 = vpop.permute.xlu0 %4015
        %v4017 = vsel %vm1563, %v4014, 0
        %v4019 = vsel %vm1563, %v4016, 0
        %4021 = vmatpush.xpose.msra.mxu0 0.0
        %4022 = vmatpush.xpose.msra.mxu0 0.0
        %4023 = vmatpush.xpose.msra.mxu0 0.0
        %4024 = vmatpush.xpose.msra.mxu0 0.0
        %4025 = vmatpush.xpose.msra.mxu0 0.0
        %4026 = vmatpush.xpose.msra.mxu0 0.0
        %4027 = vmatpush.xpose.msra.mxu0 0.0
        %4028 = vmatpush.xpose.msra.mxu0 0.0
        %4029 = vmatpush.xpose.msra.mxu0 0.0
        %4030 = vmatpush.xpose.msra.mxu0 0.0
        %4031 = vmatpush.xpose.msra.mxu0 0.0
        %4032 = vmatpush.xpose.msra.mxu0 0.0
        %4033 = vmatpush.xpose.msra.mxu0 0.0
        %4034 = vmatpush.xpose.msra.mxu0 0.0
        %4035 = vmatpush.xpose.msra.mxu0 0.0
        %4036 = vmatpush.xpose.msra.mxu0 %v4019
        %4037 = vmatmul.f32.gmra.mxu0 %v4017
        %v4038 = vpop.f32.mrf.mxu0
        %v4039 = vadd.f32 %v3481, %v4038
        %4040 = vdwg.mxu0
        %v4041 = vsel %vm1660, %v4039, -inf
        %4042 = vmax.xlane.f32.xlu0 %v4041
        %v4043 = vpop.xlane.xlu0 %4042
        %v4044 = vsub.f32 %v4039, %v4043
        %v4045 = vmul.f32 %v4044, 1.442695
        %v4046 = vpow.pop %v4045
        %v4047 = vsel %vm1660, %v4046, 0.0
        %4048 = vadd.xlane.f32.xlu0 %v4047
        %v4049 = vpop.xlane.xlu0 %4048
        %v4050 = vrcp.pop %v4049
        %v4051 = vmul.f32 %v4049, %v4050
        %v4052 = vsub.f32 1.0, %v4051
        %v4053 = vmul.f32 %v4050, %v4052
        %v4054 = vadd.f32 %v4050, %v4053
        %vm4055 = vweird.f32 %v4049
        %vm4056 = vweird.f32 %v4050
        %vm4057 = vmor %vm4055, %vm4056
        %v4058 = vsel %vm4057, %v4050, %v4054
        %v4059 = vand.u32 2147483647, %v4049
        %vm4060 = vcmp.eq.f32.partialorder %v4059, 8.507059e+37
        %v4061 = vand.u32 %v4049, 2147483648
        %v4062 = vor.u32 1.1754944e-38, %v4061
        %v4063 = vsel %vm4060, %v4062, %v4058
        %v4064 = vmul.f32 %v4046, %v4063
        %4065 = vrot.lane.b32.xlu0 %v3511, 40
        %v4066 = vpop.permute.xlu0 %4065
        %v4069 = vsel %vm1660, %v4064, 0
        %4071 = vmatpush.msra.mxu0 0.0
        %4072 = vmatpush.msra.mxu0 0.0
        %4073 = vmatpush.msra.mxu0 0.0
        %4074 = vmatpush.msra.mxu0 0.0
        %4075 = vmatpush.msra.mxu0 0.0
        %4076 = vmatpush.msra.mxu0 0.0
        %4077 = vmatpush.msra.mxu0 0.0
        %4078 = vmatpush.msra.mxu0 0.0
        %4079 = vmatpush.msra.mxu0 0.0
        %4080 = vmatpush.msra.mxu0 0.0
        %4081 = vmatpush.msra.mxu0 0.0
        %4082 = vmatpush.msra.mxu0 0.0
        %4083 = vmatpush.msra.mxu0 0.0
        %4084 = vmatpush.msra.mxu0 0.0
        %4085 = vmatpush.msra.mxu0 0.0
        %4086 = vmatpush.msra.mxu0 %v4066
        %4087 = vmatmul.f32.gmra.mxu0 %v4069
        %v4088 = vpop.f32.mrf.mxu0
        %v4089 = vadd.f32 0.0, %v4088
        %4090 = vdwg.mxu0
        %4092 = vrot.lane.b32.xlu0 %v4089, 24
        %v4093 = vpop.permute.xlu0 %4092
        %4095 = vst.msk [vmem:[#allocation2] sm:$0xff] %vm2214, %v4093
        %4096 = vrot.lane.b32.xlu0 %v3518, 100
        %v4097 = vpop.permute.xlu0 %4096
        %4098 = vrot.lane.b32.xlu0 %v3511, 68
        %v4099 = vpop.permute.xlu0 %4098
        %v4100 = vsel %vm1563, %v4097, 0
        %v4102 = vsel %vm1563, %v4099, 0
        %4104 = vmatpush.xpose.msra.mxu0 0.0
        %4105 = vmatpush.xpose.msra.mxu0 0.0
        %4106 = vmatpush.xpose.msra.mxu0 0.0
        %4107 = vmatpush.xpose.msra.mxu0 0.0
        %4108 = vmatpush.xpose.msra.mxu0 0.0
        %4109 = vmatpush.xpose.msra.mxu0 0.0
        %4110 = vmatpush.xpose.msra.mxu0 0.0
        %4111 = vmatpush.xpose.msra.mxu0 0.0
        %4112 = vmatpush.xpose.msra.mxu0 0.0
        %4113 = vmatpush.xpose.msra.mxu0 0.0
        %4114 = vmatpush.xpose.msra.mxu0 0.0
        %4115 = vmatpush.xpose.msra.mxu0 0.0
        %4116 = vmatpush.xpose.msra.mxu0 0.0
        %4117 = vmatpush.xpose.msra.mxu0 0.0
        %4118 = vmatpush.xpose.msra.mxu0 0.0
        %4119 = vmatpush.xpose.msra.mxu0 %v4102
        %4120 = vmatmul.f32.gmra.mxu0 %v4100
        %v4121 = vpop.f32.mrf.mxu0
        %v4122 = vadd.f32 %v3481, %v4121
        %4123 = vdwg.mxu0
        %v4124 = vsel %vm1660, %v4122, -inf
        %4125 = vmax.xlane.f32.xlu0 %v4124
        %v4126 = vpop.xlane.xlu0 %4125
        %v4127 = vsub.f32 %v4122, %v4126
        %v4128 = vmul.f32 %v4127, 1.442695
        %v4129 = vpow.pop %v4128
        %v4130 = vsel %vm1660, %v4129, 0.0
        %4131 = vadd.xlane.f32.xlu0 %v4130
        %v4132 = vpop.xlane.xlu0 %4131
        %v4133 = vrcp.pop %v4132
        %v4134 = vmul.f32 %v4132, %v4133
        %v4135 = vsub.f32 1.0, %v4134
        %v4136 = vmul.f32 %v4133, %v4135
        %v4137 = vadd.f32 %v4133, %v4136
        %vm4138 = vweird.f32 %v4132
        %vm4139 = vweird.f32 %v4133
        %vm4140 = vmor %vm4138, %vm4139
        %v4141 = vsel %vm4140, %v4133, %v4137
        %v4142 = vand.u32 2147483647, %v4132
        %vm4143 = vcmp.eq.f32.partialorder %v4142, 8.507059e+37
        %v4144 = vand.u32 %v4132, 2147483648
        %v4145 = vor.u32 1.1754944e-38, %v4144
        %v4146 = vsel %vm4143, %v4145, %v4141
        %v4147 = vmul.f32 %v4129, %v4146
        %4148 = vrot.lane.b32.xlu0 %v3511, 36
        %v4149 = vpop.permute.xlu0 %4148
        %v4152 = vsel %vm1660, %v4147, 0
        %4154 = vmatpush.msra.mxu0 0.0
        %4155 = vmatpush.msra.mxu0 0.0
        %4156 = vmatpush.msra.mxu0 0.0
        %4157 = vmatpush.msra.mxu0 0.0
        %4158 = vmatpush.msra.mxu0 0.0
        %4159 = vmatpush.msra.mxu0 0.0
        %4160 = vmatpush.msra.mxu0 0.0
        %4161 = vmatpush.msra.mxu0 0.0
        %4162 = vmatpush.msra.mxu0 0.0
        %4163 = vmatpush.msra.mxu0 0.0
        %4164 = vmatpush.msra.mxu0 0.0
        %4165 = vmatpush.msra.mxu0 0.0
        %4166 = vmatpush.msra.mxu0 0.0
        %4167 = vmatpush.msra.mxu0 0.0
        %4168 = vmatpush.msra.mxu0 0.0
        %4169 = vmatpush.msra.mxu0 %v4149
        %4170 = vmatmul.f32.gmra.mxu0 %v4152
        %v4171 = vpop.f32.mrf.mxu0
        %v4172 = vadd.f32 0.0, %v4171
        %4173 = vdwg.mxu0
        %4175 = vrot.lane.b32.xlu0 %v4172, 28
        %v4176 = vpop.permute.xlu0 %4175
        %4178 = vst.msk [vmem:[#allocation2] sm:$0xff] %vm2298, %v4176
        %v4179 = vld [vmem:[#allocation2] sm:$0xff]
        %v4181 = vperm.slane %v3517, 0
        %v4184 = vsel %vm1602, %v4179, 0
        %4186 = vmatpush.msra.mxu0 0.0
        %4187 = vmatpush.msra.mxu0 0.0
        %4188 = vmatpush.msra.mxu0 0.0
        %4189 = vmatpush.msra.mxu0 0.0
        %4190 = vmatpush.msra.mxu0 0.0
        %4191 = vmatpush.msra.mxu0 0.0
        %4192 = vmatpush.msra.mxu0 0.0
        %4193 = vmatpush.msra.mxu0 0.0
        %4194 = vmatpush.msra.mxu0 0.0
        %4195 = vmatpush.msra.mxu0 0.0
        %4196 = vmatpush.msra.mxu0 0.0
        %4197 = vmatpush.msra.mxu0 0.0
        %4198 = vmatpush.msra.mxu0 %v3516
        %4199 = vmatpush.msra.mxu0 %v3515
        %4200 = vmatpush.msra.mxu0 %v3514
        %4201 = vmatpush.msra.mxu0 %v3513
        %4202 = vmatmul.f32.gmra.mxu0 %v4184
        %v4203 = vpop.f32.mrf.mxu0
        %v4204 = vadd.f32 %v4181, %v4203
        %4205 = vdwg.mxu0
        %v4206 = vadd.f32 %v3480, %v4204
        %v4207 = vld [vmem:[%s57] sm:$0x1]
        %v4208 = vld [vmem:[%s59] sm:$0x1]
        %v4209 = vsel %vm1602, %v4206, 0.0
        %4210 = vadd.xlane.f32.xlu0 %v4209
        %v4211 = vpop.xlane.xlu0 %4210
        %v4212 = vmul.f32 %v4211, %v2339
        %v4213 = vsub.f32 %v4206, %v4212
        %v4214 = vmul.f32 %v4213, %v4213
        %v4215 = vsel %vm1602, %v4214, 0.0
        %4216 = vadd.xlane.f32.xlu0 %v4215
        %v4217 = vpop.xlane.xlu0 %4216
        %v4218 = vmul.f32 %v4217, %v2339
        %v4219 = vadd.f32 %v4218, 1e-05
        %v4220 = vrsqrt.pop %v4219
        %v4221 = vmul.f32 %v4220, %v4219
        %v4222 = vmul.f32 %v4221, %v4220
        %v4223 = vmul.f32 0.5, %v4222
        %v4224 = vsub.f32 1.5, %v4223
        %v4225 = vmul.f32 %v4220, %v4224
        %vm4226 = vweird.f32 %v4219
        %vm4227 = vweird.f32 %v4220
        %vm4228 = vmor %vm4226, %vm4227
        %v4229 = vsel %vm4228, %v4220, %v4225
        %v4230 = vmul.f32 %v4213, %v4229
        %v4232 = vperm.slane %v4207, 0
        %v4234 = vmul.f32 %v4230, %v4232
        %v4236 = vperm.slane %v4208, 0
        %v4238 = vadd.f32 %v4234, %v4236
        %v4239 = vld [vmem:[#allocation3] sm:$0xff]
        %v4240 = vld [vmem:[#allocation3 + $0x8] sm:$0xff]
        %v4241 = vld [vmem:[#allocation3 + $0x10] sm:$0xff]
        %v4242 = vld [vmem:[#allocation3 + $0x18] sm:$0xff]
        %v4243 = vld [vmem:[%s63] sm:$0x1]
        %v4245 = vperm.slane %v4243, 0
        %v4248 = vsel %vm1602, %v4238, 0
        %4250 = vmatpush.msra.mxu0 0.0
        %4251 = vmatpush.msra.mxu0 0.0
        %4252 = vmatpush.msra.mxu0 0.0
        %4253 = vmatpush.msra.mxu0 0.0
        %4254 = vmatpush.msra.mxu0 0.0
        %4255 = vmatpush.msra.mxu0 0.0
        %4256 = vmatpush.msra.mxu0 0.0
        %4257 = vmatpush.msra.mxu0 0.0
        %4258 = vmatpush.msra.mxu0 0.0
        %4259 = vmatpush.msra.mxu0 0.0
        %4260 = vmatpush.msra.mxu0 0.0
        %4261 = vmatpush.msra.mxu0 0.0
        %4262 = vmatpush.msra.mxu0 %v4242
        %4263 = vmatpush.msra.mxu0 %v4241
        %4264 = vmatpush.msra.mxu0 %v4240
        %4265 = vmatpush.msra.mxu0 %v4239
        %4266 = vmatmul.f32.gmra.mxu0 %v4248
        %v4267 = vpop.f32.mrf.mxu0
        %v4268 = vadd.f32 %v4245, %v4267
        %4269 = vdwg.mxu0
        %v4270 = vld [vmem:[#allocation5] sm:$0xff]
        %v4271 = vld [vmem:[#allocation5 + $0x8] sm:$0xff]
        %v4272 = vld [vmem:[#allocation5 + $0x10] sm:$0xff]
        %v4273 = vld [vmem:[#allocation5 + $0x18] sm:$0xff]
        %v4274 = vld [vmem:[%s67] sm:$0x1]
        %v4276 = vperm.slane %v4274, 0
        %v4279 = vsel %vm1602, %v3446, 0
        %4281 = vmatpush.msra.mxu0 0.0
        %4282 = vmatpush.msra.mxu0 0.0
        %4283 = vmatpush.msra.mxu0 0.0
        %4284 = vmatpush.msra.mxu0 0.0
        %4285 = vmatpush.msra.mxu0 0.0
        %4286 = vmatpush.msra.mxu0 0.0
        %4287 = vmatpush.msra.mxu0 0.0
        %4288 = vmatpush.msra.mxu0 0.0
        %4289 = vmatpush.msra.mxu0 0.0
        %4290 = vmatpush.msra.mxu0 0.0
        %4291 = vmatpush.msra.mxu0 0.0
        %4292 = vmatpush.msra.mxu0 0.0
        %4293 = vmatpush.msra.mxu0 %v4273
        %4294 = vmatpush.msra.mxu0 %v4272
        %4295 = vmatpush.msra.mxu0 %v4271
        %4296 = vmatpush.msra.mxu0 %v4270
        %4297 = vmatmul.f32.gmra.mxu0 %v4279
        %v4298 = vpop.f32.mrf.mxu0
        %v4299 = vadd.f32 %v4276, %v4298
        %4300 = vdwg.mxu0
        %v4301 = vld [vmem:[#allocation7] sm:$0xff]
        %v4302 = vld [vmem:[#allocation7 + $0x8] sm:$0xff]
        %v4303 = vld [vmem:[#allocation7 + $0x10] sm:$0xff]
        %v4304 = vld [vmem:[#allocation7 + $0x18] sm:$0xff]
        %v4305 = vld [vmem:[%s71] sm:$0x1]
        %v4306 = vmul.f32 %v4268, 0.5
        %v4308 = vsel %vm1563, %v4306, 0
        %v4311 = vsel %vm1563, %v4299, 0
        %4313 = vmatpush.xpose.msra.mxu0 0.0
        %4314 = vmatpush.xpose.msra.mxu0 0.0
        %4315 = vmatpush.xpose.msra.mxu0 0.0
        %4316 = vmatpush.xpose.msra.mxu0 0.0
        %4317 = vmatpush.xpose.msra.mxu0 0.0
        %4318 = vmatpush.xpose.msra.mxu0 0.0
        %4319 = vmatpush.xpose.msra.mxu0 0.0
        %4320 = vmatpush.xpose.msra.mxu0 0.0
        %4321 = vmatpush.xpose.msra.mxu0 0.0
        %4322 = vmatpush.xpose.msra.mxu0 0.0
        %4323 = vmatpush.xpose.msra.mxu0 0.0
        %4324 = vmatpush.xpose.msra.mxu0 0.0
        %4325 = vmatpush.xpose.msra.mxu0 0.0
        %4326 = vmatpush.xpose.msra.mxu0 0.0
        %4327 = vmatpush.xpose.msra.mxu0 0.0
        %4328 = vmatpush.xpose.msra.mxu0 %v4311
        %4329 = vmatmul.f32.gmra.mxu0 %v4308
        %v4330 = vpop.f32.mrf.mxu0
        %v4331 = vadd.f32 0.0, %v4330
        %4332 = vdwg.mxu0
        %v4333 = vsel %vm1660, %v4331, -inf
        %4334 = vmax.xlane.f32.xlu0 %v4333
        %v4335 = vpop.xlane.xlu0 %4334
        %v4336 = vsub.f32 %v4331, %v4335
        %v4337 = vmul.f32 %v4336, 1.442695
        %v4338 = vpow.pop %v4337
        %v4339 = vsel %vm1660, %v4338, 0.0
        %4340 = vadd.xlane.f32.xlu0 %v4339
        %v4341 = vpop.xlane.xlu0 %4340
        %v4342 = vrcp.pop %v4341
        %v4343 = vmul.f32 %v4341, %v4342
        %v4344 = vsub.f32 1.0, %v4343
        %v4345 = vmul.f32 %v4342, %v4344
        %v4346 = vadd.f32 %v4342, %v4345
        %vm4347 = vweird.f32 %v4341
        %vm4348 = vweird.f32 %v4342
        %vm4349 = vmor %vm4347, %vm4348
        %v4350 = vsel %vm4349, %v4342, %v4346
        %v4351 = vand.u32 2147483647, %v4341
        %vm4352 = vcmp.eq.f32.partialorder %v4351, 8.507059e+37
        %v4353 = vand.u32 %v4341, 2147483648
        %v4354 = vor.u32 1.1754944e-38, %v4353
        %v4355 = vsel %vm4352, %v4354, %v4350
        %v4356 = vmul.f32 %v4338, %v4355
        %4357 = vrot.lane.b32.xlu0 %v4299, 96
        %v4358 = vpop.permute.xlu0 %4357
        %v4361 = vsel %vm1660, %v4356, 0
        %4363 = vmatpush.msra.mxu0 0.0
        %4364 = vmatpush.msra.mxu0 0.0
        %4365 = vmatpush.msra.mxu0 0.0
        %4366 = vmatpush.msra.mxu0 0.0
        %4367 = vmatpush.msra.mxu0 0.0
        %4368 = vmatpush.msra.mxu0 0.0
        %4369 = vmatpush.msra.mxu0 0.0
        %4370 = vmatpush.msra.mxu0 0.0
        %4371 = vmatpush.msra.mxu0 0.0
        %4372 = vmatpush.msra.mxu0 0.0
        %4373 = vmatpush.msra.mxu0 0.0
        %4374 = vmatpush.msra.mxu0 0.0
        %4375 = vmatpush.msra.mxu0 0.0
        %4376 = vmatpush.msra.mxu0 0.0
        %4377 = vmatpush.msra.mxu0 0.0
        %4378 = vmatpush.msra.mxu0 %v4358
        %4379 = vmatmul.f32.gmra.mxu0 %v4361
        %v4380 = vpop.f32.mrf.mxu0
        %v4381 = vadd.f32 0.0, %v4380
        %4382 = vdwg.mxu0
        %4383 = vst.msk [vmem:[#allocation2] sm:$0xff] %vm1563, %v4381
        %4384 = vrot.lane.b32.xlu0 %v4306, 124
        %v4385 = vpop.permute.xlu0 %4384
        %4386 = vrot.lane.b32.xlu0 %v4299, 124
        %v4387 = vpop.permute.xlu0 %4386
        %v4388 = vsel %vm1563, %v4385, 0
        %v4390 = vsel %vm1563, %v4387, 0
        %4392 = vmatpush.xpose.msra.mxu0 0.0
        %4393 = vmatpush.xpose.msra.mxu0 0.0
        %4394 = vmatpush.xpose.msra.mxu0 0.0
        %4395 = vmatpush.xpose.msra.mxu0 0.0
        %4396 = vmatpush.xpose.msra.mxu0 0.0
        %4397 = vmatpush.xpose.msra.mxu0 0.0
        %4398 = vmatpush.xpose.msra.mxu0 0.0
        %4399 = vmatpush.xpose.msra.mxu0 0.0
        %4400 = vmatpush.xpose.msra.mxu0 0.0
        %4401 = vmatpush.xpose.msra.mxu0 0.0
        %4402 = vmatpush.xpose.msra.mxu0 0.0
        %4403 = vmatpush.xpose.msra.mxu0 0.0
        %4404 = vmatpush.xpose.msra.mxu0 0.0
        %4405 = vmatpush.xpose.msra.mxu0 0.0
        %4406 = vmatpush.xpose.msra.mxu0 0.0
        %4407 = vmatpush.xpose.msra.mxu0 %v4390
        %4408 = vmatmul.f32.gmra.mxu0 %v4388
        %v4409 = vpop.f32.mrf.mxu0
        %v4410 = vadd.f32 0.0, %v4409
        %4411 = vdwg.mxu0
        %v4412 = vsel %vm1660, %v4410, -inf
        %4413 = vmax.xlane.f32.xlu0 %v4412
        %v4414 = vpop.xlane.xlu0 %4413
        %v4415 = vsub.f32 %v4410, %v4414
        %v4416 = vmul.f32 %v4415, 1.442695
        %v4417 = vpow.pop %v4416
        %v4418 = vsel %vm1660, %v4417, 0.0
        %4419 = vadd.xlane.f32.xlu0 %v4418
        %v4420 = vpop.xlane.xlu0 %4419
        %v4421 = vrcp.pop %v4420
        %v4422 = vmul.f32 %v4420, %v4421
        %v4423 = vsub.f32 1.0, %v4422
        %v4424 = vmul.f32 %v4421, %v4423
        %v4425 = vadd.f32 %v4421, %v4424
        %vm4426 = vweird.f32 %v4420
        %vm4427 = vweird.f32 %v4421
        %vm4428 = vmor %vm4426, %vm4427
        %v4429 = vsel %vm4428, %v4421, %v4425
        %v4430 = vand.u32 2147483647, %v4420
        %vm4431 = vcmp.eq.f32.partialorder %v4430, 8.507059e+37
        %v4432 = vand.u32 %v4420, 2147483648
        %v4433 = vor.u32 1.1754944e-38, %v4432
        %v4434 = vsel %vm4431, %v4433, %v4429
        %v4435 = vmul.f32 %v4417, %v4434
        %4436 = vrot.lane.b32.xlu0 %v4299, 92
        %v4437 = vpop.permute.xlu0 %4436
        %v4440 = vsel %vm1660, %v4435, 0
        %4442 = vmatpush.msra.mxu0 0.0
        %4443 = vmatpush.msra.mxu0 0.0
        %4444 = vmatpush.msra.mxu0 0.0
        %4445 = vmatpush.msra.mxu0 0.0
        %4446 = vmatpush.msra.mxu0 0.0
        %4447 = vmatpush.msra.mxu0 0.0
        %4448 = vmatpush.msra.mxu0 0.0
        %4449 = vmatpush.msra.mxu0 0.0
        %4450 = vmatpush.msra.mxu0 0.0
        %4451 = vmatpush.msra.mxu0 0.0
        %4452 = vmatpush.msra.mxu0 0.0
        %4453 = vmatpush.msra.mxu0 0.0
        %4454 = vmatpush.msra.mxu0 0.0
        %4455 = vmatpush.msra.mxu0 0.0
        %4456 = vmatpush.msra.mxu0 0.0
        %4457 = vmatpush.msra.mxu0 %v4437
        %4458 = vmatmul.f32.gmra.mxu0 %v4440
        %v4459 = vpop.f32.mrf.mxu0
        %v4460 = vadd.f32 0.0, %v4459
        %4461 = vdwg.mxu0
        %4463 = vrot.lane.b32.xlu0 %v4460, 4
        %v4464 = vpop.permute.xlu0 %4463
        %4466 = vst.msk [vmem:[#allocation2] sm:$0xff] %vm1794, %v4464
        %4467 = vrot.lane.b32.xlu0 %v4306, 120
        %v4468 = vpop.permute.xlu0 %4467
        %4469 = vrot.lane.b32.xlu0 %v4299, 120
        %v4470 = vpop.permute.xlu0 %4469
        %v4471 = vsel %vm1563, %v4468, 0
        %v4473 = vsel %vm1563, %v4470, 0
        %4475 = vmatpush.xpose.msra.mxu0 0.0
        %4476 = vmatpush.xpose.msra.mxu0 0.0
        %4477 = vmatpush.xpose.msra.mxu0 0.0
        %4478 = vmatpush.xpose.msra.mxu0 0.0
        %4479 = vmatpush.xpose.msra.mxu0 0.0
        %4480 = vmatpush.xpose.msra.mxu0 0.0
        %4481 = vmatpush.xpose.msra.mxu0 0.0
        %4482 = vmatpush.xpose.msra.mxu0 0.0
        %4483 = vmatpush.xpose.msra.mxu0 0.0
        %4484 = vmatpush.xpose.msra.mxu0 0.0
        %4485 = vmatpush.xpose.msra.mxu0 0.0
        %4486 = vmatpush.xpose.msra.mxu0 0.0
        %4487 = vmatpush.xpose.msra.mxu0 0.0
        %4488 = vmatpush.xpose.msra.mxu0 0.0
        %4489 = vmatpush.xpose.msra.mxu0 0.0
        %4490 = vmatpush.xpose.msra.mxu0 %v4473
        %4491 = vmatmul.f32.gmra.mxu0 %v4471
        %v4492 = vpop.f32.mrf.mxu0
        %v4493 = vadd.f32 0.0, %v4492
        %4494 = vdwg.mxu0
        %v4495 = vsel %vm1660, %v4493, -inf
        %4496 = vmax.xlane.f32.xlu0 %v4495
        %v4497 = vpop.xlane.xlu0 %4496
        %v4498 = vsub.f32 %v4493, %v4497
        %v4499 = vmul.f32 %v4498, 1.442695
        %v4500 = vpow.pop %v4499
        %v4501 = vsel %vm1660, %v4500, 0.0
        %4502 = vadd.xlane.f32.xlu0 %v4501
        %v4503 = vpop.xlane.xlu0 %4502
        %v4504 = vrcp.pop %v4503
        %v4505 = vmul.f32 %v4503, %v4504
        %v4506 = vsub.f32 1.0, %v4505
        %v4507 = vmul.f32 %v4504, %v4506
        %v4508 = vadd.f32 %v4504, %v4507
        %vm4509 = vweird.f32 %v4503
        %vm4510 = vweird.f32 %v4504
        %vm4511 = vmor %vm4509, %vm4510
        %v4512 = vsel %vm4511, %v4504, %v4508
        %v4513 = vand.u32 2147483647, %v4503
        %vm4514 = vcmp.eq.f32.partialorder %v4513, 8.507059e+37
        %v4515 = vand.u32 %v4503, 2147483648
        %v4516 = vor.u32 1.1754944e-38, %v4515
        %v4517 = vsel %vm4514, %v4516, %v4512
        %v4518 = vmul.f32 %v4500, %v4517
        %4519 = vrot.lane.b32.xlu0 %v4299, 88
        %v4520 = vpop.permute.xlu0 %4519
        %v4523 = vsel %vm1660, %v4518, 0
        %4525 = vmatpush.msra.mxu0 0.0
        %4526 = vmatpush.msra.mxu0 0.0
        %4527 = vmatpush.msra.mxu0 0.0
        %4528 = vmatpush.msra.mxu0 0.0
        %4529 = vmatpush.msra.mxu0 0.0
        %4530 = vmatpush.msra.mxu0 0.0
        %4531 = vmatpush.msra.mxu0 0.0
        %4532 = vmatpush.msra.mxu0 0.0
        %4533 = vmatpush.msra.mxu0 0.0
        %4534 = vmatpush.msra.mxu0 0.0
        %4535 = vmatpush.msra.mxu0 0.0
        %4536 = vmatpush.msra.mxu0 0.0
        %4537 = vmatpush.msra.mxu0 0.0
        %4538 = vmatpush.msra.mxu0 0.0
        %4539 = vmatpush.msra.mxu0 0.0
        %4540 = vmatpush.msra.mxu0 %v4520
        %4541 = vmatmul.f32.gmra.mxu0 %v4523
        %v4542 = vpop.f32.mrf.mxu0
        %v4543 = vadd.f32 0.0, %v4542
        %4544 = vdwg.mxu0
        %4546 = vrot.lane.b32.xlu0 %v4543, 8
        %v4547 = vpop.permute.xlu0 %4546
        %4549 = vst.msk [vmem:[#allocation2] sm:$0xff] %vm1878, %v4547
        %4550 = vrot.lane.b32.xlu0 %v4306, 116
        %v4551 = vpop.permute.xlu0 %4550
        %4552 = vrot.lane.b32.xlu0 %v4299, 116
        %v4553 = vpop.permute.xlu0 %4552
        %v4554 = vsel %vm1563, %v4551, 0
        %v4556 = vsel %vm1563, %v4553, 0
        %4558 = vmatpush.xpose.msra.mxu0 0.0
        %4559 = vmatpush.xpose.msra.mxu0 0.0
        %4560 = vmatpush.xpose.msra.mxu0 0.0
        %4561 = vmatpush.xpose.msra.mxu0 0.0
        %4562 = vmatpush.xpose.msra.mxu0 0.0
        %4563 = vmatpush.xpose.msra.mxu0 0.0
        %4564 = vmatpush.xpose.msra.mxu0 0.0
        %4565 = vmatpush.xpose.msra.mxu0 0.0
        %4566 = vmatpush.xpose.msra.mxu0 0.0
        %4567 = vmatpush.xpose.msra.mxu0 0.0
        %4568 = vmatpush.xpose.msra.mxu0 0.0
        %4569 = vmatpush.xpose.msra.mxu0 0.0
        %4570 = vmatpush.xpose.msra.mxu0 0.0
        %4571 = vmatpush.xpose.msra.mxu0 0.0
        %4572 = vmatpush.xpose.msra.mxu0 0.0
        %4573 = vmatpush.xpose.msra.mxu0 %v4556
        %4574 = vmatmul.f32.gmra.mxu0 %v4554
        %v4575 = vpop.f32.mrf.mxu0
        %v4576 = vadd.f32 0.0, %v4575
        %4577 = vdwg.mxu0
        %v4578 = vsel %vm1660, %v4576, -inf
        %4579 = vmax.xlane.f32.xlu0 %v4578
        %v4580 = vpop.xlane.xlu0 %4579
        %v4581 = vsub.f32 %v4576, %v4580
        %v4582 = vmul.f32 %v4581, 1.442695
        %v4583 = vpow.pop %v4582
        %v4584 = vsel %vm1660, %v4583, 0.0
        %4585 = vadd.xlane.f32.xlu0 %v4584
        %v4586 = vpop.xlane.xlu0 %4585
        %v4587 = vrcp.pop %v4586
        %v4588 = vmul.f32 %v4586, %v4587
        %v4589 = vsub.f32 1.0, %v4588
        %v4590 = vmul.f32 %v4587, %v4589
        %v4591 = vadd.f32 %v4587, %v4590
        %vm4592 = vweird.f32 %v4586
        %vm4593 = vweird.f32 %v4587
        %vm4594 = vmor %vm4592, %vm4593
        %v4595 = vsel %vm4594, %v4587, %v4591
        %v4596 = vand.u32 2147483647, %v4586
        %vm4597 = vcmp.eq.f32.partialorder %v4596, 8.507059e+37
        %v4598 = vand.u32 %v4586, 2147483648
        %v4599 = vor.u32 1.1754944e-38, %v4598
        %v4600 = vsel %vm4597, %v4599, %v4595
        %v4601 = vmul.f32 %v4583, %v4600
        %4602 = vrot.lane.b32.xlu0 %v4299, 84
        %v4603 = vpop.permute.xlu0 %4602
        %v4606 = vsel %vm1660, %v4601, 0
        %4608 = vmatpush.msra.mxu0 0.0
        %4609 = vmatpush.msra.mxu0 0.0
        %4610 = vmatpush.msra.mxu0 0.0
        %4611 = vmatpush.msra.mxu0 0.0
        %4612 = vmatpush.msra.mxu0 0.0
        %4613 = vmatpush.msra.mxu0 0.0
        %4614 = vmatpush.msra.mxu0 0.0
        %4615 = vmatpush.msra.mxu0 0.0
        %4616 = vmatpush.msra.mxu0 0.0
        %4617 = vmatpush.msra.mxu0 0.0
        %4618 = vmatpush.msra.mxu0 0.0
        %4619 = vmatpush.msra.mxu0 0.0
        %4620 = vmatpush.msra.mxu0 0.0
        %4621 = vmatpush.msra.mxu0 0.0
        %4622 = vmatpush.msra.mxu0 0.0
        %4623 = vmatpush.msra.mxu0 %v4603
        %4624 = vmatmul.f32.gmra.mxu0 %v4606
        %v4625 = vpop.f32.mrf.mxu0
        %v4626 = vadd.f32 0.0, %v4625
        %4627 = vdwg.mxu0
        %4629 = vrot.lane.b32.xlu0 %v4626, 12
        %v4630 = vpop.permute.xlu0 %4629
        %4632 = vst.msk [vmem:[#allocation2] sm:$0xff] %vm1962, %v4630
        %4633 = vrot.lane.b32.xlu0 %v4306, 112
        %v4634 = vpop.permute.xlu0 %4633
        %4635 = vrot.lane.b32.xlu0 %v4299, 112
        %v4636 = vpop.permute.xlu0 %4635
        %v4637 = vsel %vm1563, %v4634, 0
        %v4639 = vsel %vm1563, %v4636, 0
        %4641 = vmatpush.xpose.msra.mxu0 0.0
        %4642 = vmatpush.xpose.msra.mxu0 0.0
        %4643 = vmatpush.xpose.msra.mxu0 0.0
        %4644 = vmatpush.xpose.msra.mxu0 0.0
        %4645 = vmatpush.xpose.msra.mxu0 0.0
        %4646 = vmatpush.xpose.msra.mxu0 0.0
        %4647 = vmatpush.xpose.msra.mxu0 0.0
        %4648 = vmatpush.xpose.msra.mxu0 0.0
        %4649 = vmatpush.xpose.msra.mxu0 0.0
        %4650 = vmatpush.xpose.msra.mxu0 0.0
        %4651 = vmatpush.xpose.msra.mxu0 0.0
        %4652 = vmatpush.xpose.msra.mxu0 0.0
        %4653 = vmatpush.xpose.msra.mxu0 0.0
        %4654 = vmatpush.xpose.msra.mxu0 0.0
        %4655 = vmatpush.xpose.msra.mxu0 0.0
        %4656 = vmatpush.xpose.msra.mxu0 %v4639
        %4657 = vmatmul.f32.gmra.mxu0 %v4637
        %v4658 = vpop.f32.mrf.mxu0
        %v4659 = vadd.f32 0.0, %v4658
        %4660 = vdwg.mxu0
        %v4661 = vsel %vm1660, %v4659, -inf
        %4662 = vmax.xlane.f32.xlu0 %v4661
        %v4663 = vpop.xlane.xlu0 %4662
        %v4664 = vsub.f32 %v4659, %v4663
        %v4665 = vmul.f32 %v4664, 1.442695
        %v4666 = vpow.pop %v4665
        %v4667 = vsel %vm1660, %v4666, 0.0
        %4668 = vadd.xlane.f32.xlu0 %v4667
        %v4669 = vpop.xlane.xlu0 %4668
        %v4670 = vrcp.pop %v4669
        %v4671 = vmul.f32 %v4669, %v4670
        %v4672 = vsub.f32 1.0, %v4671
        %v4673 = vmul.f32 %v4670, %v4672
        %v4674 = vadd.f32 %v4670, %v4673
        %vm4675 = vweird.f32 %v4669
        %vm4676 = vweird.f32 %v4670
        %vm4677 = vmor %vm4675, %vm4676
        %v4678 = vsel %vm4677, %v4670, %v4674
        %v4679 = vand.u32 2147483647, %v4669
        %vm4680 = vcmp.eq.f32.partialorder %v4679, 8.507059e+37
        %v4681 = vand.u32 %v4669, 2147483648
        %v4682 = vor.u32 1.1754944e-38, %v4681
        %v4683 = vsel %vm4680, %v4682, %v4678
        %v4684 = vmul.f32 %v4666, %v4683
        %4685 = vrot.lane.b32.xlu0 %v4299, 80
        %v4686 = vpop.permute.xlu0 %4685
        %v4689 = vsel %vm1660, %v4684, 0
        %4691 = vmatpush.msra.mxu0 0.0
        %4692 = vmatpush.msra.mxu0 0.0
        %4693 = vmatpush.msra.mxu0 0.0
        %4694 = vmatpush.msra.mxu0 0.0
        %4695 = vmatpush.msra.mxu0 0.0
        %4696 = vmatpush.msra.mxu0 0.0
        %4697 = vmatpush.msra.mxu0 0.0
        %4698 = vmatpush.msra.mxu0 0.0
        %4699 = vmatpush.msra.mxu0 0.0
        %4700 = vmatpush.msra.mxu0 0.0
        %4701 = vmatpush.msra.mxu0 0.0
        %4702 = vmatpush.msra.mxu0 0.0
        %4703 = vmatpush.msra.mxu0 0.0
        %4704 = vmatpush.msra.mxu0 0.0
        %4705 = vmatpush.msra.mxu0 0.0
        %4706 = vmatpush.msra.mxu0 %v4686
        %4707 = vmatmul.f32.gmra.mxu0 %v4689
        %v4708 = vpop.f32.mrf.mxu0
        %v4709 = vadd.f32 0.0, %v4708
        %4710 = vdwg.mxu0
        %4712 = vrot.lane.b32.xlu0 %v4709, 16
        %v4713 = vpop.permute.xlu0 %4712
        %4715 = vst.msk [vmem:[#allocation2] sm:$0xff] %vm2046, %v4713
        %4716 = vrot.lane.b32.xlu0 %v4306, 108
        %v4717 = vpop.permute.xlu0 %4716
        %4718 = vrot.lane.b32.xlu0 %v4299, 108
        %v4719 = vpop.permute.xlu0 %4718
        %v4720 = vsel %vm1563, %v4717, 0
        %v4722 = vsel %vm1563, %v4719, 0
        %4724 = vmatpush.xpose.msra.mxu0 0.0
        %4725 = vmatpush.xpose.msra.mxu0 0.0
        %4726 = vmatpush.xpose.msra.mxu0 0.0
        %4727 = vmatpush.xpose.msra.mxu0 0.0
        %4728 = vmatpush.xpose.msra.mxu0 0.0
        %4729 = vmatpush.xpose.msra.mxu0 0.0
        %4730 = vmatpush.xpose.msra.mxu0 0.0
        %4731 = vmatpush.xpose.msra.mxu0 0.0
        %4732 = vmatpush.xpose.msra.mxu0 0.0
        %4733 = vmatpush.xpose.msra.mxu0 0.0
        %4734 = vmatpush.xpose.msra.mxu0 0.0
        %4735 = vmatpush.xpose.msra.mxu0 0.0
        %4736 = vmatpush.xpose.msra.mxu0 0.0
        %4737 = vmatpush.xpose.msra.mxu0 0.0
        %4738 = vmatpush.xpose.msra.mxu0 0.0
        %4739 = vmatpush.xpose.msra.mxu0 %v4722
        %4740 = vmatmul.f32.gmra.mxu0 %v4720
        %v4741 = vpop.f32.mrf.mxu0
        %v4742 = vadd.f32 0.0, %v4741
        %4743 = vdwg.mxu0
        %v4744 = vsel %vm1660, %v4742, -inf
        %4745 = vmax.xlane.f32.xlu0 %v4744
        %v4746 = vpop.xlane.xlu0 %4745
        %v4747 = vsub.f32 %v4742, %v4746
        %v4748 = vmul.f32 %v4747, 1.442695
        %v4749 = vpow.pop %v4748
        %v4750 = vsel %vm1660, %v4749, 0.0
        %4751 = vadd.xlane.f32.xlu0 %v4750
        %v4752 = vpop.xlane.xlu0 %4751
        %v4753 = vrcp.pop %v4752
        %v4754 = vmul.f32 %v4752, %v4753
        %v4755 = vsub.f32 1.0, %v4754
        %v4756 = vmul.f32 %v4753, %v4755
        %v4757 = vadd.f32 %v4753, %v4756
        %vm4758 = vweird.f32 %v4752
        %vm4759 = vweird.f32 %v4753
        %vm4760 = vmor %vm4758, %vm4759
        %v4761 = vsel %vm4760, %v4753, %v4757
        %v4762 = vand.u32 2147483647, %v4752
        %vm4763 = vcmp.eq.f32.partialorder %v4762, 8.507059e+37
        %v4764 = vand.u32 %v4752, 2147483648
        %v4765 = vor.u32 1.1754944e-38, %v4764
        %v4766 = vsel %vm4763, %v4765, %v4761
        %v4767 = vmul.f32 %v4749, %v4766
        %4768 = vrot.lane.b32.xlu0 %v4299, 76
        %v4769 = vpop.permute.xlu0 %4768
        %v4772 = vsel %vm1660, %v4767, 0
        %4774 = vmatpush.msra.mxu0 0.0
        %4775 = vmatpush.msra.mxu0 0.0
        %4776 = vmatpush.msra.mxu0 0.0
        %4777 = vmatpush.msra.mxu0 0.0
        %4778 = vmatpush.msra.mxu0 0.0
        %4779 = vmatpush.msra.mxu0 0.0
        %4780 = vmatpush.msra.mxu0 0.0
        %4781 = vmatpush.msra.mxu0 0.0
        %4782 = vmatpush.msra.mxu0 0.0
        %4783 = vmatpush.msra.mxu0 0.0
        %4784 = vmatpush.msra.mxu0 0.0
        %4785 = vmatpush.msra.mxu0 0.0
        %4786 = vmatpush.msra.mxu0 0.0
        %4787 = vmatpush.msra.mxu0 0.0
        %4788 = vmatpush.msra.mxu0 0.0
        %4789 = vmatpush.msra.mxu0 %v4769
        %4790 = vmatmul.f32.gmra.mxu0 %v4772
        %v4791 = vpop.f32.mrf.mxu0
        %v4792 = vadd.f32 0.0, %v4791
        %4793 = vdwg.mxu0
        %4795 = vrot.lane.b32.xlu0 %v4792, 20
        %v4796 = vpop.permute.xlu0 %4795
        %4798 = vst.msk [vmem:[#allocation2] sm:$0xff] %vm2130, %v4796
        %4799 = vrot.lane.b32.xlu0 %v4306, 104
        %v4800 = vpop.permute.xlu0 %4799
        %4801 = vrot.lane.b32.xlu0 %v4299, 104
        %v4802 = vpop.permute.xlu0 %4801
        %v4803 = vsel %vm1563, %v4800, 0
        %v4805 = vsel %vm1563, %v4802, 0
        %4807 = vmatpush.xpose.msra.mxu0 0.0
        %4808 = vmatpush.xpose.msra.mxu0 0.0
        %4809 = vmatpush.xpose.msra.mxu0 0.0
        %4810 = vmatpush.xpose.msra.mxu0 0.0
        %4811 = vmatpush.xpose.msra.mxu0 0.0
        %4812 = vmatpush.xpose.msra.mxu0 0.0
        %4813 = vmatpush.xpose.msra.mxu0 0.0
        %4814 = vmatpush.xpose.msra.mxu0 0.0
        %4815 = vmatpush.xpose.msra.mxu0 0.0
        %4816 = vmatpush.xpose.msra.mxu0 0.0
        %4817 = vmatpush.xpose.msra.mxu0 0.0
        %4818 = vmatpush.xpose.msra.mxu0 0.0
        %4819 = vmatpush.xpose.msra.mxu0 0.0
        %4820 = vmatpush.xpose.msra.mxu0 0.0
        %4821 = vmatpush.xpose.msra.mxu0 0.0
        %4822 = vmatpush.xpose.msra.mxu0 %v4805
        %4823 = vmatmul.f32.gmra.mxu0 %v4803
        %v4824 = vpop.f32.mrf.mxu0
        %v4825 = vadd.f32 0.0, %v4824
        %4826 = vdwg.mxu0
        %v4827 = vsel %vm1660, %v4825, -inf
        %4828 = vmax.xlane.f32.xlu0 %v4827
        %v4829 = vpop.xlane.xlu0 %4828
        %v4830 = vsub.f32 %v4825, %v4829
        %v4831 = vmul.f32 %v4830, 1.442695
        %v4832 = vpow.pop %v4831
        %v4833 = vsel %vm1660, %v4832, 0.0
        %4834 = vadd.xlane.f32.xlu0 %v4833
        %v4835 = vpop.xlane.xlu0 %4834
        %v4836 = vrcp.pop %v4835
        %v4837 = vmul.f32 %v4835, %v4836
        %v4838 = vsub.f32 1.0, %v4837
        %v4839 = vmul.f32 %v4836, %v4838
        %v4840 = vadd.f32 %v4836, %v4839
        %vm4841 = vweird.f32 %v4835
        %vm4842 = vweird.f32 %v4836
        %vm4843 = vmor %vm4841, %vm4842
        %v4844 = vsel %vm4843, %v4836, %v4840
        %v4845 = vand.u32 2147483647, %v4835
        %vm4846 = vcmp.eq.f32.partialorder %v4845, 8.507059e+37
        %v4847 = vand.u32 %v4835, 2147483648
        %v4848 = vor.u32 1.1754944e-38, %v4847
        %v4849 = vsel %vm4846, %v4848, %v4844
        %v4850 = vmul.f32 %v4832, %v4849
        %4851 = vrot.lane.b32.xlu0 %v4299, 72
        %v4852 = vpop.permute.xlu0 %4851
        %v4855 = vsel %vm1660, %v4850, 0
        %4857 = vmatpush.msra.mxu0 0.0
        %4858 = vmatpush.msra.mxu0 0.0
        %4859 = vmatpush.msra.mxu0 0.0
        %4860 = vmatpush.msra.mxu0 0.0
        %4861 = vmatpush.msra.mxu0 0.0
        %4862 = vmatpush.msra.mxu0 0.0
        %4863 = vmatpush.msra.mxu0 0.0
        %4864 = vmatpush.msra.mxu0 0.0
        %4865 = vmatpush.msra.mxu0 0.0
        %4866 = vmatpush.msra.mxu0 0.0
        %4867 = vmatpush.msra.mxu0 0.0
        %4868 = vmatpush.msra.mxu0 0.0
        %4869 = vmatpush.msra.mxu0 0.0
        %4870 = vmatpush.msra.mxu0 0.0
        %4871 = vmatpush.msra.mxu0 0.0
        %4872 = vmatpush.msra.mxu0 %v4852
        %4873 = vmatmul.f32.gmra.mxu0 %v4855
        %v4874 = vpop.f32.mrf.mxu0
        %v4875 = vadd.f32 0.0, %v4874
        %4876 = vdwg.mxu0
        %4878 = vrot.lane.b32.xlu0 %v4875, 24
        %v4879 = vpop.permute.xlu0 %4878
        %4881 = vst.msk [vmem:[#allocation2] sm:$0xff] %vm2214, %v4879
        %4882 = vrot.lane.b32.xlu0 %v4306, 100
        %v4883 = vpop.permute.xlu0 %4882
        %4884 = vrot.lane.b32.xlu0 %v4299, 100
        %v4885 = vpop.permute.xlu0 %4884
        %v4886 = vsel %vm1563, %v4883, 0
        %v4888 = vsel %vm1563, %v4885, 0
        %4890 = vmatpush.xpose.msra.mxu0 0.0
        %4891 = vmatpush.xpose.msra.mxu0 0.0
        %4892 = vmatpush.xpose.msra.mxu0 0.0
        %4893 = vmatpush.xpose.msra.mxu0 0.0
        %4894 = vmatpush.xpose.msra.mxu0 0.0
        %4895 = vmatpush.xpose.msra.mxu0 0.0
        %4896 = vmatpush.xpose.msra.mxu0 0.0
        %4897 = vmatpush.xpose.msra.mxu0 0.0
        %4898 = vmatpush.xpose.msra.mxu0 0.0
        %4899 = vmatpush.xpose.msra.mxu0 0.0
        %4900 = vmatpush.xpose.msra.mxu0 0.0
        %4901 = vmatpush.xpose.msra.mxu0 0.0
        %4902 = vmatpush.xpose.msra.mxu0 0.0
        %4903 = vmatpush.xpose.msra.mxu0 0.0
        %4904 = vmatpush.xpose.msra.mxu0 0.0
        %4905 = vmatpush.xpose.msra.mxu0 %v4888
        %4906 = vmatmul.f32.gmra.mxu0 %v4886
        %v4907 = vpop.f32.mrf.mxu0
        %v4908 = vadd.f32 0.0, %v4907
        %4909 = vdwg.mxu0
        %v4910 = vsel %vm1660, %v4908, -inf
        %4911 = vmax.xlane.f32.xlu0 %v4910
        %v4912 = vpop.xlane.xlu0 %4911
        %v4913 = vsub.f32 %v4908, %v4912
        %v4914 = vmul.f32 %v4913, 1.442695
        %v4915 = vpow.pop %v4914
        %v4916 = vsel %vm1660, %v4915, 0.0
        %4917 = vadd.xlane.f32.xlu0 %v4916
        %v4918 = vpop.xlane.xlu0 %4917
        %v4919 = vrcp.pop %v4918
        %v4920 = vmul.f32 %v4918, %v4919
        %v4921 = vsub.f32 1.0, %v4920
        %v4922 = vmul.f32 %v4919, %v4921
        %v4923 = vadd.f32 %v4919, %v4922
        %vm4924 = vweird.f32 %v4918
        %vm4925 = vweird.f32 %v4919
        %vm4926 = vmor %vm4924, %vm4925
        %v4927 = vsel %vm4926, %v4919, %v4923
        %v4928 = vand.u32 2147483647, %v4918
        %vm4929 = vcmp.eq.f32.partialorder %v4928, 8.507059e+37
        %v4930 = vand.u32 %v4918, 2147483648
        %v4931 = vor.u32 1.1754944e-38, %v4930
        %v4932 = vsel %vm4929, %v4931, %v4927
        %v4933 = vmul.f32 %v4915, %v4932
        %4934 = vrot.lane.b32.xlu0 %v4299, 68
        %v4935 = vpop.permute.xlu0 %4934
        %v4938 = vsel %vm1660, %v4933, 0
        %4940 = vmatpush.msra.mxu0 0.0
        %4941 = vmatpush.msra.mxu0 0.0
        %4942 = vmatpush.msra.mxu0 0.0
        %4943 = vmatpush.msra.mxu0 0.0
        %4944 = vmatpush.msra.mxu0 0.0
        %4945 = vmatpush.msra.mxu0 0.0
        %4946 = vmatpush.msra.mxu0 0.0
        %4947 = vmatpush.msra.mxu0 0.0
        %4948 = vmatpush.msra.mxu0 0.0
        %4949 = vmatpush.msra.mxu0 0.0
        %4950 = vmatpush.msra.mxu0 0.0
        %4951 = vmatpush.msra.mxu0 0.0
        %4952 = vmatpush.msra.mxu0 0.0
        %4953 = vmatpush.msra.mxu0 0.0
        %4954 = vmatpush.msra.mxu0 0.0
        %4955 = vmatpush.msra.mxu0 %v4935
        %4956 = vmatmul.f32.gmra.mxu0 %v4938
        %v4957 = vpop.f32.mrf.mxu0
        %v4958 = vadd.f32 0.0, %v4957
        %4959 = vdwg.mxu0
        %4961 = vrot.lane.b32.xlu0 %v4958, 28
        %v4962 = vpop.permute.xlu0 %4961
        %4964 = vst.msk [vmem:[#allocation2] sm:$0xff] %vm2298, %v4962
        %v4965 = vld [vmem:[#allocation2] sm:$0xff]
        %v4967 = vperm.slane %v4305, 0
        %v4970 = vsel %vm1602, %v4965, 0
        %4972 = vmatpush.msra.mxu0 0.0
        %4973 = vmatpush.msra.mxu0 0.0
        %4974 = vmatpush.msra.mxu0 0.0
        %4975 = vmatpush.msra.mxu0 0.0
        %4976 = vmatpush.msra.mxu0 0.0
        %4977 = vmatpush.msra.mxu0 0.0
        %4978 = vmatpush.msra.mxu0 0.0
        %4979 = vmatpush.msra.mxu0 0.0
        %4980 = vmatpush.msra.mxu0 0.0
        %4981 = vmatpush.msra.mxu0 0.0
        %4982 = vmatpush.msra.mxu0 0.0
        %4983 = vmatpush.msra.mxu0 0.0
        %4984 = vmatpush.msra.mxu0 %v4304
        %4985 = vmatpush.msra.mxu0 %v4303
        %4986 = vmatpush.msra.mxu0 %v4302
        %4987 = vmatpush.msra.mxu0 %v4301
        %4988 = vmatmul.f32.gmra.mxu0 %v4970
        %v4989 = vpop.f32.mrf.mxu0
        %v4990 = vadd.f32 %v4967, %v4989
        %4991 = vdwg.mxu0
        %v4992 = vadd.f32 %v4238, %v4990
        %v4993 = vld [vmem:[%s73] sm:$0x1]
        %v4994 = vld [vmem:[%s75] sm:$0x1]
        %v4995 = vsel %vm1602, %v4992, 0.0
        %4996 = vadd.xlane.f32.xlu0 %v4995
        %v4997 = vpop.xlane.xlu0 %4996
        %v4998 = vmul.f32 %v4997, %v2339
        %v4999 = vsub.f32 %v4992, %v4998
        %v5000 = vmul.f32 %v4999, %v4999
        %v5001 = vsel %vm1602, %v5000, 0.0
        %5002 = vadd.xlane.f32.xlu0 %v5001
        %v5003 = vpop.xlane.xlu0 %5002
        %v5004 = vmul.f32 %v5003, %v2339
        %v5005 = vadd.f32 %v5004, 1e-05
        %v5006 = vrsqrt.pop %v5005
        %v5007 = vmul.f32 %v5006, %v5005
        %v5008 = vmul.f32 %v5007, %v5006
        %v5009 = vmul.f32 0.5, %v5008
        %v5010 = vsub.f32 1.5, %v5009
        %v5011 = vmul.f32 %v5006, %v5010
        %vm5012 = vweird.f32 %v5005
        %vm5013 = vweird.f32 %v5006
        %vm5014 = vmor %vm5012, %vm5013
        %v5015 = vsel %vm5014, %v5006, %v5011
        %v5016 = vmul.f32 %v4999, %v5015
        %v5018 = vperm.slane %v4993, 0
        %v5020 = vmul.f32 %v5016, %v5018
        %v5022 = vperm.slane %v4994, 0
        %v5024 = vadd.f32 %v5020, %v5022
        %v5025 = vld [vmem:[#allocation8] sm:$0xff]
        %v5026 = vld [vmem:[#allocation8 + $0x8] sm:$0xff]
        %v5027 = vld [vmem:[#allocation8 + $0x10] sm:$0xff]
        %v5028 = vld [vmem:[#allocation8 + $0x18] sm:$0xff]
        %v5029 = vld [vmem:[%s79] sm:$0x1]
        %v5031 = vperm.slane %v5029, 0
        %v5034 = vsel %vm1602, %v5024, 0
        %5036 = vmatpush.msra.mxu0 0.0
        %5037 = vmatpush.msra.mxu0 0.0
        %5038 = vmatpush.msra.mxu0 0.0
        %5039 = vmatpush.msra.mxu0 0.0
        %5040 = vmatpush.msra.mxu0 0.0
        %5041 = vmatpush.msra.mxu0 0.0
        %5042 = vmatpush.msra.mxu0 0.0
        %5043 = vmatpush.msra.mxu0 0.0
        %5044 = vmatpush.msra.mxu0 0.0
        %5045 = vmatpush.msra.mxu0 0.0
        %5046 = vmatpush.msra.mxu0 0.0
        %5047 = vmatpush.msra.mxu0 0.0
        %5048 = vmatpush.msra.mxu0 %v5028
        %5049 = vmatpush.msra.mxu0 %v5027
        %5050 = vmatpush.msra.mxu0 %v5026
        %5051 = vmatpush.msra.mxu0 %v5025
        %5052 = vmatmul.f32.gmra.mxu0 %v5034
        %v5053 = vpop.f32.mrf.mxu0
        %v5054 = vadd.f32 %v5031, %v5053
        %5055 = vdwg.mxu0
        %v5056 = vmul.f32 %v5054, 0.5
        %v5057 = vmul.f32 %v5054, 0.70710677
        %vm5058 = vcmp.lt.f32.partialorder %v5057, 0.0
        %v5059 = vsel %vm5058, -1.0, 1.0
        %v5060 = vand.u32 2147483647, %v5057
        %v5061 = vmul.f32 %v5060, 0.3275911
        %v5062 = vadd.f32 %v5061, 1.0
        %v5063 = vrcp.pop %v5062
        %v5064 = vmul.f32 %v5062, %v5063
        %v5065 = vsub.f32 1.0, %v5064
        %v5066 = vmul.f32 %v5063, %v5065
        %v5067 = vadd.f32 %v5063, %v5066
        %vm5068 = vweird.f32 %v5062
        %vm5069 = vweird.f32 %v5063
        %vm5070 = vmor %vm5068, %vm5069
        %v5071 = vsel %vm5070, %v5063, %v5067
        %v5072 = vand.u32 2147483647, %v5062
        %vm5073 = vcmp.eq.f32.partialorder %v5072, 8.507059e+37
        %v5074 = vand.u32 %v5062, 2147483648
        %v5075 = vor.u32 1.1754944e-38, %v5074
        %v5076 = vsel %vm5073, %v5075, %v5071
        %v5077 = vmul.f32 1.0, %v5076
        %v5078 = vmul.f32 %v5077, 1.0614054
        %v5079 = vadd.f32 %v5078, -1.4531521
        %v5080 = vmul.f32 %v5079, %v5077
        %v5081 = vadd.f32 %v5080, 1.4214138
        %v5082 = vmul.f32 %v5081, %v5077
        %v5083 = vadd.f32 %v5082, -0.28449672
        %v5084 = vmul.f32 %v5083, %v5077
        %v5085 = vadd.f32 %v5084, 0.2548296
        %v5086 = vmul.f32 %v5085, %v5077
        %v5087 = vsub.f32 0.0, %v5060
        %v5088 = vmul.f32 %v5087, %v5060
        %v5089 = vmul.f32 %v5088, 1.442695
        %v5090 = vpow.pop %v5089
        %v5091 = vmul.f32 %v5086, %v5090
        %v5092 = vsub.f32 1.0, %v5091
        %v5093 = vmul.f32 %v5059, %v5092
        %v5094 = vadd.f32 %v5093, 1.0
        %v5095 = vmul.f32 %v5056, %v5094
        %v5096 = vld [vmem:[%s81] sm:$0xff]
        %v5097 = vld [vmem:[%s81 + $0x8] sm:$0xff]
        %v5098 = vld [vmem:[%s81 + $0x10] sm:$0xff]
        %v5099 = vld [vmem:[%s81 + $0x18] sm:$0xff]
        %v5100 = vld [vmem:[%s81 + $0x20] sm:$0xff]
        %v5101 = vld [vmem:[%s81 + $0x28] sm:$0xff]
        %v5102 = vld [vmem:[%s81 + $0x30] sm:$0xff]
        %v5103 = vld [vmem:[%s81 + $0x38] sm:$0xff]
        %v5104 = vld [vmem:[%s83] sm:$0x1]
        %v5106 = vperm.slane %v5104, 0
        %v5109 = vsel %vm2450, %v5095, 0
        %5111 = vmatpush.msra.mxu0 0.0
        %5112 = vmatpush.msra.mxu0 0.0
        %5113 = vmatpush.msra.mxu0 0.0
        %5114 = vmatpush.msra.mxu0 0.0
        %5115 = vmatpush.msra.mxu0 0.0
        %5116 = vmatpush.msra.mxu0 0.0
        %5117 = vmatpush.msra.mxu0 0.0
        %5118 = vmatpush.msra.mxu0 0.0
        %5119 = vmatpush.msra.mxu0 %v5103
        %5120 = vmatpush.msra.mxu0 %v5102
        %5121 = vmatpush.msra.mxu0 %v5101
        %5122 = vmatpush.msra.mxu0 %v5100
        %5123 = vmatpush.msra.mxu0 %v5099
        %5124 = vmatpush.msra.mxu0 %v5098
        %5125 = vmatpush.msra.mxu0 %v5097
        %5126 = vmatpush.msra.mxu0 %v5096
        %5127 = vmatmul.f32.gmra.mxu0 %v5109
        %v5128 = vpop.f32.mrf.mxu0
        %v5129 = vadd.f32 %v5106, %v5128
        %5130 = vdwg.mxu0
        %v5131 = vadd.f32 %v5024, %v5129
        %v5132 = vld [vmem:[%s85] sm:$0x1]
        %v5133 = vld [vmem:[%s87] sm:$0x1]
        %v5134 = vsel %vm1602, %v5131, 0.0
        %5135 = vadd.xlane.f32.xlu0 %v5134
        %v5136 = vpop.xlane.xlu0 %5135
        %v5137 = vmul.f32 %v5136, %v2339
        %v5138 = vsub.f32 %v5131, %v5137
        %v5139 = vmul.f32 %v5138, %v5138
        %v5140 = vsel %vm1602, %v5139, 0.0
        %5141 = vadd.xlane.f32.xlu0 %v5140
        %v5142 = vpop.xlane.xlu0 %5141
        %v5143 = vmul.f32 %v5142, %v2339
        %v5144 = vadd.f32 %v5143, 1e-05
        %v5145 = vrsqrt.pop %v5144
        %v5146 = vmul.f32 %v5145, %v5144
        %v5147 = vmul.f32 %v5146, %v5145
        %v5148 = vmul.f32 0.5, %v5147
        %v5149 = vsub.f32 1.5, %v5148
        %v5150 = vmul.f32 %v5145, %v5149
        %vm5151 = vweird.f32 %v5144
        %vm5152 = vweird.f32 %v5145
        %vm5153 = vmor %vm5151, %vm5152
        %v5154 = vsel %vm5153, %v5145, %v5150
        %v5155 = vmul.f32 %v5138, %v5154
        %v5157 = vperm.slane %v5132, 0
        %v5159 = vmul.f32 %v5155, %v5157
        %v5161 = vperm.slane %v5133, 0
        %v5163 = vadd.f32 %v5159, %v5161
        %s5164 = scalar_lea.vmem %s49, 32
        %v5165 = vld [vmem:[%s5164] sm:$0xff]
        %v5166 = vld [vmem:[%s5164 + $0x8] sm:$0xff]
        %v5167 = vld [vmem:[%s5164 + $0x10] sm:$0xff]
        %v5168 = vld [vmem:[%s5164 + $0x18] sm:$0xff]
        %s5169 = scalar_lea.vmem %s51, 1
        %v5170 = vld [vmem:[%s5169] sm:$0x1]
        %v5172 = vperm.slane %v5170, 0
        %v5175 = vsel %vm1602, %v5163, 0
        %5177 = vmatpush.msra.mxu0 0.0
        %5178 = vmatpush.msra.mxu0 0.0
        %5179 = vmatpush.msra.mxu0 0.0
        %5180 = vmatpush.msra.mxu0 0.0
        %5181 = vmatpush.msra.mxu0 0.0
        %5182 = vmatpush.msra.mxu0 0.0
        %5183 = vmatpush.msra.mxu0 0.0
        %5184 = vmatpush.msra.mxu0 0.0
        %5185 = vmatpush.msra.mxu0 0.0
        %5186 = vmatpush.msra.mxu0 0.0
        %5187 = vmatpush.msra.mxu0 0.0
        %5188 = vmatpush.msra.mxu0 0.0
        %5189 = vmatpush.msra.mxu0 %v5168
        %5190 = vmatpush.msra.mxu0 %v5167
        %5191 = vmatpush.msra.mxu0 %v5166
        %5192 = vmatpush.msra.mxu0 %v5165
        %5193 = vmatmul.f32.gmra.mxu0 %v5175
        %v5194 = vpop.f32.mrf.mxu0
        %v5195 = vadd.f32 %v5172, %v5194
        %5196 = vdwg.mxu0
        %s5197 = scalar_lea.vmem %s53, 32
        %v5198 = vld [vmem:[%s5197] sm:$0xff]
        %v5199 = vld [vmem:[%s5197 + $0x8] sm:$0xff]
        %v5200 = vld [vmem:[%s5197 + $0x10] sm:$0xff]
        %v5201 = vld [vmem:[%s5197 + $0x18] sm:$0xff]
        %s5202 = scalar_lea.vmem %s55, 1
        %v5203 = vld [vmem:[%s5202] sm:$0x1]
        %v5204 = vmul.f32 %v5195, 0.5
        %5206 = vrot.lane.b32.xlu0 %v5195, 96
        %v5207 = vpop.permute.xlu0 %5206
        %v5209 = vsel %vm1563, %v5204, 0
        %v5211 = vsel %vm1563, %v5207, 0
        %5213 = vmatpush.xpose.msra.mxu0 0.0
        %5214 = vmatpush.xpose.msra.mxu0 0.0
        %5215 = vmatpush.xpose.msra.mxu0 0.0
        %5216 = vmatpush.xpose.msra.mxu0 0.0
        %5217 = vmatpush.xpose.msra.mxu0 0.0
        %5218 = vmatpush.xpose.msra.mxu0 0.0
        %5219 = vmatpush.xpose.msra.mxu0 0.0
        %5220 = vmatpush.xpose.msra.mxu0 0.0
        %5221 = vmatpush.xpose.msra.mxu0 0.0
        %5222 = vmatpush.xpose.msra.mxu0 0.0
        %5223 = vmatpush.xpose.msra.mxu0 0.0
        %5224 = vmatpush.xpose.msra.mxu0 0.0
        %5225 = vmatpush.xpose.msra.mxu0 0.0
        %5226 = vmatpush.xpose.msra.mxu0 0.0
        %5227 = vmatpush.xpose.msra.mxu0 0.0
        %5228 = vmatpush.xpose.msra.mxu0 %v5211
        %5229 = vmatmul.f32.gmra.mxu0 %v5209
        %v5230 = vpop.f32.mrf.mxu0
        %v5231 = vadd.f32 %v3481, %v5230
        %5232 = vdwg.mxu0
        %v5233 = vsel %vm1660, %v5231, -inf
        %5234 = vmax.xlane.f32.xlu0 %v5233
        %v5235 = vpop.xlane.xlu0 %5234
        %v5236 = vsub.f32 %v5231, %v5235
        %v5237 = vmul.f32 %v5236, 1.442695
        %v5238 = vpow.pop %v5237
        %v5239 = vsel %vm1660, %v5238, 0.0
        %5240 = vadd.xlane.f32.xlu0 %v5239
        %v5241 = vpop.xlane.xlu0 %5240
        %v5242 = vrcp.pop %v5241
        %v5243 = vmul.f32 %v5241, %v5242
        %v5244 = vsub.f32 1.0, %v5243
        %v5245 = vmul.f32 %v5242, %v5244
        %v5246 = vadd.f32 %v5242, %v5245
        %vm5247 = vweird.f32 %v5241
        %vm5248 = vweird.f32 %v5242
        %vm5249 = vmor %vm5247, %vm5248
        %v5250 = vsel %vm5249, %v5242, %v5246
        %v5251 = vand.u32 2147483647, %v5241
        %vm5252 = vcmp.eq.f32.partialorder %v5251, 8.507059e+37
        %v5253 = vand.u32 %v5241, 2147483648
        %v5254 = vor.u32 1.1754944e-38, %v5253
        %v5255 = vsel %vm5252, %v5254, %v5250
        %v5256 = vmul.f32 %v5238, %v5255
        %5257 = vrot.lane.b32.xlu0 %v5195, 64
        %v5258 = vpop.permute.xlu0 %5257
        %v5261 = vsel %vm1660, %v5256, 0
        %5263 = vmatpush.msra.mxu0 0.0
        %5264 = vmatpush.msra.mxu0 0.0
        %5265 = vmatpush.msra.mxu0 0.0
        %5266 = vmatpush.msra.mxu0 0.0
        %5267 = vmatpush.msra.mxu0 0.0
        %5268 = vmatpush.msra.mxu0 0.0
        %5269 = vmatpush.msra.mxu0 0.0
        %5270 = vmatpush.msra.mxu0 0.0
        %5271 = vmatpush.msra.mxu0 0.0
        %5272 = vmatpush.msra.mxu0 0.0
        %5273 = vmatpush.msra.mxu0 0.0
        %5274 = vmatpush.msra.mxu0 0.0
        %5275 = vmatpush.msra.mxu0 0.0
        %5276 = vmatpush.msra.mxu0 0.0
        %5277 = vmatpush.msra.mxu0 0.0
        %5278 = vmatpush.msra.mxu0 %v5258
        %5279 = vmatmul.f32.gmra.mxu0 %v5261
        %v5280 = vpop.f32.mrf.mxu0
        %v5281 = vadd.f32 0.0, %v5280
        %5282 = vdwg.mxu0
        %5283 = vst.msk [vmem:[#allocation2] sm:$0xff] %vm1563, %v5281
        %5284 = vrot.lane.b32.xlu0 %v5204, 124
        %v5285 = vpop.permute.xlu0 %5284
        %5286 = vrot.lane.b32.xlu0 %v5195, 92
        %v5287 = vpop.permute.xlu0 %5286
        %v5288 = vsel %vm1563, %v5285, 0
        %v5290 = vsel %vm1563, %v5287, 0
        %5292 = vmatpush.xpose.msra.mxu0 0.0
        %5293 = vmatpush.xpose.msra.mxu0 0.0
        %5294 = vmatpush.xpose.msra.mxu0 0.0
        %5295 = vmatpush.xpose.msra.mxu0 0.0
        %5296 = vmatpush.xpose.msra.mxu0 0.0
        %5297 = vmatpush.xpose.msra.mxu0 0.0
        %5298 = vmatpush.xpose.msra.mxu0 0.0
        %5299 = vmatpush.xpose.msra.mxu0 0.0
        %5300 = vmatpush.xpose.msra.mxu0 0.0
        %5301 = vmatpush.xpose.msra.mxu0 0.0
        %5302 = vmatpush.xpose.msra.mxu0 0.0
        %5303 = vmatpush.xpose.msra.mxu0 0.0
        %5304 = vmatpush.xpose.msra.mxu0 0.0
        %5305 = vmatpush.xpose.msra.mxu0 0.0
        %5306 = vmatpush.xpose.msra.mxu0 0.0
        %5307 = vmatpush.xpose.msra.mxu0 %v5290
        %5308 = vmatmul.f32.gmra.mxu0 %v5288
        %v5309 = vpop.f32.mrf.mxu0
        %v5310 = vadd.f32 %v3481, %v5309
        %5311 = vdwg.mxu0
        %v5312 = vsel %vm1660, %v5310, -inf
        %5313 = vmax.xlane.f32.xlu0 %v5312
        %v5314 = vpop.xlane.xlu0 %5313
        %v5315 = vsub.f32 %v5310, %v5314
        %v5316 = vmul.f32 %v5315, 1.442695
        %v5317 = vpow.pop %v5316
        %v5318 = vsel %vm1660, %v5317, 0.0
        %5319 = vadd.xlane.f32.xlu0 %v5318
        %v5320 = vpop.xlane.xlu0 %5319
        %v5321 = vrcp.pop %v5320
        %v5322 = vmul.f32 %v5320, %v5321
        %v5323 = vsub.f32 1.0, %v5322
        %v5324 = vmul.f32 %v5321, %v5323
        %v5325 = vadd.f32 %v5321, %v5324
        %vm5326 = vweird.f32 %v5320
        %vm5327 = vweird.f32 %v5321
        %vm5328 = vmor %vm5326, %vm5327
        %v5329 = vsel %vm5328, %v5321, %v5325
        %v5330 = vand.u32 2147483647, %v5320
        %vm5331 = vcmp.eq.f32.partialorder %v5330, 8.507059e+37
        %v5332 = vand.u32 %v5320, 2147483648
        %v5333 = vor.u32 1.1754944e-38, %v5332
        %v5334 = vsel %vm5331, %v5333, %v5329
        %v5335 = vmul.f32 %v5317, %v5334
        %5336 = vrot.lane.b32.xlu0 %v5195, 60
        %v5337 = vpop.permute.xlu0 %5336
        %v5340 = vsel %vm1660, %v5335, 0
        %5342 = vmatpush.msra.mxu0 0.0
        %5343 = vmatpush.msra.mxu0 0.0
        %5344 = vmatpush.msra.mxu0 0.0
        %5345 = vmatpush.msra.mxu0 0.0
        %5346 = vmatpush.msra.mxu0 0.0
        %5347 = vmatpush.msra.mxu0 0.0
        %5348 = vmatpush.msra.mxu0 0.0
        %5349 = vmatpush.msra.mxu0 0.0
        %5350 = vmatpush.msra.mxu0 0.0
        %5351 = vmatpush.msra.mxu0 0.0
        %5352 = vmatpush.msra.mxu0 0.0
        %5353 = vmatpush.msra.mxu0 0.0
        %5354 = vmatpush.msra.mxu0 0.0
        %5355 = vmatpush.msra.mxu0 0.0
        %5356 = vmatpush.msra.mxu0 0.0
        %5357 = vmatpush.msra.mxu0 %v5337
        %5358 = vmatmul.f32.gmra.mxu0 %v5340
        %v5359 = vpop.f32.mrf.mxu0
        %v5360 = vadd.f32 0.0, %v5359
        %5361 = vdwg.mxu0
        %5363 = vrot.lane.b32.xlu0 %v5360, 4
        %v5364 = vpop.permute.xlu0 %5363
        %5366 = vst.msk [vmem:[#allocation2] sm:$0xff] %vm1794, %v5364
        %5367 = vrot.lane.b32.xlu0 %v5204, 120
        %v5368 = vpop.permute.xlu0 %5367
        %5369 = vrot.lane.b32.xlu0 %v5195, 88
        %v5370 = vpop.permute.xlu0 %5369
        %v5371 = vsel %vm1563, %v5368, 0
        %v5373 = vsel %vm1563, %v5370, 0
        %5375 = vmatpush.xpose.msra.mxu0 0.0
        %5376 = vmatpush.xpose.msra.mxu0 0.0
        %5377 = vmatpush.xpose.msra.mxu0 0.0
        %5378 = vmatpush.xpose.msra.mxu0 0.0
        %5379 = vmatpush.xpose.msra.mxu0 0.0
        %5380 = vmatpush.xpose.msra.mxu0 0.0
        %5381 = vmatpush.xpose.msra.mxu0 0.0
        %5382 = vmatpush.xpose.msra.mxu0 0.0
        %5383 = vmatpush.xpose.msra.mxu0 0.0
        %5384 = vmatpush.xpose.msra.mxu0 0.0
        %5385 = vmatpush.xpose.msra.mxu0 0.0
        %5386 = vmatpush.xpose.msra.mxu0 0.0
        %5387 = vmatpush.xpose.msra.mxu0 0.0
        %5388 = vmatpush.xpose.msra.mxu0 0.0
        %5389 = vmatpush.xpose.msra.mxu0 0.0
        %5390 = vmatpush.xpose.msra.mxu0 %v5373
        %5391 = vmatmul.f32.gmra.mxu0 %v5371
        %v5392 = vpop.f32.mrf.mxu0
        %v5393 = vadd.f32 %v3481, %v5392
        %5394 = vdwg.mxu0
        %v5395 = vsel %vm1660, %v5393, -inf
        %5396 = vmax.xlane.f32.xlu0 %v5395
        %v5397 = vpop.xlane.xlu0 %5396
        %v5398 = vsub.f32 %v5393, %v5397
        %v5399 = vmul.f32 %v5398, 1.442695
        %v5400 = vpow.pop %v5399
        %v5401 = vsel %vm1660, %v5400, 0.0
        %5402 = vadd.xlane.f32.xlu0 %v5401
        %v5403 = vpop.xlane.xlu0 %5402
        %v5404 = vrcp.pop %v5403
        %v5405 = vmul.f32 %v5403, %v5404
        %v5406 = vsub.f32 1.0, %v5405
        %v5407 = vmul.f32 %v5404, %v5406
        %v5408 = vadd.f32 %v5404, %v5407
        %vm5409 = vweird.f32 %v5403
        %vm5410 = vweird.f32 %v5404
        %vm5411 = vmor %vm5409, %vm5410
        %v5412 = vsel %vm5411, %v5404, %v5408
        %v5413 = vand.u32 2147483647, %v5403
        %vm5414 = vcmp.eq.f32.partialorder %v5413, 8.507059e+37
        %v5415 = vand.u32 %v5403, 2147483648
        %v5416 = vor.u32 1.1754944e-38, %v5415
        %v5417 = vsel %vm5414, %v5416, %v5412
        %v5418 = vmul.f32 %v5400, %v5417
        %5419 = vrot.lane.b32.xlu0 %v5195, 56
        %v5420 = vpop.permute.xlu0 %5419
        %v5423 = vsel %vm1660, %v5418, 0
        %5425 = vmatpush.msra.mxu0 0.0
        %5426 = vmatpush.msra.mxu0 0.0
        %5427 = vmatpush.msra.mxu0 0.0
        %5428 = vmatpush.msra.mxu0 0.0
        %5429 = vmatpush.msra.mxu0 0.0
        %5430 = vmatpush.msra.mxu0 0.0
        %5431 = vmatpush.msra.mxu0 0.0
        %5432 = vmatpush.msra.mxu0 0.0
        %5433 = vmatpush.msra.mxu0 0.0
        %5434 = vmatpush.msra.mxu0 0.0
        %5435 = vmatpush.msra.mxu0 0.0
        %5436 = vmatpush.msra.mxu0 0.0
        %5437 = vmatpush.msra.mxu0 0.0
        %5438 = vmatpush.msra.mxu0 0.0
        %5439 = vmatpush.msra.mxu0 0.0
        %5440 = vmatpush.msra.mxu0 %v5420
        %5441 = vmatmul.f32.gmra.mxu0 %v5423
        %v5442 = vpop.f32.mrf.mxu0
        %v5443 = vadd.f32 0.0, %v5442
        %5444 = vdwg.mxu0
        %5446 = vrot.lane.b32.xlu0 %v5443, 8
        %v5447 = vpop.permute.xlu0 %5446
        %5449 = vst.msk [vmem:[#allocation2] sm:$0xff] %vm1878, %v5447
        %5450 = vrot.lane.b32.xlu0 %v5204, 116
        %v5451 = vpop.permute.xlu0 %5450
        %5452 = vrot.lane.b32.xlu0 %v5195, 84
        %v5453 = vpop.permute.xlu0 %5452
        %v5454 = vsel %vm1563, %v5451, 0
        %v5456 = vsel %vm1563, %v5453, 0
        %5458 = vmatpush.xpose.msra.mxu0 0.0
        %5459 = vmatpush.xpose.msra.mxu0 0.0
        %5460 = vmatpush.xpose.msra.mxu0 0.0
        %5461 = vmatpush.xpose.msra.mxu0 0.0
        %5462 = vmatpush.xpose.msra.mxu0 0.0
        %5463 = vmatpush.xpose.msra.mxu0 0.0
        %5464 = vmatpush.xpose.msra.mxu0 0.0
        %5465 = vmatpush.xpose.msra.mxu0 0.0
        %5466 = vmatpush.xpose.msra.mxu0 0.0
        %5467 = vmatpush.xpose.msra.mxu0 0.0
        %5468 = vmatpush.xpose.msra.mxu0 0.0
        %5469 = vmatpush.xpose.msra.mxu0 0.0
        %5470 = vmatpush.xpose.msra.mxu0 0.0
        %5471 = vmatpush.xpose.msra.mxu0 0.0
        %5472 = vmatpush.xpose.msra.mxu0 0.0
        %5473 = vmatpush.xpose.msra.mxu0 %v5456
        %5474 = vmatmul.f32.gmra.mxu0 %v5454
        %v5475 = vpop.f32.mrf.mxu0
        %v5476 = vadd.f32 %v3481, %v5475
        %5477 = vdwg.mxu0
        %v5478 = vsel %vm1660, %v5476, -inf
        %5479 = vmax.xlane.f32.xlu0 %v5478
        %v5480 = vpop.xlane.xlu0 %5479
        %v5481 = vsub.f32 %v5476, %v5480
        %v5482 = vmul.f32 %v5481, 1.442695
        %v5483 = vpow.pop %v5482
        %v5484 = vsel %vm1660, %v5483, 0.0
        %5485 = vadd.xlane.f32.xlu0 %v5484
        %v5486 = vpop.xlane.xlu0 %5485
        %v5487 = vrcp.pop %v5486
        %v5488 = vmul.f32 %v5486, %v5487
        %v5489 = vsub.f32 1.0, %v5488
        %v5490 = vmul.f32 %v5487, %v5489
        %v5491 = vadd.f32 %v5487, %v5490
        %vm5492 = vweird.f32 %v5486
        %vm5493 = vweird.f32 %v5487
        %vm5494 = vmor %vm5492, %vm5493
        %v5495 = vsel %vm5494, %v5487, %v5491
        %v5496 = vand.u32 2147483647, %v5486
        %vm5497 = vcmp.eq.f32.partialorder %v5496, 8.507059e+37
        %v5498 = vand.u32 %v5486, 2147483648
        %v5499 = vor.u32 1.1754944e-38, %v5498
        %v5500 = vsel %vm5497, %v5499, %v5495
        %v5501 = vmul.f32 %v5483, %v5500
        %5502 = vrot.lane.b32.xlu0 %v5195, 52
        %v5503 = vpop.permute.xlu0 %5502
        %v5506 = vsel %vm1660, %v5501, 0
        %5508 = vmatpush.msra.mxu0 0.0
        %5509 = vmatpush.msra.mxu0 0.0
        %5510 = vmatpush.msra.mxu0 0.0
        %5511 = vmatpush.msra.mxu0 0.0
        %5512 = vmatpush.msra.mxu0 0.0
        %5513 = vmatpush.msra.mxu0 0.0
        %5514 = vmatpush.msra.mxu0 0.0
        %5515 = vmatpush.msra.mxu0 0.0
        %5516 = vmatpush.msra.mxu0 0.0
        %5517 = vmatpush.msra.mxu0 0.0
        %5518 = vmatpush.msra.mxu0 0.0
        %5519 = vmatpush.msra.mxu0 0.0
        %5520 = vmatpush.msra.mxu0 0.0
        %5521 = vmatpush.msra.mxu0 0.0
        %5522 = vmatpush.msra.mxu0 0.0
        %5523 = vmatpush.msra.mxu0 %v5503
        %5524 = vmatmul.f32.gmra.mxu0 %v5506
        %v5525 = vpop.f32.mrf.mxu0
        %v5526 = vadd.f32 0.0, %v5525
        %5527 = vdwg.mxu0
        %5529 = vrot.lane.b32.xlu0 %v5526, 12
        %v5530 = vpop.permute.xlu0 %5529
        %5532 = vst.msk [vmem:[#allocation2] sm:$0xff] %vm1962, %v5530
        %5533 = vrot.lane.b32.xlu0 %v5204, 112
        %v5534 = vpop.permute.xlu0 %5533
        %5535 = vrot.lane.b32.xlu0 %v5195, 80
        %v5536 = vpop.permute.xlu0 %5535
        %v5537 = vsel %vm1563, %v5534, 0
        %v5539 = vsel %vm1563, %v5536, 0
        %5541 = vmatpush.xpose.msra.mxu0 0.0
        %5542 = vmatpush.xpose.msra.mxu0 0.0
        %5543 = vmatpush.xpose.msra.mxu0 0.0
        %5544 = vmatpush.xpose.msra.mxu0 0.0
        %5545 = vmatpush.xpose.msra.mxu0 0.0
        %5546 = vmatpush.xpose.msra.mxu0 0.0
        %5547 = vmatpush.xpose.msra.mxu0 0.0
        %5548 = vmatpush.xpose.msra.mxu0 0.0
        %5549 = vmatpush.xpose.msra.mxu0 0.0
        %5550 = vmatpush.xpose.msra.mxu0 0.0
        %5551 = vmatpush.xpose.msra.mxu0 0.0
        %5552 = vmatpush.xpose.msra.mxu0 0.0
        %5553 = vmatpush.xpose.msra.mxu0 0.0
        %5554 = vmatpush.xpose.msra.mxu0 0.0
        %5555 = vmatpush.xpose.msra.mxu0 0.0
        %5556 = vmatpush.xpose.msra.mxu0 %v5539
        %5557 = vmatmul.f32.gmra.mxu0 %v5537
        %v5558 = vpop.f32.mrf.mxu0
        %v5559 = vadd.f32 %v3481, %v5558
        %5560 = vdwg.mxu0
        %v5561 = vsel %vm1660, %v5559, -inf
        %5562 = vmax.xlane.f32.xlu0 %v5561
        %v5563 = vpop.xlane.xlu0 %5562
        %v5564 = vsub.f32 %v5559, %v5563
        %v5565 = vmul.f32 %v5564, 1.442695
        %v5566 = vpow.pop %v5565
        %v5567 = vsel %vm1660, %v5566, 0.0
        %5568 = vadd.xlane.f32.xlu0 %v5567
        %v5569 = vpop.xlane.xlu0 %5568
        %v5570 = vrcp.pop %v5569
        %v5571 = vmul.f32 %v5569, %v5570
        %v5572 = vsub.f32 1.0, %v5571
        %v5573 = vmul.f32 %v5570, %v5572
        %v5574 = vadd.f32 %v5570, %v5573
        %vm5575 = vweird.f32 %v5569
        %vm5576 = vweird.f32 %v5570
        %vm5577 = vmor %vm5575, %vm5576
        %v5578 = vsel %vm5577, %v5570, %v5574
        %v5579 = vand.u32 2147483647, %v5569
        %vm5580 = vcmp.eq.f32.partialorder %v5579, 8.507059e+37
        %v5581 = vand.u32 %v5569, 2147483648
        %v5582 = vor.u32 1.1754944e-38, %v5581
        %v5583 = vsel %vm5580, %v5582, %v5578
        %v5584 = vmul.f32 %v5566, %v5583
        %5585 = vrot.lane.b32.xlu0 %v5195, 48
        %v5586 = vpop.permute.xlu0 %5585
        %v5589 = vsel %vm1660, %v5584, 0
        %5591 = vmatpush.msra.mxu0 0.0
        %5592 = vmatpush.msra.mxu0 0.0
        %5593 = vmatpush.msra.mxu0 0.0
        %5594 = vmatpush.msra.mxu0 0.0
        %5595 = vmatpush.msra.mxu0 0.0
        %5596 = vmatpush.msra.mxu0 0.0
        %5597 = vmatpush.msra.mxu0 0.0
        %5598 = vmatpush.msra.mxu0 0.0
        %5599 = vmatpush.msra.mxu0 0.0
        %5600 = vmatpush.msra.mxu0 0.0
        %5601 = vmatpush.msra.mxu0 0.0
        %5602 = vmatpush.msra.mxu0 0.0
        %5603 = vmatpush.msra.mxu0 0.0
        %5604 = vmatpush.msra.mxu0 0.0
        %5605 = vmatpush.msra.mxu0 0.0
        %5606 = vmatpush.msra.mxu0 %v5586
        %5607 = vmatmul.f32.gmra.mxu0 %v5589
        %v5608 = vpop.f32.mrf.mxu0
        %v5609 = vadd.f32 0.0, %v5608
        %5610 = vdwg.mxu0
        %5612 = vrot.lane.b32.xlu0 %v5609, 16
        %v5613 = vpop.permute.xlu0 %5612
        %5615 = vst.msk [vmem:[#allocation2] sm:$0xff] %vm2046, %v5613
        %5616 = vrot.lane.b32.xlu0 %v5204, 108
        %v5617 = vpop.permute.xlu0 %5616
        %5618 = vrot.lane.b32.xlu0 %v5195, 76
        %v5619 = vpop.permute.xlu0 %5618
        %v5620 = vsel %vm1563, %v5617, 0
        %v5622 = vsel %vm1563, %v5619, 0
        %5624 = vmatpush.xpose.msra.mxu0 0.0
        %5625 = vmatpush.xpose.msra.mxu0 0.0
        %5626 = vmatpush.xpose.msra.mxu0 0.0
        %5627 = vmatpush.xpose.msra.mxu0 0.0
        %5628 = vmatpush.xpose.msra.mxu0 0.0
        %5629 = vmatpush.xpose.msra.mxu0 0.0
        %5630 = vmatpush.xpose.msra.mxu0 0.0
        %5631 = vmatpush.xpose.msra.mxu0 0.0
        %5632 = vmatpush.xpose.msra.mxu0 0.0
        %5633 = vmatpush.xpose.msra.mxu0 0.0
        %5634 = vmatpush.xpose.msra.mxu0 0.0
        %5635 = vmatpush.xpose.msra.mxu0 0.0
        %5636 = vmatpush.xpose.msra.mxu0 0.0
        %5637 = vmatpush.xpose.msra.mxu0 0.0
        %5638 = vmatpush.xpose.msra.mxu0 0.0
        %5639 = vmatpush.xpose.msra.mxu0 %v5622
        %5640 = vmatmul.f32.gmra.mxu0 %v5620
        %v5641 = vpop.f32.mrf.mxu0
        %v5642 = vadd.f32 %v3481, %v5641
        %5643 = vdwg.mxu0
        %v5644 = vsel %vm1660, %v5642, -inf
        %5645 = vmax.xlane.f32.xlu0 %v5644
        %v5646 = vpop.xlane.xlu0 %5645
        %v5647 = vsub.f32 %v5642, %v5646
        %v5648 = vmul.f32 %v5647, 1.442695
        %v5649 = vpow.pop %v5648
        %v5650 = vsel %vm1660, %v5649, 0.0
        %5651 = vadd.xlane.f32.xlu0 %v5650
        %v5652 = vpop.xlane.xlu0 %5651
        %v5653 = vrcp.pop %v5652
        %v5654 = vmul.f32 %v5652, %v5653
        %v5655 = vsub.f32 1.0, %v5654
        %v5656 = vmul.f32 %v5653, %v5655
        %v5657 = vadd.f32 %v5653, %v5656
        %vm5658 = vweird.f32 %v5652
        %vm5659 = vweird.f32 %v5653
        %vm5660 = vmor %vm5658, %vm5659
        %v5661 = vsel %vm5660, %v5653, %v5657
        %v5662 = vand.u32 2147483647, %v5652
        %vm5663 = vcmp.eq.f32.partialorder %v5662, 8.507059e+37
        %v5664 = vand.u32 %v5652, 2147483648
        %v5665 = vor.u32 1.1754944e-38, %v5664
        %v5666 = vsel %vm5663, %v5665, %v5661
        %v5667 = vmul.f32 %v5649, %v5666
        %5668 = vrot.lane.b32.xlu0 %v5195, 44
        %v5669 = vpop.permute.xlu0 %5668
        %v5672 = vsel %vm1660, %v5667, 0
        %5674 = vmatpush.msra.mxu0 0.0
        %5675 = vmatpush.msra.mxu0 0.0
        %5676 = vmatpush.msra.mxu0 0.0
        %5677 = vmatpush.msra.mxu0 0.0
        %5678 = vmatpush.msra.mxu0 0.0
        %5679 = vmatpush.msra.mxu0 0.0
        %5680 = vmatpush.msra.mxu0 0.0
        %5681 = vmatpush.msra.mxu0 0.0
        %5682 = vmatpush.msra.mxu0 0.0
        %5683 = vmatpush.msra.mxu0 0.0
        %5684 = vmatpush.msra.mxu0 0.0
        %5685 = vmatpush.msra.mxu0 0.0
        %5686 = vmatpush.msra.mxu0 0.0
        %5687 = vmatpush.msra.mxu0 0.0
        %5688 = vmatpush.msra.mxu0 0.0
        %5689 = vmatpush.msra.mxu0 %v5669
        %5690 = vmatmul.f32.gmra.mxu0 %v5672
        %v5691 = vpop.f32.mrf.mxu0
        %v5692 = vadd.f32 0.0, %v5691
        %5693 = vdwg.mxu0
        %5695 = vrot.lane.b32.xlu0 %v5692, 20
        %v5696 = vpop.permute.xlu0 %5695
        %5698 = vst.msk [vmem:[#allocation2] sm:$0xff] %vm2130, %v5696
        %5699 = vrot.lane.b32.xlu0 %v5204, 104
        %v5700 = vpop.permute.xlu0 %5699
        %5701 = vrot.lane.b32.xlu0 %v5195, 72
        %v5702 = vpop.permute.xlu0 %5701
        %v5703 = vsel %vm1563, %v5700, 0
        %v5705 = vsel %vm1563, %v5702, 0
        %5707 = vmatpush.xpose.msra.mxu0 0.0
        %5708 = vmatpush.xpose.msra.mxu0 0.0
        %5709 = vmatpush.xpose.msra.mxu0 0.0
        %5710 = vmatpush.xpose.msra.mxu0 0.0
        %5711 = vmatpush.xpose.msra.mxu0 0.0
        %5712 = vmatpush.xpose.msra.mxu0 0.0
        %5713 = vmatpush.xpose.msra.mxu0 0.0
        %5714 = vmatpush.xpose.msra.mxu0 0.0
        %5715 = vmatpush.xpose.msra.mxu0 0.0
        %5716 = vmatpush.xpose.msra.mxu0 0.0
        %5717 = vmatpush.xpose.msra.mxu0 0.0
        %5718 = vmatpush.xpose.msra.mxu0 0.0
        %5719 = vmatpush.xpose.msra.mxu0 0.0
        %5720 = vmatpush.xpose.msra.mxu0 0.0
        %5721 = vmatpush.xpose.msra.mxu0 0.0
        %5722 = vmatpush.xpose.msra.mxu0 %v5705
        %5723 = vmatmul.f32.gmra.mxu0 %v5703
        %v5724 = vpop.f32.mrf.mxu0
        %v5725 = vadd.f32 %v3481, %v5724
        %5726 = vdwg.mxu0
        %v5727 = vsel %vm1660, %v5725, -inf
        %5728 = vmax.xlane.f32.xlu0 %v5727
        %v5729 = vpop.xlane.xlu0 %5728
        %v5730 = vsub.f32 %v5725, %v5729
        %v5731 = vmul.f32 %v5730, 1.442695
        %v5732 = vpow.pop %v5731
        %v5733 = vsel %vm1660, %v5732, 0.0
        %5734 = vadd.xlane.f32.xlu0 %v5733
        %v5735 = vpop.xlane.xlu0 %5734
        %v5736 = vrcp.pop %v5735
        %v5737 = vmul.f32 %v5735, %v5736
        %v5738 = vsub.f32 1.0, %v5737
        %v5739 = vmul.f32 %v5736, %v5738
        %v5740 = vadd.f32 %v5736, %v5739
        %vm5741 = vweird.f32 %v5735
        %vm5742 = vweird.f32 %v5736
        %vm5743 = vmor %vm5741, %vm5742
        %v5744 = vsel %vm5743, %v5736, %v5740
        %v5745 = vand.u32 2147483647, %v5735
        %vm5746 = vcmp.eq.f32.partialorder %v5745, 8.507059e+37
        %v5747 = vand.u32 %v5735, 2147483648
        %v5748 = vor.u32 1.1754944e-38, %v5747
        %v5749 = vsel %vm5746, %v5748, %v5744
        %v5750 = vmul.f32 %v5732, %v5749
        %5751 = vrot.lane.b32.xlu0 %v5195, 40
        %v5752 = vpop.permute.xlu0 %5751
        %v5755 = vsel %vm1660, %v5750, 0
        %5757 = vmatpush.msra.mxu0 0.0
        %5758 = vmatpush.msra.mxu0 0.0
        %5759 = vmatpush.msra.mxu0 0.0
        %5760 = vmatpush.msra.mxu0 0.0
        %5761 = vmatpush.msra.mxu0 0.0
        %5762 = vmatpush.msra.mxu0 0.0
        %5763 = vmatpush.msra.mxu0 0.0
        %5764 = vmatpush.msra.mxu0 0.0
        %5765 = vmatpush.msra.mxu0 0.0
        %5766 = vmatpush.msra.mxu0 0.0
        %5767 = vmatpush.msra.mxu0 0.0
        %5768 = vmatpush.msra.mxu0 0.0
        %5769 = vmatpush.msra.mxu0 0.0
        %5770 = vmatpush.msra.mxu0 0.0
        %5771 = vmatpush.msra.mxu0 0.0
        %5772 = vmatpush.msra.mxu0 %v5752
        %5773 = vmatmul.f32.gmra.mxu0 %v5755
        %v5774 = vpop.f32.mrf.mxu0
        %v5775 = vadd.f32 0.0, %v5774
        %5776 = vdwg.mxu0
        %5778 = vrot.lane.b32.xlu0 %v5775, 24
        %v5779 = vpop.permute.xlu0 %5778
        %5781 = vst.msk [vmem:[#allocation2] sm:$0xff] %vm2214, %v5779
        %5782 = vrot.lane.b32.xlu0 %v5204, 100
        %v5783 = vpop.permute.xlu0 %5782
        %5784 = vrot.lane.b32.xlu0 %v5195, 68
        %v5785 = vpop.permute.xlu0 %5784
        %v5786 = vsel %vm1563, %v5783, 0
        %v5788 = vsel %vm1563, %v5785, 0
        %5790 = vmatpush.xpose.msra.mxu0 0.0
        %5791 = vmatpush.xpose.msra.mxu0 0.0
        %5792 = vmatpush.xpose.msra.mxu0 0.0
        %5793 = vmatpush.xpose.msra.mxu0 0.0
        %5794 = vmatpush.xpose.msra.mxu0 0.0
        %5795 = vmatpush.xpose.msra.mxu0 0.0
        %5796 = vmatpush.xpose.msra.mxu0 0.0
        %5797 = vmatpush.xpose.msra.mxu0 0.0
        %5798 = vmatpush.xpose.msra.mxu0 0.0
        %5799 = vmatpush.xpose.msra.mxu0 0.0
        %5800 = vmatpush.xpose.msra.mxu0 0.0
        %5801 = vmatpush.xpose.msra.mxu0 0.0
        %5802 = vmatpush.xpose.msra.mxu0 0.0
        %5803 = vmatpush.xpose.msra.mxu0 0.0
        %5804 = vmatpush.xpose.msra.mxu0 0.0
        %5805 = vmatpush.xpose.msra.mxu0 %v5788
        %5806 = vmatmul.f32.gmra.mxu0 %v5786
        %v5807 = vpop.f32.mrf.mxu0
        %v5808 = vadd.f32 %v3481, %v5807
        %5809 = vdwg.mxu0
        %v5810 = vsel %vm1660, %v5808, -inf
        %5811 = vmax.xlane.f32.xlu0 %v5810
        %v5812 = vpop.xlane.xlu0 %5811
        %v5813 = vsub.f32 %v5808, %v5812
        %v5814 = vmul.f32 %v5813, 1.442695
        %v5815 = vpow.pop %v5814
        %v5816 = vsel %vm1660, %v5815, 0.0
        %5817 = vadd.xlane.f32.xlu0 %v5816
        %v5818 = vpop.xlane.xlu0 %5817
        %v5819 = vrcp.pop %v5818
        %v5820 = vmul.f32 %v5818, %v5819
        %v5821 = vsub.f32 1.0, %v5820
        %v5822 = vmul.f32 %v5819, %v5821
        %v5823 = vadd.f32 %v5819, %v5822
        %vm5824 = vweird.f32 %v5818
        %vm5825 = vweird.f32 %v5819
        %vm5826 = vmor %vm5824, %vm5825
        %v5827 = vsel %vm5826, %v5819, %v5823
        %v5828 = vand.u32 2147483647, %v5818
        %vm5829 = vcmp.eq.f32.partialorder %v5828, 8.507059e+37
        %v5830 = vand.u32 %v5818, 2147483648
        %v5831 = vor.u32 1.1754944e-38, %v5830
        %v5832 = vsel %vm5829, %v5831, %v5827
        %v5833 = vmul.f32 %v5815, %v5832
        %5834 = vrot.lane.b32.xlu0 %v5195, 36
        %v5835 = vpop.permute.xlu0 %5834
        %v5838 = vsel %vm1660, %v5833, 0
        %5840 = vmatpush.msra.mxu0 0.0
        %5841 = vmatpush.msra.mxu0 0.0
        %5842 = vmatpush.msra.mxu0 0.0
        %5843 = vmatpush.msra.mxu0 0.0
        %5844 = vmatpush.msra.mxu0 0.0
        %5845 = vmatpush.msra.mxu0 0.0
        %5846 = vmatpush.msra.mxu0 0.0
        %5847 = vmatpush.msra.mxu0 0.0
        %5848 = vmatpush.msra.mxu0 0.0
        %5849 = vmatpush.msra.mxu0 0.0
        %5850 = vmatpush.msra.mxu0 0.0
        %5851 = vmatpush.msra.mxu0 0.0
        %5852 = vmatpush.msra.mxu0 0.0
        %5853 = vmatpush.msra.mxu0 0.0
        %5854 = vmatpush.msra.mxu0 0.0
        %5855 = vmatpush.msra.mxu0 %v5835
        %5856 = vmatmul.f32.gmra.mxu0 %v5838
        %v5857 = vpop.f32.mrf.mxu0
        %v5858 = vadd.f32 0.0, %v5857
        %5859 = vdwg.mxu0
        %5861 = vrot.lane.b32.xlu0 %v5858, 28
        %v5862 = vpop.permute.xlu0 %5861
        %5864 = vst.msk [vmem:[#allocation2] sm:$0xff] %vm2298, %v5862
        %v5865 = vld [vmem:[#allocation2] sm:$0xff]
        %v5867 = vperm.slane %v5203, 0
        %v5870 = vsel %vm1602, %v5865, 0
        %5872 = vmatpush.msra.mxu0 0.0
        %5873 = vmatpush.msra.mxu0 0.0
        %5874 = vmatpush.msra.mxu0 0.0
        %5875 = vmatpush.msra.mxu0 0.0
        %5876 = vmatpush.msra.mxu0 0.0
        %5877 = vmatpush.msra.mxu0 0.0
        %5878 = vmatpush.msra.mxu0 0.0
        %5879 = vmatpush.msra.mxu0 0.0
        %5880 = vmatpush.msra.mxu0 0.0
        %5881 = vmatpush.msra.mxu0 0.0
        %5882 = vmatpush.msra.mxu0 0.0
        %5883 = vmatpush.msra.mxu0 0.0
        %5884 = vmatpush.msra.mxu0 %v5201
        %5885 = vmatpush.msra.mxu0 %v5200
        %5886 = vmatpush.msra.mxu0 %v5199
        %5887 = vmatpush.msra.mxu0 %v5198
        %5888 = vmatmul.f32.gmra.mxu0 %v5870
        %v5889 = vpop.f32.mrf.mxu0
        %v5890 = vadd.f32 %v5867, %v5889
        %5891 = vdwg.mxu0
        %v5892 = vadd.f32 %v5163, %v5890
        %s5893 = scalar_lea.vmem %s57, 1
        %v5894 = vld [vmem:[%s5893] sm:$0x1]
        %s5895 = scalar_lea.vmem %s59, 1
        %v5896 = vld [vmem:[%s5895] sm:$0x1]
        %v5897 = vsel %vm1602, %v5892, 0.0
        %5898 = vadd.xlane.f32.xlu0 %v5897
        %v5899 = vpop.xlane.xlu0 %5898
        %v5900 = vmul.f32 %v5899, %v2339
        %v5901 = vsub.f32 %v5892, %v5900
        %v5902 = vmul.f32 %v5901, %v5901
        %v5903 = vsel %vm1602, %v5902, 0.0
        %5904 = vadd.xlane.f32.xlu0 %v5903
        %v5905 = vpop.xlane.xlu0 %5904
        %v5906 = vmul.f32 %v5905, %v2339
        %v5907 = vadd.f32 %v5906, 1e-05
        %v5908 = vrsqrt.pop %v5907
        %v5909 = vmul.f32 %v5908, %v5907
        %v5910 = vmul.f32 %v5909, %v5908
        %v5911 = vmul.f32 0.5, %v5910
        %v5912 = vsub.f32 1.5, %v5911
        %v5913 = vmul.f32 %v5908, %v5912
        %vm5914 = vweird.f32 %v5907
        %vm5915 = vweird.f32 %v5908
        %vm5916 = vmor %vm5914, %vm5915
        %v5917 = vsel %vm5916, %v5908, %v5913
        %v5918 = vmul.f32 %v5901, %v5917
        %v5920 = vperm.slane %v5894, 0
        %v5922 = vmul.f32 %v5918, %v5920
        %v5924 = vperm.slane %v5896, 0
        %v5926 = vadd.f32 %v5922, %v5924
        %s5927 = scalar_lea.vmem [#allocation3], 32
        %v5928 = vld [vmem:[%s5927] sm:$0xff]
        %v5929 = vld [vmem:[%s5927 + $0x8] sm:$0xff]
        %v5930 = vld [vmem:[%s5927 + $0x10] sm:$0xff]
        %v5931 = vld [vmem:[%s5927 + $0x18] sm:$0xff]
        %s5932 = scalar_lea.vmem %s63, 1
        %v5933 = vld [vmem:[%s5932] sm:$0x1]
        %v5935 = vperm.slane %v5933, 0
        %v5938 = vsel %vm1602, %v5926, 0
        %5940 = vmatpush.msra.mxu0 0.0
        %5941 = vmatpush.msra.mxu0 0.0
        %5942 = vmatpush.msra.mxu0 0.0
        %5943 = vmatpush.msra.mxu0 0.0
        %5944 = vmatpush.msra.mxu0 0.0
        %5945 = vmatpush.msra.mxu0 0.0
        %5946 = vmatpush.msra.mxu0 0.0
        %5947 = vmatpush.msra.mxu0 0.0
        %5948 = vmatpush.msra.mxu0 0.0
        %5949 = vmatpush.msra.mxu0 0.0
        %5950 = vmatpush.msra.mxu0 0.0
        %5951 = vmatpush.msra.mxu0 0.0
        %5952 = vmatpush.msra.mxu0 %v5931
        %5953 = vmatpush.msra.mxu0 %v5930
        %5954 = vmatpush.msra.mxu0 %v5929
        %5955 = vmatpush.msra.mxu0 %v5928
        %5956 = vmatmul.f32.gmra.mxu0 %v5938
        %v5957 = vpop.f32.mrf.mxu0
        %v5958 = vadd.f32 %v5935, %v5957
        %5959 = vdwg.mxu0
        %s5960 = scalar_lea.vmem [#allocation5], 32
        %v5961 = vld [vmem:[%s5960] sm:$0xff]
        %v5962 = vld [vmem:[%s5960 + $0x8] sm:$0xff]
        %v5963 = vld [vmem:[%s5960 + $0x10] sm:$0xff]
        %v5964 = vld [vmem:[%s5960 + $0x18] sm:$0xff]
        %s5965 = scalar_lea.vmem %s67, 1
        %v5966 = vld [vmem:[%s5965] sm:$0x1]
        %v5968 = vperm.slane %v5966, 0
        %5970 = vmatpush.msra.mxu0 0.0
        %5971 = vmatpush.msra.mxu0 0.0
        %5972 = vmatpush.msra.mxu0 0.0
        %5973 = vmatpush.msra.mxu0 0.0
        %5974 = vmatpush.msra.mxu0 0.0
        %5975 = vmatpush.msra.mxu0 0.0
        %5976 = vmatpush.msra.mxu0 0.0
        %5977 = vmatpush.msra.mxu0 0.0
        %5978 = vmatpush.msra.mxu0 0.0
        %5979 = vmatpush.msra.mxu0 0.0
        %5980 = vmatpush.msra.mxu0 0.0
        %5981 = vmatpush.msra.mxu0 0.0
        %5982 = vmatpush.msra.mxu0 %v5964
        %5983 = vmatpush.msra.mxu0 %v5963
        %5984 = vmatpush.msra.mxu0 %v5962
        %5985 = vmatpush.msra.mxu0 %v5961
        %5986 = vmatmul.f32.gmra.mxu0 %v4279
        %v5987 = vpop.f32.mrf.mxu0
        %v5988 = vadd.f32 %v5968, %v5987
        %5989 = vdwg.mxu0
        %s5990 = scalar_lea.vmem [#allocation7], 32
        %v5991 = vld [vmem:[%s5990] sm:$0xff]
        %v5992 = vld [vmem:[%s5990 + $0x8] sm:$0xff]
        %v5993 = vld [vmem:[%s5990 + $0x10] sm:$0xff]
        %v5994 = vld [vmem:[%s5990 + $0x18] sm:$0xff]
        %s5995 = scalar_lea.vmem %s71, 1
        %v5996 = vld [vmem:[%s5995] sm:$0x1]
        %v5997 = vmul.f32 %v5958, 0.5
        %v5999 = vsel %vm1563, %v5997, 0
        %v6002 = vsel %vm1563, %v5988, 0
        %6004 = vmatpush.xpose.msra.mxu0 0.0
        %6005 = vmatpush.xpose.msra.mxu0 0.0
        %6006 = vmatpush.xpose.msra.mxu0 0.0
        %6007 = vmatpush.xpose.msra.mxu0 0.0
        %6008 = vmatpush.xpose.msra.mxu0 0.0
        %6009 = vmatpush.xpose.msra.mxu0 0.0
        %6010 = vmatpush.xpose.msra.mxu0 0.0
        %6011 = vmatpush.xpose.msra.mxu0 0.0
        %6012 = vmatpush.xpose.msra.mxu0 0.0
        %6013 = vmatpush.xpose.msra.mxu0 0.0
        %6014 = vmatpush.xpose.msra.mxu0 0.0
        %6015 = vmatpush.xpose.msra.mxu0 0.0
        %6016 = vmatpush.xpose.msra.mxu0 0.0
        %6017 = vmatpush.xpose.msra.mxu0 0.0
        %6018 = vmatpush.xpose.msra.mxu0 0.0
        %6019 = vmatpush.xpose.msra.mxu0 %v6002
        %6020 = vmatmul.f32.gmra.mxu0 %v5999
        %v6021 = vpop.f32.mrf.mxu0
        %v6022 = vadd.f32 0.0, %v6021
        %6023 = vdwg.mxu0
        %v6024 = vsel %vm1660, %v6022, -inf
        %6025 = vmax.xlane.f32.xlu0 %v6024
        %v6026 = vpop.xlane.xlu0 %6025
        %v6027 = vsub.f32 %v6022, %v6026
        %v6028 = vmul.f32 %v6027, 1.442695
        %v6029 = vpow.pop %v6028
        %v6030 = vsel %vm1660, %v6029, 0.0
        %6031 = vadd.xlane.f32.xlu0 %v6030
        %v6032 = vpop.xlane.xlu0 %6031
        %v6033 = vrcp.pop %v6032
        %v6034 = vmul.f32 %v6032, %v6033
        %v6035 = vsub.f32 1.0, %v6034
        %v6036 = vmul.f32 %v6033, %v6035
        %v6037 = vadd.f32 %v6033, %v6036
        %vm6038 = vweird.f32 %v6032
        %vm6039 = vweird.f32 %v6033
        %vm6040 = vmor %vm6038, %vm6039
        %v6041 = vsel %vm6040, %v6033, %v6037
        %v6042 = vand.u32 2147483647, %v6032
        %vm6043 = vcmp.eq.f32.partialorder %v6042, 8.507059e+37
        %v6044 = vand.u32 %v6032, 2147483648
        %v6045 = vor.u32 1.1754944e-38, %v6044
        %v6046 = vsel %vm6043, %v6045, %v6041
        %v6047 = vmul.f32 %v6029, %v6046
        %6048 = vrot.lane.b32.xlu0 %v5988, 96
        %v6049 = vpop.permute.xlu0 %6048
        %v6052 = vsel %vm1660, %v6047, 0
        %6054 = vmatpush.msra.mxu0 0.0
        %6055 = vmatpush.msra.mxu0 0.0
        %6056 = vmatpush.msra.mxu0 0.0
        %6057 = vmatpush.msra.mxu0 0.0
        %6058 = vmatpush.msra.mxu0 0.0
        %6059 = vmatpush.msra.mxu0 0.0
        %6060 = vmatpush.msra.mxu0 0.0
        %6061 = vmatpush.msra.mxu0 0.0
        %6062 = vmatpush.msra.mxu0 0.0
        %6063 = vmatpush.msra.mxu0 0.0
        %6064 = vmatpush.msra.mxu0 0.0
        %6065 = vmatpush.msra.mxu0 0.0
        %6066 = vmatpush.msra.mxu0 0.0
        %6067 = vmatpush.msra.mxu0 0.0
        %6068 = vmatpush.msra.mxu0 0.0
        %6069 = vmatpush.msra.mxu0 %v6049
        %6070 = vmatmul.f32.gmra.mxu0 %v6052
        %v6071 = vpop.f32.mrf.mxu0
        %v6072 = vadd.f32 0.0, %v6071
        %6073 = vdwg.mxu0
        %6074 = vst.msk [vmem:[#allocation2] sm:$0xff] %vm1563, %v6072
        %6075 = vrot.lane.b32.xlu0 %v5997, 124
        %v6076 = vpop.permute.xlu0 %6075
        %6077 = vrot.lane.b32.xlu0 %v5988, 124
        %v6078 = vpop.permute.xlu0 %6077
        %v6079 = vsel %vm1563, %v6076, 0
        %v6081 = vsel %vm1563, %v6078, 0
        %6083 = vmatpush.xpose.msra.mxu0 0.0
        %6084 = vmatpush.xpose.msra.mxu0 0.0
        %6085 = vmatpush.xpose.msra.mxu0 0.0
        %6086 = vmatpush.xpose.msra.mxu0 0.0
        %6087 = vmatpush.xpose.msra.mxu0 0.0
        %6088 = vmatpush.xpose.msra.mxu0 0.0
        %6089 = vmatpush.xpose.msra.mxu0 0.0
        %6090 = vmatpush.xpose.msra.mxu0 0.0
        %6091 = vmatpush.xpose.msra.mxu0 0.0
        %6092 = vmatpush.xpose.msra.mxu0 0.0
        %6093 = vmatpush.xpose.msra.mxu0 0.0
        %6094 = vmatpush.xpose.msra.mxu0 0.0
        %6095 = vmatpush.xpose.msra.mxu0 0.0
        %6096 = vmatpush.xpose.msra.mxu0 0.0
        %6097 = vmatpush.xpose.msra.mxu0 0.0
        %6098 = vmatpush.xpose.msra.mxu0 %v6081
        %6099 = vmatmul.f32.gmra.mxu0 %v6079
        %v6100 = vpop.f32.mrf.mxu0
        %v6101 = vadd.f32 0.0, %v6100
        %6102 = vdwg.mxu0
        %v6103 = vsel %vm1660, %v6101, -inf
        %6104 = vmax.xlane.f32.xlu0 %v6103
        %v6105 = vpop.xlane.xlu0 %6104
        %v6106 = vsub.f32 %v6101, %v6105
        %v6107 = vmul.f32 %v6106, 1.442695
        %v6108 = vpow.pop %v6107
        %v6109 = vsel %vm1660, %v6108, 0.0
        %6110 = vadd.xlane.f32.xlu0 %v6109
        %v6111 = vpop.xlane.xlu0 %6110
        %v6112 = vrcp.pop %v6111
        %v6113 = vmul.f32 %v6111, %v6112
        %v6114 = vsub.f32 1.0, %v6113
        %v6115 = vmul.f32 %v6112, %v6114
        %v6116 = vadd.f32 %v6112, %v6115
        %vm6117 = vweird.f32 %v6111
        %vm6118 = vweird.f32 %v6112
        %vm6119 = vmor %vm6117, %vm6118
        %v6120 = vsel %vm6119, %v6112, %v6116
        %v6121 = vand.u32 2147483647, %v6111
        %vm6122 = vcmp.eq.f32.partialorder %v6121, 8.507059e+37
        %v6123 = vand.u32 %v6111, 2147483648
        %v6124 = vor.u32 1.1754944e-38, %v6123
        %v6125 = vsel %vm6122, %v6124, %v6120
        %v6126 = vmul.f32 %v6108, %v6125
        %6127 = vrot.lane.b32.xlu0 %v5988, 92
        %v6128 = vpop.permute.xlu0 %6127
        %v6131 = vsel %vm1660, %v6126, 0
        %6133 = vmatpush.msra.mxu0 0.0
        %6134 = vmatpush.msra.mxu0 0.0
        %6135 = vmatpush.msra.mxu0 0.0
        %6136 = vmatpush.msra.mxu0 0.0
        %6137 = vmatpush.msra.mxu0 0.0
        %6138 = vmatpush.msra.mxu0 0.0
        %6139 = vmatpush.msra.mxu0 0.0
        %6140 = vmatpush.msra.mxu0 0.0
        %6141 = vmatpush.msra.mxu0 0.0
        %6142 = vmatpush.msra.mxu0 0.0
        %6143 = vmatpush.msra.mxu0 0.0
        %6144 = vmatpush.msra.mxu0 0.0
        %6145 = vmatpush.msra.mxu0 0.0
        %6146 = vmatpush.msra.mxu0 0.0
        %6147 = vmatpush.msra.mxu0 0.0
        %6148 = vmatpush.msra.mxu0 %v6128
        %6149 = vmatmul.f32.gmra.mxu0 %v6131
        %v6150 = vpop.f32.mrf.mxu0
        %v6151 = vadd.f32 0.0, %v6150
        %6152 = vdwg.mxu0
        %6154 = vrot.lane.b32.xlu0 %v6151, 4
        %v6155 = vpop.permute.xlu0 %6154
        %6157 = vst.msk [vmem:[#allocation2] sm:$0xff] %vm1794, %v6155
        %6158 = vrot.lane.b32.xlu0 %v5997, 120
        %v6159 = vpop.permute.xlu0 %6158
        %6160 = vrot.lane.b32.xlu0 %v5988, 120
        %v6161 = vpop.permute.xlu0 %6160
        %v6162 = vsel %vm1563, %v6159, 0
        %v6164 = vsel %vm1563, %v6161, 0
        %6166 = vmatpush.xpose.msra.mxu0 0.0
        %6167 = vmatpush.xpose.msra.mxu0 0.0
        %6168 = vmatpush.xpose.msra.mxu0 0.0
        %6169 = vmatpush.xpose.msra.mxu0 0.0
        %6170 = vmatpush.xpose.msra.mxu0 0.0
        %6171 = vmatpush.xpose.msra.mxu0 0.0
        %6172 = vmatpush.xpose.msra.mxu0 0.0
        %6173 = vmatpush.xpose.msra.mxu0 0.0
        %6174 = vmatpush.xpose.msra.mxu0 0.0
        %6175 = vmatpush.xpose.msra.mxu0 0.0
        %6176 = vmatpush.xpose.msra.mxu0 0.0
        %6177 = vmatpush.xpose.msra.mxu0 0.0
        %6178 = vmatpush.xpose.msra.mxu0 0.0
        %6179 = vmatpush.xpose.msra.mxu0 0.0
        %6180 = vmatpush.xpose.msra.mxu0 0.0
        %6181 = vmatpush.xpose.msra.mxu0 %v6164
        %6182 = vmatmul.f32.gmra.mxu0 %v6162
        %v6183 = vpop.f32.mrf.mxu0
        %v6184 = vadd.f32 0.0, %v6183
        %6185 = vdwg.mxu0
        %v6186 = vsel %vm1660, %v6184, -inf
        %6187 = vmax.xlane.f32.xlu0 %v6186
        %v6188 = vpop.xlane.xlu0 %6187
        %v6189 = vsub.f32 %v6184, %v6188
        %v6190 = vmul.f32 %v6189, 1.442695
        %v6191 = vpow.pop %v6190
        %v6192 = vsel %vm1660, %v6191, 0.0
        %6193 = vadd.xlane.f32.xlu0 %v6192
        %v6194 = vpop.xlane.xlu0 %6193
        %v6195 = vrcp.pop %v6194
        %v6196 = vmul.f32 %v6194, %v6195
        %v6197 = vsub.f32 1.0, %v6196
        %v6198 = vmul.f32 %v6195, %v6197
        %v6199 = vadd.f32 %v6195, %v6198
        %vm6200 = vweird.f32 %v6194
        %vm6201 = vweird.f32 %v6195
        %vm6202 = vmor %vm6200, %vm6201
        %v6203 = vsel %vm6202, %v6195, %v6199
        %v6204 = vand.u32 2147483647, %v6194
        %vm6205 = vcmp.eq.f32.partialorder %v6204, 8.507059e+37
        %v6206 = vand.u32 %v6194, 2147483648
        %v6207 = vor.u32 1.1754944e-38, %v6206
        %v6208 = vsel %vm6205, %v6207, %v6203
        %v6209 = vmul.f32 %v6191, %v6208
        %6210 = vrot.lane.b32.xlu0 %v5988, 88
        %v6211 = vpop.permute.xlu0 %6210
        %v6214 = vsel %vm1660, %v6209, 0
        %6216 = vmatpush.msra.mxu0 0.0
        %6217 = vmatpush.msra.mxu0 0.0
        %6218 = vmatpush.msra.mxu0 0.0
        %6219 = vmatpush.msra.mxu0 0.0
        %6220 = vmatpush.msra.mxu0 0.0
        %6221 = vmatpush.msra.mxu0 0.0
        %6222 = vmatpush.msra.mxu0 0.0
        %6223 = vmatpush.msra.mxu0 0.0
        %6224 = vmatpush.msra.mxu0 0.0
        %6225 = vmatpush.msra.mxu0 0.0
        %6226 = vmatpush.msra.mxu0 0.0
        %6227 = vmatpush.msra.mxu0 0.0
        %6228 = vmatpush.msra.mxu0 0.0
        %6229 = vmatpush.msra.mxu0 0.0
        %6230 = vmatpush.msra.mxu0 0.0
        %6231 = vmatpush.msra.mxu0 %v6211
        %6232 = vmatmul.f32.gmra.mxu0 %v6214
        %v6233 = vpop.f32.mrf.mxu0
        %v6234 = vadd.f32 0.0, %v6233
        %6235 = vdwg.mxu0
        %6237 = vrot.lane.b32.xlu0 %v6234, 8
        %v6238 = vpop.permute.xlu0 %6237
        %6240 = vst.msk [vmem:[#allocation2] sm:$0xff] %vm1878, %v6238
        %6241 = vrot.lane.b32.xlu0 %v5997, 116
        %v6242 = vpop.permute.xlu0 %6241
        %6243 = vrot.lane.b32.xlu0 %v5988, 116
        %v6244 = vpop.permute.xlu0 %6243
        %v6245 = vsel %vm1563, %v6242, 0
        %v6247 = vsel %vm1563, %v6244, 0
        %6249 = vmatpush.xpose.msra.mxu0 0.0
        %6250 = vmatpush.xpose.msra.mxu0 0.0
        %6251 = vmatpush.xpose.msra.mxu0 0.0
        %6252 = vmatpush.xpose.msra.mxu0 0.0
        %6253 = vmatpush.xpose.msra.mxu0 0.0
        %6254 = vmatpush.xpose.msra.mxu0 0.0
        %6255 = vmatpush.xpose.msra.mxu0 0.0
        %6256 = vmatpush.xpose.msra.mxu0 0.0
        %6257 = vmatpush.xpose.msra.mxu0 0.0
        %6258 = vmatpush.xpose.msra.mxu0 0.0
        %6259 = vmatpush.xpose.msra.mxu0 0.0
        %6260 = vmatpush.xpose.msra.mxu0 0.0
        %6261 = vmatpush.xpose.msra.mxu0 0.0
        %6262 = vmatpush.xpose.msra.mxu0 0.0
        %6263 = vmatpush.xpose.msra.mxu0 0.0
        %6264 = vmatpush.xpose.msra.mxu0 %v6247
        %6265 = vmatmul.f32.gmra.mxu0 %v6245
        %v6266 = vpop.f32.mrf.mxu0
        %v6267 = vadd.f32 0.0, %v6266
        %6268 = vdwg.mxu0
        %v6269 = vsel %vm1660, %v6267, -inf
        %6270 = vmax.xlane.f32.xlu0 %v6269
        %v6271 = vpop.xlane.xlu0 %6270
        %v6272 = vsub.f32 %v6267, %v6271
        %v6273 = vmul.f32 %v6272, 1.442695
        %v6274 = vpow.pop %v6273
        %v6275 = vsel %vm1660, %v6274, 0.0
        %6276 = vadd.xlane.f32.xlu0 %v6275
        %v6277 = vpop.xlane.xlu0 %6276
        %v6278 = vrcp.pop %v6277
        %v6279 = vmul.f32 %v6277, %v6278
        %v6280 = vsub.f32 1.0, %v6279
        %v6281 = vmul.f32 %v6278, %v6280
        %v6282 = vadd.f32 %v6278, %v6281
        %vm6283 = vweird.f32 %v6277
        %vm6284 = vweird.f32 %v6278
        %vm6285 = vmor %vm6283, %vm6284
        %v6286 = vsel %vm6285, %v6278, %v6282
        %v6287 = vand.u32 2147483647, %v6277
        %vm6288 = vcmp.eq.f32.partialorder %v6287, 8.507059e+37
        %v6289 = vand.u32 %v6277, 2147483648
        %v6290 = vor.u32 1.1754944e-38, %v6289
        %v6291 = vsel %vm6288, %v6290, %v6286
        %v6292 = vmul.f32 %v6274, %v6291
        %6293 = vrot.lane.b32.xlu0 %v5988, 84
        %v6294 = vpop.permute.xlu0 %6293
        %v6297 = vsel %vm1660, %v6292, 0
        %6299 = vmatpush.msra.mxu0 0.0
        %6300 = vmatpush.msra.mxu0 0.0
        %6301 = vmatpush.msra.mxu0 0.0
        %6302 = vmatpush.msra.mxu0 0.0
        %6303 = vmatpush.msra.mxu0 0.0
        %6304 = vmatpush.msra.mxu0 0.0
        %6305 = vmatpush.msra.mxu0 0.0
        %6306 = vmatpush.msra.mxu0 0.0
        %6307 = vmatpush.msra.mxu0 0.0
        %6308 = vmatpush.msra.mxu0 0.0
        %6309 = vmatpush.msra.mxu0 0.0
        %6310 = vmatpush.msra.mxu0 0.0
        %6311 = vmatpush.msra.mxu0 0.0
        %6312 = vmatpush.msra.mxu0 0.0
        %6313 = vmatpush.msra.mxu0 0.0
        %6314 = vmatpush.msra.mxu0 %v6294
        %6315 = vmatmul.f32.gmra.mxu0 %v6297
        %v6316 = vpop.f32.mrf.mxu0
        %v6317 = vadd.f32 0.0, %v6316
        %6318 = vdwg.mxu0
        %6320 = vrot.lane.b32.xlu0 %v6317, 12
        %v6321 = vpop.permute.xlu0 %6320
        %6323 = vst.msk [vmem:[#allocation2] sm:$0xff] %vm1962, %v6321
        %6324 = vrot.lane.b32.xlu0 %v5997, 112
        %v6325 = vpop.permute.xlu0 %6324
        %6326 = vrot.lane.b32.xlu0 %v5988, 112
        %v6327 = vpop.permute.xlu0 %6326
        %v6328 = vsel %vm1563, %v6325, 0
        %v6330 = vsel %vm1563, %v6327, 0
        %6332 = vmatpush.xpose.msra.mxu0 0.0
        %6333 = vmatpush.xpose.msra.mxu0 0.0
        %6334 = vmatpush.xpose.msra.mxu0 0.0
        %6335 = vmatpush.xpose.msra.mxu0 0.0
        %6336 = vmatpush.xpose.msra.mxu0 0.0
        %6337 = vmatpush.xpose.msra.mxu0 0.0
        %6338 = vmatpush.xpose.msra.mxu0 0.0
        %6339 = vmatpush.xpose.msra.mxu0 0.0
        %6340 = vmatpush.xpose.msra.mxu0 0.0
        %6341 = vmatpush.xpose.msra.mxu0 0.0
        %6342 = vmatpush.xpose.msra.mxu0 0.0
        %6343 = vmatpush.xpose.msra.mxu0 0.0
        %6344 = vmatpush.xpose.msra.mxu0 0.0
        %6345 = vmatpush.xpose.msra.mxu0 0.0
        %6346 = vmatpush.xpose.msra.mxu0 0.0
        %6347 = vmatpush.xpose.msra.mxu0 %v6330
        %6348 = vmatmul.f32.gmra.mxu0 %v6328
        %v6349 = vpop.f32.mrf.mxu0
        %v6350 = vadd.f32 0.0, %v6349
        %6351 = vdwg.mxu0
        %v6352 = vsel %vm1660, %v6350, -inf
        %6353 = vmax.xlane.f32.xlu0 %v6352
        %v6354 = vpop.xlane.xlu0 %6353
        %v6355 = vsub.f32 %v6350, %v6354
        %v6356 = vmul.f32 %v6355, 1.442695
        %v6357 = vpow.pop %v6356
        %v6358 = vsel %vm1660, %v6357, 0.0
        %6359 = vadd.xlane.f32.xlu0 %v6358
        %v6360 = vpop.xlane.xlu0 %6359
        %v6361 = vrcp.pop %v6360
        %v6362 = vmul.f32 %v6360, %v6361
        %v6363 = vsub.f32 1.0, %v6362
        %v6364 = vmul.f32 %v6361, %v6363
        %v6365 = vadd.f32 %v6361, %v6364
        %vm6366 = vweird.f32 %v6360
        %vm6367 = vweird.f32 %v6361
        %vm6368 = vmor %vm6366, %vm6367
        %v6369 = vsel %vm6368, %v6361, %v6365
        %v6370 = vand.u32 2147483647, %v6360
        %vm6371 = vcmp.eq.f32.partialorder %v6370, 8.507059e+37
        %v6372 = vand.u32 %v6360, 2147483648
        %v6373 = vor.u32 1.1754944e-38, %v6372
        %v6374 = vsel %vm6371, %v6373, %v6369
        %v6375 = vmul.f32 %v6357, %v6374
        %6376 = vrot.lane.b32.xlu0 %v5988, 80
        %v6377 = vpop.permute.xlu0 %6376
        %v6380 = vsel %vm1660, %v6375, 0
        %6382 = vmatpush.msra.mxu0 0.0
        %6383 = vmatpush.msra.mxu0 0.0
        %6384 = vmatpush.msra.mxu0 0.0
        %6385 = vmatpush.msra.mxu0 0.0
        %6386 = vmatpush.msra.mxu0 0.0
        %6387 = vmatpush.msra.mxu0 0.0
        %6388 = vmatpush.msra.mxu0 0.0
        %6389 = vmatpush.msra.mxu0 0.0
        %6390 = vmatpush.msra.mxu0 0.0
        %6391 = vmatpush.msra.mxu0 0.0
        %6392 = vmatpush.msra.mxu0 0.0
        %6393 = vmatpush.msra.mxu0 0.0
        %6394 = vmatpush.msra.mxu0 0.0
        %6395 = vmatpush.msra.mxu0 0.0
        %6396 = vmatpush.msra.mxu0 0.0
        %6397 = vmatpush.msra.mxu0 %v6377
        %6398 = vmatmul.f32.gmra.mxu0 %v6380
        %v6399 = vpop.f32.mrf.mxu0
        %v6400 = vadd.f32 0.0, %v6399
        %6401 = vdwg.mxu0
        %6403 = vrot.lane.b32.xlu0 %v6400, 16
        %v6404 = vpop.permute.xlu0 %6403
        %6406 = vst.msk [vmem:[#allocation2] sm:$0xff] %vm2046, %v6404
        %6407 = vrot.lane.b32.xlu0 %v5997, 108
        %v6408 = vpop.permute.xlu0 %6407
        %6409 = vrot.lane.b32.xlu0 %v5988, 108
        %v6410 = vpop.permute.xlu0 %6409
        %v6411 = vsel %vm1563, %v6408, 0
        %v6413 = vsel %vm1563, %v6410, 0
        %6415 = vmatpush.xpose.msra.mxu0 0.0
        %6416 = vmatpush.xpose.msra.mxu0 0.0
        %6417 = vmatpush.xpose.msra.mxu0 0.0
        %6418 = vmatpush.xpose.msra.mxu0 0.0
        %6419 = vmatpush.xpose.msra.mxu0 0.0
        %6420 = vmatpush.xpose.msra.mxu0 0.0
        %6421 = vmatpush.xpose.msra.mxu0 0.0
        %6422 = vmatpush.xpose.msra.mxu0 0.0
        %6423 = vmatpush.xpose.msra.mxu0 0.0
        %6424 = vmatpush.xpose.msra.mxu0 0.0
        %6425 = vmatpush.xpose.msra.mxu0 0.0
        %6426 = vmatpush.xpose.msra.mxu0 0.0
        %6427 = vmatpush.xpose.msra.mxu0 0.0
        %6428 = vmatpush.xpose.msra.mxu0 0.0
        %6429 = vmatpush.xpose.msra.mxu0 0.0
        %6430 = vmatpush.xpose.msra.mxu0 %v6413
        %6431 = vmatmul.f32.gmra.mxu0 %v6411
        %v6432 = vpop.f32.mrf.mxu0
        %v6433 = vadd.f32 0.0, %v6432
        %6434 = vdwg.mxu0
        %v6435 = vsel %vm1660, %v6433, -inf
        %6436 = vmax.xlane.f32.xlu0 %v6435
        %v6437 = vpop.xlane.xlu0 %6436
        %v6438 = vsub.f32 %v6433, %v6437
        %v6439 = vmul.f32 %v6438, 1.442695
        %v6440 = vpow.pop %v6439
        %v6441 = vsel %vm1660, %v6440, 0.0
        %6442 = vadd.xlane.f32.xlu0 %v6441
        %v6443 = vpop.xlane.xlu0 %6442
        %v6444 = vrcp.pop %v6443
        %v6445 = vmul.f32 %v6443, %v6444
        %v6446 = vsub.f32 1.0, %v6445
        %v6447 = vmul.f32 %v6444, %v6446
        %v6448 = vadd.f32 %v6444, %v6447
        %vm6449 = vweird.f32 %v6443
        %vm6450 = vweird.f32 %v6444
        %vm6451 = vmor %vm6449, %vm6450
        %v6452 = vsel %vm6451, %v6444, %v6448
        %v6453 = vand.u32 2147483647, %v6443
        %vm6454 = vcmp.eq.f32.partialorder %v6453, 8.507059e+37
        %v6455 = vand.u32 %v6443, 2147483648
        %v6456 = vor.u32 1.1754944e-38, %v6455
        %v6457 = vsel %vm6454, %v6456, %v6452
        %v6458 = vmul.f32 %v6440, %v6457
        %6459 = vrot.lane.b32.xlu0 %v5988, 76
        %v6460 = vpop.permute.xlu0 %6459
        %v6463 = vsel %vm1660, %v6458, 0
        %6465 = vmatpush.msra.mxu0 0.0
        %6466 = vmatpush.msra.mxu0 0.0
        %6467 = vmatpush.msra.mxu0 0.0
        %6468 = vmatpush.msra.mxu0 0.0
        %6469 = vmatpush.msra.mxu0 0.0
        %6470 = vmatpush.msra.mxu0 0.0
        %6471 = vmatpush.msra.mxu0 0.0
        %6472 = vmatpush.msra.mxu0 0.0
        %6473 = vmatpush.msra.mxu0 0.0
        %6474 = vmatpush.msra.mxu0 0.0
        %6475 = vmatpush.msra.mxu0 0.0
        %6476 = vmatpush.msra.mxu0 0.0
        %6477 = vmatpush.msra.mxu0 0.0
        %6478 = vmatpush.msra.mxu0 0.0
        %6479 = vmatpush.msra.mxu0 0.0
        %6480 = vmatpush.msra.mxu0 %v6460
        %6481 = vmatmul.f32.gmra.mxu0 %v6463
        %v6482 = vpop.f32.mrf.mxu0
        %v6483 = vadd.f32 0.0, %v6482
        %6484 = vdwg.mxu0
        %6486 = vrot.lane.b32.xlu0 %v6483, 20
        %v6487 = vpop.permute.xlu0 %6486
        %6489 = vst.msk [vmem:[#allocation2] sm:$0xff] %vm2130, %v6487
        %6490 = vrot.lane.b32.xlu0 %v5997, 104
        %v6491 = vpop.permute.xlu0 %6490
        %6492 = vrot.lane.b32.xlu0 %v5988, 104
        %v6493 = vpop.permute.xlu0 %6492
        %v6494 = vsel %vm1563, %v6491, 0
        %v6496 = vsel %vm1563, %v6493, 0
        %6498 = vmatpush.xpose.msra.mxu0 0.0
        %6499 = vmatpush.xpose.msra.mxu0 0.0
        %6500 = vmatpush.xpose.msra.mxu0 0.0
        %6501 = vmatpush.xpose.msra.mxu0 0.0
        %6502 = vmatpush.xpose.msra.mxu0 0.0
        %6503 = vmatpush.xpose.msra.mxu0 0.0
        %6504 = vmatpush.xpose.msra.mxu0 0.0
        %6505 = vmatpush.xpose.msra.mxu0 0.0
        %6506 = vmatpush.xpose.msra.mxu0 0.0
        %6507 = vmatpush.xpose.msra.mxu0 0.0
        %6508 = vmatpush.xpose.msra.mxu0 0.0
        %6509 = vmatpush.xpose.msra.mxu0 0.0
        %6510 = vmatpush.xpose.msra.mxu0 0.0
        %6511 = vmatpush.xpose.msra.mxu0 0.0
        %6512 = vmatpush.xpose.msra.mxu0 0.0
        %6513 = vmatpush.xpose.msra.mxu0 %v6496
        %6514 = vmatmul.f32.gmra.mxu0 %v6494
        %v6515 = vpop.f32.mrf.mxu0
        %v6516 = vadd.f32 0.0, %v6515
        %6517 = vdwg.mxu0
        %v6518 = vsel %vm1660, %v6516, -inf
        %6519 = vmax.xlane.f32.xlu0 %v6518
        %v6520 = vpop.xlane.xlu0 %6519
        %v6521 = vsub.f32 %v6516, %v6520
        %v6522 = vmul.f32 %v6521, 1.442695
        %v6523 = vpow.pop %v6522
        %v6524 = vsel %vm1660, %v6523, 0.0
        %6525 = vadd.xlane.f32.xlu0 %v6524
        %v6526 = vpop.xlane.xlu0 %6525
        %v6527 = vrcp.pop %v6526
        %v6528 = vmul.f32 %v6526, %v6527
        %v6529 = vsub.f32 1.0, %v6528
        %v6530 = vmul.f32 %v6527, %v6529
        %v6531 = vadd.f32 %v6527, %v6530
        %vm6532 = vweird.f32 %v6526
        %vm6533 = vweird.f32 %v6527
        %vm6534 = vmor %vm6532, %vm6533
        %v6535 = vsel %vm6534, %v6527, %v6531
        %v6536 = vand.u32 2147483647, %v6526
        %vm6537 = vcmp.eq.f32.partialorder %v6536, 8.507059e+37
        %v6538 = vand.u32 %v6526, 2147483648
        %v6539 = vor.u32 1.1754944e-38, %v6538
        %v6540 = vsel %vm6537, %v6539, %v6535
        %v6541 = vmul.f32 %v6523, %v6540
        %6542 = vrot.lane.b32.xlu0 %v5988, 72
        %v6543 = vpop.permute.xlu0 %6542
        %v6546 = vsel %vm1660, %v6541, 0
        %6548 = vmatpush.msra.mxu0 0.0
        %6549 = vmatpush.msra.mxu0 0.0
        %6550 = vmatpush.msra.mxu0 0.0
        %6551 = vmatpush.msra.mxu0 0.0
        %6552 = vmatpush.msra.mxu0 0.0
        %6553 = vmatpush.msra.mxu0 0.0
        %6554 = vmatpush.msra.mxu0 0.0
        %6555 = vmatpush.msra.mxu0 0.0
        %6556 = vmatpush.msra.mxu0 0.0
        %6557 = vmatpush.msra.mxu0 0.0
        %6558 = vmatpush.msra.mxu0 0.0
        %6559 = vmatpush.msra.mxu0 0.0
        %6560 = vmatpush.msra.mxu0 0.0
        %6561 = vmatpush.msra.mxu0 0.0
        %6562 = vmatpush.msra.mxu0 0.0
        %6563 = vmatpush.msra.mxu0 %v6543
        %6564 = vmatmul.f32.gmra.mxu0 %v6546
        %v6565 = vpop.f32.mrf.mxu0
        %v6566 = vadd.f32 0.0, %v6565
        %6567 = vdwg.mxu0
        %6569 = vrot.lane.b32.xlu0 %v6566, 24
        %v6570 = vpop.permute.xlu0 %6569
        %6572 = vst.msk [vmem:[#allocation2] sm:$0xff] %vm2214, %v6570
        %6573 = vrot.lane.b32.xlu0 %v5997, 100
        %v6574 = vpop.permute.xlu0 %6573
        %6575 = vrot.lane.b32.xlu0 %v5988, 100
        %v6576 = vpop.permute.xlu0 %6575
        %v6577 = vsel %vm1563, %v6574, 0
        %v6579 = vsel %vm1563, %v6576, 0
        %6581 = vmatpush.xpose.msra.mxu0 0.0
        %6582 = vmatpush.xpose.msra.mxu0 0.0
        %6583 = vmatpush.xpose.msra.mxu0 0.0
        %6584 = vmatpush.xpose.msra.mxu0 0.0
        %6585 = vmatpush.xpose.msra.mxu0 0.0
        %6586 = vmatpush.xpose.msra.mxu0 0.0
        %6587 = vmatpush.xpose.msra.mxu0 0.0
        %6588 = vmatpush.xpose.msra.mxu0 0.0
        %6589 = vmatpush.xpose.msra.mxu0 0.0
        %6590 = vmatpush.xpose.msra.mxu0 0.0
        %6591 = vmatpush.xpose.msra.mxu0 0.0
        %6592 = vmatpush.xpose.msra.mxu0 0.0
        %6593 = vmatpush.xpose.msra.mxu0 0.0
        %6594 = vmatpush.xpose.msra.mxu0 0.0
        %6595 = vmatpush.xpose.msra.mxu0 0.0
        %6596 = vmatpush.xpose.msra.mxu0 %v6579
        %6597 = vmatmul.f32.gmra.mxu0 %v6577
        %v6598 = vpop.f32.mrf.mxu0
        %v6599 = vadd.f32 0.0, %v6598
        %6600 = vdwg.mxu0
        %v6601 = vsel %vm1660, %v6599, -inf
        %6602 = vmax.xlane.f32.xlu0 %v6601
        %v6603 = vpop.xlane.xlu0 %6602
        %v6604 = vsub.f32 %v6599, %v6603
        %v6605 = vmul.f32 %v6604, 1.442695
        %v6606 = vpow.pop %v6605
        %v6607 = vsel %vm1660, %v6606, 0.0
        %6608 = vadd.xlane.f32.xlu0 %v6607
        %v6609 = vpop.xlane.xlu0 %6608
        %v6610 = vrcp.pop %v6609
        %v6611 = vmul.f32 %v6609, %v6610
        %v6612 = vsub.f32 1.0, %v6611
        %v6613 = vmul.f32 %v6610, %v6612
        %v6614 = vadd.f32 %v6610, %v6613
        %vm6615 = vweird.f32 %v6609
        %vm6616 = vweird.f32 %v6610
        %vm6617 = vmor %vm6615, %vm6616
        %v6618 = vsel %vm6617, %v6610, %v6614
        %v6619 = vand.u32 2147483647, %v6609
        %vm6620 = vcmp.eq.f32.partialorder %v6619, 8.507059e+37
        %v6621 = vand.u32 %v6609, 2147483648
        %v6622 = vor.u32 1.1754944e-38, %v6621
        %v6623 = vsel %vm6620, %v6622, %v6618
        %v6624 = vmul.f32 %v6606, %v6623
        %6625 = vrot.lane.b32.xlu0 %v5988, 68
        %v6626 = vpop.permute.xlu0 %6625
        %v6629 = vsel %vm1660, %v6624, 0
        %6631 = vmatpush.msra.mxu0 0.0
        %6632 = vmatpush.msra.mxu0 0.0
        %6633 = vmatpush.msra.mxu0 0.0
        %6634 = vmatpush.msra.mxu0 0.0
        %6635 = vmatpush.msra.mxu0 0.0
        %6636 = vmatpush.msra.mxu0 0.0
        %6637 = vmatpush.msra.mxu0 0.0
        %6638 = vmatpush.msra.mxu0 0.0
        %6639 = vmatpush.msra.mxu0 0.0
        %6640 = vmatpush.msra.mxu0 0.0
        %6641 = vmatpush.msra.mxu0 0.0
        %6642 = vmatpush.msra.mxu0 0.0
        %6643 = vmatpush.msra.mxu0 0.0
        %6644 = vmatpush.msra.mxu0 0.0
        %6645 = vmatpush.msra.mxu0 0.0
        %6646 = vmatpush.msra.mxu0 %v6626
        %6647 = vmatmul.f32.gmra.mxu0 %v6629
        %v6648 = vpop.f32.mrf.mxu0
        %v6649 = vadd.f32 0.0, %v6648
        %6650 = vdwg.mxu0
        %6652 = vrot.lane.b32.xlu0 %v6649, 28
        %v6653 = vpop.permute.xlu0 %6652
        %6655 = vst.msk [vmem:[#allocation2] sm:$0xff] %vm2298, %v6653
        %v6656 = vld [vmem:[#allocation2] sm:$0xff]
        %v6658 = vperm.slane %v5996, 0
        %v6661 = vsel %vm1602, %v6656, 0
        %6663 = vmatpush.msra.mxu0 0.0
        %6664 = vmatpush.msra.mxu0 0.0
        %6665 = vmatpush.msra.mxu0 0.0
        %6666 = vmatpush.msra.mxu0 0.0
        %6667 = vmatpush.msra.mxu0 0.0
        %6668 = vmatpush.msra.mxu0 0.0
        %6669 = vmatpush.msra.mxu0 0.0
        %6670 = vmatpush.msra.mxu0 0.0
        %6671 = vmatpush.msra.mxu0 0.0
        %6672 = vmatpush.msra.mxu0 0.0
        %6673 = vmatpush.msra.mxu0 0.0
        %6674 = vmatpush.msra.mxu0 0.0
        %6675 = vmatpush.msra.mxu0 %v5994
        %6676 = vmatpush.msra.mxu0 %v5993
        %6677 = vmatpush.msra.mxu0 %v5992
        %6678 = vmatpush.msra.mxu0 %v5991
        %6679 = vmatmul.f32.gmra.mxu0 %v6661
        %v6680 = vpop.f32.mrf.mxu0
        %v6681 = vadd.f32 %v6658, %v6680
        %6682 = vdwg.mxu0
        %v6683 = vadd.f32 %v5926, %v6681
        %s6684 = scalar_lea.vmem %s73, 1
        %v6685 = vld [vmem:[%s6684] sm:$0x1]
        %s6686 = scalar_lea.vmem %s75, 1
        %v6687 = vld [vmem:[%s6686] sm:$0x1]
        %v6688 = vsel %vm1602, %v6683, 0.0
        %6689 = vadd.xlane.f32.xlu0 %v6688
        %v6690 = vpop.xlane.xlu0 %6689
        %v6691 = vmul.f32 %v6690, %v2339
        %v6692 = vsub.f32 %v6683, %v6691
        %v6693 = vmul.f32 %v6692, %v6692
        %v6694 = vsel %vm1602, %v6693, 0.0
        %6695 = vadd.xlane.f32.xlu0 %v6694
        %v6696 = vpop.xlane.xlu0 %6695
        %v6697 = vmul.f32 %v6696, %v2339
        %v6698 = vadd.f32 %v6697, 1e-05
        %v6699 = vrsqrt.pop %v6698
        %v6700 = vmul.f32 %v6699, %v6698
        %v6701 = vmul.f32 %v6700, %v6699
        %v6702 = vmul.f32 0.5, %v6701
        %v6703 = vsub.f32 1.5, %v6702
        %v6704 = vmul.f32 %v6699, %v6703
        %vm6705 = vweird.f32 %v6698
        %vm6706 = vweird.f32 %v6699
        %vm6707 = vmor %vm6705, %vm6706
        %v6708 = vsel %vm6707, %v6699, %v6704
        %v6709 = vmul.f32 %v6692, %v6708
        %v6711 = vperm.slane %v6685, 0
        %v6713 = vmul.f32 %v6709, %v6711
        %v6715 = vperm.slane %v6687, 0
        %v6717 = vadd.f32 %v6713, %v6715
        %s6718 = scalar_lea.vmem [#allocation8], 32
        %v6719 = vld [vmem:[%s6718] sm:$0xff]
        %v6720 = vld [vmem:[%s6718 + $0x8] sm:$0xff]
        %v6721 = vld [vmem:[%s6718 + $0x10] sm:$0xff]
        %v6722 = vld [vmem:[%s6718 + $0x18] sm:$0xff]
        %s6723 = scalar_lea.vmem %s79, 1
        %v6724 = vld [vmem:[%s6723] sm:$0x1]
        %v6726 = vperm.slane %v6724, 0
        %v6729 = vsel %vm1602, %v6717, 0
        %6731 = vmatpush.msra.mxu0 0.0
        %6732 = vmatpush.msra.mxu0 0.0
        %6733 = vmatpush.msra.mxu0 0.0
        %6734 = vmatpush.msra.mxu0 0.0
        %6735 = vmatpush.msra.mxu0 0.0
        %6736 = vmatpush.msra.mxu0 0.0
        %6737 = vmatpush.msra.mxu0 0.0
        %6738 = vmatpush.msra.mxu0 0.0
        %6739 = vmatpush.msra.mxu0 0.0
        %6740 = vmatpush.msra.mxu0 0.0
        %6741 = vmatpush.msra.mxu0 0.0
        %6742 = vmatpush.msra.mxu0 0.0
        %6743 = vmatpush.msra.mxu0 %v6722
        %6744 = vmatpush.msra.mxu0 %v6721
        %6745 = vmatpush.msra.mxu0 %v6720
        %6746 = vmatpush.msra.mxu0 %v6719
        %6747 = vmatmul.f32.gmra.mxu0 %v6729
        %v6748 = vpop.f32.mrf.mxu0
        %v6749 = vadd.f32 %v6726, %v6748
        %6750 = vdwg.mxu0
        %v6751 = vmul.f32 %v6749, 0.5
        %v6752 = vmul.f32 %v6749, 0.70710677
        %vm6753 = vcmp.lt.f32.partialorder %v6752, 0.0
        %v6754 = vsel %vm6753, -1.0, 1.0
        %v6755 = vand.u32 2147483647, %v6752
        %v6756 = vmul.f32 %v6755, 0.3275911
        %v6757 = vadd.f32 %v6756, 1.0
        %v6758 = vrcp.pop %v6757
        %v6759 = vmul.f32 %v6757, %v6758
        %v6760 = vsub.f32 1.0, %v6759
        %v6761 = vmul.f32 %v6758, %v6760
        %v6762 = vadd.f32 %v6758, %v6761
        %vm6763 = vweird.f32 %v6757
        %vm6764 = vweird.f32 %v6758
        %vm6765 = vmor %vm6763, %vm6764
        %v6766 = vsel %vm6765, %v6758, %v6762
        %v6767 = vand.u32 2147483647, %v6757
        %vm6768 = vcmp.eq.f32.partialorder %v6767, 8.507059e+37
        %v6769 = vand.u32 %v6757, 2147483648
        %v6770 = vor.u32 1.1754944e-38, %v6769
        %v6771 = vsel %vm6768, %v6770, %v6766
        %v6772 = vmul.f32 1.0, %v6771
        %v6773 = vmul.f32 %v6772, 1.0614054
        %v6774 = vadd.f32 %v6773, -1.4531521
        %v6775 = vmul.f32 %v6774, %v6772
        %v6776 = vadd.f32 %v6775, 1.4214138
        %v6777 = vmul.f32 %v6776, %v6772
        %v6778 = vadd.f32 %v6777, -0.28449672
        %v6779 = vmul.f32 %v6778, %v6772
        %v6780 = vadd.f32 %v6779, 0.2548296
        %v6781 = vmul.f32 %v6780, %v6772
        %v6782 = vsub.f32 0.0, %v6755
        %v6783 = vmul.f32 %v6782, %v6755
        %v6784 = vmul.f32 %v6783, 1.442695
        %v6785 = vpow.pop %v6784
        %v6786 = vmul.f32 %v6781, %v6785
        %v6787 = vsub.f32 1.0, %v6786
        %v6788 = vmul.f32 %v6754, %v6787
        %v6789 = vadd.f32 %v6788, 1.0
        %v6790 = vmul.f32 %v6751, %v6789
        %s6791 = scalar_lea.vmem %s81, 64
        %v6792 = vld [vmem:[%s6791] sm:$0xff]
        %v6793 = vld [vmem:[%s6791 + $0x8] sm:$0xff]
        %v6794 = vld [vmem:[%s6791 + $0x10] sm:$0xff]
        %v6795 = vld [vmem:[%s6791 + $0x18] sm:$0xff]
        %v6796 = vld [vmem:[%s6791 + $0x20] sm:$0xff]
        %v6797 = vld [vmem:[%s6791 + $0x28] sm:$0xff]
        %v6798 = vld [vmem:[%s6791 + $0x30] sm:$0xff]
        %v6799 = vld [vmem:[%s6791 + $0x38] sm:$0xff]
        %s6800 = scalar_lea.vmem %s83, 1
        %v6801 = vld [vmem:[%s6800] sm:$0x1]
        %v6803 = vperm.slane %v6801, 0
        %v6806 = vsel %vm2450, %v6790, 0
        %6808 = vmatpush.msra.mxu0 0.0
        %6809 = vmatpush.msra.mxu0 0.0
        %6810 = vmatpush.msra.mxu0 0.0
        %6811 = vmatpush.msra.mxu0 0.0
        %6812 = vmatpush.msra.mxu0 0.0
        %6813 = vmatpush.msra.mxu0 0.0
        %6814 = vmatpush.msra.mxu0 0.0
        %6815 = vmatpush.msra.mxu0 0.0
        %6816 = vmatpush.msra.mxu0 %v6799
        %6817 = vmatpush.msra.mxu0 %v6798
        %6818 = vmatpush.msra.mxu0 %v6797
        %6819 = vmatpush.msra.mxu0 %v6796
        %6820 = vmatpush.msra.mxu0 %v6795
        %6821 = vmatpush.msra.mxu0 %v6794
        %6822 = vmatpush.msra.mxu0 %v6793
        %6823 = vmatpush.msra.mxu0 %v6792
        %6824 = vmatmul.f32.gmra.mxu0 %v6806
        %v6825 = vpop.f32.mrf.mxu0
        %v6826 = vadd.f32 %v6803, %v6825
        %6827 = vdwg.mxu0
        %v6828 = vadd.f32 %v6717, %v6826
        %s6829 = scalar_lea.vmem %s85, 1
        %v6830 = vld [vmem:[%s6829] sm:$0x1]
        %s6831 = scalar_lea.vmem %s87, 1
        %v6832 = vld [vmem:[%s6831] sm:$0x1]
        %v6833 = vsel %vm1602, %v6828, 0.0
        %6834 = vadd.xlane.f32.xlu0 %v6833
        %v6835 = vpop.xlane.xlu0 %6834
        %v6836 = vmul.f32 %v6835, %v2339
        %v6837 = vsub.f32 %v6828, %v6836
        %v6838 = vmul.f32 %v6837, %v6837
        %v6839 = vsel %vm1602, %v6838, 0.0
        %6840 = vadd.xlane.f32.xlu0 %v6839
        %v6841 = vpop.xlane.xlu0 %6840
        %v6842 = vmul.f32 %v6841, %v2339
        %v6843 = vadd.f32 %v6842, 1e-05
        %v6844 = vrsqrt.pop %v6843
        %v6845 = vmul.f32 %v6844, %v6843
        %v6846 = vmul.f32 %v6845, %v6844
        %v6847 = vmul.f32 0.5, %v6846
        %v6848 = vsub.f32 1.5, %v6847
        %v6849 = vmul.f32 %v6844, %v6848
        %vm6850 = vweird.f32 %v6843
        %vm6851 = vweird.f32 %v6844
        %vm6852 = vmor %vm6850, %vm6851
        %v6853 = vsel %vm6852, %v6844, %v6849
        %v6854 = vmul.f32 %v6837, %v6853
        %v6856 = vperm.slane %v6830, 0
        %v6858 = vmul.f32 %v6854, %v6856
        %v6860 = vperm.slane %v6832, 0
        %v6862 = vadd.f32 %v6858, %v6860
        %v6863 = vld [vmem:[#allocation10] sm:$0x1]
        %v6864 = vld [vmem:[#allocation11] sm:$0x1]
        %v6865 = vsel %vm1602, %v6862, 0.0
        %6866 = vadd.xlane.f32.xlu0 %v6865
        %v6867 = vpop.xlane.xlu0 %6866
        %v6868 = vmul.f32 %v6867, %v2339
        %v6869 = vsub.f32 %v6862, %v6868
        %v6870 = vmul.f32 %v6869, %v6869
        %v6871 = vsel %vm1602, %v6870, 0.0
        %6872 = vadd.xlane.f32.xlu0 %v6871
        %v6873 = vpop.xlane.xlu0 %6872
        %v6874 = vmul.f32 %v6873, %v2339
        %v6875 = vadd.f32 %v6874, 1e-05
        %v6876 = vrsqrt.pop %v6875
        %v6877 = vmul.f32 %v6876, %v6875
        %v6878 = vmul.f32 %v6877, %v6876
        %v6879 = vmul.f32 0.5, %v6878
        %v6880 = vsub.f32 1.5, %v6879
        %v6881 = vmul.f32 %v6876, %v6880
        %vm6882 = vweird.f32 %v6875
        %vm6883 = vweird.f32 %v6876
        %vm6884 = vmor %vm6882, %vm6883
        %v6885 = vsel %vm6884, %v6876, %v6881
        %v6886 = vmul.f32 %v6869, %v6885
        %v6888 = vperm.slane %v6863, 0
        %v6890 = vmul.f32 %v6886, %v6888
        %v6892 = vperm.slane %v6864, 0
        %v6894 = vadd.f32 %v6890, %v6892
        %v6895 = vld [vmem:[%s93] sm:$0xff]
        %v6896 = vld [vmem:[%s93 + $0x8] sm:$0xff]
        %v6897 = vld [vmem:[%s93 + $0x10] sm:$0xff]
        %v6898 = vld [vmem:[%s93 + $0x18] sm:$0xff]
        %v6899 = vld [vmem:[#allocation13] sm:$0x1]
        %v6901 = vperm.slane %v6899, 0
        %v6904 = vsel %vm1602, %v6894, 0
        %6906 = vmatpush.msra.mxu0 0.0
        %6907 = vmatpush.msra.mxu0 0.0
        %6908 = vmatpush.msra.mxu0 0.0
        %6909 = vmatpush.msra.mxu0 0.0
        %6910 = vmatpush.msra.mxu0 0.0
        %6911 = vmatpush.msra.mxu0 0.0
        %6912 = vmatpush.msra.mxu0 0.0
        %6913 = vmatpush.msra.mxu0 0.0
        %6914 = vmatpush.msra.mxu0 0.0
        %6915 = vmatpush.msra.mxu0 0.0
        %6916 = vmatpush.msra.mxu0 0.0
        %6917 = vmatpush.msra.mxu0 0.0
        %6918 = vmatpush.msra.mxu0 %v6898
        %6919 = vmatpush.msra.mxu0 %v6897
        %6920 = vmatpush.msra.mxu0 %v6896
        %6921 = vmatpush.msra.mxu0 %v6895
        %6922 = vmatmul.f32.gmra.mxu0 %v6904
        %v6923 = vpop.f32.mrf.mxu0
        %v6924 = vadd.f32 %v6901, %v6923
        %6925 = vdwg.mxu0
        %6926 = vst.msk [vmem:[%s1556] sm:$0xff] %vm1563, %v6924
        %p6927 = scmp.lt.s32.totalorder %s112, 1
        %s6928 = scalar_select %p6927, %s112, 1
        %s6929 = smul.addr %s6928, 8
        %s6930 = scalar_lea.vmem %s97, %s6929
        // Predicated region
        $region241: #{transformer_forward.1} parent=211 // pred_check
          %p6931 = pneg %p1148
        $region242: #{transformer_forward.1} parent=211 // pred_check_branch
          %6933 = sbr.rel (%p6931) target = $region244
        $region243: #{transformer_forward.1} parent=211 // pred_region
          _
        $region244: #{transformer_forward.1} parent=211 // pred_fallthru
          _
      $region212: #{transformer_forward.1} parent=5 // pred_fallthru
        _
      %p6934 = scmp.le.s32.totalorder 2, %s107
      // Predicated region
      $region245: #{transformer_forward.1} parent=5 // pred_check
        %p6935 = pneg %p6934
      $region246: #{transformer_forward.1} parent=5 // pred_check_branch
        %6937 = sbr.rel (%p6935) target = $region248
      $region247: #{transformer_forward.1} parent=5 // pred_region
        %s6938 = ssub.s32 %s107, 2
        // Predicated region
        $region249: #{transformer_forward.1} parent=247 // pred_check
          %p6939 = pneg %p1154
        $region250: #{transformer_forward.1} parent=247 // pred_check_branch
          %6941 = sbr.rel (%p6939) target = $region252
        $region251: #{transformer_forward.1} parent=247 // pred_region
          %p6942 = scmp.lt.s32.totalorder %s113, 1
          %s6943 = scalar_select %p6942, %s113, 1
          %s6944 = smul.addr %s6943, 8
          %s6945 = scalar_lea.vmem %s97, %s6944
        $region252: #{transformer_forward.1} parent=247 // pred_fallthru
          _
      $region248: #{transformer_forward.1} parent=5 // pred_fallthru
        _
    $region6: #{transformer_forward.1} parent=1 // loop_footer
      %s111 = sadd.s32 1, %s107
    $region7: #{transformer_forward.1} parent=1 // loop_footer_branch
      %106 = sbr.rel target = $region3
    $region8: #{transformer_forward.1} parent=1 // loop_exit
      _
    %6946 = vsyncpa [#allocation4], 1
    %s6947 = scalar_lea.sflag [#allocation4], 1
    %6948 = vsyncpa %s6947, 1
    %6949 = vsyncpa [#allocation6], 1
    %6950 = vsyncpa [#allocation9], 1
    %6951 = vsyncpa [#allocation12], 1

</llo_original>
